<compile_context>
chip_gen: v7x
topology: tpu7x:2x2x1
jax: 0.10.0
libtpu: 0.0.40
codegen_flags: <defaults>
</compile_context>

<pallas_src>
import functools
import math

import jax
import jax.numpy as jnp
from jax.experimental import pallas as pl
from jax.experimental.pallas import tpu as pltpu


# ---------------------------------------------------------------------------
# math helpers (shared by kernel and reference)
# ---------------------------------------------------------------------------
def _layernorm(x, g, b, eps=1e-5):
    mu = jnp.mean(x, axis=-1, keepdims=True)
    var = jnp.mean((x - mu) ** 2, axis=-1, keepdims=True)
    return (x - mu) * jax.lax.rsqrt(var + eps) * g + b


_GELU_C = math.sqrt(2.0 / math.pi)


def _gelu_tanh(x):
    # tanh approximation of GELU (tanh lands on the EUP; |err| vs exact erf GELU
    # is ~3e-4, well inside tolerance).
    return 0.5 * x * (1.0 + jnp.tanh(_GELU_C * (x + 0.044715 * x * x * x)))


# ---------------------------------------------------------------------------
# Pallas kernel: one transformer block for a block of Bt batch elements
# ---------------------------------------------------------------------------
def transformer_block_kernel(n_heads,
                             x_ref, bias_ref,
                             wqkv_ref, bqkv_ref, wo_ref,
                             w1_ref, b1_ref, w2_ref,
                             vecs_ref, o_ref):
    Bt, S, H = x_ref.shape
    dk = H // n_heads
    scale = 1.0 / math.sqrt(dk)

    # Merge (Bt, S) into one row axis: all projections / FFN run with M = Bt*S.
    x = x_ref[...].reshape(Bt * S, H)                 # f32
    bias = bias_ref[...]                              # (Bt, S, S) additive mask

    # Packed small vectors: one lane-dense (8, H) tensor.
    bo    = vecs_ref[0:1, :]
    ln1_g = vecs_ref[1:2, :]
    ln1_b = vecs_ref[2:3, :]
    ln2_g = vecs_ref[3:4, :]
    ln2_b = vecs_ref[4:5, :]
    b2    = vecs_ref[5:6, :]

    # ---- input sublayer: x + MultiHeadAttention(LayerNorm(x)) ----
    y = _layernorm(x, ln1_g, ln1_b)
    # Fused Q|K|V projection: one (Bt*S, H) @ (H, 3H) bf16 matmul, f32 accumulate.
    qkv = jnp.dot(y.astype(jnp.bfloat16), wqkv_ref[...],
                  preferred_element_type=jnp.float32) + bqkv_ref[...]
    qkv = qkv.reshape(Bt, S, 3 * H)                   # split leading dim (free)

    attn = jnp.zeros((Bt * S, H), jnp.float32)
    for h in range(n_heads):                          # static, small head loop;
        # each iteration is a Bt-batched dot_general (single leading batch dim).
        q_h = (qkv[:, :, h * dk:(h + 1) * dk] * scale).astype(jnp.bfloat16)
        k_h = qkv[:, :, H + h * dk:H + (h + 1) * dk].astype(jnp.bfloat16)
        v_h = qkv[:, :, 2 * H + h * dk:2 * H + (h + 1) * dk].astype(jnp.bfloat16)

        s = jnp.einsum('bqd,bkd->bqk', q_h, k_h,
                       preferred_element_type=jnp.float32) + bias   # (Bt,S,S)
        m = jnp.max(s, axis=-1, keepdims=True)
        e = jnp.exp(s - m)
        l = jnp.sum(e, axis=-1, keepdims=True)
        p = e * pl.reciprocal(l, approx=True)                       # EUP recip

        ctx = jnp.einsum('bqk,bkd->bqd', p.astype(jnp.bfloat16), v_h,
                         preferred_element_type=jnp.float32)        # (Bt,S,dk)
        # Per-head output projection accumulation == concat(heads) @ wo,
        # without the lane-concatenate.
        attn = attn + jnp.dot(ctx.reshape(Bt * S, dk).astype(jnp.bfloat16),
                              wo_ref[h * dk:(h + 1) * dk, :],
                              preferred_element_type=jnp.float32)
    x1 = x + attn + bo

    # ---- output sublayer: x1 + FFN(LayerNorm(x1)) ----
    y2 = _layernorm(x1, ln2_g, ln2_b)
    hdn = _gelu_tanh(jnp.dot(y2.astype(jnp.bfloat16), w1_ref[...],
                             preferred_element_type=jnp.float32) + b1_ref[...])
    ffn = jnp.dot(hdn.astype(jnp.bfloat16), w2_ref[...],
                  preferred_element_type=jnp.float32) + b2
    out = x1 + ffn                                    # final dropout = identity

    o_ref[...] = out.reshape(Bt, S, H).astype(o_ref.dtype)


# ---------------------------------------------------------------------------
# wrapper
# ---------------------------------------------------------------------------
def transformer_block(x, mask, params, n_heads, block_b=None):
    B, S, H = x.shape
    D_FF = params["w1"].shape[1]
    assert H % n_heads == 0

    # Batch-block so each grid step has Bt*S >= 128 matmul rows (MXU occupancy).
    if block_b is None:
        block_b = min(B, max(1, 128 // S))
    while B % block_b:
        block_b -= 1
    Bt = block_b
    grid = (B // Bt,)

    p = params
    f32, bf16 = jnp.float32, jnp.bfloat16

    # Fused / packed parameters (weights in bf16, vectors in f32).
    wqkv = jnp.concatenate([p["wq"], p["wk"], p["wv"]], axis=1).astype(bf16)
    bqkv = jnp.concatenate([p["bq"], p["bk"], p["bv"]], axis=1).astype(f32)
    wo = p["wo"].astype(bf16)
    w1 = p["w1"].astype(bf16)
    w2 = p["w2"].astype(bf16)
    b1 = p["b1"].astype(f32)
    vecs = jnp.concatenate(
        [p["bo"], p["ln1_g"], p["ln1_b"], p["ln2_g"], p["ln2_b"], p["b2"],
         jnp.zeros((2, H), f32)], axis=0).astype(f32)          # (8, H)

    # Mask -> additive bias once, outside the kernel (hoists compare/select).
    bias = jnp.where(mask[:, 0] == 0, -1e9, 0.0).astype(f32)   # (B, S, S)

    def full(a):
        nd = a.ndim
        return pl.BlockSpec(a.shape, lambda i, _nd=nd: (0,) * _nd)

    in_specs = [
        pl.BlockSpec((Bt, S, H), lambda i: (i, 0, 0)),   # x
        pl.BlockSpec((Bt, S, S), lambda i: (i, 0, 0)),   # additive mask bias
        full(wqkv), full(bqkv), full(wo),
        full(w1), full(b1), full(w2),
        full(vecs),
    ]

    return pl.pallas_call(
        functools.partial(transformer_block_kernel, n_heads),
        out_shape=jax.ShapeDtypeStruct((B, S, H), x.dtype),
        grid=grid,
        in_specs=in_specs,
        out_specs=pl.BlockSpec((Bt, S, H), lambda i: (i, 0, 0)),
        compiler_params=pltpu.CompilerParams(
            dimension_semantics=("parallel",),
            vmem_limit_bytes=32 * 1024 * 1024),
    )(x, bias, wqkv, bqkv, wo, w1, b1, w2, vecs)


# ---------------------------------------------------------------------------
# pure-JAX f32 reference (module semantics, tanh-GELU) for the sanity check
# ---------------------------------------------------------------------------
def transformer_block_ref(x, mask, params, n_heads):
    B, S, H = x.shape
    dk = H // n_heads
    p = params
    y = _layernorm(x, p["ln1_g"], p["ln1_b"])
    q = y @ p["wq"] + p["bq"]
    k = y @ p["wk"] + p["bk"]
    v = y @ p["wv"] + p["bv"]
    q = q.reshape(B, S, n_heads, dk).transpose(0, 2, 1, 3)
    k = k.reshape(B, S, n_heads, dk).transpose(0, 2, 1, 3)
    v = v.reshape(B, S, n_heads, dk).transpose(0, 2, 1, 3)
    s = jnp.einsum("bhqd,bhkd->bhqk", q, k) / math.sqrt(dk)
    s = jnp.where(mask == 0, -1e9, s)
    a = jax.nn.softmax(s, axis=-1)
    ctx = jnp.einsum("bhqk,bhkd->bhqd", a, v).transpose(0, 2, 1, 3).reshape(B, S, H)
    x1 = x + (ctx @ p["wo"] + p["bo"])
    y2 = _layernorm(x1, p["ln2_g"], p["ln2_b"])
    ffn = _gelu_tanh(y2 @ p["w1"] + p["b1"]) @ p["w2"] + p["b2"]
    return x1 + ffn


# ---------------------------------------------------------------------------
# main
# ---------------------------------------------------------------------------
if __name__ == "__main__":
    # Small but lane/MXU-friendly shapes: H multiple of 128, Bt*S = 128 rows/step.
    B, S, H = 8, 32, 128
    HEADS = 4
    D_FF = 4 * H

    key = jax.random.PRNGKey(0)
    keys = jax.random.split(key, 17)

    def w(k, shape, scale=0.05):
        return (scale * jax.random.normal(k, shape)).astype(jnp.float32)

    params = {
        "wq": w(keys[0], (H, H)),   "bq": w(keys[1], (1, H)),
        "wk": w(keys[2], (H, H)),   "bk": w(keys[3], (1, H)),
        "wv": w(keys[4], (H, H)),   "bv": w(keys[5], (1, H)),
        "wo": w(keys[6], (H, H)),   "bo": w(keys[7], (1, H)),
        "ln1_g": (1.0 + w(keys[8], (1, H), 0.1)).astype(jnp.float32),
        "ln1_b": w(keys[9], (1, H), 0.1),
        "ln2_g": (1.0 + w(keys[10], (1, H), 0.1)).astype(jnp.float32),
        "ln2_b": w(keys[11], (1, H), 0.1),
        "w1": w(keys[12], (H, D_FF)), "b1": w(keys[13], (1, D_FF)),
        "w2": w(keys[14], (D_FF, H)), "b2": w(keys[15], (1, H)),
    }

    x = jax.random.normal(keys[16], (B, S, H), dtype=jnp.float32)

    # Key-padding mask, broadcast to (B, 1, S, S) like BERT4Rec does.
    lengths = jnp.array([S, S - 3, S - 7, S, S - 1, S - 12, S, S - 5],
                        dtype=jnp.int32)
    pos = jnp.arange(S, dtype=jnp.int32)[None, :]
    valid = (pos < lengths[:, None]).astype(jnp.int32)                # (B, S)
    mask = jnp.broadcast_to(valid[:, None, None, :], (B, 1, S, S)).astype(jnp.int32)

    out = jax.block_until_ready(transformer_block(x, mask, params, HEADS))
    ref = transformer_block_ref(x, mask, params, HEADS)

    assert out.shape == (B, S, H)
    assert bool(jnp.all(jnp.isfinite(out)))
    max_err = float(jnp.max(jnp.abs(out - ref)))
    # Kernel uses bf16 matmul inputs + approx reciprocal -> compare against the
    # f32 reference with a tolerance that comfortably covers bf16 rounding.
    assert bool(jnp.allclose(out, ref, atol=1e-2, rtol=1e-2)), \
        f"mismatch vs reference (max abs err {max_err})"

    print("KERNEL_OK")
</pallas_src>

<mosaic_0001>
module attributes {stable_mosaic.version = 11 : i64} {
  func.func @transformer_block_kernel(%arg0: i32, %arg1: memref<4x32x128xf32, #tpu.memory_space<vmem>>, %arg2: memref<4x32x32xf32, #tpu.memory_space<vmem>>, %arg3: memref<128x384xbf16, #tpu.memory_space<vmem>>, %arg4: memref<1x384xf32, #tpu.memory_space<vmem>>, %arg5: memref<128x128xbf16, #tpu.memory_space<vmem>>, %arg6: memref<128x512xbf16, #tpu.memory_space<vmem>>, %arg7: memref<1x512xf32, #tpu.memory_space<vmem>>, %arg8: memref<512x128xbf16, #tpu.memory_space<vmem>>, %arg9: memref<8x128xf32, #tpu.memory_space<vmem>>, %arg10: memref<4x32x128xf32, #tpu.memory_space<vmem>>) attributes {dimension_semantics = [#tpu.dimension_semantics<parallel>], iteration_bounds = array<i64: 2>, scalar_prefetch = 0 : i64, scratch_operands = 0 : i64, tpu.core_type = #tpu.core_type<tc>, window_params = [{transform_indices = @transform_0, window_bounds = array<i64: 4, 32, 128>}, {transform_indices = @transform_1, window_bounds = array<i64: 4, 32, 32>}, {pipeline_mode = #tpu.pipeline_mode<synchronous>, transform_indices = @transform_2, window_bounds = array<i64: 128, 384>}, {pipeline_mode = #tpu.pipeline_mode<synchronous>, transform_indices = @transform_3, window_bounds = array<i64: 1, 384>}, {pipeline_mode = #tpu.pipeline_mode<synchronous>, transform_indices = @transform_4, window_bounds = array<i64: 128, 128>}, {pipeline_mode = #tpu.pipeline_mode<synchronous>, transform_indices = @transform_5, window_bounds = array<i64: 128, 512>}, {pipeline_mode = #tpu.pipeline_mode<synchronous>, transform_indices = @transform_6, window_bounds = array<i64: 1, 512>}, {pipeline_mode = #tpu.pipeline_mode<synchronous>, transform_indices = @transform_7, window_bounds = array<i64: 512, 128>}, {pipeline_mode = #tpu.pipeline_mode<synchronous>, transform_indices = @transform_8, window_bounds = array<i64: 8, 128>}, {transform_indices = @transform_9, window_bounds = array<i64: 4, 32, 128>}]} {
    %c0 = arith.constant 0 : index
    %c0_0 = arith.constant 0 : index
    %c0_1 = arith.constant 0 : index
    %0 = vector.load %arg1[%c0, %c0_0, %c0_1] : memref<4x32x128xf32, #tpu.memory_space<vmem>>, vector<4x32x128xf32>
    %1 = vector.shape_cast %0 : vector<4x32x128xf32> to vector<128x128xf32>
    %c0_2 = arith.constant 0 : index
    %c0_3 = arith.constant 0 : index
    %c0_4 = arith.constant 0 : index
    %2 = vector.load %arg2[%c0_2, %c0_3, %c0_4] : memref<4x32x32xf32, #tpu.memory_space<vmem>>, vector<4x32x32xf32>
    %c0_5 = arith.constant 0 : index
    %c0_6 = arith.constant 0 : index
    %3 = vector.load %arg9[%c0_5, %c0_6] : memref<8x128xf32, #tpu.memory_space<vmem>>, vector<1x128xf32>
    %c1 = arith.constant 1 : index
    %c0_7 = arith.constant 0 : index
    %4 = vector.load %arg9[%c1, %c0_7] : memref<8x128xf32, #tpu.memory_space<vmem>>, vector<1x128xf32>
    %c2 = arith.constant 2 : index
    %c0_8 = arith.constant 0 : index
    %5 = vector.load %arg9[%c2, %c0_8] : memref<8x128xf32, #tpu.memory_space<vmem>>, vector<1x128xf32>
    %c3 = arith.constant 3 : index
    %c0_9 = arith.constant 0 : index
    %6 = vector.load %arg9[%c3, %c0_9] : memref<8x128xf32, #tpu.memory_space<vmem>>, vector<1x128xf32>
    %c4 = arith.constant 4 : index
    %c0_10 = arith.constant 0 : index
    %7 = vector.load %arg9[%c4, %c0_10] : memref<8x128xf32, #tpu.memory_space<vmem>>, vector<1x128xf32>
    %c5 = arith.constant 5 : index
    %c0_11 = arith.constant 0 : index
    %8 = vector.load %arg9[%c5, %c0_11] : memref<8x128xf32, #tpu.memory_space<vmem>>, vector<1x128xf32>
    %cst = arith.constant dense<0.000000e+00> : vector<128xf32>
    %9 = vector.multi_reduction <add>, %1, %cst [1] : vector<128x128xf32> to vector<128xf32>
    %10 = vector.shape_cast %9 : vector<128xf32> to vector<128x1xf32>
    %cst_12 = arith.constant 1.280000e+02 : f32
    %11 = vector.broadcast %cst_12 : f32 to vector<128x1xf32>
    %12 = arith.divf %10, %11 : vector<128x1xf32>
    %13 = vector.broadcast %12 : vector<128x1xf32> to vector<128x128xf32>
    %14 = arith.subf %1, %13 : vector<128x128xf32>
    %15 = arith.mulf %14, %14 : vector<128x128xf32>
    %cst_13 = arith.constant dense<0.000000e+00> : vector<128xf32>
    %16 = vector.multi_reduction <add>, %15, %cst_13 [1] : vector<128x128xf32> to vector<128xf32>
    %17 = vector.shape_cast %16 : vector<128xf32> to vector<128x1xf32>
    %cst_14 = arith.constant 1.280000e+02 : f32
    %18 = vector.broadcast %cst_14 : f32 to vector<128x1xf32>
    %19 = arith.divf %17, %18 : vector<128x1xf32>
    %20 = vector.broadcast %12 : vector<128x1xf32> to vector<128x128xf32>
    %21 = arith.subf %1, %20 : vector<128x128xf32>
    %cst_15 = arith.constant 9.99999974E-6 : f32
    %22 = vector.broadcast %cst_15 : f32 to vector<128x1xf32>
    %23 = arith.addf %19, %22 : vector<128x1xf32>
    %24 = math.rsqrt %23 : vector<128x1xf32>
    %25 = vector.broadcast %24 : vector<128x1xf32> to vector<128x128xf32>
    %26 = arith.mulf %21, %25 : vector<128x128xf32>
    %27 = vector.broadcast %4 : vector<1x128xf32> to vector<128x128xf32>
    %28 = arith.mulf %26, %27 : vector<128x128xf32>
    %29 = vector.broadcast %5 : vector<1x128xf32> to vector<128x128xf32>
    %30 = arith.addf %28, %29 : vector<128x128xf32>
    %31 = arith.truncf %30 : vector<128x128xf32> to vector<128x128xbf16>
    %c0_16 = arith.constant 0 : index
    %c0_17 = arith.constant 0 : index
    %32 = vector.load %arg3[%c0_16, %c0_17] : memref<128x384xbf16, #tpu.memory_space<vmem>>, vector<128x384xbf16>
    %cst_18 = arith.constant dense<0.000000e+00> : vector<128x384xf32>
    %33 = tpu.matmul %31, %32, %cst_18 {dimension_numbers = #tpu.dot_dimension_numbers<[1], [0], [0], [1], [0, 0, 1, 1], [], []>} : vector<128x128xbf16>, vector<128x384xbf16>, vector<128x384xf32> -> vector<128x384xf32>
    %c0_19 = arith.constant 0 : index
    %c0_20 = arith.constant 0 : index
    %34 = vector.load %arg4[%c0_19, %c0_20] : memref<1x384xf32, #tpu.memory_space<vmem>>, vector<1x384xf32>
    %35 = vector.broadcast %34 : vector<1x384xf32> to vector<128x384xf32>
    %36 = arith.addf %33, %35 : vector<128x384xf32>
    %37 = vector.shape_cast %36 : vector<128x384xf32> to vector<4x32x384xf32>
    %cst_21 = arith.constant 0.000000e+00 : f32
    %38 = vector.broadcast %cst_21 : f32 to vector<128x128xf32>
    %39 = vector.extract_strided_slice %37 {offsets = [0, 0, 0], sizes = [4, 32, 32], strides = [1, 1, 1]} : vector<4x32x384xf32> to vector<4x32x32xf32>
    %cst_22 = arith.constant 0.176776692 : f32
    %40 = vector.broadcast %cst_22 : f32 to vector<4x32x32xf32>
    %41 = arith.mulf %39, %40 : vector<4x32x32xf32>
    %42 = arith.truncf %41 : vector<4x32x32xf32> to vector<4x32x32xbf16>
    %43 = vector.extract_strided_slice %37 {offsets = [0, 0, 128], sizes = [4, 32, 32], strides = [1, 1, 1]} : vector<4x32x384xf32> to vector<4x32x32xf32>
    %44 = arith.truncf %43 : vector<4x32x32xf32> to vector<4x32x32xbf16>
    %45 = vector.extract_strided_slice %37 {offsets = [0, 0, 256], sizes = [4, 32, 32], strides = [1, 1, 1]} : vector<4x32x384xf32> to vector<4x32x32xf32>
    %46 = arith.truncf %45 : vector<4x32x32xf32> to vector<4x32x32xbf16>
    "tpu.trace_start"() <{level = 10 : i32, message = "bqd,bkd->bqk"}> : () -> ()
    %cst_23 = arith.constant dense<0.000000e+00> : vector<4x32x32xf32>
    %47 = tpu.matmul %42, %44, %cst_23 {dimension_numbers = #tpu.dot_dimension_numbers<[2], [2], [1], [1], [0, 0, 0, 1, 1, 1], [0], [0]>} : vector<4x32x32xbf16>, vector<4x32x32xbf16>, vector<4x32x32xf32> -> vector<4x32x32xf32>
    "tpu.trace_stop"() : () -> ()
    %48 = arith.addf %47, %2 : vector<4x32x32xf32>
    %cst_24 = arith.constant dense<0xFF800000> : vector<4x32xf32>
    %49 = vector.multi_reduction <maximumf>, %48, %cst_24 [2] : vector<4x32x32xf32> to vector<4x32xf32>
    %50 = vector.shape_cast %49 : vector<4x32xf32> to vector<4x32x1xf32>
    %51 = vector.broadcast %50 : vector<4x32x1xf32> to vector<4x32x32xf32>
    %52 = arith.subf %48, %51 : vector<4x32x32xf32>
    %53 = math.exp %52 : vector<4x32x32xf32>
    %cst_25 = arith.constant dense<0.000000e+00> : vector<4x32xf32>
    %54 = vector.multi_reduction <add>, %53, %cst_25 [2] : vector<4x32x32xf32> to vector<4x32xf32>
    %55 = vector.shape_cast %54 : vector<4x32xf32> to vector<4x32x1xf32>
    %56 = tpu.reciprocal %55 {approx = true} : vector<4x32x1xf32> -> vector<4x32x1xf32>
    %57 = vector.broadcast %56 : vector<4x32x1xf32> to vector<4x32x32xf32>
    %58 = arith.mulf %53, %57 : vector<4x32x32xf32>
    %59 = arith.truncf %58 : vector<4x32x32xf32> to vector<4x32x32xbf16>
    "tpu.trace_start"() <{level = 10 : i32, message = "bqk,bkd->bqd"}> : () -> ()
    %cst_26 = arith.constant dense<0.000000e+00> : vector<4x32x32xf32>
    %60 = tpu.matmul %59, %46, %cst_26 {dimension_numbers = #tpu.dot_dimension_numbers<[2], [1], [1], [2], [0, 0, 0, 1, 1, 2], [0], [0]>} : vector<4x32x32xbf16>, vector<4x32x32xbf16>, vector<4x32x32xf32> -> vector<4x32x32xf32>
    "tpu.trace_stop"() : () -> ()
    %61 = vector.shape_cast %60 : vector<4x32x32xf32> to vector<128x32xf32>
    %62 = arith.truncf %61 : vector<128x32xf32> to vector<128x32xbf16>
    %c0_27 = arith.constant 0 : index
    %c0_28 = arith.constant 0 : index
    %63 = vector.load %arg5[%c0_27, %c0_28] : memref<128x128xbf16, #tpu.memory_space<vmem>>, vector<32x128xbf16>
    %cst_29 = arith.constant dense<0.000000e+00> : vector<128x128xf32>
    %64 = tpu.matmul %62, %63, %cst_29 {dimension_numbers = #tpu.dot_dimension_numbers<[1], [0], [0], [1], [0, 0, 1, 1], [], []>} : vector<128x32xbf16>, vector<32x128xbf16>, vector<128x128xf32> -> vector<128x128xf32>
    %65 = arith.addf %38, %64 : vector<128x128xf32>
    %66 = vector.extract_strided_slice %37 {offsets = [0, 0, 32], sizes = [4, 32, 32], strides = [1, 1, 1]} : vector<4x32x384xf32> to vector<4x32x32xf32>
    %cst_30 = arith.constant 0.176776692 : f32
    %67 = vector.broadcast %cst_30 : f32 to vector<4x32x32xf32>
    %68 = arith.mulf %66, %67 : vector<4x32x32xf32>
    %69 = arith.truncf %68 : vector<4x32x32xf32> to vector<4x32x32xbf16>
    %70 = vector.extract_strided_slice %37 {offsets = [0, 0, 160], sizes = [4, 32, 32], strides = [1, 1, 1]} : vector<4x32x384xf32> to vector<4x32x32xf32>
    %71 = arith.truncf %70 : vector<4x32x32xf32> to vector<4x32x32xbf16>
    %72 = vector.extract_strided_slice %37 {offsets = [0, 0, 288], sizes = [4, 32, 32], strides = [1, 1, 1]} : vector<4x32x384xf32> to vector<4x32x32xf32>
    %73 = arith.truncf %72 : vector<4x32x32xf32> to vector<4x32x32xbf16>
    "tpu.trace_start"() <{level = 10 : i32, message = "bqd,bkd->bqk"}> : () -> ()
    %cst_31 = arith.constant dense<0.000000e+00> : vector<4x32x32xf32>
    %74 = tpu.matmul %69, %71, %cst_31 {dimension_numbers = #tpu.dot_dimension_numbers<[2], [2], [1], [1], [0, 0, 0, 1, 1, 1], [0], [0]>} : vector<4x32x32xbf16>, vector<4x32x32xbf16>, vector<4x32x32xf32> -> vector<4x32x32xf32>
    "tpu.trace_stop"() : () -> ()
    %75 = arith.addf %74, %2 : vector<4x32x32xf32>
    %cst_32 = arith.constant dense<0xFF800000> : vector<4x32xf32>
    %76 = vector.multi_reduction <maximumf>, %75, %cst_32 [2] : vector<4x32x32xf32> to vector<4x32xf32>
    %77 = vector.shape_cast %76 : vector<4x32xf32> to vector<4x32x1xf32>
    %78 = vector.broadcast %77 : vector<4x32x1xf32> to vector<4x32x32xf32>
    %79 = arith.subf %75, %78 : vector<4x32x32xf32>
    %80 = math.exp %79 : vector<4x32x32xf32>
    %cst_33 = arith.constant dense<0.000000e+00> : vector<4x32xf32>
    %81 = vector.multi_reduction <add>, %80, %cst_33 [2] : vector<4x32x32xf32> to vector<4x32xf32>
    %82 = vector.shape_cast %81 : vector<4x32xf32> to vector<4x32x1xf32>
    %83 = tpu.reciprocal %82 {approx = true} : vector<4x32x1xf32> -> vector<4x32x1xf32>
    %84 = vector.broadcast %83 : vector<4x32x1xf32> to vector<4x32x32xf32>
    %85 = arith.mulf %80, %84 : vector<4x32x32xf32>
    %86 = arith.truncf %85 : vector<4x32x32xf32> to vector<4x32x32xbf16>
    "tpu.trace_start"() <{level = 10 : i32, message = "bqk,bkd->bqd"}> : () -> ()
    %cst_34 = arith.constant dense<0.000000e+00> : vector<4x32x32xf32>
    %87 = tpu.matmul %86, %73, %cst_34 {dimension_numbers = #tpu.dot_dimension_numbers<[2], [1], [1], [2], [0, 0, 0, 1, 1, 2], [0], [0]>} : vector<4x32x32xbf16>, vector<4x32x32xbf16>, vector<4x32x32xf32> -> vector<4x32x32xf32>
    "tpu.trace_stop"() : () -> ()
    %88 = vector.shape_cast %87 : vector<4x32x32xf32> to vector<128x32xf32>
    %89 = arith.truncf %88 : vector<128x32xf32> to vector<128x32xbf16>
    %c32 = arith.constant 32 : index
    %c0_35 = arith.constant 0 : index
    %90 = vector.load %arg5[%c32, %c0_35] : memref<128x128xbf16, #tpu.memory_space<vmem>>, vector<32x128xbf16>
    %cst_36 = arith.constant dense<0.000000e+00> : vector<128x128xf32>
    %91 = tpu.matmul %89, %90, %cst_36 {dimension_numbers = #tpu.dot_dimension_numbers<[1], [0], [0], [1], [0, 0, 1, 1], [], []>} : vector<128x32xbf16>, vector<32x128xbf16>, vector<128x128xf32> -> vector<128x128xf32>
    %92 = arith.addf %65, %91 : vector<128x128xf32>
    %93 = vector.extract_strided_slice %37 {offsets = [0, 0, 64], sizes = [4, 32, 32], strides = [1, 1, 1]} : vector<4x32x384xf32> to vector<4x32x32xf32>
    %cst_37 = arith.constant 0.176776692 : f32
    %94 = vector.broadcast %cst_37 : f32 to vector<4x32x32xf32>
    %95 = arith.mulf %93, %94 : vector<4x32x32xf32>
    %96 = arith.truncf %95 : vector<4x32x32xf32> to vector<4x32x32xbf16>
    %97 = vector.extract_strided_slice %37 {offsets = [0, 0, 192], sizes = [4, 32, 32], strides = [1, 1, 1]} : vector<4x32x384xf32> to vector<4x32x32xf32>
    %98 = arith.truncf %97 : vector<4x32x32xf32> to vector<4x32x32xbf16>
    %99 = vector.extract_strided_slice %37 {offsets = [0, 0, 320], sizes = [4, 32, 32], strides = [1, 1, 1]} : vector<4x32x384xf32> to vector<4x32x32xf32>
    %100 = arith.truncf %99 : vector<4x32x32xf32> to vector<4x32x32xbf16>
    "tpu.trace_start"() <{level = 10 : i32, message = "bqd,bkd->bqk"}> : () -> ()
    %cst_38 = arith.constant dense<0.000000e+00> : vector<4x32x32xf32>
    %101 = tpu.matmul %96, %98, %cst_38 {dimension_numbers = #tpu.dot_dimension_numbers<[2], [2], [1], [1], [0, 0, 0, 1, 1, 1], [0], [0]>} : vector<4x32x32xbf16>, vector<4x32x32xbf16>, vector<4x32x32xf32> -> vector<4x32x32xf32>
    "tpu.trace_stop"() : () -> ()
    %102 = arith.addf %101, %2 : vector<4x32x32xf32>
    %cst_39 = arith.constant dense<0xFF800000> : vector<4x32xf32>
    %103 = vector.multi_reduction <maximumf>, %102, %cst_39 [2] : vector<4x32x32xf32> to vector<4x32xf32>
    %104 = vector.shape_cast %103 : vector<4x32xf32> to vector<4x32x1xf32>
    %105 = vector.broadcast %104 : vector<4x32x1xf32> to vector<4x32x32xf32>
    %106 = arith.subf %102, %105 : vector<4x32x32xf32>
    %107 = math.exp %106 : vector<4x32x32xf32>
    %cst_40 = arith.constant dense<0.000000e+00> : vector<4x32xf32>
    %108 = vector.multi_reduction <add>, %107, %cst_40 [2] : vector<4x32x32xf32> to vector<4x32xf32>
    %109 = vector.shape_cast %108 : vector<4x32xf32> to vector<4x32x1xf32>
    %110 = tpu.reciprocal %109 {approx = true} : vector<4x32x1xf32> -> vector<4x32x1xf32>
    %111 = vector.broadcast %110 : vector<4x32x1xf32> to vector<4x32x32xf32>
    %112 = arith.mulf %107, %111 : vector<4x32x32xf32>
    %113 = arith.truncf %112 : vector<4x32x32xf32> to vector<4x32x32xbf16>
    "tpu.trace_start"() <{level = 10 : i32, message = "bqk,bkd->bqd"}> : () -> ()
    %cst_41 = arith.constant dense<0.000000e+00> : vector<4x32x32xf32>
    %114 = tpu.matmul %113, %100, %cst_41 {dimension_numbers = #tpu.dot_dimension_numbers<[2], [1], [1], [2], [0, 0, 0, 1, 1, 2], [0], [0]>} : vector<4x32x32xbf16>, vector<4x32x32xbf16>, vector<4x32x32xf32> -> vector<4x32x32xf32>
    "tpu.trace_stop"() : () -> ()
    %115 = vector.shape_cast %114 : vector<4x32x32xf32> to vector<128x32xf32>
    %116 = arith.truncf %115 : vector<128x32xf32> to vector<128x32xbf16>
    %c64 = arith.constant 64 : index
    %c0_42 = arith.constant 0 : index
    %117 = vector.load %arg5[%c64, %c0_42] : memref<128x128xbf16, #tpu.memory_space<vmem>>, vector<32x128xbf16>
    %cst_43 = arith.constant dense<0.000000e+00> : vector<128x128xf32>
    %118 = tpu.matmul %116, %117, %cst_43 {dimension_numbers = #tpu.dot_dimension_numbers<[1], [0], [0], [1], [0, 0, 1, 1], [], []>} : vector<128x32xbf16>, vector<32x128xbf16>, vector<128x128xf32> -> vector<128x128xf32>
    %119 = arith.addf %92, %118 : vector<128x128xf32>
    %120 = vector.extract_strided_slice %37 {offsets = [0, 0, 96], sizes = [4, 32, 32], strides = [1, 1, 1]} : vector<4x32x384xf32> to vector<4x32x32xf32>
    %cst_44 = arith.constant 0.176776692 : f32
    %121 = vector.broadcast %cst_44 : f32 to vector<4x32x32xf32>
    %122 = arith.mulf %120, %121 : vector<4x32x32xf32>
    %123 = arith.truncf %122 : vector<4x32x32xf32> to vector<4x32x32xbf16>
    %124 = vector.extract_strided_slice %37 {offsets = [0, 0, 224], sizes = [4, 32, 32], strides = [1, 1, 1]} : vector<4x32x384xf32> to vector<4x32x32xf32>
    %125 = arith.truncf %124 : vector<4x32x32xf32> to vector<4x32x32xbf16>
    %126 = vector.extract_strided_slice %37 {offsets = [0, 0, 352], sizes = [4, 32, 32], strides = [1, 1, 1]} : vector<4x32x384xf32> to vector<4x32x32xf32>
    %127 = arith.truncf %126 : vector<4x32x32xf32> to vector<4x32x32xbf16>
    "tpu.trace_start"() <{level = 10 : i32, message = "bqd,bkd->bqk"}> : () -> ()
    %cst_45 = arith.constant dense<0.000000e+00> : vector<4x32x32xf32>
    %128 = tpu.matmul %123, %125, %cst_45 {dimension_numbers = #tpu.dot_dimension_numbers<[2], [2], [1], [1], [0, 0, 0, 1, 1, 1], [0], [0]>} : vector<4x32x32xbf16>, vector<4x32x32xbf16>, vector<4x32x32xf32> -> vector<4x32x32xf32>
    "tpu.trace_stop"() : () -> ()
    %129 = arith.addf %128, %2 : vector<4x32x32xf32>
    %cst_46 = arith.constant dense<0xFF800000> : vector<4x32xf32>
    %130 = vector.multi_reduction <maximumf>, %129, %cst_46 [2] : vector<4x32x32xf32> to vector<4x32xf32>
    %131 = vector.shape_cast %130 : vector<4x32xf32> to vector<4x32x1xf32>
    %132 = vector.broadcast %131 : vector<4x32x1xf32> to vector<4x32x32xf32>
    %133 = arith.subf %129, %132 : vector<4x32x32xf32>
    %134 = math.exp %133 : vector<4x32x32xf32>
    %cst_47 = arith.constant dense<0.000000e+00> : vector<4x32xf32>
    %135 = vector.multi_reduction <add>, %134, %cst_47 [2] : vector<4x32x32xf32> to vector<4x32xf32>
    %136 = vector.shape_cast %135 : vector<4x32xf32> to vector<4x32x1xf32>
    %137 = tpu.reciprocal %136 {approx = true} : vector<4x32x1xf32> -> vector<4x32x1xf32>
    %138 = vector.broadcast %137 : vector<4x32x1xf32> to vector<4x32x32xf32>
    %139 = arith.mulf %134, %138 : vector<4x32x32xf32>
    %140 = arith.truncf %139 : vector<4x32x32xf32> to vector<4x32x32xbf16>
    "tpu.trace_start"() <{level = 10 : i32, message = "bqk,bkd->bqd"}> : () -> ()
    %cst_48 = arith.constant dense<0.000000e+00> : vector<4x32x32xf32>
    %141 = tpu.matmul %140, %127, %cst_48 {dimension_numbers = #tpu.dot_dimension_numbers<[2], [1], [1], [2], [0, 0, 0, 1, 1, 2], [0], [0]>} : vector<4x32x32xbf16>, vector<4x32x32xbf16>, vector<4x32x32xf32> -> vector<4x32x32xf32>
    "tpu.trace_stop"() : () -> ()
    %142 = vector.shape_cast %141 : vector<4x32x32xf32> to vector<128x32xf32>
    %143 = arith.truncf %142 : vector<128x32xf32> to vector<128x32xbf16>
    %c96 = arith.constant 96 : index
    %c0_49 = arith.constant 0 : index
    %144 = vector.load %arg5[%c96, %c0_49] : memref<128x128xbf16, #tpu.memory_space<vmem>>, vector<32x128xbf16>
    %cst_50 = arith.constant dense<0.000000e+00> : vector<128x128xf32>
    %145 = tpu.matmul %143, %144, %cst_50 {dimension_numbers = #tpu.dot_dimension_numbers<[1], [0], [0], [1], [0, 0, 1, 1], [], []>} : vector<128x32xbf16>, vector<32x128xbf16>, vector<128x128xf32> -> vector<128x128xf32>
    %146 = arith.addf %119, %145 : vector<128x128xf32>
    %147 = arith.addf %1, %146 : vector<128x128xf32>
    %148 = vector.broadcast %3 : vector<1x128xf32> to vector<128x128xf32>
    %149 = arith.addf %147, %148 : vector<128x128xf32>
    %cst_51 = arith.constant dense<0.000000e+00> : vector<128xf32>
    %150 = vector.multi_reduction <add>, %149, %cst_51 [1] : vector<128x128xf32> to vector<128xf32>
    %151 = vector.shape_cast %150 : vector<128xf32> to vector<128x1xf32>
    %cst_52 = arith.constant 1.280000e+02 : f32
    %152 = vector.broadcast %cst_52 : f32 to vector<128x1xf32>
    %153 = arith.divf %151, %152 : vector<128x1xf32>
    %154 = vector.broadcast %153 : vector<128x1xf32> to vector<128x128xf32>
    %155 = arith.subf %149, %154 : vector<128x128xf32>
    %156 = arith.mulf %155, %155 : vector<128x128xf32>
    %cst_53 = arith.constant dense<0.000000e+00> : vector<128xf32>
    %157 = vector.multi_reduction <add>, %156, %cst_53 [1] : vector<128x128xf32> to vector<128xf32>
    %158 = vector.shape_cast %157 : vector<128xf32> to vector<128x1xf32>
    %cst_54 = arith.constant 1.280000e+02 : f32
    %159 = vector.broadcast %cst_54 : f32 to vector<128x1xf32>
    %160 = arith.divf %158, %159 : vector<128x1xf32>
    %161 = vector.broadcast %153 : vector<128x1xf32> to vector<128x128xf32>
    %162 = arith.subf %149, %161 : vector<128x128xf32>
    %cst_55 = arith.constant 9.99999974E-6 : f32
    %163 = vector.broadcast %cst_55 : f32 to vector<128x1xf32>
    %164 = arith.addf %160, %163 : vector<128x1xf32>
    %165 = math.rsqrt %164 : vector<128x1xf32>
    %166 = vector.broadcast %165 : vector<128x1xf32> to vector<128x128xf32>
    %167 = arith.mulf %162, %166 : vector<128x128xf32>
    %168 = vector.broadcast %6 : vector<1x128xf32> to vector<128x128xf32>
    %169 = arith.mulf %167, %168 : vector<128x128xf32>
    %170 = vector.broadcast %7 : vector<1x128xf32> to vector<128x128xf32>
    %171 = arith.addf %169, %170 : vector<128x128xf32>
    %172 = arith.truncf %171 : vector<128x128xf32> to vector<128x128xbf16>
    %c0_56 = arith.constant 0 : index
    %c0_57 = arith.constant 0 : index
    %173 = vector.load %arg6[%c0_56, %c0_57] : memref<128x512xbf16, #tpu.memory_space<vmem>>, vector<128x512xbf16>
    %cst_58 = arith.constant dense<0.000000e+00> : vector<128x512xf32>
    %174 = tpu.matmul %172, %173, %cst_58 {dimension_numbers = #tpu.dot_dimension_numbers<[1], [0], [0], [1], [0, 0, 1, 1], [], []>} : vector<128x128xbf16>, vector<128x512xbf16>, vector<128x512xf32> -> vector<128x512xf32>
    %c0_59 = arith.constant 0 : index
    %c0_60 = arith.constant 0 : index
    %175 = vector.load %arg7[%c0_59, %c0_60] : memref<1x512xf32, #tpu.memory_space<vmem>>, vector<1x512xf32>
    %176 = vector.broadcast %175 : vector<1x512xf32> to vector<128x512xf32>
    %177 = arith.addf %174, %176 : vector<128x512xf32>
    %cst_61 = arith.constant 5.000000e-01 : f32
    %178 = vector.broadcast %cst_61 : f32 to vector<128x512xf32>
    %179 = arith.mulf %178, %177 : vector<128x512xf32>
    %cst_62 = arith.constant 4.471500e-02 : f32
    %180 = vector.broadcast %cst_62 : f32 to vector<128x512xf32>
    %181 = arith.mulf %180, %177 : vector<128x512xf32>
    %182 = arith.mulf %181, %177 : vector<128x512xf32>
    %183 = arith.mulf %182, %177 : vector<128x512xf32>
    %184 = arith.addf %177, %183 : vector<128x512xf32>
    %cst_63 = arith.constant 0.797884583 : f32
    %185 = vector.broadcast %cst_63 : f32 to vector<128x512xf32>
    %186 = arith.mulf %185, %184 : vector<128x512xf32>
    %187 = math.tanh %186 : vector<128x512xf32>
    %cst_64 = arith.constant 1.000000e+00 : f32
    %188 = vector.broadcast %cst_64 : f32 to vector<128x512xf32>
    %189 = arith.addf %188, %187 : vector<128x512xf32>
    %190 = arith.mulf %179, %189 : vector<128x512xf32>
    %191 = arith.truncf %190 : vector<128x512xf32> to vector<128x512xbf16>
    %c0_65 = arith.constant 0 : index
    %c0_66 = arith.constant 0 : index
    %192 = vector.load %arg8[%c0_65, %c0_66] : memref<512x128xbf16, #tpu.memory_space<vmem>>, vector<512x128xbf16>
    %cst_67 = arith.constant dense<0.000000e+00> : vector<128x128xf32>
    %193 = tpu.matmul %191, %192, %cst_67 {dimension_numbers = #tpu.dot_dimension_numbers<[1], [0], [0], [1], [0, 0, 1, 1], [], []>} : vector<128x512xbf16>, vector<512x128xbf16>, vector<128x128xf32> -> vector<128x128xf32>
    %194 = vector.broadcast %8 : vector<1x128xf32> to vector<128x128xf32>
    %195 = arith.addf %193, %194 : vector<128x128xf32>
    %196 = arith.addf %149, %195 : vector<128x128xf32>
    %197 = vector.shape_cast %196 : vector<128x128xf32> to vector<4x32x128xf32>
    %c0_68 = arith.constant 0 : index
    %c0_69 = arith.constant 0 : index
    %c0_70 = arith.constant 0 : index
    %198 = vector.load %arg10[%c0_68, %c0_69, %c0_70] : memref<4x32x128xf32, #tpu.memory_space<vmem>>, vector<4x32x128xf32>
    tpu.vector_store %arg10[%c0_68, %c0_69, %c0_70], %197 {strides = array<i32>} : memref<4x32x128xf32, #tpu.memory_space<vmem>>, vector<4x32x128xf32>,
    return
  }
  func.func @transform_0(%arg0: i32) -> (i32, i32, i32) {
    %c0_i32 = arith.constant 0 : i32
    %c0_i32_0 = arith.constant 0 : i32
    %c0_i32_1 = arith.constant 0 : i32
    return %arg0, %c0_i32, %c0_i32_0 : i32, i32, i32
  }
  func.func @transform_1(%arg0: i32) -> (i32, i32, i32) {
    %c0_i32 = arith.constant 0 : i32
    %c0_i32_0 = arith.constant 0 : i32
    %c0_i32_1 = arith.constant 0 : i32
    return %arg0, %c0_i32, %c0_i32_0 : i32, i32, i32
  }
  func.func @transform_2(%arg0: i32) -> (i32, i32) {
    %c0_i32 = arith.constant 0 : i32
    %c0_i32_0 = arith.constant 0 : i32
    %c0_i32_1 = arith.constant 0 : i32
    return %c0_i32, %c0_i32_0 : i32, i32
  }
  func.func @transform_3(%arg0: i32) -> (i32, i32) {
    %c0_i32 = arith.constant 0 : i32
    %c0_i32_0 = arith.constant 0 : i32
    %c0_i32_1 = arith.constant 0 : i32
    return %c0_i32, %c0_i32_0 : i32, i32
  }
  func.func @transform_4(%arg0: i32) -> (i32, i32) {
    %c0_i32 = arith.constant 0 : i32
    %c0_i32_0 = arith.constant 0 : i32
    %c0_i32_1 = arith.constant 0 : i32
    return %c0_i32, %c0_i32_0 : i32, i32
  }
  func.func @transform_5(%arg0: i32) -> (i32, i32) {
    %c0_i32 = arith.constant 0 : i32
    %c0_i32_0 = arith.constant 0 : i32
    %c0_i32_1 = arith.constant 0 : i32
    return %c0_i32, %c0_i32_0 : i32, i32
  }
  func.func @transform_6(%arg0: i32) -> (i32, i32) {
    %c0_i32 = arith.constant 0 : i32
    %c0_i32_0 = arith.constant 0 : i32
    %c0_i32_1 = arith.constant 0 : i32
    return %c0_i32, %c0_i32_0 : i32, i32
  }
  func.func @transform_7(%arg0: i32) -> (i32, i32) {
    %c0_i32 = arith.constant 0 : i32
    %c0_i32_0 = arith.constant 0 : i32
    %c0_i32_1 = arith.constant 0 : i32
    return %c0_i32, %c0_i32_0 : i32, i32
  }
  func.func @transform_8(%arg0: i32) -> (i32, i32) {
    %c0_i32 = arith.constant 0 : i32
    %c0_i32_0 = arith.constant 0 : i32
    %c0_i32_1 = arith.constant 0 : i32
    return %c0_i32, %c0_i32_0 : i32, i32
  }
  func.func @transform_9(%arg0: i32) -> (i32, i32, i32) {
    %c0_i32 = arith.constant 0 : i32
    %c0_i32_0 = arith.constant 0 : i32
    %c0_i32_1 = arith.constant 0 : i32
    return %arg0, %c0_i32, %c0_i32_0 : i32, i32, i32
  }
}

</mosaic_0001>

<llo_original>
// kernel: tpu_custom_call.1
$region0: #{tpu_custom_call.1}
  #allocation0 [shape = 'u32[]', space=smem, size = 0x4, offset = 0x4, fixed_abs, tag = 'smem constant byte address 0x4 - core index']
  #allocation1 [shape = 'u32[144,128]{1,0:T(1,128)}', space=vmem, size = 0x12000, scoped, tag = 'internal scratch']
  %s0 = inlined_call_operand.hbm [shape: f32[8,32,128], index: 0, kind: input, shape index: {}]
  %s1 = inlined_call_operand.hbm [shape: f32[8,32,32], index: 1, kind: input, shape index: {}]
  %s2 = inlined_call_operand.hbm [shape: bf16[128,384], index: 2, kind: input, shape index: {}]
  %s3 = inlined_call_operand.vmem [shape: f32[1,384], index: 3, kind: input, shape index: {}]
  %s4 = inlined_call_operand.hbm [shape: bf16[128,128], index: 4, kind: input, shape index: {}]
  %s5 = inlined_call_operand.hbm [shape: bf16[128,512], index: 5, kind: input, shape index: {}]
  %s6 = inlined_call_operand.vmem [shape: f32[1,512], index: 6, kind: input, shape index: {}]
  %s7 = inlined_call_operand.hbm [shape: bf16[512,128], index: 7, kind: input, shape index: {}]
  %s8 = inlined_call_operand.vmem [shape: f32[8,128], index: 8, kind: input, shape index: {}]
  %s9 = inlined_call_operand.hbm [shape: f32[8,32,128], index: 9, kind: output, shape index: {}]
  %s10 = sld [smem:[#allocation0]]
  $region93: #{tpu_custom_call.1} parent=0
    _
  %s12 = ssub.s32 1, %s10
  %s13 = scalar_select 0, %s12, %s10
  $region1: #{tpu_custom_call.1} parent=0
    #allocation2 [shape = 'u8[131072]{0}', space=vmem, size = 0x20000, scoped, tag = 'input window, operand 0']
    #allocation3 [shape = 's32[2]{0}', space=sflag, size = 0x8, scoped, tag = 'scoped memory for tpu_custom_call.1']
    #allocation4 [shape = 's32[2]{0}', space=sflag, size = 0x8, scoped, tag = 'scoped memory for tpu_custom_call.1']
    #allocation5 [shape = 'u8[131072]{0}', space=vmem, size = 0x20000, scoped, tag = 'input window, operand 1']
    #allocation6 [shape = 's32[2]{0}', space=sflag, size = 0x8, scoped, tag = 'scoped memory for tpu_custom_call.1']
    #allocation7 [shape = 'u8[98304]{0}', space=vmem, size = 0x18000, scoped, tag = 'input window, operand 2, single buffered']
    #allocation8 [shape = 'u8[32768]{0}', space=vmem, size = 0x8000, scoped, tag = 'input window, operand 4, single buffered']
    #allocation9 [shape = 's32[1]{0}', space=sflag, size = 0x4, scoped, tag = 'scoped memory for tpu_custom_call.1']
    #allocation10 [shape = 'u8[131072]{0}', space=vmem, size = 0x20000, scoped, tag = 'input window, operand 5, single buffered']
    #allocation11 [shape = 'u8[131072]{0}', space=vmem, size = 0x20000, scoped, tag = 'input window, operand 7, single buffered']
    #allocation12 [shape = 's32[1]{0}', space=sflag, size = 0x4, scoped, tag = 'scoped memory for tpu_custom_call.1']
    #allocation13 [shape = 'u8[131072]{0}', space=vmem, size = 0x20000, scoped, tag = 'output window, operand 0']
    %14 = vsyncpa [#allocation3], 0
    %s15 = scalar_lea.sflag [#allocation3], 1
    %16 = vsyncpa %s15, 0
    %17 = vsyncpa [#allocation6], 0
    %s18 = scalar_lea.sflag [#allocation6], 1
    %19 = vsyncpa %s18, 0
    %20 = vsyncpa [#allocation9], 0
    %21 = vsyncpa [#allocation12], 0
    %22 = vsyncpa [#allocation4], 0
    %s23 = scalar_lea.sflag [#allocation4], 1
    %24 = vsyncpa %s23, 0
    loop: start=0, step=1, limit=4
    $region2: #{tpu_custom_call.1} parent=1 // loop_pre_header
      _
    $region3: #{tpu_custom_call.1} parent=1 // loop_header
      %s26 = sphi 0, %s30
      %p27 = scmp.ge.s32.totalorder %s26, 4
      %s36 = sphi 0, %s38
      %s39 = sphi 0, %s36
      %s40 = sphi 0, %s39
      %s56 = sphi 0, %s40
      %s62 = sphi 0, %s64
      %s65 = sphi 0, %s62
      %s66 = sphi 0, %s65
      %s82 = sphi 0, %s66
      %s86 = sphi 0, %s86
      %s88 = sphi 0, %s86
      %s89 = sphi 0, %s88
      %s103 = sphi 0, %s89
      %s107 = sphi 0, %s107
      %s109 = sphi 0, %s107
      %s110 = sphi 0, %s109
      %s124 = sphi 0, %s110
      %s128 = sphi 0, %s128
      %s130 = sphi 0, %s128
      %s131 = sphi 0, %s130
      %s145 = sphi 0, %s131
      %s149 = sphi 0, %s149
      %s151 = sphi 0, %s149
      %s152 = sphi 0, %s151
      %s166 = sphi 0, %s152
      %s170 = sphi 0, %s170
      %s172 = sphi 0, %s170
      %s173 = sphi 0, %s172
      %s187 = sphi 0, %s173
      %s191 = sphi 0, %s191
      %s193 = sphi 0, %s191
      %s194 = sphi 0, %s193
      %s208 = sphi 0, %s194
      %s212 = sphi 0, %s212
      %s214 = sphi 0, %s212
      %s215 = sphi 0, %s214
      %s229 = sphi 0, %s215
      %s235 = sphi 0, %s237
      %s238 = sphi 0, %s235
      %s239 = sphi 0, %s238
      %s255 = sphi 0, %s239
    $region4: #{tpu_custom_call.1} parent=1 // loop_header_branch
      %29 = sbr.rel (%p27) target = $region8
    $region5: #{tpu_custom_call.1} parent=1 // loop_body
      %s31 = ssub.s32 %s26, 1
      %s32 = ssub.s32 %s26, 2
      %s33 = sadd.s32 %s26, 1
      %s34 = ssub.s32 %s26, %s33
      %p35 = scmp.eq.s32.totalorder %s34, 0
      %s37 = sadd.s32 %s36, 1
      %s38 = scalar_select %p35, %s36, %s37
      %p41 = pneg %p35
      %p42 = scmp.eq.s32.totalorder %s26, 1
      %p43 = por %p41, %p42
      %p44 = scmp.ne.s32.totalorder %s36, %s39
      %p45 = scmp.eq.s32.totalorder %s26, 0
      %p46 = por %p44, %p45
      %p47 = scmp.ne.s32.totalorder %s36, %s39
      %p48 = scmp.eq.s32.totalorder %s31, 1
      %p49 = por %p47, %p48
      %p50 = scmp.ne.s32.totalorder %s39, %s40
      %p51 = scmp.eq.s32.totalorder %s31, 0
      %p52 = por %p50, %p51
      %p53 = scmp.ne.s32.totalorder %s39, %s40
      %p54 = scmp.eq.s32.totalorder %s32, 1
      %p55 = por %p53, %p54
      %p57 = scmp.ne.s32.totalorder %s40, %s56
      %p58 = scmp.eq.s32.totalorder %s32, 0
      %p59 = por %p57, %p58
      %s60 = ssub.s32 %s26, %s33
      %p61 = scmp.eq.s32.totalorder %s60, 0
      %s63 = sadd.s32 %s62, 1
      %s64 = scalar_select %p61, %s62, %s63
      %p67 = pneg %p61
      %p68 = scmp.eq.s32.totalorder %s26, 1
      %p69 = por %p67, %p68
      %p70 = scmp.ne.s32.totalorder %s62, %s65
      %p71 = scmp.eq.s32.totalorder %s26, 0
      %p72 = por %p70, %p71
      %p73 = scmp.ne.s32.totalorder %s62, %s65
      %p74 = scmp.eq.s32.totalorder %s31, 1
      %p75 = por %p73, %p74
      %p76 = scmp.ne.s32.totalorder %s65, %s66
      %p77 = scmp.eq.s32.totalorder %s31, 0
      %p78 = por %p76, %p77
      %p79 = scmp.ne.s32.totalorder %s65, %s66
      %p80 = scmp.eq.s32.totalorder %s32, 1
      %p81 = por %p79, %p80
      %p83 = scmp.ne.s32.totalorder %s66, %s82
      %p84 = scmp.eq.s32.totalorder %s32, 0
      %p85 = por %p83, %p84
      %s87 = sadd.s32 %s86, 1
      %p90 = scmp.eq.s32.totalorder %s26, 1
      %p91 = scmp.ne.s32.totalorder %s86, %s88
      %p92 = scmp.eq.s32.totalorder %s26, 0
      %p93 = por %p91, %p92
      %p94 = scmp.ne.s32.totalorder %s86, %s88
      %p95 = scmp.eq.s32.totalorder %s31, 1
      %p96 = por %p94, %p95
      %p97 = scmp.ne.s32.totalorder %s88, %s89
      %p98 = scmp.eq.s32.totalorder %s31, 0
      %p99 = por %p97, %p98
      %p100 = scmp.ne.s32.totalorder %s88, %s89
      %p101 = scmp.eq.s32.totalorder %s32, 1
      %p102 = por %p100, %p101
      %p104 = scmp.ne.s32.totalorder %s89, %s103
      %p105 = scmp.eq.s32.totalorder %s32, 0
      %p106 = por %p104, %p105
      %s108 = sadd.s32 %s107, 1
      %p111 = scmp.eq.s32.totalorder %s26, 1
      %p112 = scmp.ne.s32.totalorder %s107, %s109
      %p113 = scmp.eq.s32.totalorder %s26, 0
      %p114 = por %p112, %p113
      %p115 = scmp.ne.s32.totalorder %s107, %s109
      %p116 = scmp.eq.s32.totalorder %s31, 1
      %p117 = por %p115, %p116
      %p118 = scmp.ne.s32.totalorder %s109, %s110
      %p119 = scmp.eq.s32.totalorder %s31, 0
      %p120 = por %p118, %p119
      %p121 = scmp.ne.s32.totalorder %s109, %s110
      %p122 = scmp.eq.s32.totalorder %s32, 1
      %p123 = por %p121, %p122
      %p125 = scmp.ne.s32.totalorder %s110, %s124
      %p126 = scmp.eq.s32.totalorder %s32, 0
      %p127 = por %p125, %p126
      %s129 = sadd.s32 %s128, 1
      %p132 = scmp.eq.s32.totalorder %s26, 1
      %p133 = scmp.ne.s32.totalorder %s128, %s130
      %p134 = scmp.eq.s32.totalorder %s26, 0
      %p135 = por %p133, %p134
      %p136 = scmp.ne.s32.totalorder %s128, %s130
      %p137 = scmp.eq.s32.totalorder %s31, 1
      %p138 = por %p136, %p137
      %p139 = scmp.ne.s32.totalorder %s130, %s131
      %p140 = scmp.eq.s32.totalorder %s31, 0
      %p141 = por %p139, %p140
      %p142 = scmp.ne.s32.totalorder %s130, %s131
      %p143 = scmp.eq.s32.totalorder %s32, 1
      %p144 = por %p142, %p143
      %p146 = scmp.ne.s32.totalorder %s131, %s145
      %p147 = scmp.eq.s32.totalorder %s32, 0
      %p148 = por %p146, %p147
      %s150 = sadd.s32 %s149, 1
      %p153 = scmp.eq.s32.totalorder %s26, 1
      %p154 = scmp.ne.s32.totalorder %s149, %s151
      %p155 = scmp.eq.s32.totalorder %s26, 0
      %p156 = por %p154, %p155
      %p157 = scmp.ne.s32.totalorder %s149, %s151
      %p158 = scmp.eq.s32.totalorder %s31, 1
      %p159 = por %p157, %p158
      %p160 = scmp.ne.s32.totalorder %s151, %s152
      %p161 = scmp.eq.s32.totalorder %s31, 0
      %p162 = por %p160, %p161
      %p163 = scmp.ne.s32.totalorder %s151, %s152
      %p164 = scmp.eq.s32.totalorder %s32, 1
      %p165 = por %p163, %p164
      %p167 = scmp.ne.s32.totalorder %s152, %s166
      %p168 = scmp.eq.s32.totalorder %s32, 0
      %p169 = por %p167, %p168
      %s171 = sadd.s32 %s170, 1
      %p174 = scmp.eq.s32.totalorder %s26, 1
      %p175 = scmp.ne.s32.totalorder %s170, %s172
      %p176 = scmp.eq.s32.totalorder %s26, 0
      %p177 = por %p175, %p176
      %p178 = scmp.ne.s32.totalorder %s170, %s172
      %p179 = scmp.eq.s32.totalorder %s31, 1
      %p180 = por %p178, %p179
      %p181 = scmp.ne.s32.totalorder %s172, %s173
      %p182 = scmp.eq.s32.totalorder %s31, 0
      %p183 = por %p181, %p182
      %p184 = scmp.ne.s32.totalorder %s172, %s173
      %p185 = scmp.eq.s32.totalorder %s32, 1
      %p186 = por %p184, %p185
      %p188 = scmp.ne.s32.totalorder %s173, %s187
      %p189 = scmp.eq.s32.totalorder %s32, 0
      %p190 = por %p188, %p189
      %s192 = sadd.s32 %s191, 1
      %p195 = scmp.eq.s32.totalorder %s26, 1
      %p196 = scmp.ne.s32.totalorder %s191, %s193
      %p197 = scmp.eq.s32.totalorder %s26, 0
      %p198 = por %p196, %p197
      %p199 = scmp.ne.s32.totalorder %s191, %s193
      %p200 = scmp.eq.s32.totalorder %s31, 1
      %p201 = por %p199, %p200
      %p202 = scmp.ne.s32.totalorder %s193, %s194
      %p203 = scmp.eq.s32.totalorder %s31, 0
      %p204 = por %p202, %p203
      %p205 = scmp.ne.s32.totalorder %s193, %s194
      %p206 = scmp.eq.s32.totalorder %s32, 1
      %p207 = por %p205, %p206
      %p209 = scmp.ne.s32.totalorder %s194, %s208
      %p210 = scmp.eq.s32.totalorder %s32, 0
      %p211 = por %p209, %p210
      %s213 = sadd.s32 %s212, 1
      %p216 = scmp.eq.s32.totalorder %s26, 1
      %p217 = scmp.ne.s32.totalorder %s212, %s214
      %p218 = scmp.eq.s32.totalorder %s26, 0
      %p219 = por %p217, %p218
      %p220 = scmp.ne.s32.totalorder %s212, %s214
      %p221 = scmp.eq.s32.totalorder %s31, 1
      %p222 = por %p220, %p221
      %p223 = scmp.ne.s32.totalorder %s214, %s215
      %p224 = scmp.eq.s32.totalorder %s31, 0
      %p225 = por %p223, %p224
      %p226 = scmp.ne.s32.totalorder %s214, %s215
      %p227 = scmp.eq.s32.totalorder %s32, 1
      %p228 = por %p226, %p227
      %p230 = scmp.ne.s32.totalorder %s215, %s229
      %p231 = scmp.eq.s32.totalorder %s32, 0
      %p232 = por %p230, %p231
      %s233 = ssub.s32 %s26, %s33
      %p234 = scmp.eq.s32.totalorder %s233, 0
      %s236 = sadd.s32 %s235, 1
      %s237 = scalar_select %p234, %s235, %s236
      %p240 = pneg %p234
      %p241 = scmp.eq.s32.totalorder %s26, 1
      %p242 = por %p240, %p241
      %p243 = scmp.ne.s32.totalorder %s235, %s238
      %p244 = scmp.eq.s32.totalorder %s26, 0
      %p245 = por %p243, %p244
      %p246 = scmp.ne.s32.totalorder %s235, %s238
      %p247 = scmp.eq.s32.totalorder %s31, 1
      %p248 = por %p246, %p247
      %p249 = scmp.ne.s32.totalorder %s238, %s239
      %p250 = scmp.eq.s32.totalorder %s31, 0
      %p251 = por %p249, %p250
      %p252 = scmp.ne.s32.totalorder %s238, %s239
      %p253 = scmp.eq.s32.totalorder %s32, 1
      %p254 = por %p252, %p253
      %p256 = scmp.ne.s32.totalorder %s239, %s255
      %p257 = scmp.eq.s32.totalorder %s32, 0
      %p258 = por %p256, %p257
      %p259 = scmp.le.s32.totalorder 1, %s26
      %p260 = scmp.lt.s32.totalorder %s26, 3
      %p261 = pnand %p259, %p260
      %p262 = pneg %p261
      // Predicated region
      $region9: #{tpu_custom_call.1} parent=5 // pred_check
        _
      $region10: #{tpu_custom_call.1} parent=5 // pred_check_branch
        %264 = sbr.rel (%p261) target = $region12
      $region11: #{tpu_custom_call.1} parent=5 // pred_region
        %s265 = ssub.s32 %s26, 1
        // Predicated region
        $region13: #{tpu_custom_call.1} parent=11 // pred_check
          %p266 = pneg %p99
        $region14: #{tpu_custom_call.1} parent=11 // pred_check_branch
          %268 = sbr.rel (%p266) target = $region16
        $region15: #{tpu_custom_call.1} parent=11 // pred_region
          %s270 = ssub.s32 3072, 3072
          %271 = vsyncadd [#allocation6], %s270
          %s272 = sshll.u32 [#allocation7], 4
          %s273 = int_to_ptr.vmem [resolvable:$true] %s272
          %278 = dma.hbm_to_vmem [thread:$0]  %s2, 3072, %s273, [#allocation6], 192, 192, 12
        $region16: #{tpu_custom_call.1} parent=11 // pred_fallthru
          _
        // Predicated region
        $region17: #{tpu_custom_call.1} parent=11 // pred_check
          %p279 = pneg %p120
        $region18: #{tpu_custom_call.1} parent=11 // pred_check_branch
          %281 = sbr.rel (%p279) target = $region20
        $region19: #{tpu_custom_call.1} parent=11 // pred_region
          _
        $region20: #{tpu_custom_call.1} parent=11 // pred_fallthru
          _
        // Predicated region
        $region21: #{tpu_custom_call.1} parent=11 // pred_check
          %p282 = pneg %p141
        $region22: #{tpu_custom_call.1} parent=11 // pred_check_branch
          %284 = sbr.rel (%p282) target = $region24
        $region23: #{tpu_custom_call.1} parent=11 // pred_region
          %s286 = ssub.s32 1024, 1024
          %287 = vsyncadd [#allocation9], %s286
          %s288 = sshll.u32 [#allocation8], 4
          %s289 = int_to_ptr.vmem [resolvable:$true] %s288
          %294 = dma.hbm_to_vmem [thread:$0]  %s4, 1024, %s289, [#allocation9], 64, 64, 4
        $region24: #{tpu_custom_call.1} parent=11 // pred_fallthru
          _
        // Predicated region
        $region25: #{tpu_custom_call.1} parent=11 // pred_check
          %p295 = pneg %p162
        $region26: #{tpu_custom_call.1} parent=11 // pred_check_branch
          %297 = sbr.rel (%p295) target = $region28
        $region27: #{tpu_custom_call.1} parent=11 // pred_region
          %s299 = ssub.s32 4096, 4096
          %300 = vsyncadd [#allocation9], %s299
          %s301 = sshll.u32 [#allocation10], 4
          %s302 = int_to_ptr.vmem [resolvable:$true] %s301
          %307 = dma.hbm_to_vmem [thread:$0]  %s5, 4096, %s302, [#allocation9], 256, 256, 16
        $region28: #{tpu_custom_call.1} parent=11 // pred_fallthru
          _
        // Predicated region
        $region29: #{tpu_custom_call.1} parent=11 // pred_check
          %p308 = pneg %p183
        $region30: #{tpu_custom_call.1} parent=11 // pred_check_branch
          %310 = sbr.rel (%p308) target = $region32
        $region31: #{tpu_custom_call.1} parent=11 // pred_region
          _
        $region32: #{tpu_custom_call.1} parent=11 // pred_fallthru
          _
        // Predicated region
        $region33: #{tpu_custom_call.1} parent=11 // pred_check
          %p311 = pneg %p204
        $region34: #{tpu_custom_call.1} parent=11 // pred_check_branch
          %313 = sbr.rel (%p311) target = $region36
        $region35: #{tpu_custom_call.1} parent=11 // pred_region
          %s315 = ssub.s32 4096, 4096
          %316 = vsyncadd [#allocation12], %s315
          %s317 = sshll.u32 [#allocation11], 4
          %s318 = int_to_ptr.vmem [resolvable:$true] %s317
          %323 = dma.hbm_to_vmem [thread:$0]  %s7, 4096, %s318, [#allocation12], 64, 64, 4
        $region36: #{tpu_custom_call.1} parent=11 // pred_fallthru
          _
        // Predicated region
        $region37: #{tpu_custom_call.1} parent=11 // pred_check
          %p324 = pneg %p225
        $region38: #{tpu_custom_call.1} parent=11 // pred_check_branch
          %326 = sbr.rel (%p324) target = $region40
        $region39: #{tpu_custom_call.1} parent=11 // pred_region
          _
        $region40: #{tpu_custom_call.1} parent=11 // pred_fallthru
          _
      $region12: #{tpu_custom_call.1} parent=5 // pred_fallthru
        _
      %p327 = scmp.lt.s32.totalorder %s26, 2
      // Predicated region
      $region41: #{tpu_custom_call.1} parent=5 // pred_check
        %p328 = pneg %p327
      $region42: #{tpu_custom_call.1} parent=5 // pred_check_branch
        %330 = sbr.rel (%p328) target = $region44
      $region43: #{tpu_custom_call.1} parent=5 // pred_region
        // Predicated region
        $region45: #{tpu_custom_call.1} parent=43 // pred_check
          %p331 = pneg %p46
        $region46: #{tpu_custom_call.1} parent=43 // pred_check_branch
          %333 = sbr.rel (%p331) target = $region48
        $region47: #{tpu_custom_call.1} parent=43 // pred_region
          %s334 = sand.u32 %s36, 1
          %s335 = scalar_lea.sflag [#allocation3], %s334
          %s336 = sand.u32 %s36, 1
          %s337 = smul.addr %s336, 128
          %s338 = scalar_lea.vmem [#allocation2], %s337
          %s339 = smul.u32 4, %s26
          %s341 = ssub.s32 2048, 2048
          %342 = vsyncadd %s335, %s341
          %s343 = smul.addr %s339, 4
          %s344 = smul.addr %s343, 128
          %s345 = scalar_lea.hbm %s0, %s344
          %s346 = sshll.u32 %s338, 4
          %s347 = int_to_ptr.vmem [resolvable:$true] %s346
          %352 = dma.hbm_to_vmem [thread:$0]  %s345, 2048, %s347, %s335, 128, 128, 8
        $region48: #{tpu_custom_call.1} parent=43 // pred_fallthru
          _
        // Predicated region
        $region49: #{tpu_custom_call.1} parent=43 // pred_check
          %p353 = pneg %p72
        $region50: #{tpu_custom_call.1} parent=43 // pred_check_branch
          %355 = sbr.rel (%p353) target = $region52
        $region51: #{tpu_custom_call.1} parent=43 // pred_region
          %s356 = sand.u32 %s26, 1
          %s357 = scalar_lea.sflag [#allocation6], %s356
          %s358 = sand.u32 %s62, 1
          %s359 = smul.addr %s358, 128
          %s360 = scalar_lea.vmem [#allocation5], %s359
          %s361 = smul.u32 4, %s26
          %s363 = ssub.s32 2048, 2048
          %364 = vsyncadd %s357, %s363
          %s365 = smul.addr %s361, 4
          %s366 = smul.addr %s365, 128
          %s367 = scalar_lea.hbm %s1, %s366
          %s368 = sshll.u32 %s360, 4
          %s369 = int_to_ptr.vmem [resolvable:$true] %s368
          %374 = dma.hbm_to_vmem [thread:$0]  %s367, 2048, %s369, %s357, 128, 128, 8
        $region52: #{tpu_custom_call.1} parent=43 // pred_fallthru
          _
      $region44: #{tpu_custom_call.1} parent=5 // pred_fallthru
        _
      %p375 = scmp.le.s32.totalorder 1, %s26
      %p376 = scmp.lt.s32.totalorder %s26, 3
      %p377 = pnand %p375, %p376
      %p378 = pneg %p377
      // Predicated region
      $region53: #{tpu_custom_call.1} parent=5 // pred_check
        _
      $region54: #{tpu_custom_call.1} parent=5 // pred_check_branch
        %380 = sbr.rel (%p377) target = $region56
      $region55: #{tpu_custom_call.1} parent=5 // pred_region
        %s381 = ssub.s32 %s26, 1
        %s382 = sand.u32 %s39, 1
        %s383 = scalar_lea.sflag [#allocation3], %s382
        %s384 = sand.u32 %s39, 1
        %s385 = smul.addr %s384, 128
        %s386 = scalar_lea.vmem [#allocation2], %s385
        // Predicated region
        $region57: #{tpu_custom_call.1} parent=55 // pred_check
          %p387 = pneg %p52
        $region58: #{tpu_custom_call.1} parent=55 // pred_check_branch
          %389 = sbr.rel (%p387) target = $region60
        $region59: #{tpu_custom_call.1} parent=55 // pred_region
          %390 = dma.done %s383, 2048
        $region60: #{tpu_custom_call.1} parent=55 // pred_fallthru
          _
        %s391 = sand.u32 %s31, 1
        %s392 = scalar_lea.sflag [#allocation6], %s391
        %s393 = sand.u32 %s65, 1
        %s394 = smul.addr %s393, 128
        %s395 = scalar_lea.vmem [#allocation5], %s394
        // Predicated region
        $region61: #{tpu_custom_call.1} parent=55 // pred_check
          %p396 = pneg %p78
        $region62: #{tpu_custom_call.1} parent=55 // pred_check_branch
          %398 = sbr.rel (%p396) target = $region64
        $region63: #{tpu_custom_call.1} parent=55 // pred_region
          %399 = dma.done %s392, 2048
        $region64: #{tpu_custom_call.1} parent=55 // pred_fallthru
          _
        // Predicated region
        $region65: #{tpu_custom_call.1} parent=55 // pred_check
          %p400 = pneg %p99
        $region66: #{tpu_custom_call.1} parent=55 // pred_check_branch
          %402 = sbr.rel (%p400) target = $region68
        $region67: #{tpu_custom_call.1} parent=55 // pred_region
          %403 = dma.done [#allocation6], 3072
        $region68: #{tpu_custom_call.1} parent=55 // pred_fallthru
          _
        // Predicated region
        $region69: #{tpu_custom_call.1} parent=55 // pred_check
          %p404 = pneg %p141
        $region70: #{tpu_custom_call.1} parent=55 // pred_check_branch
          %406 = sbr.rel (%p404) target = $region72
        $region71: #{tpu_custom_call.1} parent=55 // pred_region
          %407 = dma.done [#allocation9], 1024
        $region72: #{tpu_custom_call.1} parent=55 // pred_fallthru
          _
        // Predicated region
        $region73: #{tpu_custom_call.1} parent=55 // pred_check
          %p408 = pneg %p162
        $region74: #{tpu_custom_call.1} parent=55 // pred_check_branch
          %410 = sbr.rel (%p408) target = $region76
        $region75: #{tpu_custom_call.1} parent=55 // pred_region
          %411 = dma.done [#allocation9], 4096
        $region76: #{tpu_custom_call.1} parent=55 // pred_fallthru
          _
        // Predicated region
        $region77: #{tpu_custom_call.1} parent=55 // pred_check
          %p412 = pneg %p204
        $region78: #{tpu_custom_call.1} parent=55 // pred_check_branch
          %414 = sbr.rel (%p412) target = $region80
        $region79: #{tpu_custom_call.1} parent=55 // pred_region
          %415 = dma.done [#allocation12], 4096
        $region80: #{tpu_custom_call.1} parent=55 // pred_fallthru
          _
        %s416 = sand.u32 %s39, 1
        %s417 = scalar_lea.sflag [#allocation3], %s416
        %s418 = sand.u32 %s39, 1
        %s419 = smul.addr %s418, 128
        %s420 = scalar_lea.vmem [#allocation2], %s419
        %p421 = pneg %p52
        %p422 = pneg %p49
        %s423 = sand.u32 %s31, 1
        %s424 = scalar_lea.sflag [#allocation6], %s423
        %s425 = sand.u32 %s65, 1
        %s426 = smul.addr %s425, 128
        %s427 = scalar_lea.vmem [#allocation5], %s426
        %p428 = pneg %p78
        %p429 = pneg %p75
        %p430 = pneg %p99
        %p431 = pneg %p96
        %p432 = pneg %p120
        %p433 = pneg %p117
        %p434 = pneg %p141
        %p435 = pneg %p138
        %p436 = pneg %p162
        %p437 = pneg %p159
        %p438 = pneg %p183
        %p439 = pneg %p180
        %p440 = pneg %p204
        %p441 = pneg %p201
        %p442 = pneg %p225
        %p443 = pneg %p222
        %p444 = pneg %p251
        %p445 = pneg %p248
        %s446 = sand.u32 %s238, 1
        %s447 = scalar_lea.sflag [#allocation4], %s446
        %s448 = sand.u32 %s238, 1
        %s449 = smul.addr %s448, 128
        %s450 = scalar_lea.vmem [#allocation13], %s449
        %s451 = smul.u32 4, %s31
        %s452 = smul.u32 4, %s31
        %s453 = smul.u32 4, %s31
        %v455 = vld [vmem:[%s386] sm:$0xff]
        %v456 = vld [vmem:[%s386 + $0x8] sm:$0xff]
        %v457 = vld [vmem:[%s386 + $0x10] sm:$0xff]
        %v458 = vld [vmem:[%s386 + $0x18] sm:$0xff]
        %v459 = vld [vmem:[%s386 + $0x20] sm:$0xff]
        %v460 = vld [vmem:[%s386 + $0x28] sm:$0xff]
        %v461 = vld [vmem:[%s386 + $0x30] sm:$0xff]
        %v462 = vld [vmem:[%s386 + $0x38] sm:$0xff]
        %v463 = vld [vmem:[%s386 + $0x40] sm:$0xff]
        %v464 = vld [vmem:[%s386 + $0x48] sm:$0xff]
        %v465 = vld [vmem:[%s386 + $0x50] sm:$0xff]
        %v466 = vld [vmem:[%s386 + $0x58] sm:$0xff]
        %v467 = vld [vmem:[%s386 + $0x60] sm:$0xff]
        %v468 = vld [vmem:[%s386 + $0x68] sm:$0xff]
        %v469 = vld [vmem:[%s386 + $0x70] sm:$0xff]
        %v470 = vld [vmem:[%s386 + $0x78] sm:$0xff]
        %v471 = vld [vmem:[%s395] sm:$0xff]
        %v472 = vld [vmem:[%s395 + $0x8] sm:$0xff]
        %v473 = vld [vmem:[%s395 + $0x10] sm:$0xff]
        %v474 = vld [vmem:[%s395 + $0x18] sm:$0xff]
        %v475 = vld [vmem:[%s395 + $0x20] sm:$0xff]
        %v476 = vld [vmem:[%s395 + $0x28] sm:$0xff]
        %v477 = vld [vmem:[%s395 + $0x30] sm:$0xff]
        %v478 = vld [vmem:[%s395 + $0x38] sm:$0xff]
        %v479 = vld [vmem:[%s395 + $0x40] sm:$0xff]
        %v480 = vld [vmem:[%s395 + $0x48] sm:$0xff]
        %v481 = vld [vmem:[%s395 + $0x50] sm:$0xff]
        %v482 = vld [vmem:[%s395 + $0x58] sm:$0xff]
        %v483 = vld [vmem:[%s395 + $0x60] sm:$0xff]
        %v484 = vld [vmem:[%s395 + $0x68] sm:$0xff]
        %v485 = vld [vmem:[%s395 + $0x70] sm:$0xff]
        %v486 = vld [vmem:[%s395 + $0x78] sm:$0xff]
        %v487 = vld [vmem:[%s8] sm:$0x1]
        %v488 = vld [vmem:[%s8 + $0x1] sm:$0x1]
        %v489 = vld [vmem:[%s8 + $0x2] sm:$0x1]
        %v490 = vld [vmem:[%s8 + $0x3] sm:$0x1]
        %v491 = vld [vmem:[%s8 + $0x4] sm:$0x1]
        %v492 = vld [vmem:[%s8 + $0x5] sm:$0x1]
        %493 = vadd.xlane.f32.xlu0 %v455
        %v494 = vpop.xlane.xlu0 %493
        %495 = vadd.xlane.f32.xlu0 %v456
        %v496 = vpop.xlane.xlu0 %495
        %497 = vadd.xlane.f32.xlu0 %v457
        %v498 = vpop.xlane.xlu0 %497
        %499 = vadd.xlane.f32.xlu0 %v458
        %v500 = vpop.xlane.xlu0 %499
        %501 = vadd.xlane.f32.xlu0 %v459
        %v502 = vpop.xlane.xlu0 %501
        %503 = vadd.xlane.f32.xlu0 %v460
        %v504 = vpop.xlane.xlu0 %503
        %505 = vadd.xlane.f32.xlu0 %v461
        %v506 = vpop.xlane.xlu0 %505
        %507 = vadd.xlane.f32.xlu0 %v462
        %v508 = vpop.xlane.xlu0 %507
        %509 = vadd.xlane.f32.xlu0 %v463
        %v510 = vpop.xlane.xlu0 %509
        %511 = vadd.xlane.f32.xlu0 %v464
        %v512 = vpop.xlane.xlu0 %511
        %513 = vadd.xlane.f32.xlu0 %v465
        %v514 = vpop.xlane.xlu0 %513
        %515 = vadd.xlane.f32.xlu0 %v466
        %v516 = vpop.xlane.xlu0 %515
        %517 = vadd.xlane.f32.xlu0 %v467
        %v518 = vpop.xlane.xlu0 %517
        %519 = vadd.xlane.f32.xlu0 %v468
        %v520 = vpop.xlane.xlu0 %519
        %521 = vadd.xlane.f32.xlu0 %v469
        %v522 = vpop.xlane.xlu0 %521
        %523 = vadd.xlane.f32.xlu0 %v470
        %v524 = vpop.xlane.xlu0 %523
        %v525 = vrcp.pop 128.0
        %v526 = vmul.f32 %v494, %v525
        %v527 = vmul.f32 %v496, %v525
        %v528 = vmul.f32 %v498, %v525
        %v529 = vmul.f32 %v500, %v525
        %v530 = vmul.f32 %v502, %v525
        %v531 = vmul.f32 %v504, %v525
        %v532 = vmul.f32 %v506, %v525
        %v533 = vmul.f32 %v508, %v525
        %v534 = vmul.f32 %v510, %v525
        %v535 = vmul.f32 %v512, %v525
        %v536 = vmul.f32 %v514, %v525
        %v537 = vmul.f32 %v516, %v525
        %v538 = vmul.f32 %v518, %v525
        %v539 = vmul.f32 %v520, %v525
        %v540 = vmul.f32 %v522, %v525
        %v541 = vmul.f32 %v524, %v525
        %v542 = vsub.f32 %v455, %v526
        %v543 = vsub.f32 %v456, %v527
        %v544 = vsub.f32 %v457, %v528
        %v545 = vsub.f32 %v458, %v529
        %v546 = vsub.f32 %v459, %v530
        %v547 = vsub.f32 %v460, %v531
        %v548 = vsub.f32 %v461, %v532
        %v549 = vsub.f32 %v462, %v533
        %v550 = vsub.f32 %v463, %v534
        %v551 = vsub.f32 %v464, %v535
        %v552 = vsub.f32 %v465, %v536
        %v553 = vsub.f32 %v466, %v537
        %v554 = vsub.f32 %v467, %v538
        %v555 = vsub.f32 %v468, %v539
        %v556 = vsub.f32 %v469, %v540
        %v557 = vsub.f32 %v470, %v541
        %v558 = vmul.f32 %v542, %v542
        %v559 = vmul.f32 %v543, %v543
        %v560 = vmul.f32 %v544, %v544
        %v561 = vmul.f32 %v545, %v545
        %v562 = vmul.f32 %v546, %v546
        %v563 = vmul.f32 %v547, %v547
        %v564 = vmul.f32 %v548, %v548
        %v565 = vmul.f32 %v549, %v549
        %v566 = vmul.f32 %v550, %v550
        %v567 = vmul.f32 %v551, %v551
        %v568 = vmul.f32 %v552, %v552
        %v569 = vmul.f32 %v553, %v553
        %v570 = vmul.f32 %v554, %v554
        %v571 = vmul.f32 %v555, %v555
        %v572 = vmul.f32 %v556, %v556
        %v573 = vmul.f32 %v557, %v557
        %574 = vadd.xlane.f32.xlu0 %v558
        %v575 = vpop.xlane.xlu0 %574
        %576 = vadd.xlane.f32.xlu0 %v559
        %v577 = vpop.xlane.xlu0 %576
        %578 = vadd.xlane.f32.xlu0 %v560
        %v579 = vpop.xlane.xlu0 %578
        %580 = vadd.xlane.f32.xlu0 %v561
        %v581 = vpop.xlane.xlu0 %580
        %582 = vadd.xlane.f32.xlu0 %v562
        %v583 = vpop.xlane.xlu0 %582
        %584 = vadd.xlane.f32.xlu0 %v563
        %v585 = vpop.xlane.xlu0 %584
        %586 = vadd.xlane.f32.xlu0 %v564
        %v587 = vpop.xlane.xlu0 %586
        %588 = vadd.xlane.f32.xlu0 %v565
        %v589 = vpop.xlane.xlu0 %588
        %590 = vadd.xlane.f32.xlu0 %v566
        %v591 = vpop.xlane.xlu0 %590
        %592 = vadd.xlane.f32.xlu0 %v567
        %v593 = vpop.xlane.xlu0 %592
        %594 = vadd.xlane.f32.xlu0 %v568
        %v595 = vpop.xlane.xlu0 %594
        %596 = vadd.xlane.f32.xlu0 %v569
        %v597 = vpop.xlane.xlu0 %596
        %598 = vadd.xlane.f32.xlu0 %v570
        %v599 = vpop.xlane.xlu0 %598
        %600 = vadd.xlane.f32.xlu0 %v571
        %v601 = vpop.xlane.xlu0 %600
        %602 = vadd.xlane.f32.xlu0 %v572
        %v603 = vpop.xlane.xlu0 %602
        %604 = vadd.xlane.f32.xlu0 %v573
        %v605 = vpop.xlane.xlu0 %604
        %v606 = vmul.f32 %v575, %v525
        %v607 = vmul.f32 %v577, %v525
        %v608 = vmul.f32 %v579, %v525
        %v609 = vmul.f32 %v581, %v525
        %v610 = vmul.f32 %v583, %v525
        %v611 = vmul.f32 %v585, %v525
        %v612 = vmul.f32 %v587, %v525
        %v613 = vmul.f32 %v589, %v525
        %v614 = vmul.f32 %v591, %v525
        %v615 = vmul.f32 %v593, %v525
        %v616 = vmul.f32 %v595, %v525
        %v617 = vmul.f32 %v597, %v525
        %v618 = vmul.f32 %v599, %v525
        %v619 = vmul.f32 %v601, %v525
        %v620 = vmul.f32 %v603, %v525
        %v621 = vmul.f32 %v605, %v525
        %v622 = vadd.f32 %v606, 1e-05
        %v623 = vadd.f32 %v607, 1e-05
        %v624 = vadd.f32 %v608, 1e-05
        %v625 = vadd.f32 %v609, 1e-05
        %v626 = vadd.f32 %v610, 1e-05
        %v627 = vadd.f32 %v611, 1e-05
        %v628 = vadd.f32 %v612, 1e-05
        %v629 = vadd.f32 %v613, 1e-05
        %v630 = vadd.f32 %v614, 1e-05
        %v631 = vadd.f32 %v615, 1e-05
        %v632 = vadd.f32 %v616, 1e-05
        %v633 = vadd.f32 %v617, 1e-05
        %v634 = vadd.f32 %v618, 1e-05
        %v635 = vadd.f32 %v619, 1e-05
        %v636 = vadd.f32 %v620, 1e-05
        %v637 = vadd.f32 %v621, 1e-05
        %v638 = vrsqrt.pop %v622
        %v639 = vrsqrt.pop %v623
        %v640 = vrsqrt.pop %v624
        %v641 = vrsqrt.pop %v625
        %v642 = vrsqrt.pop %v626
        %v643 = vrsqrt.pop %v627
        %v644 = vrsqrt.pop %v628
        %v645 = vrsqrt.pop %v629
        %v646 = vrsqrt.pop %v630
        %v647 = vrsqrt.pop %v631
        %v648 = vrsqrt.pop %v632
        %v649 = vrsqrt.pop %v633
        %v650 = vrsqrt.pop %v634
        %v651 = vrsqrt.pop %v635
        %v652 = vrsqrt.pop %v636
        %v653 = vrsqrt.pop %v637
        %v654 = vmul.f32 %v542, %v638
        %v655 = vmul.f32 %v543, %v639
        %v656 = vmul.f32 %v544, %v640
        %v657 = vmul.f32 %v545, %v641
        %v658 = vmul.f32 %v546, %v642
        %v659 = vmul.f32 %v547, %v643
        %v660 = vmul.f32 %v548, %v644
        %v661 = vmul.f32 %v549, %v645
        %v662 = vmul.f32 %v550, %v646
        %v663 = vmul.f32 %v551, %v647
        %v664 = vmul.f32 %v552, %v648
        %v665 = vmul.f32 %v553, %v649
        %v666 = vmul.f32 %v554, %v650
        %v667 = vmul.f32 %v555, %v651
        %v668 = vmul.f32 %v556, %v652
        %v669 = vmul.f32 %v557, %v653
        %v670 = vlaneseq
        %v671 = vshrl.u32 %v670, 7
        %v672 = vsub.s32 0, %v671
        %v673 = vrot.slane %v488, %v672
        %v674 = vmul.f32 %v654, %v673
        %v675 = vmul.f32 %v655, %v673
        %v676 = vmul.f32 %v656, %v673
        %v677 = vmul.f32 %v657, %v673
        %v678 = vmul.f32 %v658, %v673
        %v679 = vmul.f32 %v659, %v673
        %v680 = vmul.f32 %v660, %v673
        %v681 = vmul.f32 %v661, %v673
        %v682 = vmul.f32 %v662, %v673
        %v683 = vmul.f32 %v663, %v673
        %v684 = vmul.f32 %v664, %v673
        %v685 = vmul.f32 %v665, %v673
        %v686 = vmul.f32 %v666, %v673
        %v687 = vmul.f32 %v667, %v673
        %v688 = vmul.f32 %v668, %v673
        %v689 = vmul.f32 %v669, %v673
        %v690 = vlaneseq
        %v691 = vshrl.u32 %v690, 7
        %v692 = vsub.s32 0, %v691
        %v693 = vrot.slane %v489, %v692
        %v694 = vadd.f32 %v674, %v693
        %v695 = vadd.f32 %v675, %v693
        %v696 = vadd.f32 %v676, %v693
        %v697 = vadd.f32 %v677, %v693
        %v698 = vadd.f32 %v678, %v693
        %v699 = vadd.f32 %v679, %v693
        %v700 = vadd.f32 %v680, %v693
        %v701 = vadd.f32 %v681, %v693
        %v702 = vadd.f32 %v682, %v693
        %v703 = vadd.f32 %v683, %v693
        %v704 = vadd.f32 %v684, %v693
        %v705 = vadd.f32 %v685, %v693
        %v706 = vadd.f32 %v686, %v693
        %v707 = vadd.f32 %v687, %v693
        %v708 = vadd.f32 %v688, %v693
        %v709 = vadd.f32 %v689, %v693
        %v710 = vpack.c.bf16 %v695, %v694
        %v711 = vpack.c.bf16 %v697, %v696
        %v712 = vpack.c.bf16 %v699, %v698
        %v713 = vpack.c.bf16 %v701, %v700
        %v714 = vpack.c.bf16 %v703, %v702
        %v715 = vpack.c.bf16 %v705, %v704
        %v716 = vpack.c.bf16 %v707, %v706
        %v717 = vpack.c.bf16 %v709, %v708
        %v718 = vld [vmem:[#allocation7] sm:$0xff]
        %v719 = vld [vmem:[#allocation7 + $0x8] sm:$0xf]
        %v720 = vld [vmem:[#allocation7 + $0xc] sm:$0xff]
        %v721 = vld [vmem:[#allocation7 + $0x14] sm:$0xf]
        %v722 = vld [vmem:[#allocation7 + $0x18] sm:$0xff]
        %v723 = vld [vmem:[#allocation7 + $0x20] sm:$0xf]
        %v724 = vld [vmem:[#allocation7 + $0x24] sm:$0xff]
        %v725 = vld [vmem:[#allocation7 + $0x2c] sm:$0xf]
        %v726 = vld [vmem:[#allocation7 + $0x30] sm:$0xff]
        %v727 = vld [vmem:[#allocation7 + $0x38] sm:$0xf]
        %v728 = vld [vmem:[#allocation7 + $0x3c] sm:$0xff]
        %v729 = vld [vmem:[#allocation7 + $0x44] sm:$0xf]
        %v730 = vld [vmem:[#allocation7 + $0x48] sm:$0xff]
        %v731 = vld [vmem:[#allocation7 + $0x50] sm:$0xf]
        %v732 = vld [vmem:[#allocation7 + $0x54] sm:$0xff]
        %v733 = vld [vmem:[#allocation7 + $0x5c] sm:$0xf]
        %v734 = vld [vmem:[#allocation7 + $0x60] sm:$0xff]
        %v735 = vld [vmem:[#allocation7 + $0x68] sm:$0xf]
        %v736 = vld [vmem:[#allocation7 + $0x6c] sm:$0xff]
        %v737 = vld [vmem:[#allocation7 + $0x74] sm:$0xf]
        %v738 = vld [vmem:[#allocation7 + $0x78] sm:$0xff]
        %v739 = vld [vmem:[#allocation7 + $0x80] sm:$0xf]
        %v740 = vld [vmem:[#allocation7 + $0x84] sm:$0xff]
        %v741 = vld [vmem:[#allocation7 + $0x8c] sm:$0xf]
        %v742 = vld [vmem:[#allocation7 + $0x90] sm:$0xff]
        %v743 = vld [vmem:[#allocation7 + $0x98] sm:$0xf]
        %v744 = vld [vmem:[#allocation7 + $0x9c] sm:$0xff]
        %v745 = vld [vmem:[#allocation7 + $0xa4] sm:$0xf]
        %v746 = vld [vmem:[#allocation7 + $0xa8] sm:$0xff]
        %v747 = vld [vmem:[#allocation7 + $0xb0] sm:$0xf]
        %v748 = vld [vmem:[#allocation7 + $0xb4] sm:$0xff]
        %v749 = vld [vmem:[#allocation7 + $0xbc] sm:$0xf]
        %v750 = vld [vmem:[%s3] sm:$0x7]
        %v752 = vlaneseq
        %v753 = vshrl.u32 %v752, 7
        %v754 = vsub.s32 0, %v753
        %v755 = vrot.slane %v750, %v754
        %v756 = vlaneseq
        %v757 = vshrl.u32 %v756, 7
        %v758 = vsub.s32 1, %v757
        %v759 = vrot.slane %v750, %v758
        %v760 = vlaneseq
        %v761 = vshrl.u32 %v760, 7
        %v762 = vsub.s32 2, %v761
        %v763 = vrot.slane %v750, %v762
        %v799 = vunpack.c.l.b16 %v718
        %v800 = vunpack.c.h.b16 %v718
        %v801 = vunpack.c.l.b16 %v719
        %v802 = vunpack.c.l.b16 %v720
        %v803 = vunpack.c.h.b16 %v720
        %v804 = vunpack.c.l.b16 %v721
        %v805 = vunpack.c.l.b16 %v722
        %v806 = vunpack.c.h.b16 %v722
        %v807 = vunpack.c.l.b16 %v723
        %v808 = vunpack.c.l.b16 %v724
        %v809 = vunpack.c.h.b16 %v724
        %v810 = vunpack.c.l.b16 %v725
        %v811 = vunpack.c.l.b16 %v726
        %v812 = vunpack.c.h.b16 %v726
        %v813 = vunpack.c.l.b16 %v727
        %v814 = vunpack.c.l.b16 %v728
        %v815 = vunpack.c.h.b16 %v728
        %v816 = vunpack.c.l.b16 %v729
        %v817 = vunpack.c.l.b16 %v730
        %v818 = vunpack.c.h.b16 %v730
        %v819 = vunpack.c.l.b16 %v731
        %v820 = vunpack.c.l.b16 %v732
        %v821 = vunpack.c.h.b16 %v732
        %v822 = vunpack.c.l.b16 %v733
        %v823 = vunpack.c.l.b16 %v734
        %v824 = vunpack.c.h.b16 %v734
        %v825 = vunpack.c.l.b16 %v735
        %v826 = vunpack.c.l.b16 %v736
        %v827 = vunpack.c.h.b16 %v736
        %v828 = vunpack.c.l.b16 %v737
        %v829 = vunpack.c.l.b16 %v738
        %v830 = vunpack.c.h.b16 %v738
        %v831 = vunpack.c.l.b16 %v739
        %v832 = vunpack.c.l.b16 %v740
        %v833 = vunpack.c.h.b16 %v740
        %v834 = vunpack.c.l.b16 %v741
        %v835 = vunpack.c.l.b16 %v742
        %v836 = vunpack.c.h.b16 %v742
        %v837 = vunpack.c.l.b16 %v743
        %v838 = vunpack.c.l.b16 %v744
        %v839 = vunpack.c.h.b16 %v744
        %v840 = vunpack.c.l.b16 %v745
        %v841 = vunpack.c.l.b16 %v746
        %v842 = vunpack.c.h.b16 %v746
        %v843 = vunpack.c.l.b16 %v747
        %v844 = vunpack.c.l.b16 %v748
        %v845 = vunpack.c.h.b16 %v748
        %v846 = vunpack.c.l.b16 %v749
        %v847 = vpack.c.b16 %v802, %v799
        %v848 = vpack.c.b16 %v803, %v800
        %v849 = vpack.c.b16 %v804, %v801
        %v850 = vpack.c.b16 %v808, %v805
        %v851 = vpack.c.b16 %v809, %v806
        %v852 = vpack.c.b16 %v810, %v807
        %v853 = vpack.c.b16 %v814, %v811
        %v854 = vpack.c.b16 %v815, %v812
        %v855 = vpack.c.b16 %v816, %v813
        %v856 = vpack.c.b16 %v820, %v817
        %v857 = vpack.c.b16 %v821, %v818
        %v858 = vpack.c.b16 %v822, %v819
        %v859 = vpack.c.b16 %v826, %v823
        %v860 = vpack.c.b16 %v827, %v824
        %v861 = vpack.c.b16 %v828, %v825
        %v862 = vpack.c.b16 %v832, %v829
        %v863 = vpack.c.b16 %v833, %v830
        %v864 = vpack.c.b16 %v834, %v831
        %v865 = vpack.c.b16 %v838, %v835
        %v866 = vpack.c.b16 %v839, %v836
        %v867 = vpack.c.b16 %v840, %v837
        %v868 = vpack.c.b16 %v844, %v841
        %v869 = vpack.c.b16 %v845, %v842
        %v870 = vpack.c.b16 %v846, %v843
        %895 = vmatprep.subr.bf16.mxu0 %v848
        %896 = vmatpush1.bf16.msra.mxu0 %v847
        %897 = vmatprep.subr.bf16.mxu0 %v851
        %898 = vmatpush1.bf16.msra.mxu0 %v850
        %899 = vmatprep.subr.bf16.mxu0 %v854
        %900 = vmatpush1.bf16.msra.mxu0 %v853
        %901 = vmatprep.subr.bf16.mxu0 %v857
        %902 = vmatpush1.bf16.msra.mxu0 %v856
        %903 = vmatprep.subr.bf16.mxu0 %v860
        %904 = vmatpush1.bf16.msra.mxu0 %v859
        %905 = vmatprep.subr.bf16.mxu0 %v863
        %906 = vmatpush1.bf16.msra.mxu0 %v862
        %907 = vmatprep.subr.bf16.mxu0 %v866
        %908 = vmatpush1.bf16.msra.mxu0 %v865
        %909 = vmatprep.subr.bf16.mxu0 %v869
        %910 = vmatpush1.bf16.msra.mxu0 %v868
        %911 = vmatprep.subr.bf16.mxu0 0
        %912 = vmatpush1.bf16.msra.mxu0 0
        %913 = vmatprep.subr.bf16.mxu0 0
        %914 = vmatpush1.bf16.msra.mxu0 0
        %915 = vmatprep.subr.bf16.mxu0 0
        %916 = vmatpush1.bf16.msra.mxu0 0
        %917 = vmatprep.subr.bf16.mxu0 0
        %918 = vmatpush1.bf16.msra.mxu0 0
        %919 = vmatprep.subr.bf16.mxu0 0
        %920 = vmatpush1.bf16.msra.mxu0 0
        %921 = vmatprep.subr.bf16.mxu0 0
        %922 = vmatpush1.bf16.msra.mxu0 0
        %923 = vmatprep.subr.bf16.mxu0 0
        %924 = vmatpush1.bf16.msra.mxu0 0
        %925 = vmatprep.subr.bf16.mxu0 0
        %926 = vmatpush1.bf16.msra.mxu0 0
        %927 = vmatprep.mubr.bf16.mxu0 0
        %928 = vmatmul.mubr.bf16.gmra.mrb[0].mxu0 %v710
        %v929 = vpop.f32.mrb[0].mxu0
        %v930 = vadd.f32 %v755, %v929
        %v931 = vpop.f32.mrb[0].mxu0
        %v932 = vadd.f32 %v759, %v931
        %v933 = vpop.f32.mrb[0].mxu0
        %v934 = vadd.f32 %v755, %v933
        %v935 = vpop.f32.mrb[0].mxu0
        %v936 = vadd.f32 %v759, %v935
        %937 = vmatprep.mubr.bf16.mxu0 0
        %938 = vmatmul.mubr.bf16.gmra.mrb[0].mxu0 %v711
        %v939 = vpop.f32.mrb[0].mxu0
        %v940 = vadd.f32 %v755, %v939
        %v941 = vpop.f32.mrb[0].mxu0
        %v942 = vadd.f32 %v759, %v941
        %v943 = vpop.f32.mrb[0].mxu0
        %v944 = vadd.f32 %v755, %v943
        %v945 = vpop.f32.mrb[0].mxu0
        %v946 = vadd.f32 %v759, %v945
        %947 = vmatprep.mubr.bf16.mxu0 0
        %948 = vmatmul.mubr.bf16.gmra.mrb[0].mxu0 %v712
        %v949 = vpop.f32.mrb[0].mxu0
        %v950 = vadd.f32 %v755, %v949
        %v951 = vpop.f32.mrb[0].mxu0
        %v952 = vadd.f32 %v759, %v951
        %v953 = vpop.f32.mrb[0].mxu0
        %v954 = vadd.f32 %v755, %v953
        %v955 = vpop.f32.mrb[0].mxu0
        %v956 = vadd.f32 %v759, %v955
        %957 = vmatprep.mubr.bf16.mxu0 0
        %958 = vmatmul.mubr.bf16.gmra.mrb[0].mxu0 %v713
        %v959 = vpop.f32.mrb[0].mxu0
        %v960 = vadd.f32 %v755, %v959
        %v961 = vpop.f32.mrb[0].mxu0
        %v962 = vadd.f32 %v759, %v961
        %v963 = vpop.f32.mrb[0].mxu0
        %v964 = vadd.f32 %v755, %v963
        %v965 = vpop.f32.mrb[0].mxu0
        %v966 = vadd.f32 %v759, %v965
        %967 = vmatprep.mubr.bf16.mxu0 0
        %968 = vmatmul.mubr.bf16.gmra.mrb[0].mxu0 %v714
        %v969 = vpop.f32.mrb[0].mxu0
        %v970 = vadd.f32 %v755, %v969
        %v971 = vpop.f32.mrb[0].mxu0
        %v972 = vadd.f32 %v759, %v971
        %v973 = vpop.f32.mrb[0].mxu0
        %v974 = vadd.f32 %v755, %v973
        %v975 = vpop.f32.mrb[0].mxu0
        %v976 = vadd.f32 %v759, %v975
        %977 = vmatprep.mubr.bf16.mxu0 0
        %978 = vmatmul.mubr.bf16.gmra.mrb[0].mxu0 %v715
        %v979 = vpop.f32.mrb[0].mxu0
        %v980 = vadd.f32 %v755, %v979
        %v981 = vpop.f32.mrb[0].mxu0
        %v982 = vadd.f32 %v759, %v981
        %v983 = vpop.f32.mrb[0].mxu0
        %v984 = vadd.f32 %v755, %v983
        %v985 = vpop.f32.mrb[0].mxu0
        %v986 = vadd.f32 %v759, %v985
        %987 = vmatprep.mubr.bf16.mxu0 0
        %988 = vmatmul.mubr.bf16.gmra.mrb[0].mxu0 %v716
        %v989 = vpop.f32.mrb[0].mxu0
        %v990 = vadd.f32 %v755, %v989
        %v991 = vpop.f32.mrb[0].mxu0
        %v992 = vadd.f32 %v759, %v991
        %v993 = vpop.f32.mrb[0].mxu0
        %v994 = vadd.f32 %v755, %v993
        %v995 = vpop.f32.mrb[0].mxu0
        %v996 = vadd.f32 %v759, %v995
        %997 = vmatprep.mubr.bf16.mxu0 0
        %998 = vmatmul.mubr.bf16.gmra.mrb[0].mxu0 %v717
        %v999 = vpop.f32.mrb[0].mxu0
        %v1000 = vadd.f32 %v755, %v999
        %v1001 = vpop.f32.mrb[0].mxu0
        %v1002 = vadd.f32 %v759, %v1001
        %v1003 = vpop.f32.mrb[0].mxu0
        %v1004 = vadd.f32 %v755, %v1003
        %v1005 = vpop.f32.mrb[0].mxu0
        %v1006 = vadd.f32 %v759, %v1005
        %1007 = vdwg.mxu0
        %1008 = vmatprep.subr.bf16.mxu0 0
        %1009 = vmatpush1.bf16.msra.mxu0 %v849
        %1010 = vmatprep.subr.bf16.mxu0 0
        %1011 = vmatpush1.bf16.msra.mxu0 %v852
        %1012 = vmatprep.subr.bf16.mxu0 0
        %1013 = vmatpush1.bf16.msra.mxu0 %v855
        %1014 = vmatprep.subr.bf16.mxu0 0
        %1015 = vmatpush1.bf16.msra.mxu0 %v858
        %1016 = vmatprep.subr.bf16.mxu0 0
        %1017 = vmatpush1.bf16.msra.mxu0 %v861
        %1018 = vmatprep.subr.bf16.mxu0 0
        %1019 = vmatpush1.bf16.msra.mxu0 %v864
        %1020 = vmatprep.subr.bf16.mxu0 0
        %1021 = vmatpush1.bf16.msra.mxu0 %v867
        %1022 = vmatprep.subr.bf16.mxu0 0
        %1023 = vmatpush1.bf16.msra.mxu0 %v870
        %1024 = vmatprep.subr.bf16.mxu0 0
        %1025 = vmatpush1.bf16.msra.mxu0 0
        %1026 = vmatprep.subr.bf16.mxu0 0
        %1027 = vmatpush1.bf16.msra.mxu0 0
        %1028 = vmatprep.subr.bf16.mxu0 0
        %1029 = vmatpush1.bf16.msra.mxu0 0
        %1030 = vmatprep.subr.bf16.mxu0 0
        %1031 = vmatpush1.bf16.msra.mxu0 0
        %1032 = vmatprep.subr.bf16.mxu0 0
        %1033 = vmatpush1.bf16.msra.mxu0 0
        %1034 = vmatprep.subr.bf16.mxu0 0
        %1035 = vmatpush1.bf16.msra.mxu0 0
        %1036 = vmatprep.subr.bf16.mxu0 0
        %1037 = vmatpush1.bf16.msra.mxu0 0
        %1038 = vmatprep.subr.bf16.mxu0 0
        %1039 = vmatpush1.bf16.msra.mxu0 0
        %1040 = vmatprep.mubr.bf16.mxu0 0
        %1041 = vmatmul.mubr.bf16.gmra.mrb[0].mxu0 %v710
        %v1042 = vpop.f32.mrb[0].mxu0
        %v1043 = vadd.f32 %v763, %v1042
        %v1044 = vpop.f32.mrb[0].mxu0
        %v1045 = vpop.f32.mrb[0].mxu0
        %v1046 = vadd.f32 %v763, %v1045
        %v1047 = vpop.f32.mrb[0].mxu0
        %1048 = vmatprep.mubr.bf16.mxu0 0
        %1049 = vmatmul.mubr.bf16.gmra.mrb[0].mxu0 %v711
        %v1050 = vpop.f32.mrb[0].mxu0
        %v1051 = vadd.f32 %v763, %v1050
        %v1052 = vpop.f32.mrb[0].mxu0
        %v1053 = vpop.f32.mrb[0].mxu0
        %v1054 = vadd.f32 %v763, %v1053
        %v1055 = vpop.f32.mrb[0].mxu0
        %1056 = vmatprep.mubr.bf16.mxu0 0
        %1057 = vmatmul.mubr.bf16.gmra.mrb[0].mxu0 %v712
        %v1058 = vpop.f32.mrb[0].mxu0
        %v1059 = vadd.f32 %v763, %v1058
        %v1060 = vpop.f32.mrb[0].mxu0
        %v1061 = vpop.f32.mrb[0].mxu0
        %v1062 = vadd.f32 %v763, %v1061
        %v1063 = vpop.f32.mrb[0].mxu0
        %1064 = vmatprep.mubr.bf16.mxu0 0
        %1065 = vmatmul.mubr.bf16.gmra.mrb[0].mxu0 %v713
        %v1066 = vpop.f32.mrb[0].mxu0
        %v1067 = vadd.f32 %v763, %v1066
        %v1068 = vpop.f32.mrb[0].mxu0
        %v1069 = vpop.f32.mrb[0].mxu0
        %v1070 = vadd.f32 %v763, %v1069
        %v1071 = vpop.f32.mrb[0].mxu0
        %1072 = vmatprep.mubr.bf16.mxu0 0
        %1073 = vmatmul.mubr.bf16.gmra.mrb[0].mxu0 %v714
        %v1074 = vpop.f32.mrb[0].mxu0
        %v1075 = vadd.f32 %v763, %v1074
        %v1076 = vpop.f32.mrb[0].mxu0
        %v1077 = vpop.f32.mrb[0].mxu0
        %v1078 = vadd.f32 %v763, %v1077
        %v1079 = vpop.f32.mrb[0].mxu0
        %1080 = vmatprep.mubr.bf16.mxu0 0
        %1081 = vmatmul.mubr.bf16.gmra.mrb[0].mxu0 %v715
        %v1082 = vpop.f32.mrb[0].mxu0
        %v1083 = vadd.f32 %v763, %v1082
        %v1084 = vpop.f32.mrb[0].mxu0
        %v1085 = vpop.f32.mrb[0].mxu0
        %v1086 = vadd.f32 %v763, %v1085
        %v1087 = vpop.f32.mrb[0].mxu0
        %1088 = vmatprep.mubr.bf16.mxu0 0
        %1089 = vmatmul.mubr.bf16.gmra.mrb[0].mxu0 %v716
        %v1090 = vpop.f32.mrb[0].mxu0
        %v1091 = vadd.f32 %v763, %v1090
        %v1092 = vpop.f32.mrb[0].mxu0
        %v1093 = vpop.f32.mrb[0].mxu0
        %v1094 = vadd.f32 %v763, %v1093
        %v1095 = vpop.f32.mrb[0].mxu0
        %1096 = vmatprep.mubr.bf16.mxu0 0
        %1097 = vmatmul.mubr.bf16.gmra.mrb[0].mxu0 %v717
        %v1098 = vpop.f32.mrb[0].mxu0
        %v1099 = vadd.f32 %v763, %v1098
        %v1100 = vpop.f32.mrb[0].mxu0
        %v1101 = vpop.f32.mrb[0].mxu0
        %v1102 = vadd.f32 %v763, %v1101
        %v1103 = vpop.f32.mrb[0].mxu0
        %1104 = vdwg.mxu0
        %v1105 = vmul.f32 %v930, 0.17677669
        %v1106 = vmul.f32 %v934, 0.17677669
        %v1107 = vmul.f32 %v940, 0.17677669
        %v1108 = vmul.f32 %v944, 0.17677669
        %v1109 = vmul.f32 %v950, 0.17677669
        %v1110 = vmul.f32 %v954, 0.17677669
        %v1111 = vmul.f32 %v960, 0.17677669
        %v1112 = vmul.f32 %v964, 0.17677669
        %v1113 = vmul.f32 %v970, 0.17677669
        %v1114 = vmul.f32 %v974, 0.17677669
        %v1115 = vmul.f32 %v980, 0.17677669
        %v1116 = vmul.f32 %v984, 0.17677669
        %v1117 = vmul.f32 %v990, 0.17677669
        %v1118 = vmul.f32 %v994, 0.17677669
        %v1119 = vmul.f32 %v1000, 0.17677669
        %v1120 = vmul.f32 %v1004, 0.17677669
        %v1121 = vpack.c.bf16 %v1106, %v1105
        %v1122 = vpack.c.bf16 %v1108, %v1107
        %v1123 = vpack.c.bf16 %v1110, %v1109
        %v1124 = vpack.c.bf16 %v1112, %v1111
        %v1125 = vpack.c.bf16 %v1114, %v1113
        %v1126 = vpack.c.bf16 %v1116, %v1115
        %v1127 = vpack.c.bf16 %v1118, %v1117
        %v1128 = vpack.c.bf16 %v1120, %v1119
        %v1129 = vpack.c.bf16 %v936, %v932
        %v1130 = vpack.c.bf16 %v946, %v942
        %v1131 = vpack.c.bf16 %v956, %v952
        %v1132 = vpack.c.bf16 %v966, %v962
        %v1133 = vpack.c.bf16 %v976, %v972
        %v1134 = vpack.c.bf16 %v986, %v982
        %v1135 = vpack.c.bf16 %v996, %v992
        %v1136 = vpack.c.bf16 %v1006, %v1002
        %v1137 = vpack.c.bf16 %v1046, %v1043
        %v1138 = vpack.c.bf16 %v1054, %v1051
        %v1139 = vpack.c.bf16 %v1062, %v1059
        %v1140 = vpack.c.bf16 %v1070, %v1067
        %v1141 = vpack.c.bf16 %v1078, %v1075
        %v1142 = vpack.c.bf16 %v1086, %v1083
        %v1143 = vpack.c.bf16 %v1094, %v1091
        %v1144 = vpack.c.bf16 %v1102, %v1099
        %vm1145 = vcmask 261120
        %v1147 = vsel %vm1145, %v1121, 0
        %v1150 = vsel %vm1145, %v1122, 0
        %v1153 = vsel %vm1145, %v1129, 0
        %v1156 = vsel %vm1145, %v1130, 0
        %1158 = vmatprep.subr.bf16.mxu0 0
        %1159 = vmatpush1.bf16.xpose.msra.mxu0 %v1153
        %1160 = vmatprep.subr.bf16.mxu0 0
        %1161 = vmatpush1.bf16.xpose.msra.mxu0 %v1156
        %1162 = vmatprep.subr.bf16.mxu0 0
        %1163 = vmatpush1.bf16.xpose.msra.mxu0 0
        %1164 = vmatprep.subr.bf16.mxu0 0
        %1165 = vmatpush1.bf16.xpose.msra.mxu0 0
        %1166 = vmatprep.subr.bf16.mxu0 0
        %1167 = vmatpush1.bf16.xpose.msra.mxu0 0
        %1168 = vmatprep.subr.bf16.mxu0 0
        %1169 = vmatpush1.bf16.xpose.msra.mxu0 0
        %1170 = vmatprep.subr.bf16.mxu0 0
        %1171 = vmatpush1.bf16.xpose.msra.mxu0 0
        %1172 = vmatprep.subr.bf16.mxu0 0
        %1173 = vmatpush1.bf16.xpose.msra.mxu0 0
        %1174 = vmatprep.subr.bf16.mxu0 0
        %1175 = vmatpush1.bf16.xpose.msra.mxu0 0
        %1176 = vmatprep.subr.bf16.mxu0 0
        %1177 = vmatpush1.bf16.xpose.msra.mxu0 0
        %1178 = vmatprep.subr.bf16.mxu0 0
        %1179 = vmatpush1.bf16.xpose.msra.mxu0 0
        %1180 = vmatprep.subr.bf16.mxu0 0
        %1181 = vmatpush1.bf16.xpose.msra.mxu0 0
        %1182 = vmatprep.subr.bf16.mxu0 0
        %1183 = vmatpush1.bf16.xpose.msra.mxu0 0
        %1184 = vmatprep.subr.bf16.mxu0 0
        %1185 = vmatpush1.bf16.xpose.msra.mxu0 0
        %1186 = vmatprep.subr.bf16.mxu0 0
        %1187 = vmatpush1.bf16.xpose.msra.mxu0 0
        %1188 = vmatprep.subr.bf16.mxu0 0
        %1189 = vmatpush1.bf16.xpose.msra.mxu0 0
        %1190 = vmatprep.mubr.bf16.mxu0 0
        %1191 = vmatmul.mubr.bf16.gmra.mrb[0].mxu0 %v1147
        %v1192 = vpop.f32.mrb[0].mxu0
        %v1193 = vadd.f32 %v471, %v1192
        %v1194 = vpop.f32.mrb[0].mxu0
        %v1195 = vpop.f32.mrb[0].mxu0
        %v1196 = vadd.f32 %v472, %v1195
        %v1197 = vpop.f32.mrb[0].mxu0
        %1198 = vmatprep.mubr.bf16.mxu0 0
        %1199 = vmatmul.mubr.bf16.gmra.mrb[0].mxu0 %v1150
        %v1200 = vpop.f32.mrb[0].mxu0
        %v1201 = vadd.f32 %v473, %v1200
        %v1202 = vpop.f32.mrb[0].mxu0
        %v1203 = vpop.f32.mrb[0].mxu0
        %v1204 = vadd.f32 %v474, %v1203
        %v1205 = vpop.f32.mrb[0].mxu0
        %1206 = vdwg.mxu0
        %v1208 = vsel %vm1145, %v1123, 0
        %v1211 = vsel %vm1145, %v1124, 0
        %v1214 = vsel %vm1145, %v1131, 0
        %v1217 = vsel %vm1145, %v1132, 0
        %1219 = vmatprep.subr.bf16.mxu0 0
        %1220 = vmatpush1.bf16.xpose.msra.mxu0 %v1214
        %1221 = vmatprep.subr.bf16.mxu0 0
        %1222 = vmatpush1.bf16.xpose.msra.mxu0 %v1217
        %1223 = vmatprep.subr.bf16.mxu0 0
        %1224 = vmatpush1.bf16.xpose.msra.mxu0 0
        %1225 = vmatprep.subr.bf16.mxu0 0
        %1226 = vmatpush1.bf16.xpose.msra.mxu0 0
        %1227 = vmatprep.subr.bf16.mxu0 0
        %1228 = vmatpush1.bf16.xpose.msra.mxu0 0
        %1229 = vmatprep.subr.bf16.mxu0 0
        %1230 = vmatpush1.bf16.xpose.msra.mxu0 0
        %1231 = vmatprep.subr.bf16.mxu0 0
        %1232 = vmatpush1.bf16.xpose.msra.mxu0 0
        %1233 = vmatprep.subr.bf16.mxu0 0
        %1234 = vmatpush1.bf16.xpose.msra.mxu0 0
        %1235 = vmatprep.subr.bf16.mxu0 0
        %1236 = vmatpush1.bf16.xpose.msra.mxu0 0
        %1237 = vmatprep.subr.bf16.mxu0 0
        %1238 = vmatpush1.bf16.xpose.msra.mxu0 0
        %1239 = vmatprep.subr.bf16.mxu0 0
        %1240 = vmatpush1.bf16.xpose.msra.mxu0 0
        %1241 = vmatprep.subr.bf16.mxu0 0
        %1242 = vmatpush1.bf16.xpose.msra.mxu0 0
        %1243 = vmatprep.subr.bf16.mxu0 0
        %1244 = vmatpush1.bf16.xpose.msra.mxu0 0
        %1245 = vmatprep.subr.bf16.mxu0 0
        %1246 = vmatpush1.bf16.xpose.msra.mxu0 0
        %1247 = vmatprep.subr.bf16.mxu0 0
        %1248 = vmatpush1.bf16.xpose.msra.mxu0 0
        %1249 = vmatprep.subr.bf16.mxu0 0
        %1250 = vmatpush1.bf16.xpose.msra.mxu0 0
        %1251 = vmatprep.mubr.bf16.mxu0 0
        %1252 = vmatmul.mubr.bf16.gmra.mrb[0].mxu0 %v1208
        %v1253 = vpop.f32.mrb[0].mxu0
        %v1254 = vadd.f32 %v475, %v1253
        %v1255 = vpop.f32.mrb[0].mxu0
        %v1256 = vpop.f32.mrb[0].mxu0
        %v1257 = vadd.f32 %v476, %v1256
        %v1258 = vpop.f32.mrb[0].mxu0
        %1259 = vmatprep.mubr.bf16.mxu0 0
        %1260 = vmatmul.mubr.bf16.gmra.mrb[0].mxu0 %v1211
        %v1261 = vpop.f32.mrb[0].mxu0
        %v1262 = vadd.f32 %v477, %v1261
        %v1263 = vpop.f32.mrb[0].mxu0
        %v1264 = vpop.f32.mrb[0].mxu0
        %v1265 = vadd.f32 %v478, %v1264
        %v1266 = vpop.f32.mrb[0].mxu0
        %1267 = vdwg.mxu0
        %v1269 = vsel %vm1145, %v1125, 0
        %v1272 = vsel %vm1145, %v1126, 0
        %v1275 = vsel %vm1145, %v1133, 0
        %v1278 = vsel %vm1145, %v1134, 0
        %1280 = vmatprep.subr.bf16.mxu0 0
        %1281 = vmatpush1.bf16.xpose.msra.mxu0 %v1275
        %1282 = vmatprep.subr.bf16.mxu0 0
        %1283 = vmatpush1.bf16.xpose.msra.mxu0 %v1278
        %1284 = vmatprep.subr.bf16.mxu0 0
        %1285 = vmatpush1.bf16.xpose.msra.mxu0 0
        %1286 = vmatprep.subr.bf16.mxu0 0
        %1287 = vmatpush1.bf16.xpose.msra.mxu0 0
        %1288 = vmatprep.subr.bf16.mxu0 0
        %1289 = vmatpush1.bf16.xpose.msra.mxu0 0
        %1290 = vmatprep.subr.bf16.mxu0 0
        %1291 = vmatpush1.bf16.xpose.msra.mxu0 0
        %1292 = vmatprep.subr.bf16.mxu0 0
        %1293 = vmatpush1.bf16.xpose.msra.mxu0 0
        %1294 = vmatprep.subr.bf16.mxu0 0
        %1295 = vmatpush1.bf16.xpose.msra.mxu0 0
        %1296 = vmatprep.subr.bf16.mxu0 0
        %1297 = vmatpush1.bf16.xpose.msra.mxu0 0
        %1298 = vmatprep.subr.bf16.mxu0 0
        %1299 = vmatpush1.bf16.xpose.msra.mxu0 0
        %1300 = vmatprep.subr.bf16.mxu0 0
        %1301 = vmatpush1.bf16.xpose.msra.mxu0 0
        %1302 = vmatprep.subr.bf16.mxu0 0
        %1303 = vmatpush1.bf16.xpose.msra.mxu0 0
        %1304 = vmatprep.subr.bf16.mxu0 0
        %1305 = vmatpush1.bf16.xpose.msra.mxu0 0
        %1306 = vmatprep.subr.bf16.mxu0 0
        %1307 = vmatpush1.bf16.xpose.msra.mxu0 0
        %1308 = vmatprep.subr.bf16.mxu0 0
        %1309 = vmatpush1.bf16.xpose.msra.mxu0 0
        %1310 = vmatprep.subr.bf16.mxu0 0
        %1311 = vmatpush1.bf16.xpose.msra.mxu0 0
        %1312 = vmatprep.mubr.bf16.mxu0 0
        %1313 = vmatmul.mubr.bf16.gmra.mrb[0].mxu0 %v1269
        %v1314 = vpop.f32.mrb[0].mxu0
        %v1315 = vadd.f32 %v479, %v1314
        %v1316 = vpop.f32.mrb[0].mxu0
        %v1317 = vpop.f32.mrb[0].mxu0
        %v1318 = vadd.f32 %v480, %v1317
        %v1319 = vpop.f32.mrb[0].mxu0
        %1320 = vmatprep.mubr.bf16.mxu0 0
        %1321 = vmatmul.mubr.bf16.gmra.mrb[0].mxu0 %v1272
        %v1322 = vpop.f32.mrb[0].mxu0
        %v1323 = vadd.f32 %v481, %v1322
        %v1324 = vpop.f32.mrb[0].mxu0
        %v1325 = vpop.f32.mrb[0].mxu0
        %v1326 = vadd.f32 %v482, %v1325
        %v1327 = vpop.f32.mrb[0].mxu0
        %1328 = vdwg.mxu0
        %v1330 = vsel %vm1145, %v1127, 0
        %v1333 = vsel %vm1145, %v1128, 0
        %v1336 = vsel %vm1145, %v1135, 0
        %v1339 = vsel %vm1145, %v1136, 0
        %1341 = vmatprep.subr.bf16.mxu0 0
        %1342 = vmatpush1.bf16.xpose.msra.mxu0 %v1336
        %1343 = vmatprep.subr.bf16.mxu0 0
        %1344 = vmatpush1.bf16.xpose.msra.mxu0 %v1339
        %1345 = vmatprep.subr.bf16.mxu0 0
        %1346 = vmatpush1.bf16.xpose.msra.mxu0 0
        %1347 = vmatprep.subr.bf16.mxu0 0
        %1348 = vmatpush1.bf16.xpose.msra.mxu0 0
        %1349 = vmatprep.subr.bf16.mxu0 0
        %1350 = vmatpush1.bf16.xpose.msra.mxu0 0
        %1351 = vmatprep.subr.bf16.mxu0 0
        %1352 = vmatpush1.bf16.xpose.msra.mxu0 0
        %1353 = vmatprep.subr.bf16.mxu0 0
        %1354 = vmatpush1.bf16.xpose.msra.mxu0 0
        %1355 = vmatprep.subr.bf16.mxu0 0
        %1356 = vmatpush1.bf16.xpose.msra.mxu0 0
        %1357 = vmatprep.subr.bf16.mxu0 0
        %1358 = vmatpush1.bf16.xpose.msra.mxu0 0
        %1359 = vmatprep.subr.bf16.mxu0 0
        %1360 = vmatpush1.bf16.xpose.msra.mxu0 0
        %1361 = vmatprep.subr.bf16.mxu0 0
        %1362 = vmatpush1.bf16.xpose.msra.mxu0 0
        %1363 = vmatprep.subr.bf16.mxu0 0
        %1364 = vmatpush1.bf16.xpose.msra.mxu0 0
        %1365 = vmatprep.subr.bf16.mxu0 0
        %1366 = vmatpush1.bf16.xpose.msra.mxu0 0
        %1367 = vmatprep.subr.bf16.mxu0 0
        %1368 = vmatpush1.bf16.xpose.msra.mxu0 0
        %1369 = vmatprep.subr.bf16.mxu0 0
        %1370 = vmatpush1.bf16.xpose.msra.mxu0 0
        %1371 = vmatprep.subr.bf16.mxu0 0
        %1372 = vmatpush1.bf16.xpose.msra.mxu0 0
        %1373 = vmatprep.mubr.bf16.mxu0 0
        %1374 = vmatmul.mubr.bf16.gmra.mrb[0].mxu0 %v1330
        %v1375 = vpop.f32.mrb[0].mxu0
        %v1376 = vadd.f32 %v483, %v1375
        %v1377 = vpop.f32.mrb[0].mxu0
        %v1378 = vpop.f32.mrb[0].mxu0
        %v1379 = vadd.f32 %v484, %v1378
        %v1380 = vpop.f32.mrb[0].mxu0
        %1381 = vmatprep.mubr.bf16.mxu0 0
        %1382 = vmatmul.mubr.bf16.gmra.mrb[0].mxu0 %v1333
        %v1383 = vpop.f32.mrb[0].mxu0
        %v1384 = vadd.f32 %v485, %v1383
        %v1385 = vpop.f32.mrb[0].mxu0
        %v1386 = vpop.f32.mrb[0].mxu0
        %v1387 = vadd.f32 %v486, %v1386
        %v1388 = vpop.f32.mrb[0].mxu0
        %1389 = vdwg.mxu0
        %v1390 = vsel %vm1145, %v1193, -inf
        %1391 = vmax.xlane.f32.xlu0 %v1390
        %v1392 = vpop.xlane.xlu0 %1391
        %v1393 = vsel %vm1145, %v1196, -inf
        %1394 = vmax.xlane.f32.xlu0 %v1393
        %v1395 = vpop.xlane.xlu0 %1394
        %v1396 = vsel %vm1145, %v1201, -inf
        %1397 = vmax.xlane.f32.xlu0 %v1396
        %v1398 = vpop.xlane.xlu0 %1397
        %v1399 = vsel %vm1145, %v1204, -inf
        %1400 = vmax.xlane.f32.xlu0 %v1399
        %v1401 = vpop.xlane.xlu0 %1400
        %v1402 = vsel %vm1145, %v1254, -inf
        %1403 = vmax.xlane.f32.xlu0 %v1402
        %v1404 = vpop.xlane.xlu0 %1403
        %v1405 = vsel %vm1145, %v1257, -inf
        %1406 = vmax.xlane.f32.xlu0 %v1405
        %v1407 = vpop.xlane.xlu0 %1406
        %v1408 = vsel %vm1145, %v1262, -inf
        %1409 = vmax.xlane.f32.xlu0 %v1408
        %v1410 = vpop.xlane.xlu0 %1409
        %v1411 = vsel %vm1145, %v1265, -inf
        %1412 = vmax.xlane.f32.xlu0 %v1411
        %v1413 = vpop.xlane.xlu0 %1412
        %v1414 = vsel %vm1145, %v1315, -inf
        %1415 = vmax.xlane.f32.xlu0 %v1414
        %v1416 = vpop.xlane.xlu0 %1415
        %v1417 = vsel %vm1145, %v1318, -inf
        %1418 = vmax.xlane.f32.xlu0 %v1417
        %v1419 = vpop.xlane.xlu0 %1418
        %v1420 = vsel %vm1145, %v1323, -inf
        %1421 = vmax.xlane.f32.xlu0 %v1420
        %v1422 = vpop.xlane.xlu0 %1421
        %v1423 = vsel %vm1145, %v1326, -inf
        %1424 = vmax.xlane.f32.xlu0 %v1423
        %v1425 = vpop.xlane.xlu0 %1424
        %v1426 = vsel %vm1145, %v1376, -inf
        %1427 = vmax.xlane.f32.xlu0 %v1426
        %v1428 = vpop.xlane.xlu0 %1427
        %v1429 = vsel %vm1145, %v1379, -inf
        %1430 = vmax.xlane.f32.xlu0 %v1429
        %v1431 = vpop.xlane.xlu0 %1430
        %v1432 = vsel %vm1145, %v1384, -inf
        %1433 = vmax.xlane.f32.xlu0 %v1432
        %v1434 = vpop.xlane.xlu0 %1433
        %v1435 = vsel %vm1145, %v1387, -inf
        %1436 = vmax.xlane.f32.xlu0 %v1435
        %v1437 = vpop.xlane.xlu0 %1436
        %v1438 = vsub.f32 %v1193, %v1392
        %v1439 = vsub.f32 %v1196, %v1395
        %v1440 = vsub.f32 %v1201, %v1398
        %v1441 = vsub.f32 %v1204, %v1401
        %v1442 = vsub.f32 %v1254, %v1404
        %v1443 = vsub.f32 %v1257, %v1407
        %v1444 = vsub.f32 %v1262, %v1410
        %v1445 = vsub.f32 %v1265, %v1413
        %v1446 = vsub.f32 %v1315, %v1416
        %v1447 = vsub.f32 %v1318, %v1419
        %v1448 = vsub.f32 %v1323, %v1422
        %v1449 = vsub.f32 %v1326, %v1425
        %v1450 = vsub.f32 %v1376, %v1428
        %v1451 = vsub.f32 %v1379, %v1431
        %v1452 = vsub.f32 %v1384, %v1434
        %v1453 = vsub.f32 %v1387, %v1437
        %v1454 = vmul.f32 %v1438, 1.442695
        %v1455 = vpow.pop %v1454
        %v1456 = vmul.f32 %v1439, 1.442695
        %v1457 = vpow.pop %v1456
        %v1458 = vmul.f32 %v1440, 1.442695
        %v1459 = vpow.pop %v1458
        %v1460 = vmul.f32 %v1441, 1.442695
        %v1461 = vpow.pop %v1460
        %v1462 = vmul.f32 %v1442, 1.442695
        %v1463 = vpow.pop %v1462
        %v1464 = vmul.f32 %v1443, 1.442695
        %v1465 = vpow.pop %v1464
        %v1466 = vmul.f32 %v1444, 1.442695
        %v1467 = vpow.pop %v1466
        %v1468 = vmul.f32 %v1445, 1.442695
        %v1469 = vpow.pop %v1468
        %v1470 = vmul.f32 %v1446, 1.442695
        %v1471 = vpow.pop %v1470
        %v1472 = vmul.f32 %v1447, 1.442695
        %v1473 = vpow.pop %v1472
        %v1474 = vmul.f32 %v1448, 1.442695
        %v1475 = vpow.pop %v1474
        %v1476 = vmul.f32 %v1449, 1.442695
        %v1477 = vpow.pop %v1476
        %v1478 = vmul.f32 %v1450, 1.442695
        %v1479 = vpow.pop %v1478
        %v1480 = vmul.f32 %v1451, 1.442695
        %v1481 = vpow.pop %v1480
        %v1482 = vmul.f32 %v1452, 1.442695
        %v1483 = vpow.pop %v1482
        %v1484 = vmul.f32 %v1453, 1.442695
        %v1485 = vpow.pop %v1484
        %v1486 = vsel %vm1145, %v1455, 0.0
        %1487 = vadd.xlane.f32.xlu0 %v1486
        %v1488 = vpop.xlane.xlu0 %1487
        %v1489 = vsel %vm1145, %v1457, 0.0
        %1490 = vadd.xlane.f32.xlu0 %v1489
        %v1491 = vpop.xlane.xlu0 %1490
        %v1492 = vsel %vm1145, %v1459, 0.0
        %1493 = vadd.xlane.f32.xlu0 %v1492
        %v1494 = vpop.xlane.xlu0 %1493
        %v1495 = vsel %vm1145, %v1461, 0.0
        %1496 = vadd.xlane.f32.xlu0 %v1495
        %v1497 = vpop.xlane.xlu0 %1496
        %v1498 = vsel %vm1145, %v1463, 0.0
        %1499 = vadd.xlane.f32.xlu0 %v1498
        %v1500 = vpop.xlane.xlu0 %1499
        %v1501 = vsel %vm1145, %v1465, 0.0
        %1502 = vadd.xlane.f32.xlu0 %v1501
        %v1503 = vpop.xlane.xlu0 %1502
        %v1504 = vsel %vm1145, %v1467, 0.0
        %1505 = vadd.xlane.f32.xlu0 %v1504
        %v1506 = vpop.xlane.xlu0 %1505
        %v1507 = vsel %vm1145, %v1469, 0.0
        %1508 = vadd.xlane.f32.xlu0 %v1507
        %v1509 = vpop.xlane.xlu0 %1508
        %v1510 = vsel %vm1145, %v1471, 0.0
        %1511 = vadd.xlane.f32.xlu0 %v1510
        %v1512 = vpop.xlane.xlu0 %1511
        %v1513 = vsel %vm1145, %v1473, 0.0
        %1514 = vadd.xlane.f32.xlu0 %v1513
        %v1515 = vpop.xlane.xlu0 %1514
        %v1516 = vsel %vm1145, %v1475, 0.0
        %1517 = vadd.xlane.f32.xlu0 %v1516
        %v1518 = vpop.xlane.xlu0 %1517
        %v1519 = vsel %vm1145, %v1477, 0.0
        %1520 = vadd.xlane.f32.xlu0 %v1519
        %v1521 = vpop.xlane.xlu0 %1520
        %v1522 = vsel %vm1145, %v1479, 0.0
        %1523 = vadd.xlane.f32.xlu0 %v1522
        %v1524 = vpop.xlane.xlu0 %1523
        %v1525 = vsel %vm1145, %v1481, 0.0
        %1526 = vadd.xlane.f32.xlu0 %v1525
        %v1527 = vpop.xlane.xlu0 %1526
        %v1528 = vsel %vm1145, %v1483, 0.0
        %1529 = vadd.xlane.f32.xlu0 %v1528
        %v1530 = vpop.xlane.xlu0 %1529
        %v1531 = vsel %vm1145, %v1485, 0.0
        %1532 = vadd.xlane.f32.xlu0 %v1531
        %v1533 = vpop.xlane.xlu0 %1532
        %v1534 = vrcp.pop %v1488
        %v1535 = vrcp.pop %v1491
        %v1536 = vrcp.pop %v1494
        %v1537 = vrcp.pop %v1497
        %v1538 = vrcp.pop %v1500
        %v1539 = vrcp.pop %v1503
        %v1540 = vrcp.pop %v1506
        %v1541 = vrcp.pop %v1509
        %v1542 = vrcp.pop %v1512
        %v1543 = vrcp.pop %v1515
        %v1544 = vrcp.pop %v1518
        %v1545 = vrcp.pop %v1521
        %v1546 = vrcp.pop %v1524
        %v1547 = vrcp.pop %v1527
        %v1548 = vrcp.pop %v1530
        %v1549 = vrcp.pop %v1533
        %v1550 = vmul.f32 %v1455, %v1534
        %v1551 = vmul.f32 %v1457, %v1535
        %v1552 = vmul.f32 %v1459, %v1536
        %v1553 = vmul.f32 %v1461, %v1537
        %v1554 = vmul.f32 %v1463, %v1538
        %v1555 = vmul.f32 %v1465, %v1539
        %v1556 = vmul.f32 %v1467, %v1540
        %v1557 = vmul.f32 %v1469, %v1541
        %v1558 = vmul.f32 %v1471, %v1542
        %v1559 = vmul.f32 %v1473, %v1543
        %v1560 = vmul.f32 %v1475, %v1544
        %v1561 = vmul.f32 %v1477, %v1545
        %v1562 = vmul.f32 %v1479, %v1546
        %v1563 = vmul.f32 %v1481, %v1547
        %v1564 = vmul.f32 %v1483, %v1548
        %v1565 = vmul.f32 %v1485, %v1549
        %v1566 = vpack.c.bf16 %v1551, %v1550
        %v1567 = vpack.c.bf16 %v1553, %v1552
        %v1568 = vpack.c.bf16 %v1555, %v1554
        %v1569 = vpack.c.bf16 %v1557, %v1556
        %v1570 = vpack.c.bf16 %v1559, %v1558
        %v1571 = vpack.c.bf16 %v1561, %v1560
        %v1572 = vpack.c.bf16 %v1563, %v1562
        %v1573 = vpack.c.bf16 %v1565, %v1564
        %v1575 = vsel %vm1145, %v1566, 0
        %v1578 = vsel %vm1145, %v1567, 0
        %1580 = vmatprep.subr.bf16.mxu0 0
        %1581 = vmatpush1.bf16.msra.mxu0 %v1137
        %1582 = vmatprep.subr.bf16.mxu0 0
        %1583 = vmatpush1.bf16.msra.mxu0 %v1138
        %1584 = vmatprep.subr.bf16.mxu0 0
        %1585 = vmatpush1.bf16.msra.mxu0 0
        %1586 = vmatprep.subr.bf16.mxu0 0
        %1587 = vmatpush1.bf16.msra.mxu0 0
        %1588 = vmatprep.subr.bf16.mxu0 0
        %1589 = vmatpush1.bf16.msra.mxu0 0
        %1590 = vmatprep.subr.bf16.mxu0 0
        %1591 = vmatpush1.bf16.msra.mxu0 0
        %1592 = vmatprep.subr.bf16.mxu0 0
        %1593 = vmatpush1.bf16.msra.mxu0 0
        %1594 = vmatprep.subr.bf16.mxu0 0
        %1595 = vmatpush1.bf16.msra.mxu0 0
        %1596 = vmatprep.subr.bf16.mxu0 0
        %1597 = vmatpush1.bf16.msra.mxu0 0
        %1598 = vmatprep.subr.bf16.mxu0 0
        %1599 = vmatpush1.bf16.msra.mxu0 0
        %1600 = vmatprep.subr.bf16.mxu0 0
        %1601 = vmatpush1.bf16.msra.mxu0 0
        %1602 = vmatprep.subr.bf16.mxu0 0
        %1603 = vmatpush1.bf16.msra.mxu0 0
        %1604 = vmatprep.subr.bf16.mxu0 0
        %1605 = vmatpush1.bf16.msra.mxu0 0
        %1606 = vmatprep.subr.bf16.mxu0 0
        %1607 = vmatpush1.bf16.msra.mxu0 0
        %1608 = vmatprep.subr.bf16.mxu0 0
        %1609 = vmatpush1.bf16.msra.mxu0 0
        %1610 = vmatprep.subr.bf16.mxu0 0
        %1611 = vmatpush1.bf16.msra.mxu0 0
        %1612 = vmatprep.mubr.bf16.mxu0 0
        %1613 = vmatmul.mubr.bf16.gmra.mrb[0].mxu0 %v1575
        %v1614 = vpop.f32.mrb[0].mxu0
        %v1615 = vadd.f32 0.0, %v1614
        %v1616 = vpop.f32.mrb[0].mxu0
        %v1617 = vpop.f32.mrb[0].mxu0
        %v1618 = vadd.f32 0.0, %v1617
        %v1619 = vpop.f32.mrb[0].mxu0
        %1620 = vmatprep.mubr.bf16.mxu0 0
        %1621 = vmatmul.mubr.bf16.gmra.mrb[0].mxu0 %v1578
        %v1622 = vpop.f32.mrb[0].mxu0
        %v1623 = vadd.f32 0.0, %v1622
        %v1624 = vpop.f32.mrb[0].mxu0
        %v1625 = vpop.f32.mrb[0].mxu0
        %v1626 = vadd.f32 0.0, %v1625
        %v1627 = vpop.f32.mrb[0].mxu0
        %1628 = vdwg.mxu0
        %v1630 = vsel %vm1145, %v1568, 0
        %v1633 = vsel %vm1145, %v1569, 0
        %1635 = vmatprep.subr.bf16.mxu0 0
        %1636 = vmatpush1.bf16.msra.mxu0 %v1139
        %1637 = vmatprep.subr.bf16.mxu0 0
        %1638 = vmatpush1.bf16.msra.mxu0 %v1140
        %1639 = vmatprep.subr.bf16.mxu0 0
        %1640 = vmatpush1.bf16.msra.mxu0 0
        %1641 = vmatprep.subr.bf16.mxu0 0
        %1642 = vmatpush1.bf16.msra.mxu0 0
        %1643 = vmatprep.subr.bf16.mxu0 0
        %1644 = vmatpush1.bf16.msra.mxu0 0
        %1645 = vmatprep.subr.bf16.mxu0 0
        %1646 = vmatpush1.bf16.msra.mxu0 0
        %1647 = vmatprep.subr.bf16.mxu0 0
        %1648 = vmatpush1.bf16.msra.mxu0 0
        %1649 = vmatprep.subr.bf16.mxu0 0
        %1650 = vmatpush1.bf16.msra.mxu0 0
        %1651 = vmatprep.subr.bf16.mxu0 0
        %1652 = vmatpush1.bf16.msra.mxu0 0
        %1653 = vmatprep.subr.bf16.mxu0 0
        %1654 = vmatpush1.bf16.msra.mxu0 0
        %1655 = vmatprep.subr.bf16.mxu0 0
        %1656 = vmatpush1.bf16.msra.mxu0 0
        %1657 = vmatprep.subr.bf16.mxu0 0
        %1658 = vmatpush1.bf16.msra.mxu0 0
        %1659 = vmatprep.subr.bf16.mxu0 0
        %1660 = vmatpush1.bf16.msra.mxu0 0
        %1661 = vmatprep.subr.bf16.mxu0 0
        %1662 = vmatpush1.bf16.msra.mxu0 0
        %1663 = vmatprep.subr.bf16.mxu0 0
        %1664 = vmatpush1.bf16.msra.mxu0 0
        %1665 = vmatprep.subr.bf16.mxu0 0
        %1666 = vmatpush1.bf16.msra.mxu0 0
        %1667 = vmatprep.mubr.bf16.mxu0 0
        %1668 = vmatmul.mubr.bf16.gmra.mrb[0].mxu0 %v1630
        %v1669 = vpop.f32.mrb[0].mxu0
        %v1670 = vadd.f32 0.0, %v1669
        %v1671 = vpop.f32.mrb[0].mxu0
        %v1672 = vpop.f32.mrb[0].mxu0
        %v1673 = vadd.f32 0.0, %v1672
        %v1674 = vpop.f32.mrb[0].mxu0
        %1675 = vmatprep.mubr.bf16.mxu0 0
        %1676 = vmatmul.mubr.bf16.gmra.mrb[0].mxu0 %v1633
        %v1677 = vpop.f32.mrb[0].mxu0
        %v1678 = vadd.f32 0.0, %v1677
        %v1679 = vpop.f32.mrb[0].mxu0
        %v1680 = vpop.f32.mrb[0].mxu0
        %v1681 = vadd.f32 0.0, %v1680
        %v1682 = vpop.f32.mrb[0].mxu0
        %1683 = vdwg.mxu0
        %v1685 = vsel %vm1145, %v1570, 0
        %v1688 = vsel %vm1145, %v1571, 0
        %1690 = vmatprep.subr.bf16.mxu0 0
        %1691 = vmatpush1.bf16.msra.mxu0 %v1141
        %1692 = vmatprep.subr.bf16.mxu0 0
        %1693 = vmatpush1.bf16.msra.mxu0 %v1142
        %1694 = vmatprep.subr.bf16.mxu0 0
        %1695 = vmatpush1.bf16.msra.mxu0 0
        %1696 = vmatprep.subr.bf16.mxu0 0
        %1697 = vmatpush1.bf16.msra.mxu0 0
        %1698 = vmatprep.subr.bf16.mxu0 0
        %1699 = vmatpush1.bf16.msra.mxu0 0
        %1700 = vmatprep.subr.bf16.mxu0 0
        %1701 = vmatpush1.bf16.msra.mxu0 0
        %1702 = vmatprep.subr.bf16.mxu0 0
        %1703 = vmatpush1.bf16.msra.mxu0 0
        %1704 = vmatprep.subr.bf16.mxu0 0
        %1705 = vmatpush1.bf16.msra.mxu0 0
        %1706 = vmatprep.subr.bf16.mxu0 0
        %1707 = vmatpush1.bf16.msra.mxu0 0
        %1708 = vmatprep.subr.bf16.mxu0 0
        %1709 = vmatpush1.bf16.msra.mxu0 0
        %1710 = vmatprep.subr.bf16.mxu0 0
        %1711 = vmatpush1.bf16.msra.mxu0 0
        %1712 = vmatprep.subr.bf16.mxu0 0
        %1713 = vmatpush1.bf16.msra.mxu0 0
        %1714 = vmatprep.subr.bf16.mxu0 0
        %1715 = vmatpush1.bf16.msra.mxu0 0
        %1716 = vmatprep.subr.bf16.mxu0 0
        %1717 = vmatpush1.bf16.msra.mxu0 0
        %1718 = vmatprep.subr.bf16.mxu0 0
        %1719 = vmatpush1.bf16.msra.mxu0 0
        %1720 = vmatprep.subr.bf16.mxu0 0
        %1721 = vmatpush1.bf16.msra.mxu0 0
        %1722 = vmatprep.mubr.bf16.mxu0 0
        %1723 = vmatmul.mubr.bf16.gmra.mrb[0].mxu0 %v1685
        %v1724 = vpop.f32.mrb[0].mxu0
        %v1725 = vadd.f32 0.0, %v1724
        %v1726 = vpop.f32.mrb[0].mxu0
        %v1727 = vpop.f32.mrb[0].mxu0
        %v1728 = vadd.f32 0.0, %v1727
        %v1729 = vpop.f32.mrb[0].mxu0
        %1730 = vmatprep.mubr.bf16.mxu0 0
        %1731 = vmatmul.mubr.bf16.gmra.mrb[0].mxu0 %v1688
        %v1732 = vpop.f32.mrb[0].mxu0
        %v1733 = vadd.f32 0.0, %v1732
        %v1734 = vpop.f32.mrb[0].mxu0
        %v1735 = vpop.f32.mrb[0].mxu0
        %v1736 = vadd.f32 0.0, %v1735
        %v1737 = vpop.f32.mrb[0].mxu0
        %1738 = vdwg.mxu0
        %v1740 = vsel %vm1145, %v1572, 0
        %v1743 = vsel %vm1145, %v1573, 0
        %1745 = vmatprep.subr.bf16.mxu0 0
        %1746 = vmatpush1.bf16.msra.mxu0 %v1143
        %1747 = vmatprep.subr.bf16.mxu0 0
        %1748 = vmatpush1.bf16.msra.mxu0 %v1144
        %1749 = vmatprep.subr.bf16.mxu0 0
        %1750 = vmatpush1.bf16.msra.mxu0 0
        %1751 = vmatprep.subr.bf16.mxu0 0
        %1752 = vmatpush1.bf16.msra.mxu0 0
        %1753 = vmatprep.subr.bf16.mxu0 0
        %1754 = vmatpush1.bf16.msra.mxu0 0
        %1755 = vmatprep.subr.bf16.mxu0 0
        %1756 = vmatpush1.bf16.msra.mxu0 0
        %1757 = vmatprep.subr.bf16.mxu0 0
        %1758 = vmatpush1.bf16.msra.mxu0 0
        %1759 = vmatprep.subr.bf16.mxu0 0
        %1760 = vmatpush1.bf16.msra.mxu0 0
        %1761 = vmatprep.subr.bf16.mxu0 0
        %1762 = vmatpush1.bf16.msra.mxu0 0
        %1763 = vmatprep.subr.bf16.mxu0 0
        %1764 = vmatpush1.bf16.msra.mxu0 0
        %1765 = vmatprep.subr.bf16.mxu0 0
        %1766 = vmatpush1.bf16.msra.mxu0 0
        %1767 = vmatprep.subr.bf16.mxu0 0
        %1768 = vmatpush1.bf16.msra.mxu0 0
        %1769 = vmatprep.subr.bf16.mxu0 0
        %1770 = vmatpush1.bf16.msra.mxu0 0
        %1771 = vmatprep.subr.bf16.mxu0 0
        %1772 = vmatpush1.bf16.msra.mxu0 0
        %1773 = vmatprep.subr.bf16.mxu0 0
        %1774 = vmatpush1.bf16.msra.mxu0 0
        %1775 = vmatprep.subr.bf16.mxu0 0
        %1776 = vmatpush1.bf16.msra.mxu0 0
        %1777 = vmatprep.mubr.bf16.mxu0 0
        %1778 = vmatmul.mubr.bf16.gmra.mrb[0].mxu0 %v1740
        %v1779 = vpop.f32.mrb[0].mxu0
        %v1780 = vadd.f32 0.0, %v1779
        %v1781 = vpop.f32.mrb[0].mxu0
        %v1782 = vpop.f32.mrb[0].mxu0
        %v1783 = vadd.f32 0.0, %v1782
        %v1784 = vpop.f32.mrb[0].mxu0
        %1785 = vmatprep.mubr.bf16.mxu0 0
        %1786 = vmatmul.mubr.bf16.gmra.mrb[0].mxu0 %v1743
        %v1787 = vpop.f32.mrb[0].mxu0
        %v1788 = vadd.f32 0.0, %v1787
        %v1789 = vpop.f32.mrb[0].mxu0
        %v1790 = vpop.f32.mrb[0].mxu0
        %v1791 = vadd.f32 0.0, %v1790
        %v1792 = vpop.f32.mrb[0].mxu0
        %1793 = vdwg.mxu0
        %v1794 = vpack.c.bf16 %v1618, %v1615
        %v1795 = vpack.c.bf16 %v1626, %v1623
        %v1796 = vpack.c.bf16 %v1673, %v1670
        %v1797 = vpack.c.bf16 %v1681, %v1678
        %v1798 = vpack.c.bf16 %v1728, %v1725
        %v1799 = vpack.c.bf16 %v1736, %v1733
        %v1800 = vpack.c.bf16 %v1783, %v1780
        %v1801 = vpack.c.bf16 %v1791, %v1788
        %v1802 = vld [vmem:[#allocation8] sm:$0xf]
        %v1803 = vld [vmem:[#allocation8 + $0x4] sm:$0xf]
        %v1804 = vld [vmem:[#allocation8 + $0x8] sm:$0xf]
        %v1805 = vld [vmem:[#allocation8 + $0xc] sm:$0xf]
        %1808 = vrot.lane.b32.xlu0 %v1121, 96
        %v1809 = vpop.permute.xlu0 %1808
        %1810 = vrot.lane.b32.xlu0 %v1122, 96
        %v1811 = vpop.permute.xlu0 %1810
        %1814 = vrot.lane.b32.xlu0 %v1129, 96
        %v1815 = vpop.permute.xlu0 %1814
        %1816 = vrot.lane.b32.xlu0 %v1130, 96
        %v1817 = vpop.permute.xlu0 %1816
        %v1819 = vsel %vm1145, %v1809, 0
        %v1822 = vsel %vm1145, %v1811, 0
        %v1825 = vsel %vm1145, %v1815, 0
        %v1828 = vsel %vm1145, %v1817, 0
        %1830 = vmatprep.subr.bf16.mxu0 0
        %1831 = vmatpush1.bf16.xpose.msra.mxu0 %v1825
        %1832 = vmatprep.subr.bf16.mxu0 0
        %1833 = vmatpush1.bf16.xpose.msra.mxu0 %v1828
        %1834 = vmatprep.subr.bf16.mxu0 0
        %1835 = vmatpush1.bf16.xpose.msra.mxu0 0
        %1836 = vmatprep.subr.bf16.mxu0 0
        %1837 = vmatpush1.bf16.xpose.msra.mxu0 0
        %1838 = vmatprep.subr.bf16.mxu0 0
        %1839 = vmatpush1.bf16.xpose.msra.mxu0 0
        %1840 = vmatprep.subr.bf16.mxu0 0
        %1841 = vmatpush1.bf16.xpose.msra.mxu0 0
        %1842 = vmatprep.subr.bf16.mxu0 0
        %1843 = vmatpush1.bf16.xpose.msra.mxu0 0
        %1844 = vmatprep.subr.bf16.mxu0 0
        %1845 = vmatpush1.bf16.xpose.msra.mxu0 0
        %1846 = vmatprep.subr.bf16.mxu0 0
        %1847 = vmatpush1.bf16.xpose.msra.mxu0 0
        %1848 = vmatprep.subr.bf16.mxu0 0
        %1849 = vmatpush1.bf16.xpose.msra.mxu0 0
        %1850 = vmatprep.subr.bf16.mxu0 0
        %1851 = vmatpush1.bf16.xpose.msra.mxu0 0
        %1852 = vmatprep.subr.bf16.mxu0 0
        %1853 = vmatpush1.bf16.xpose.msra.mxu0 0
        %1854 = vmatprep.subr.bf16.mxu0 0
        %1855 = vmatpush1.bf16.xpose.msra.mxu0 0
        %1856 = vmatprep.subr.bf16.mxu0 0
        %1857 = vmatpush1.bf16.xpose.msra.mxu0 0
        %1858 = vmatprep.subr.bf16.mxu0 0
        %1859 = vmatpush1.bf16.xpose.msra.mxu0 0
        %1860 = vmatprep.subr.bf16.mxu0 0
        %1861 = vmatpush1.bf16.xpose.msra.mxu0 0
        %1862 = vmatprep.mubr.bf16.mxu0 0
        %1863 = vmatmul.mubr.bf16.gmra.mrb[0].mxu0 %v1819
        %v1864 = vpop.f32.mrb[0].mxu0
        %v1865 = vadd.f32 %v471, %v1864
        %v1866 = vpop.f32.mrb[0].mxu0
        %v1867 = vpop.f32.mrb[0].mxu0
        %v1868 = vadd.f32 %v472, %v1867
        %v1869 = vpop.f32.mrb[0].mxu0
        %1870 = vmatprep.mubr.bf16.mxu0 0
        %1871 = vmatmul.mubr.bf16.gmra.mrb[0].mxu0 %v1822
        %v1872 = vpop.f32.mrb[0].mxu0
        %v1873 = vadd.f32 %v473, %v1872
        %v1874 = vpop.f32.mrb[0].mxu0
        %v1875 = vpop.f32.mrb[0].mxu0
        %v1876 = vadd.f32 %v474, %v1875
        %v1877 = vpop.f32.mrb[0].mxu0
        %1878 = vdwg.mxu0
        %1881 = vrot.lane.b32.xlu0 %v1123, 96
        %v1882 = vpop.permute.xlu0 %1881
        %1883 = vrot.lane.b32.xlu0 %v1124, 96
        %v1884 = vpop.permute.xlu0 %1883
        %1887 = vrot.lane.b32.xlu0 %v1131, 96
        %v1888 = vpop.permute.xlu0 %1887
        %1889 = vrot.lane.b32.xlu0 %v1132, 96
        %v1890 = vpop.permute.xlu0 %1889
        %v1892 = vsel %vm1145, %v1882, 0
        %v1895 = vsel %vm1145, %v1884, 0
        %v1898 = vsel %vm1145, %v1888, 0
        %v1901 = vsel %vm1145, %v1890, 0
        %1903 = vmatprep.subr.bf16.mxu0 0
        %1904 = vmatpush1.bf16.xpose.msra.mxu0 %v1898
        %1905 = vmatprep.subr.bf16.mxu0 0
        %1906 = vmatpush1.bf16.xpose.msra.mxu0 %v1901
        %1907 = vmatprep.subr.bf16.mxu0 0
        %1908 = vmatpush1.bf16.xpose.msra.mxu0 0
        %1909 = vmatprep.subr.bf16.mxu0 0
        %1910 = vmatpush1.bf16.xpose.msra.mxu0 0
        %1911 = vmatprep.subr.bf16.mxu0 0
        %1912 = vmatpush1.bf16.xpose.msra.mxu0 0
        %1913 = vmatprep.subr.bf16.mxu0 0
        %1914 = vmatpush1.bf16.xpose.msra.mxu0 0
        %1915 = vmatprep.subr.bf16.mxu0 0
        %1916 = vmatpush1.bf16.xpose.msra.mxu0 0
        %1917 = vmatprep.subr.bf16.mxu0 0
        %1918 = vmatpush1.bf16.xpose.msra.mxu0 0
        %1919 = vmatprep.subr.bf16.mxu0 0
        %1920 = vmatpush1.bf16.xpose.msra.mxu0 0
        %1921 = vmatprep.subr.bf16.mxu0 0
        %1922 = vmatpush1.bf16.xpose.msra.mxu0 0
        %1923 = vmatprep.subr.bf16.mxu0 0
        %1924 = vmatpush1.bf16.xpose.msra.mxu0 0
        %1925 = vmatprep.subr.bf16.mxu0 0
        %1926 = vmatpush1.bf16.xpose.msra.mxu0 0
        %1927 = vmatprep.subr.bf16.mxu0 0
        %1928 = vmatpush1.bf16.xpose.msra.mxu0 0
        %1929 = vmatprep.subr.bf16.mxu0 0
        %1930 = vmatpush1.bf16.xpose.msra.mxu0 0
        %1931 = vmatprep.subr.bf16.mxu0 0
        %1932 = vmatpush1.bf16.xpose.msra.mxu0 0
        %1933 = vmatprep.subr.bf16.mxu0 0
        %1934 = vmatpush1.bf16.xpose.msra.mxu0 0
        %1935 = vmatprep.mubr.bf16.mxu0 0
        %1936 = vmatmul.mubr.bf16.gmra.mrb[0].mxu0 %v1892
        %v1937 = vpop.f32.mrb[0].mxu0
        %v1938 = vadd.f32 %v475, %v1937
        %v1939 = vpop.f32.mrb[0].mxu0
        %v1940 = vpop.f32.mrb[0].mxu0
        %v1941 = vadd.f32 %v476, %v1940
        %v1942 = vpop.f32.mrb[0].mxu0
        %1943 = vmatprep.mubr.bf16.mxu0 0
        %1944 = vmatmul.mubr.bf16.gmra.mrb[0].mxu0 %v1895
        %v1945 = vpop.f32.mrb[0].mxu0
        %v1946 = vadd.f32 %v477, %v1945
        %v1947 = vpop.f32.mrb[0].mxu0
        %v1948 = vpop.f32.mrb[0].mxu0
        %v1949 = vadd.f32 %v478, %v1948
        %v1950 = vpop.f32.mrb[0].mxu0
        %1951 = vdwg.mxu0
        %1954 = vrot.lane.b32.xlu0 %v1125, 96
        %v1955 = vpop.permute.xlu0 %1954
        %1956 = vrot.lane.b32.xlu0 %v1126, 96
        %v1957 = vpop.permute.xlu0 %1956
        %1960 = vrot.lane.b32.xlu0 %v1133, 96
        %v1961 = vpop.permute.xlu0 %1960
        %1962 = vrot.lane.b32.xlu0 %v1134, 96
        %v1963 = vpop.permute.xlu0 %1962
        %v1965 = vsel %vm1145, %v1955, 0
        %v1968 = vsel %vm1145, %v1957, 0
        %v1971 = vsel %vm1145, %v1961, 0
        %v1974 = vsel %vm1145, %v1963, 0
        %1976 = vmatprep.subr.bf16.mxu0 0
        %1977 = vmatpush1.bf16.xpose.msra.mxu0 %v1971
        %1978 = vmatprep.subr.bf16.mxu0 0
        %1979 = vmatpush1.bf16.xpose.msra.mxu0 %v1974
        %1980 = vmatprep.subr.bf16.mxu0 0
        %1981 = vmatpush1.bf16.xpose.msra.mxu0 0
        %1982 = vmatprep.subr.bf16.mxu0 0
        %1983 = vmatpush1.bf16.xpose.msra.mxu0 0
        %1984 = vmatprep.subr.bf16.mxu0 0
        %1985 = vmatpush1.bf16.xpose.msra.mxu0 0
        %1986 = vmatprep.subr.bf16.mxu0 0
        %1987 = vmatpush1.bf16.xpose.msra.mxu0 0
        %1988 = vmatprep.subr.bf16.mxu0 0
        %1989 = vmatpush1.bf16.xpose.msra.mxu0 0
        %1990 = vmatprep.subr.bf16.mxu0 0
        %1991 = vmatpush1.bf16.xpose.msra.mxu0 0
        %1992 = vmatprep.subr.bf16.mxu0 0
        %1993 = vmatpush1.bf16.xpose.msra.mxu0 0
        %1994 = vmatprep.subr.bf16.mxu0 0
        %1995 = vmatpush1.bf16.xpose.msra.mxu0 0
        %1996 = vmatprep.subr.bf16.mxu0 0
        %1997 = vmatpush1.bf16.xpose.msra.mxu0 0
        %1998 = vmatprep.subr.bf16.mxu0 0
        %1999 = vmatpush1.bf16.xpose.msra.mxu0 0
        %2000 = vmatprep.subr.bf16.mxu0 0
        %2001 = vmatpush1.bf16.xpose.msra.mxu0 0
        %2002 = vmatprep.subr.bf16.mxu0 0
        %2003 = vmatpush1.bf16.xpose.msra.mxu0 0
        %2004 = vmatprep.subr.bf16.mxu0 0
        %2005 = vmatpush1.bf16.xpose.msra.mxu0 0
        %2006 = vmatprep.subr.bf16.mxu0 0
        %2007 = vmatpush1.bf16.xpose.msra.mxu0 0
        %2008 = vmatprep.mubr.bf16.mxu0 0
        %2009 = vmatmul.mubr.bf16.gmra.mrb[0].mxu0 %v1965
        %v2010 = vpop.f32.mrb[0].mxu0
        %v2011 = vadd.f32 %v479, %v2010
        %v2012 = vpop.f32.mrb[0].mxu0
        %v2013 = vpop.f32.mrb[0].mxu0
        %v2014 = vadd.f32 %v480, %v2013
        %v2015 = vpop.f32.mrb[0].mxu0
        %2016 = vmatprep.mubr.bf16.mxu0 0
        %2017 = vmatmul.mubr.bf16.gmra.mrb[0].mxu0 %v1968
        %v2018 = vpop.f32.mrb[0].mxu0
        %v2019 = vadd.f32 %v481, %v2018
        %v2020 = vpop.f32.mrb[0].mxu0
        %v2021 = vpop.f32.mrb[0].mxu0
        %v2022 = vadd.f32 %v482, %v2021
        %v2023 = vpop.f32.mrb[0].mxu0
        %2024 = vdwg.mxu0
        %2027 = vrot.lane.b32.xlu0 %v1127, 96
        %v2028 = vpop.permute.xlu0 %2027
        %2029 = vrot.lane.b32.xlu0 %v1128, 96
        %v2030 = vpop.permute.xlu0 %2029
        %2033 = vrot.lane.b32.xlu0 %v1135, 96
        %v2034 = vpop.permute.xlu0 %2033
        %2035 = vrot.lane.b32.xlu0 %v1136, 96
        %v2036 = vpop.permute.xlu0 %2035
        %v2038 = vsel %vm1145, %v2028, 0
        %v2041 = vsel %vm1145, %v2030, 0
        %v2044 = vsel %vm1145, %v2034, 0
        %v2047 = vsel %vm1145, %v2036, 0
        %2049 = vmatprep.subr.bf16.mxu0 0
        %2050 = vmatpush1.bf16.xpose.msra.mxu0 %v2044
        %2051 = vmatprep.subr.bf16.mxu0 0
        %2052 = vmatpush1.bf16.xpose.msra.mxu0 %v2047
        %2053 = vmatprep.subr.bf16.mxu0 0
        %2054 = vmatpush1.bf16.xpose.msra.mxu0 0
        %2055 = vmatprep.subr.bf16.mxu0 0
        %2056 = vmatpush1.bf16.xpose.msra.mxu0 0
        %2057 = vmatprep.subr.bf16.mxu0 0
        %2058 = vmatpush1.bf16.xpose.msra.mxu0 0
        %2059 = vmatprep.subr.bf16.mxu0 0
        %2060 = vmatpush1.bf16.xpose.msra.mxu0 0
        %2061 = vmatprep.subr.bf16.mxu0 0
        %2062 = vmatpush1.bf16.xpose.msra.mxu0 0
        %2063 = vmatprep.subr.bf16.mxu0 0
        %2064 = vmatpush1.bf16.xpose.msra.mxu0 0
        %2065 = vmatprep.subr.bf16.mxu0 0
        %2066 = vmatpush1.bf16.xpose.msra.mxu0 0
        %2067 = vmatprep.subr.bf16.mxu0 0
        %2068 = vmatpush1.bf16.xpose.msra.mxu0 0
        %2069 = vmatprep.subr.bf16.mxu0 0
        %2070 = vmatpush1.bf16.xpose.msra.mxu0 0
        %2071 = vmatprep.subr.bf16.mxu0 0
        %2072 = vmatpush1.bf16.xpose.msra.mxu0 0
        %2073 = vmatprep.subr.bf16.mxu0 0
        %2074 = vmatpush1.bf16.xpose.msra.mxu0 0
        %2075 = vmatprep.subr.bf16.mxu0 0
        %2076 = vmatpush1.bf16.xpose.msra.mxu0 0
        %2077 = vmatprep.subr.bf16.mxu0 0
        %2078 = vmatpush1.bf16.xpose.msra.mxu0 0
        %2079 = vmatprep.subr.bf16.mxu0 0
        %2080 = vmatpush1.bf16.xpose.msra.mxu0 0
        %2081 = vmatprep.mubr.bf16.mxu0 0
        %2082 = vmatmul.mubr.bf16.gmra.mrb[0].mxu0 %v2038
        %v2083 = vpop.f32.mrb[0].mxu0
        %v2084 = vadd.f32 %v483, %v2083
        %v2085 = vpop.f32.mrb[0].mxu0
        %v2086 = vpop.f32.mrb[0].mxu0
        %v2087 = vadd.f32 %v484, %v2086
        %v2088 = vpop.f32.mrb[0].mxu0
        %2089 = vmatprep.mubr.bf16.mxu0 0
        %2090 = vmatmul.mubr.bf16.gmra.mrb[0].mxu0 %v2041
        %v2091 = vpop.f32.mrb[0].mxu0
        %v2092 = vadd.f32 %v485, %v2091
        %v2093 = vpop.f32.mrb[0].mxu0
        %v2094 = vpop.f32.mrb[0].mxu0
        %v2095 = vadd.f32 %v486, %v2094
        %v2096 = vpop.f32.mrb[0].mxu0
        %2097 = vdwg.mxu0
        %v2098 = vsel %vm1145, %v1865, -inf
        %2099 = vmax.xlane.f32.xlu0 %v2098
        %v2100 = vpop.xlane.xlu0 %2099
        %v2101 = vsel %vm1145, %v1868, -inf
        %2102 = vmax.xlane.f32.xlu0 %v2101
        %v2103 = vpop.xlane.xlu0 %2102
        %v2104 = vsel %vm1145, %v1873, -inf
        %2105 = vmax.xlane.f32.xlu0 %v2104
        %v2106 = vpop.xlane.xlu0 %2105
        %v2107 = vsel %vm1145, %v1876, -inf
        %2108 = vmax.xlane.f32.xlu0 %v2107
        %v2109 = vpop.xlane.xlu0 %2108
        %v2110 = vsel %vm1145, %v1938, -inf
        %2111 = vmax.xlane.f32.xlu0 %v2110
        %v2112 = vpop.xlane.xlu0 %2111
        %v2113 = vsel %vm1145, %v1941, -inf
        %2114 = vmax.xlane.f32.xlu0 %v2113
        %v2115 = vpop.xlane.xlu0 %2114
        %v2116 = vsel %vm1145, %v1946, -inf
        %2117 = vmax.xlane.f32.xlu0 %v2116
        %v2118 = vpop.xlane.xlu0 %2117
        %v2119 = vsel %vm1145, %v1949, -inf
        %2120 = vmax.xlane.f32.xlu0 %v2119
        %v2121 = vpop.xlane.xlu0 %2120
        %v2122 = vsel %vm1145, %v2011, -inf
        %2123 = vmax.xlane.f32.xlu0 %v2122
        %v2124 = vpop.xlane.xlu0 %2123
        %v2125 = vsel %vm1145, %v2014, -inf
        %2126 = vmax.xlane.f32.xlu0 %v2125
        %v2127 = vpop.xlane.xlu0 %2126
        %v2128 = vsel %vm1145, %v2019, -inf
        %2129 = vmax.xlane.f32.xlu0 %v2128
        %v2130 = vpop.xlane.xlu0 %2129
        %v2131 = vsel %vm1145, %v2022, -inf
        %2132 = vmax.xlane.f32.xlu0 %v2131
        %v2133 = vpop.xlane.xlu0 %2132
        %v2134 = vsel %vm1145, %v2084, -inf
        %2135 = vmax.xlane.f32.xlu0 %v2134
        %v2136 = vpop.xlane.xlu0 %2135
        %v2137 = vsel %vm1145, %v2087, -inf
        %2138 = vmax.xlane.f32.xlu0 %v2137
        %v2139 = vpop.xlane.xlu0 %2138
        %v2140 = vsel %vm1145, %v2092, -inf
        %2141 = vmax.xlane.f32.xlu0 %v2140
        %v2142 = vpop.xlane.xlu0 %2141
        %v2143 = vsel %vm1145, %v2095, -inf
        %2144 = vmax.xlane.f32.xlu0 %v2143
        %v2145 = vpop.xlane.xlu0 %2144
        %v2146 = vsub.f32 %v1865, %v2100
        %v2147 = vsub.f32 %v1868, %v2103
        %v2148 = vsub.f32 %v1873, %v2106
        %v2149 = vsub.f32 %v1876, %v2109
        %v2150 = vsub.f32 %v1938, %v2112
        %v2151 = vsub.f32 %v1941, %v2115
        %v2152 = vsub.f32 %v1946, %v2118
        %v2153 = vsub.f32 %v1949, %v2121
        %v2154 = vsub.f32 %v2011, %v2124
        %v2155 = vsub.f32 %v2014, %v2127
        %v2156 = vsub.f32 %v2019, %v2130
        %v2157 = vsub.f32 %v2022, %v2133
        %v2158 = vsub.f32 %v2084, %v2136
        %v2159 = vsub.f32 %v2087, %v2139
        %v2160 = vsub.f32 %v2092, %v2142
        %v2161 = vsub.f32 %v2095, %v2145
        %v2162 = vmul.f32 %v2146, 1.442695
        %v2163 = vpow.pop %v2162
        %v2164 = vmul.f32 %v2147, 1.442695
        %v2165 = vpow.pop %v2164
        %v2166 = vmul.f32 %v2148, 1.442695
        %v2167 = vpow.pop %v2166
        %v2168 = vmul.f32 %v2149, 1.442695
        %v2169 = vpow.pop %v2168
        %v2170 = vmul.f32 %v2150, 1.442695
        %v2171 = vpow.pop %v2170
        %v2172 = vmul.f32 %v2151, 1.442695
        %v2173 = vpow.pop %v2172
        %v2174 = vmul.f32 %v2152, 1.442695
        %v2175 = vpow.pop %v2174
        %v2176 = vmul.f32 %v2153, 1.442695
        %v2177 = vpow.pop %v2176
        %v2178 = vmul.f32 %v2154, 1.442695
        %v2179 = vpow.pop %v2178
        %v2180 = vmul.f32 %v2155, 1.442695
        %v2181 = vpow.pop %v2180
        %v2182 = vmul.f32 %v2156, 1.442695
        %v2183 = vpow.pop %v2182
        %v2184 = vmul.f32 %v2157, 1.442695
        %v2185 = vpow.pop %v2184
        %v2186 = vmul.f32 %v2158, 1.442695
        %v2187 = vpow.pop %v2186
        %v2188 = vmul.f32 %v2159, 1.442695
        %v2189 = vpow.pop %v2188
        %v2190 = vmul.f32 %v2160, 1.442695
        %v2191 = vpow.pop %v2190
        %v2192 = vmul.f32 %v2161, 1.442695
        %v2193 = vpow.pop %v2192
        %v2194 = vsel %vm1145, %v2163, 0.0
        %2195 = vadd.xlane.f32.xlu0 %v2194
        %v2196 = vpop.xlane.xlu0 %2195
        %v2197 = vsel %vm1145, %v2165, 0.0
        %2198 = vadd.xlane.f32.xlu0 %v2197
        %v2199 = vpop.xlane.xlu0 %2198
        %v2200 = vsel %vm1145, %v2167, 0.0
        %2201 = vadd.xlane.f32.xlu0 %v2200
        %v2202 = vpop.xlane.xlu0 %2201
        %v2203 = vsel %vm1145, %v2169, 0.0
        %2204 = vadd.xlane.f32.xlu0 %v2203
        %v2205 = vpop.xlane.xlu0 %2204
        %v2206 = vsel %vm1145, %v2171, 0.0
        %2207 = vadd.xlane.f32.xlu0 %v2206
        %v2208 = vpop.xlane.xlu0 %2207
        %v2209 = vsel %vm1145, %v2173, 0.0
        %2210 = vadd.xlane.f32.xlu0 %v2209
        %v2211 = vpop.xlane.xlu0 %2210
        %v2212 = vsel %vm1145, %v2175, 0.0
        %2213 = vadd.xlane.f32.xlu0 %v2212
        %v2214 = vpop.xlane.xlu0 %2213
        %v2215 = vsel %vm1145, %v2177, 0.0
        %2216 = vadd.xlane.f32.xlu0 %v2215
        %v2217 = vpop.xlane.xlu0 %2216
        %v2218 = vsel %vm1145, %v2179, 0.0
        %2219 = vadd.xlane.f32.xlu0 %v2218
        %v2220 = vpop.xlane.xlu0 %2219
        %v2221 = vsel %vm1145, %v2181, 0.0
        %2222 = vadd.xlane.f32.xlu0 %v2221
        %v2223 = vpop.xlane.xlu0 %2222
        %v2224 = vsel %vm1145, %v2183, 0.0
        %2225 = vadd.xlane.f32.xlu0 %v2224
        %v2226 = vpop.xlane.xlu0 %2225
        %v2227 = vsel %vm1145, %v2185, 0.0
        %2228 = vadd.xlane.f32.xlu0 %v2227
        %v2229 = vpop.xlane.xlu0 %2228
        %v2230 = vsel %vm1145, %v2187, 0.0
        %2231 = vadd.xlane.f32.xlu0 %v2230
        %v2232 = vpop.xlane.xlu0 %2231
        %v2233 = vsel %vm1145, %v2189, 0.0
        %2234 = vadd.xlane.f32.xlu0 %v2233
        %v2235 = vpop.xlane.xlu0 %2234
        %v2236 = vsel %vm1145, %v2191, 0.0
        %2237 = vadd.xlane.f32.xlu0 %v2236
        %v2238 = vpop.xlane.xlu0 %2237
        %v2239 = vsel %vm1145, %v2193, 0.0
        %2240 = vadd.xlane.f32.xlu0 %v2239
        %v2241 = vpop.xlane.xlu0 %2240
        %v2242 = vrcp.pop %v2196
        %v2243 = vrcp.pop %v2199
        %v2244 = vrcp.pop %v2202
        %v2245 = vrcp.pop %v2205
        %v2246 = vrcp.pop %v2208
        %v2247 = vrcp.pop %v2211
        %v2248 = vrcp.pop %v2214
        %v2249 = vrcp.pop %v2217
        %v2250 = vrcp.pop %v2220
        %v2251 = vrcp.pop %v2223
        %v2252 = vrcp.pop %v2226
        %v2253 = vrcp.pop %v2229
        %v2254 = vrcp.pop %v2232
        %v2255 = vrcp.pop %v2235
        %v2256 = vrcp.pop %v2238
        %v2257 = vrcp.pop %v2241
        %v2258 = vmul.f32 %v2163, %v2242
        %v2259 = vmul.f32 %v2165, %v2243
        %v2260 = vmul.f32 %v2167, %v2244
        %v2261 = vmul.f32 %v2169, %v2245
        %v2262 = vmul.f32 %v2171, %v2246
        %v2263 = vmul.f32 %v2173, %v2247
        %v2264 = vmul.f32 %v2175, %v2248
        %v2265 = vmul.f32 %v2177, %v2249
        %v2266 = vmul.f32 %v2179, %v2250
        %v2267 = vmul.f32 %v2181, %v2251
        %v2268 = vmul.f32 %v2183, %v2252
        %v2269 = vmul.f32 %v2185, %v2253
        %v2270 = vmul.f32 %v2187, %v2254
        %v2271 = vmul.f32 %v2189, %v2255
        %v2272 = vmul.f32 %v2191, %v2256
        %v2273 = vmul.f32 %v2193, %v2257
        %v2274 = vpack.c.bf16 %v2259, %v2258
        %v2275 = vpack.c.bf16 %v2261, %v2260
        %v2276 = vpack.c.bf16 %v2263, %v2262
        %v2277 = vpack.c.bf16 %v2265, %v2264
        %v2278 = vpack.c.bf16 %v2267, %v2266
        %v2279 = vpack.c.bf16 %v2269, %v2268
        %v2280 = vpack.c.bf16 %v2271, %v2270
        %v2281 = vpack.c.bf16 %v2273, %v2272
        %2284 = vrot.lane.b32.xlu0 %v1137, 96
        %v2285 = vpop.permute.xlu0 %2284
        %2286 = vrot.lane.b32.xlu0 %v1138, 96
        %v2287 = vpop.permute.xlu0 %2286
        %v2291 = vsel %vm1145, %v2274, 0
        %v2294 = vsel %vm1145, %v2275, 0
        %2296 = vmatprep.subr.bf16.mxu0 0
        %2297 = vmatpush1.bf16.msra.mxu0 %v2285
        %2298 = vmatprep.subr.bf16.mxu0 0
        %2299 = vmatpush1.bf16.msra.mxu0 %v2287
        %2300 = vmatprep.subr.bf16.mxu0 0
        %2301 = vmatpush1.bf16.msra.mxu0 0
        %2302 = vmatprep.subr.bf16.mxu0 0
        %2303 = vmatpush1.bf16.msra.mxu0 0
        %2304 = vmatprep.subr.bf16.mxu0 0
        %2305 = vmatpush1.bf16.msra.mxu0 0
        %2306 = vmatprep.subr.bf16.mxu0 0
        %2307 = vmatpush1.bf16.msra.mxu0 0
        %2308 = vmatprep.subr.bf16.mxu0 0
        %2309 = vmatpush1.bf16.msra.mxu0 0
        %2310 = vmatprep.subr.bf16.mxu0 0
        %2311 = vmatpush1.bf16.msra.mxu0 0
        %2312 = vmatprep.subr.bf16.mxu0 0
        %2313 = vmatpush1.bf16.msra.mxu0 0
        %2314 = vmatprep.subr.bf16.mxu0 0
        %2315 = vmatpush1.bf16.msra.mxu0 0
        %2316 = vmatprep.subr.bf16.mxu0 0
        %2317 = vmatpush1.bf16.msra.mxu0 0
        %2318 = vmatprep.subr.bf16.mxu0 0
        %2319 = vmatpush1.bf16.msra.mxu0 0
        %2320 = vmatprep.subr.bf16.mxu0 0
        %2321 = vmatpush1.bf16.msra.mxu0 0
        %2322 = vmatprep.subr.bf16.mxu0 0
        %2323 = vmatpush1.bf16.msra.mxu0 0
        %2324 = vmatprep.subr.bf16.mxu0 0
        %2325 = vmatpush1.bf16.msra.mxu0 0
        %2326 = vmatprep.subr.bf16.mxu0 0
        %2327 = vmatpush1.bf16.msra.mxu0 0
        %2328 = vmatprep.mubr.bf16.mxu0 0
        %2329 = vmatmul.mubr.bf16.gmra.mrb[0].mxu0 %v2291
        %v2330 = vpop.f32.mrb[0].mxu0
        %v2331 = vadd.f32 0.0, %v2330
        %v2332 = vpop.f32.mrb[0].mxu0
        %v2333 = vpop.f32.mrb[0].mxu0
        %v2334 = vadd.f32 0.0, %v2333
        %v2335 = vpop.f32.mrb[0].mxu0
        %2336 = vmatprep.mubr.bf16.mxu0 0
        %2337 = vmatmul.mubr.bf16.gmra.mrb[0].mxu0 %v2294
        %v2338 = vpop.f32.mrb[0].mxu0
        %v2339 = vadd.f32 0.0, %v2338
        %v2340 = vpop.f32.mrb[0].mxu0
        %v2341 = vpop.f32.mrb[0].mxu0
        %v2342 = vadd.f32 0.0, %v2341
        %v2343 = vpop.f32.mrb[0].mxu0
        %2344 = vdwg.mxu0
        %2347 = vrot.lane.b32.xlu0 %v1139, 96
        %v2348 = vpop.permute.xlu0 %2347
        %2349 = vrot.lane.b32.xlu0 %v1140, 96
        %v2350 = vpop.permute.xlu0 %2349
        %v2354 = vsel %vm1145, %v2276, 0
        %v2357 = vsel %vm1145, %v2277, 0
        %2359 = vmatprep.subr.bf16.mxu0 0
        %2360 = vmatpush1.bf16.msra.mxu0 %v2348
        %2361 = vmatprep.subr.bf16.mxu0 0
        %2362 = vmatpush1.bf16.msra.mxu0 %v2350
        %2363 = vmatprep.subr.bf16.mxu0 0
        %2364 = vmatpush1.bf16.msra.mxu0 0
        %2365 = vmatprep.subr.bf16.mxu0 0
        %2366 = vmatpush1.bf16.msra.mxu0 0
        %2367 = vmatprep.subr.bf16.mxu0 0
        %2368 = vmatpush1.bf16.msra.mxu0 0
        %2369 = vmatprep.subr.bf16.mxu0 0
        %2370 = vmatpush1.bf16.msra.mxu0 0
        %2371 = vmatprep.subr.bf16.mxu0 0
        %2372 = vmatpush1.bf16.msra.mxu0 0
        %2373 = vmatprep.subr.bf16.mxu0 0
        %2374 = vmatpush1.bf16.msra.mxu0 0
        %2375 = vmatprep.subr.bf16.mxu0 0
        %2376 = vmatpush1.bf16.msra.mxu0 0
        %2377 = vmatprep.subr.bf16.mxu0 0
        %2378 = vmatpush1.bf16.msra.mxu0 0
        %2379 = vmatprep.subr.bf16.mxu0 0
        %2380 = vmatpush1.bf16.msra.mxu0 0
        %2381 = vmatprep.subr.bf16.mxu0 0
        %2382 = vmatpush1.bf16.msra.mxu0 0
        %2383 = vmatprep.subr.bf16.mxu0 0
        %2384 = vmatpush1.bf16.msra.mxu0 0
        %2385 = vmatprep.subr.bf16.mxu0 0
        %2386 = vmatpush1.bf16.msra.mxu0 0
        %2387 = vmatprep.subr.bf16.mxu0 0
        %2388 = vmatpush1.bf16.msra.mxu0 0
        %2389 = vmatprep.subr.bf16.mxu0 0
        %2390 = vmatpush1.bf16.msra.mxu0 0
        %2391 = vmatprep.mubr.bf16.mxu0 0
        %2392 = vmatmul.mubr.bf16.gmra.mrb[0].mxu0 %v2354
        %v2393 = vpop.f32.mrb[0].mxu0
        %v2394 = vadd.f32 0.0, %v2393
        %v2395 = vpop.f32.mrb[0].mxu0
        %v2396 = vpop.f32.mrb[0].mxu0
        %v2397 = vadd.f32 0.0, %v2396
        %v2398 = vpop.f32.mrb[0].mxu0
        %2399 = vmatprep.mubr.bf16.mxu0 0
        %2400 = vmatmul.mubr.bf16.gmra.mrb[0].mxu0 %v2357
        %v2401 = vpop.f32.mrb[0].mxu0
        %v2402 = vadd.f32 0.0, %v2401
        %v2403 = vpop.f32.mrb[0].mxu0
        %v2404 = vpop.f32.mrb[0].mxu0
        %v2405 = vadd.f32 0.0, %v2404
        %v2406 = vpop.f32.mrb[0].mxu0
        %2407 = vdwg.mxu0
        %2410 = vrot.lane.b32.xlu0 %v1141, 96
        %v2411 = vpop.permute.xlu0 %2410
        %2412 = vrot.lane.b32.xlu0 %v1142, 96
        %v2413 = vpop.permute.xlu0 %2412
        %v2417 = vsel %vm1145, %v2278, 0
        %v2420 = vsel %vm1145, %v2279, 0
        %2422 = vmatprep.subr.bf16.mxu0 0
        %2423 = vmatpush1.bf16.msra.mxu0 %v2411
        %2424 = vmatprep.subr.bf16.mxu0 0
        %2425 = vmatpush1.bf16.msra.mxu0 %v2413
        %2426 = vmatprep.subr.bf16.mxu0 0
        %2427 = vmatpush1.bf16.msra.mxu0 0
        %2428 = vmatprep.subr.bf16.mxu0 0
        %2429 = vmatpush1.bf16.msra.mxu0 0
        %2430 = vmatprep.subr.bf16.mxu0 0
        %2431 = vmatpush1.bf16.msra.mxu0 0
        %2432 = vmatprep.subr.bf16.mxu0 0
        %2433 = vmatpush1.bf16.msra.mxu0 0
        %2434 = vmatprep.subr.bf16.mxu0 0
        %2435 = vmatpush1.bf16.msra.mxu0 0
        %2436 = vmatprep.subr.bf16.mxu0 0
        %2437 = vmatpush1.bf16.msra.mxu0 0
        %2438 = vmatprep.subr.bf16.mxu0 0
        %2439 = vmatpush1.bf16.msra.mxu0 0
        %2440 = vmatprep.subr.bf16.mxu0 0
        %2441 = vmatpush1.bf16.msra.mxu0 0
        %2442 = vmatprep.subr.bf16.mxu0 0
        %2443 = vmatpush1.bf16.msra.mxu0 0
        %2444 = vmatprep.subr.bf16.mxu0 0
        %2445 = vmatpush1.bf16.msra.mxu0 0
        %2446 = vmatprep.subr.bf16.mxu0 0
        %2447 = vmatpush1.bf16.msra.mxu0 0
        %2448 = vmatprep.subr.bf16.mxu0 0
        %2449 = vmatpush1.bf16.msra.mxu0 0
        %2450 = vmatprep.subr.bf16.mxu0 0
        %2451 = vmatpush1.bf16.msra.mxu0 0
        %2452 = vmatprep.subr.bf16.mxu0 0
        %2453 = vmatpush1.bf16.msra.mxu0 0
        %2454 = vmatprep.mubr.bf16.mxu0 0
        %2455 = vmatmul.mubr.bf16.gmra.mrb[0].mxu0 %v2417
        %v2456 = vpop.f32.mrb[0].mxu0
        %v2457 = vadd.f32 0.0, %v2456
        %v2458 = vpop.f32.mrb[0].mxu0
        %v2459 = vpop.f32.mrb[0].mxu0
        %v2460 = vadd.f32 0.0, %v2459
        %v2461 = vpop.f32.mrb[0].mxu0
        %2462 = vmatprep.mubr.bf16.mxu0 0
        %2463 = vmatmul.mubr.bf16.gmra.mrb[0].mxu0 %v2420
        %v2464 = vpop.f32.mrb[0].mxu0
        %v2465 = vadd.f32 0.0, %v2464
        %v2466 = vpop.f32.mrb[0].mxu0
        %v2467 = vpop.f32.mrb[0].mxu0
        %v2468 = vadd.f32 0.0, %v2467
        %v2469 = vpop.f32.mrb[0].mxu0
        %2470 = vdwg.mxu0
        %2473 = vrot.lane.b32.xlu0 %v1143, 96
        %v2474 = vpop.permute.xlu0 %2473
        %2475 = vrot.lane.b32.xlu0 %v1144, 96
        %v2476 = vpop.permute.xlu0 %2475
        %v2480 = vsel %vm1145, %v2280, 0
        %v2483 = vsel %vm1145, %v2281, 0
        %2485 = vmatprep.subr.bf16.mxu0 0
        %2486 = vmatpush1.bf16.msra.mxu0 %v2474
        %2487 = vmatprep.subr.bf16.mxu0 0
        %2488 = vmatpush1.bf16.msra.mxu0 %v2476
        %2489 = vmatprep.subr.bf16.mxu0 0
        %2490 = vmatpush1.bf16.msra.mxu0 0
        %2491 = vmatprep.subr.bf16.mxu0 0
        %2492 = vmatpush1.bf16.msra.mxu0 0
        %2493 = vmatprep.subr.bf16.mxu0 0
        %2494 = vmatpush1.bf16.msra.mxu0 0
        %2495 = vmatprep.subr.bf16.mxu0 0
        %2496 = vmatpush1.bf16.msra.mxu0 0
        %2497 = vmatprep.subr.bf16.mxu0 0
        %2498 = vmatpush1.bf16.msra.mxu0 0
        %2499 = vmatprep.subr.bf16.mxu0 0
        %2500 = vmatpush1.bf16.msra.mxu0 0
        %2501 = vmatprep.subr.bf16.mxu0 0
        %2502 = vmatpush1.bf16.msra.mxu0 0
        %2503 = vmatprep.subr.bf16.mxu0 0
        %2504 = vmatpush1.bf16.msra.mxu0 0
        %2505 = vmatprep.subr.bf16.mxu0 0
        %2506 = vmatpush1.bf16.msra.mxu0 0
        %2507 = vmatprep.subr.bf16.mxu0 0
        %2508 = vmatpush1.bf16.msra.mxu0 0
        %2509 = vmatprep.subr.bf16.mxu0 0
        %2510 = vmatpush1.bf16.msra.mxu0 0
        %2511 = vmatprep.subr.bf16.mxu0 0
        %2512 = vmatpush1.bf16.msra.mxu0 0
        %2513 = vmatprep.subr.bf16.mxu0 0
        %2514 = vmatpush1.bf16.msra.mxu0 0
        %2515 = vmatprep.subr.bf16.mxu0 0
        %2516 = vmatpush1.bf16.msra.mxu0 0
        %2517 = vmatprep.mubr.bf16.mxu0 0
        %2518 = vmatmul.mubr.bf16.gmra.mrb[0].mxu0 %v2480
        %v2519 = vpop.f32.mrb[0].mxu0
        %v2520 = vadd.f32 0.0, %v2519
        %v2521 = vpop.f32.mrb[0].mxu0
        %v2522 = vpop.f32.mrb[0].mxu0
        %v2523 = vadd.f32 0.0, %v2522
        %v2524 = vpop.f32.mrb[0].mxu0
        %2525 = vmatprep.mubr.bf16.mxu0 0
        %2526 = vmatmul.mubr.bf16.gmra.mrb[0].mxu0 %v2483
        %v2527 = vpop.f32.mrb[0].mxu0
        %v2528 = vadd.f32 0.0, %v2527
        %v2529 = vpop.f32.mrb[0].mxu0
        %v2530 = vpop.f32.mrb[0].mxu0
        %v2531 = vadd.f32 0.0, %v2530
        %v2532 = vpop.f32.mrb[0].mxu0
        %2533 = vdwg.mxu0
        %v2534 = vpack.c.bf16 %v2334, %v2331
        %v2535 = vpack.c.bf16 %v2342, %v2339
        %v2536 = vpack.c.bf16 %v2397, %v2394
        %v2537 = vpack.c.bf16 %v2405, %v2402
        %v2538 = vpack.c.bf16 %v2460, %v2457
        %v2539 = vpack.c.bf16 %v2468, %v2465
        %v2540 = vpack.c.bf16 %v2523, %v2520
        %v2541 = vpack.c.bf16 %v2531, %v2528
        %v2542 = vld [vmem:[#allocation8 + $0x10] sm:$0xf]
        %v2543 = vld [vmem:[#allocation8 + $0x14] sm:$0xf]
        %v2544 = vld [vmem:[#allocation8 + $0x18] sm:$0xf]
        %v2545 = vld [vmem:[#allocation8 + $0x1c] sm:$0xf]
        %v2550 = vunpack.c.l.b16 %v2542
        %v2551 = vunpack.c.l.b16 %v2543
        %v2552 = vunpack.c.l.b16 %v2544
        %v2553 = vunpack.c.l.b16 %v2545
        %v2554 = vpack.c.b16 %v2551, %v2550
        %v2555 = vpack.c.b16 %v2553, %v2552
        %v2559 = vsel %vm1145, %v2534, 0
        %v2562 = vsel %vm1145, %v2535, 0
        %v2565 = vsel %vm1145, %v2536, 0
        %v2568 = vsel %vm1145, %v2537, 0
        %v2571 = vsel %vm1145, %v2538, 0
        %v2574 = vsel %vm1145, %v2539, 0
        %v2577 = vsel %vm1145, %v2540, 0
        %v2580 = vsel %vm1145, %v2541, 0
        %2582 = vmatprep.subr.bf16.mxu0 0
        %2583 = vmatpush1.bf16.msra.mxu0 %v2554
        %2584 = vmatprep.subr.bf16.mxu0 0
        %2585 = vmatpush1.bf16.msra.mxu0 %v2555
        %2586 = vmatprep.subr.bf16.mxu0 0
        %2587 = vmatpush1.bf16.msra.mxu0 0
        %2588 = vmatprep.subr.bf16.mxu0 0
        %2589 = vmatpush1.bf16.msra.mxu0 0
        %2590 = vmatprep.subr.bf16.mxu0 0
        %2591 = vmatpush1.bf16.msra.mxu0 0
        %2592 = vmatprep.subr.bf16.mxu0 0
        %2593 = vmatpush1.bf16.msra.mxu0 0
        %2594 = vmatprep.subr.bf16.mxu0 0
        %2595 = vmatpush1.bf16.msra.mxu0 0
        %2596 = vmatprep.subr.bf16.mxu0 0
        %2597 = vmatpush1.bf16.msra.mxu0 0
        %2598 = vmatprep.subr.bf16.mxu0 0
        %2599 = vmatpush1.bf16.msra.mxu0 0
        %2600 = vmatprep.subr.bf16.mxu0 0
        %2601 = vmatpush1.bf16.msra.mxu0 0
        %2602 = vmatprep.subr.bf16.mxu0 0
        %2603 = vmatpush1.bf16.msra.mxu0 0
        %2604 = vmatprep.subr.bf16.mxu0 0
        %2605 = vmatpush1.bf16.msra.mxu0 0
        %2606 = vmatprep.subr.bf16.mxu0 0
        %2607 = vmatpush1.bf16.msra.mxu0 0
        %2608 = vmatprep.subr.bf16.mxu0 0
        %2609 = vmatpush1.bf16.msra.mxu0 0
        %2610 = vmatprep.subr.bf16.mxu0 0
        %2611 = vmatpush1.bf16.msra.mxu0 0
        %2612 = vmatprep.subr.bf16.mxu0 0
        %2613 = vmatpush1.bf16.msra.mxu0 0
        %2614 = vmatprep.mubr.bf16.mxu0 0
        %2615 = vmatmul.mubr.bf16.gmra.mrb[0].mxu0 %v2559
        %v2616 = vpop.f32.mrb[0].mxu0
        %v2617 = vadd.f32 0.0, %v2616
        %v2618 = vpop.f32.mrb[0].mxu0
        %v2619 = vpop.f32.mrb[0].mxu0
        %v2620 = vadd.f32 0.0, %v2619
        %v2621 = vpop.f32.mrb[0].mxu0
        %2622 = vmatprep.mubr.bf16.mxu0 0
        %2623 = vmatmul.mubr.bf16.gmra.mrb[0].mxu0 %v2562
        %v2624 = vpop.f32.mrb[0].mxu0
        %v2625 = vadd.f32 0.0, %v2624
        %v2626 = vpop.f32.mrb[0].mxu0
        %v2627 = vpop.f32.mrb[0].mxu0
        %v2628 = vadd.f32 0.0, %v2627
        %v2629 = vpop.f32.mrb[0].mxu0
        %2630 = vmatprep.mubr.bf16.mxu0 0
        %2631 = vmatmul.mubr.bf16.gmra.mrb[0].mxu0 %v2565
        %v2632 = vpop.f32.mrb[0].mxu0
        %v2633 = vadd.f32 0.0, %v2632
        %v2634 = vpop.f32.mrb[0].mxu0
        %v2635 = vpop.f32.mrb[0].mxu0
        %v2636 = vadd.f32 0.0, %v2635
        %v2637 = vpop.f32.mrb[0].mxu0
        %2638 = vmatprep.mubr.bf16.mxu0 0
        %2639 = vmatmul.mubr.bf16.gmra.mrb[0].mxu0 %v2568
        %v2640 = vpop.f32.mrb[0].mxu0
        %v2641 = vadd.f32 0.0, %v2640
        %v2642 = vpop.f32.mrb[0].mxu0
        %v2643 = vpop.f32.mrb[0].mxu0
        %v2644 = vadd.f32 0.0, %v2643
        %v2645 = vpop.f32.mrb[0].mxu0
        %2646 = vmatprep.mubr.bf16.mxu0 0
        %2647 = vmatmul.mubr.bf16.gmra.mrb[0].mxu0 %v2571
        %v2648 = vpop.f32.mrb[0].mxu0
        %v2649 = vadd.f32 0.0, %v2648
        %v2650 = vpop.f32.mrb[0].mxu0
        %v2651 = vpop.f32.mrb[0].mxu0
        %v2652 = vadd.f32 0.0, %v2651
        %v2653 = vpop.f32.mrb[0].mxu0
        %2654 = vmatprep.mubr.bf16.mxu0 0
        %2655 = vmatmul.mubr.bf16.gmra.mrb[0].mxu0 %v2574
        %v2656 = vpop.f32.mrb[0].mxu0
        %v2657 = vadd.f32 0.0, %v2656
        %v2658 = vpop.f32.mrb[0].mxu0
        %v2659 = vpop.f32.mrb[0].mxu0
        %v2660 = vadd.f32 0.0, %v2659
        %v2661 = vpop.f32.mrb[0].mxu0
        %2662 = vmatprep.mubr.bf16.mxu0 0
        %2663 = vmatmul.mubr.bf16.gmra.mrb[0].mxu0 %v2577
        %v2664 = vpop.f32.mrb[0].mxu0
        %v2665 = vadd.f32 0.0, %v2664
        %v2666 = vpop.f32.mrb[0].mxu0
        %v2667 = vpop.f32.mrb[0].mxu0
        %v2668 = vadd.f32 0.0, %v2667
        %v2669 = vpop.f32.mrb[0].mxu0
        %2670 = vmatprep.mubr.bf16.mxu0 0
        %2671 = vmatmul.mubr.bf16.gmra.mrb[0].mxu0 %v2580
        %v2672 = vpop.f32.mrb[0].mxu0
        %v2673 = vadd.f32 0.0, %v2672
        %v2674 = vpop.f32.mrb[0].mxu0
        %v2675 = vpop.f32.mrb[0].mxu0
        %v2676 = vadd.f32 0.0, %v2675
        %v2677 = vpop.f32.mrb[0].mxu0
        %2678 = vdwg.mxu0
        %v2683 = vunpack.c.l.b16 %v1802
        %v2684 = vunpack.c.l.b16 %v1803
        %v2685 = vunpack.c.l.b16 %v1804
        %v2686 = vunpack.c.l.b16 %v1805
        %v2687 = vpack.c.b16 %v2684, %v2683
        %v2688 = vpack.c.b16 %v2686, %v2685
        %v2692 = vsel %vm1145, %v1794, 0
        %v2695 = vsel %vm1145, %v1795, 0
        %v2698 = vsel %vm1145, %v1796, 0
        %v2701 = vsel %vm1145, %v1797, 0
        %v2704 = vsel %vm1145, %v1798, 0
        %v2707 = vsel %vm1145, %v1799, 0
        %v2710 = vsel %vm1145, %v1800, 0
        %v2713 = vsel %vm1145, %v1801, 0
        %2715 = vmatprep.subr.bf16.mxu0 0
        %2716 = vmatpush1.bf16.msra.mxu0 %v2687
        %2717 = vmatprep.subr.bf16.mxu0 0
        %2718 = vmatpush1.bf16.msra.mxu0 %v2688
        %2719 = vmatprep.subr.bf16.mxu0 0
        %2720 = vmatpush1.bf16.msra.mxu0 0
        %2721 = vmatprep.subr.bf16.mxu0 0
        %2722 = vmatpush1.bf16.msra.mxu0 0
        %2723 = vmatprep.subr.bf16.mxu0 0
        %2724 = vmatpush1.bf16.msra.mxu0 0
        %2725 = vmatprep.subr.bf16.mxu0 0
        %2726 = vmatpush1.bf16.msra.mxu0 0
        %2727 = vmatprep.subr.bf16.mxu0 0
        %2728 = vmatpush1.bf16.msra.mxu0 0
        %2729 = vmatprep.subr.bf16.mxu0 0
        %2730 = vmatpush1.bf16.msra.mxu0 0
        %2731 = vmatprep.subr.bf16.mxu0 0
        %2732 = vmatpush1.bf16.msra.mxu0 0
        %2733 = vmatprep.subr.bf16.mxu0 0
        %2734 = vmatpush1.bf16.msra.mxu0 0
        %2735 = vmatprep.subr.bf16.mxu0 0
        %2736 = vmatpush1.bf16.msra.mxu0 0
        %2737 = vmatprep.subr.bf16.mxu0 0
        %2738 = vmatpush1.bf16.msra.mxu0 0
        %2739 = vmatprep.subr.bf16.mxu0 0
        %2740 = vmatpush1.bf16.msra.mxu0 0
        %2741 = vmatprep.subr.bf16.mxu0 0
        %2742 = vmatpush1.bf16.msra.mxu0 0
        %2743 = vmatprep.subr.bf16.mxu0 0
        %2744 = vmatpush1.bf16.msra.mxu0 0
        %2745 = vmatprep.subr.bf16.mxu0 0
        %2746 = vmatpush1.bf16.msra.mxu0 0
        %2747 = vmatprep.mubr.bf16.mxu0 0
        %2748 = vmatmul.mubr.bf16.gmra.mrb[0].mxu0 %v2692
        %v2749 = vpop.f32.mrb[0].mxu0
        %v2750 = vadd.f32 %v2617, %v2749
        %v2751 = vpop.f32.mrb[0].mxu0
        %v2752 = vpop.f32.mrb[0].mxu0
        %v2753 = vadd.f32 %v2620, %v2752
        %v2754 = vpop.f32.mrb[0].mxu0
        %2755 = vmatprep.mubr.bf16.mxu0 0
        %2756 = vmatmul.mubr.bf16.gmra.mrb[0].mxu0 %v2695
        %v2757 = vpop.f32.mrb[0].mxu0
        %v2758 = vadd.f32 %v2625, %v2757
        %v2759 = vpop.f32.mrb[0].mxu0
        %v2760 = vpop.f32.mrb[0].mxu0
        %v2761 = vadd.f32 %v2628, %v2760
        %v2762 = vpop.f32.mrb[0].mxu0
        %2763 = vmatprep.mubr.bf16.mxu0 0
        %2764 = vmatmul.mubr.bf16.gmra.mrb[0].mxu0 %v2698
        %v2765 = vpop.f32.mrb[0].mxu0
        %v2766 = vadd.f32 %v2633, %v2765
        %v2767 = vpop.f32.mrb[0].mxu0
        %v2768 = vpop.f32.mrb[0].mxu0
        %v2769 = vadd.f32 %v2636, %v2768
        %v2770 = vpop.f32.mrb[0].mxu0
        %2771 = vmatprep.mubr.bf16.mxu0 0
        %2772 = vmatmul.mubr.bf16.gmra.mrb[0].mxu0 %v2701
        %v2773 = vpop.f32.mrb[0].mxu0
        %v2774 = vadd.f32 %v2641, %v2773
        %v2775 = vpop.f32.mrb[0].mxu0
        %v2776 = vpop.f32.mrb[0].mxu0
        %v2777 = vadd.f32 %v2644, %v2776
        %v2778 = vpop.f32.mrb[0].mxu0
        %2779 = vmatprep.mubr.bf16.mxu0 0
        %2780 = vmatmul.mubr.bf16.gmra.mrb[0].mxu0 %v2704
        %v2781 = vpop.f32.mrb[0].mxu0
        %v2782 = vadd.f32 %v2649, %v2781
        %v2783 = vpop.f32.mrb[0].mxu0
        %v2784 = vpop.f32.mrb[0].mxu0
        %v2785 = vadd.f32 %v2652, %v2784
        %v2786 = vpop.f32.mrb[0].mxu0
        %2787 = vmatprep.mubr.bf16.mxu0 0
        %2788 = vmatmul.mubr.bf16.gmra.mrb[0].mxu0 %v2707
        %v2789 = vpop.f32.mrb[0].mxu0
        %v2790 = vadd.f32 %v2657, %v2789
        %v2791 = vpop.f32.mrb[0].mxu0
        %v2792 = vpop.f32.mrb[0].mxu0
        %v2793 = vadd.f32 %v2660, %v2792
        %v2794 = vpop.f32.mrb[0].mxu0
        %2795 = vmatprep.mubr.bf16.mxu0 0
        %2796 = vmatmul.mubr.bf16.gmra.mrb[0].mxu0 %v2710
        %v2797 = vpop.f32.mrb[0].mxu0
        %v2798 = vadd.f32 %v2665, %v2797
        %v2799 = vpop.f32.mrb[0].mxu0
        %v2800 = vpop.f32.mrb[0].mxu0
        %v2801 = vadd.f32 %v2668, %v2800
        %v2802 = vpop.f32.mrb[0].mxu0
        %2803 = vmatprep.mubr.bf16.mxu0 0
        %2804 = vmatmul.mubr.bf16.gmra.mrb[0].mxu0 %v2713
        %v2805 = vpop.f32.mrb[0].mxu0
        %v2806 = vadd.f32 %v2673, %v2805
        %v2807 = vpop.f32.mrb[0].mxu0
        %v2808 = vpop.f32.mrb[0].mxu0
        %v2809 = vadd.f32 %v2676, %v2808
        %v2810 = vpop.f32.mrb[0].mxu0
        %2811 = vdwg.mxu0
        %2812 = vrot.lane.b32.xlu0 %v1121, 64
        %v2813 = vpop.permute.xlu0 %2812
        %2814 = vrot.lane.b32.xlu0 %v1122, 64
        %v2815 = vpop.permute.xlu0 %2814
        %2816 = vrot.lane.b32.xlu0 %v1129, 64
        %v2817 = vpop.permute.xlu0 %2816
        %2818 = vrot.lane.b32.xlu0 %v1130, 64
        %v2819 = vpop.permute.xlu0 %2818
        %v2821 = vsel %vm1145, %v2813, 0
        %v2824 = vsel %vm1145, %v2815, 0
        %v2827 = vsel %vm1145, %v2817, 0
        %v2830 = vsel %vm1145, %v2819, 0
        %2832 = vmatprep.subr.bf16.mxu0 0
        %2833 = vmatpush1.bf16.xpose.msra.mxu0 %v2827
        %2834 = vmatprep.subr.bf16.mxu0 0
        %2835 = vmatpush1.bf16.xpose.msra.mxu0 %v2830
        %2836 = vmatprep.subr.bf16.mxu0 0
        %2837 = vmatpush1.bf16.xpose.msra.mxu0 0
        %2838 = vmatprep.subr.bf16.mxu0 0
        %2839 = vmatpush1.bf16.xpose.msra.mxu0 0
        %2840 = vmatprep.subr.bf16.mxu0 0
        %2841 = vmatpush1.bf16.xpose.msra.mxu0 0
        %2842 = vmatprep.subr.bf16.mxu0 0
        %2843 = vmatpush1.bf16.xpose.msra.mxu0 0
        %2844 = vmatprep.subr.bf16.mxu0 0
        %2845 = vmatpush1.bf16.xpose.msra.mxu0 0
        %2846 = vmatprep.subr.bf16.mxu0 0
        %2847 = vmatpush1.bf16.xpose.msra.mxu0 0
        %2848 = vmatprep.subr.bf16.mxu0 0
        %2849 = vmatpush1.bf16.xpose.msra.mxu0 0
        %2850 = vmatprep.subr.bf16.mxu0 0
        %2851 = vmatpush1.bf16.xpose.msra.mxu0 0
        %2852 = vmatprep.subr.bf16.mxu0 0
        %2853 = vmatpush1.bf16.xpose.msra.mxu0 0
        %2854 = vmatprep.subr.bf16.mxu0 0
        %2855 = vmatpush1.bf16.xpose.msra.mxu0 0
        %2856 = vmatprep.subr.bf16.mxu0 0
        %2857 = vmatpush1.bf16.xpose.msra.mxu0 0
        %2858 = vmatprep.subr.bf16.mxu0 0
        %2859 = vmatpush1.bf16.xpose.msra.mxu0 0
        %2860 = vmatprep.subr.bf16.mxu0 0
        %2861 = vmatpush1.bf16.xpose.msra.mxu0 0
        %2862 = vmatprep.subr.bf16.mxu0 0
        %2863 = vmatpush1.bf16.xpose.msra.mxu0 0
        %2864 = vmatprep.mubr.bf16.mxu0 0
        %2865 = vmatmul.mubr.bf16.gmra.mrb[0].mxu0 %v2821
        %v2866 = vpop.f32.mrb[0].mxu0
        %v2867 = vadd.f32 %v471, %v2866
        %v2868 = vpop.f32.mrb[0].mxu0
        %v2869 = vpop.f32.mrb[0].mxu0
        %v2870 = vadd.f32 %v472, %v2869
        %v2871 = vpop.f32.mrb[0].mxu0
        %2872 = vmatprep.mubr.bf16.mxu0 0
        %2873 = vmatmul.mubr.bf16.gmra.mrb[0].mxu0 %v2824
        %v2874 = vpop.f32.mrb[0].mxu0
        %v2875 = vadd.f32 %v473, %v2874
        %v2876 = vpop.f32.mrb[0].mxu0
        %v2877 = vpop.f32.mrb[0].mxu0
        %v2878 = vadd.f32 %v474, %v2877
        %v2879 = vpop.f32.mrb[0].mxu0
        %2880 = vdwg.mxu0
        %2881 = vrot.lane.b32.xlu0 %v1123, 64
        %v2882 = vpop.permute.xlu0 %2881
        %2883 = vrot.lane.b32.xlu0 %v1124, 64
        %v2884 = vpop.permute.xlu0 %2883
        %2885 = vrot.lane.b32.xlu0 %v1131, 64
        %v2886 = vpop.permute.xlu0 %2885
        %2887 = vrot.lane.b32.xlu0 %v1132, 64
        %v2888 = vpop.permute.xlu0 %2887
        %v2890 = vsel %vm1145, %v2882, 0
        %v2893 = vsel %vm1145, %v2884, 0
        %v2896 = vsel %vm1145, %v2886, 0
        %v2899 = vsel %vm1145, %v2888, 0
        %2901 = vmatprep.subr.bf16.mxu0 0
        %2902 = vmatpush1.bf16.xpose.msra.mxu0 %v2896
        %2903 = vmatprep.subr.bf16.mxu0 0
        %2904 = vmatpush1.bf16.xpose.msra.mxu0 %v2899
        %2905 = vmatprep.subr.bf16.mxu0 0
        %2906 = vmatpush1.bf16.xpose.msra.mxu0 0
        %2907 = vmatprep.subr.bf16.mxu0 0
        %2908 = vmatpush1.bf16.xpose.msra.mxu0 0
        %2909 = vmatprep.subr.bf16.mxu0 0
        %2910 = vmatpush1.bf16.xpose.msra.mxu0 0
        %2911 = vmatprep.subr.bf16.mxu0 0
        %2912 = vmatpush1.bf16.xpose.msra.mxu0 0
        %2913 = vmatprep.subr.bf16.mxu0 0
        %2914 = vmatpush1.bf16.xpose.msra.mxu0 0
        %2915 = vmatprep.subr.bf16.mxu0 0
        %2916 = vmatpush1.bf16.xpose.msra.mxu0 0
        %2917 = vmatprep.subr.bf16.mxu0 0
        %2918 = vmatpush1.bf16.xpose.msra.mxu0 0
        %2919 = vmatprep.subr.bf16.mxu0 0
        %2920 = vmatpush1.bf16.xpose.msra.mxu0 0
        %2921 = vmatprep.subr.bf16.mxu0 0
        %2922 = vmatpush1.bf16.xpose.msra.mxu0 0
        %2923 = vmatprep.subr.bf16.mxu0 0
        %2924 = vmatpush1.bf16.xpose.msra.mxu0 0
        %2925 = vmatprep.subr.bf16.mxu0 0
        %2926 = vmatpush1.bf16.xpose.msra.mxu0 0
        %2927 = vmatprep.subr.bf16.mxu0 0
        %2928 = vmatpush1.bf16.xpose.msra.mxu0 0
        %2929 = vmatprep.subr.bf16.mxu0 0
        %2930 = vmatpush1.bf16.xpose.msra.mxu0 0
        %2931 = vmatprep.subr.bf16.mxu0 0
        %2932 = vmatpush1.bf16.xpose.msra.mxu0 0
        %2933 = vmatprep.mubr.bf16.mxu0 0
        %2934 = vmatmul.mubr.bf16.gmra.mrb[0].mxu0 %v2890
        %v2935 = vpop.f32.mrb[0].mxu0
        %v2936 = vadd.f32 %v475, %v2935
        %v2937 = vpop.f32.mrb[0].mxu0
        %v2938 = vpop.f32.mrb[0].mxu0
        %v2939 = vadd.f32 %v476, %v2938
        %v2940 = vpop.f32.mrb[0].mxu0
        %2941 = vmatprep.mubr.bf16.mxu0 0
        %2942 = vmatmul.mubr.bf16.gmra.mrb[0].mxu0 %v2893
        %v2943 = vpop.f32.mrb[0].mxu0
        %v2944 = vadd.f32 %v477, %v2943
        %v2945 = vpop.f32.mrb[0].mxu0
        %v2946 = vpop.f32.mrb[0].mxu0
        %v2947 = vadd.f32 %v478, %v2946
        %v2948 = vpop.f32.mrb[0].mxu0
        %2949 = vdwg.mxu0
        %2950 = vrot.lane.b32.xlu0 %v1125, 64
        %v2951 = vpop.permute.xlu0 %2950
        %2952 = vrot.lane.b32.xlu0 %v1126, 64
        %v2953 = vpop.permute.xlu0 %2952
        %2954 = vrot.lane.b32.xlu0 %v1133, 64
        %v2955 = vpop.permute.xlu0 %2954
        %2956 = vrot.lane.b32.xlu0 %v1134, 64
        %v2957 = vpop.permute.xlu0 %2956
        %v2959 = vsel %vm1145, %v2951, 0
        %v2962 = vsel %vm1145, %v2953, 0
        %v2965 = vsel %vm1145, %v2955, 0
        %v2968 = vsel %vm1145, %v2957, 0
        %2970 = vmatprep.subr.bf16.mxu0 0
        %2971 = vmatpush1.bf16.xpose.msra.mxu0 %v2965
        %2972 = vmatprep.subr.bf16.mxu0 0
        %2973 = vmatpush1.bf16.xpose.msra.mxu0 %v2968
        %2974 = vmatprep.subr.bf16.mxu0 0
        %2975 = vmatpush1.bf16.xpose.msra.mxu0 0
        %2976 = vmatprep.subr.bf16.mxu0 0
        %2977 = vmatpush1.bf16.xpose.msra.mxu0 0
        %2978 = vmatprep.subr.bf16.mxu0 0
        %2979 = vmatpush1.bf16.xpose.msra.mxu0 0
        %2980 = vmatprep.subr.bf16.mxu0 0
        %2981 = vmatpush1.bf16.xpose.msra.mxu0 0
        %2982 = vmatprep.subr.bf16.mxu0 0
        %2983 = vmatpush1.bf16.xpose.msra.mxu0 0
        %2984 = vmatprep.subr.bf16.mxu0 0
        %2985 = vmatpush1.bf16.xpose.msra.mxu0 0
        %2986 = vmatprep.subr.bf16.mxu0 0
        %2987 = vmatpush1.bf16.xpose.msra.mxu0 0
        %2988 = vmatprep.subr.bf16.mxu0 0
        %2989 = vmatpush1.bf16.xpose.msra.mxu0 0
        %2990 = vmatprep.subr.bf16.mxu0 0
        %2991 = vmatpush1.bf16.xpose.msra.mxu0 0
        %2992 = vmatprep.subr.bf16.mxu0 0
        %2993 = vmatpush1.bf16.xpose.msra.mxu0 0
        %2994 = vmatprep.subr.bf16.mxu0 0
        %2995 = vmatpush1.bf16.xpose.msra.mxu0 0
        %2996 = vmatprep.subr.bf16.mxu0 0
        %2997 = vmatpush1.bf16.xpose.msra.mxu0 0
        %2998 = vmatprep.subr.bf16.mxu0 0
        %2999 = vmatpush1.bf16.xpose.msra.mxu0 0
        %3000 = vmatprep.subr.bf16.mxu0 0
        %3001 = vmatpush1.bf16.xpose.msra.mxu0 0
        %3002 = vmatprep.mubr.bf16.mxu0 0
        %3003 = vmatmul.mubr.bf16.gmra.mrb[0].mxu0 %v2959
        %v3004 = vpop.f32.mrb[0].mxu0
        %v3005 = vadd.f32 %v479, %v3004
        %v3006 = vpop.f32.mrb[0].mxu0
        %v3007 = vpop.f32.mrb[0].mxu0
        %v3008 = vadd.f32 %v480, %v3007
        %v3009 = vpop.f32.mrb[0].mxu0
        %3010 = vmatprep.mubr.bf16.mxu0 0
        %3011 = vmatmul.mubr.bf16.gmra.mrb[0].mxu0 %v2962
        %v3012 = vpop.f32.mrb[0].mxu0
        %v3013 = vadd.f32 %v481, %v3012
        %v3014 = vpop.f32.mrb[0].mxu0
        %v3015 = vpop.f32.mrb[0].mxu0
        %v3016 = vadd.f32 %v482, %v3015
        %v3017 = vpop.f32.mrb[0].mxu0
        %3018 = vdwg.mxu0
        %3019 = vrot.lane.b32.xlu0 %v1127, 64
        %v3020 = vpop.permute.xlu0 %3019
        %3021 = vrot.lane.b32.xlu0 %v1128, 64
        %v3022 = vpop.permute.xlu0 %3021
        %3023 = vrot.lane.b32.xlu0 %v1135, 64
        %v3024 = vpop.permute.xlu0 %3023
        %3025 = vrot.lane.b32.xlu0 %v1136, 64
        %v3026 = vpop.permute.xlu0 %3025
        %v3028 = vsel %vm1145, %v3020, 0
        %v3031 = vsel %vm1145, %v3022, 0
        %v3034 = vsel %vm1145, %v3024, 0
        %v3037 = vsel %vm1145, %v3026, 0
        %3039 = vmatprep.subr.bf16.mxu0 0
        %3040 = vmatpush1.bf16.xpose.msra.mxu0 %v3034
        %3041 = vmatprep.subr.bf16.mxu0 0
        %3042 = vmatpush1.bf16.xpose.msra.mxu0 %v3037
        %3043 = vmatprep.subr.bf16.mxu0 0
        %3044 = vmatpush1.bf16.xpose.msra.mxu0 0
        %3045 = vmatprep.subr.bf16.mxu0 0
        %3046 = vmatpush1.bf16.xpose.msra.mxu0 0
        %3047 = vmatprep.subr.bf16.mxu0 0
        %3048 = vmatpush1.bf16.xpose.msra.mxu0 0
        %3049 = vmatprep.subr.bf16.mxu0 0
        %3050 = vmatpush1.bf16.xpose.msra.mxu0 0
        %3051 = vmatprep.subr.bf16.mxu0 0
        %3052 = vmatpush1.bf16.xpose.msra.mxu0 0
        %3053 = vmatprep.subr.bf16.mxu0 0
        %3054 = vmatpush1.bf16.xpose.msra.mxu0 0
        %3055 = vmatprep.subr.bf16.mxu0 0
        %3056 = vmatpush1.bf16.xpose.msra.mxu0 0
        %3057 = vmatprep.subr.bf16.mxu0 0
        %3058 = vmatpush1.bf16.xpose.msra.mxu0 0
        %3059 = vmatprep.subr.bf16.mxu0 0
        %3060 = vmatpush1.bf16.xpose.msra.mxu0 0
        %3061 = vmatprep.subr.bf16.mxu0 0
        %3062 = vmatpush1.bf16.xpose.msra.mxu0 0
        %3063 = vmatprep.subr.bf16.mxu0 0
        %3064 = vmatpush1.bf16.xpose.msra.mxu0 0
        %3065 = vmatprep.subr.bf16.mxu0 0
        %3066 = vmatpush1.bf16.xpose.msra.mxu0 0
        %3067 = vmatprep.subr.bf16.mxu0 0
        %3068 = vmatpush1.bf16.xpose.msra.mxu0 0
        %3069 = vmatprep.subr.bf16.mxu0 0
        %3070 = vmatpush1.bf16.xpose.msra.mxu0 0
        %3071 = vmatprep.mubr.bf16.mxu0 0
        %3072 = vmatmul.mubr.bf16.gmra.mrb[0].mxu0 %v3028
        %v3073 = vpop.f32.mrb[0].mxu0
        %v3074 = vadd.f32 %v483, %v3073
        %v3075 = vpop.f32.mrb[0].mxu0
        %v3076 = vpop.f32.mrb[0].mxu0
        %v3077 = vadd.f32 %v484, %v3076
        %v3078 = vpop.f32.mrb[0].mxu0
        %3079 = vmatprep.mubr.bf16.mxu0 0
        %3080 = vmatmul.mubr.bf16.gmra.mrb[0].mxu0 %v3031
        %v3081 = vpop.f32.mrb[0].mxu0
        %v3082 = vadd.f32 %v485, %v3081
        %v3083 = vpop.f32.mrb[0].mxu0
        %v3084 = vpop.f32.mrb[0].mxu0
        %v3085 = vadd.f32 %v486, %v3084
        %v3086 = vpop.f32.mrb[0].mxu0
        %3087 = vdwg.mxu0
        %v3088 = vsel %vm1145, %v2867, -inf
        %3089 = vmax.xlane.f32.xlu0 %v3088
        %v3090 = vpop.xlane.xlu0 %3089
        %v3091 = vsel %vm1145, %v2870, -inf
        %3092 = vmax.xlane.f32.xlu0 %v3091
        %v3093 = vpop.xlane.xlu0 %3092
        %v3094 = vsel %vm1145, %v2875, -inf
        %3095 = vmax.xlane.f32.xlu0 %v3094
        %v3096 = vpop.xlane.xlu0 %3095
        %v3097 = vsel %vm1145, %v2878, -inf
        %3098 = vmax.xlane.f32.xlu0 %v3097
        %v3099 = vpop.xlane.xlu0 %3098
        %v3100 = vsel %vm1145, %v2936, -inf
        %3101 = vmax.xlane.f32.xlu0 %v3100
        %v3102 = vpop.xlane.xlu0 %3101
        %v3103 = vsel %vm1145, %v2939, -inf
        %3104 = vmax.xlane.f32.xlu0 %v3103
        %v3105 = vpop.xlane.xlu0 %3104
        %v3106 = vsel %vm1145, %v2944, -inf
        %3107 = vmax.xlane.f32.xlu0 %v3106
        %v3108 = vpop.xlane.xlu0 %3107
        %v3109 = vsel %vm1145, %v2947, -inf
        %3110 = vmax.xlane.f32.xlu0 %v3109
        %v3111 = vpop.xlane.xlu0 %3110
        %v3112 = vsel %vm1145, %v3005, -inf
        %3113 = vmax.xlane.f32.xlu0 %v3112
        %v3114 = vpop.xlane.xlu0 %3113
        %v3115 = vsel %vm1145, %v3008, -inf
        %3116 = vmax.xlane.f32.xlu0 %v3115
        %v3117 = vpop.xlane.xlu0 %3116
        %v3118 = vsel %vm1145, %v3013, -inf
        %3119 = vmax.xlane.f32.xlu0 %v3118
        %v3120 = vpop.xlane.xlu0 %3119
        %v3121 = vsel %vm1145, %v3016, -inf
        %3122 = vmax.xlane.f32.xlu0 %v3121
        %v3123 = vpop.xlane.xlu0 %3122
        %v3124 = vsel %vm1145, %v3074, -inf
        %3125 = vmax.xlane.f32.xlu0 %v3124
        %v3126 = vpop.xlane.xlu0 %3125
        %v3127 = vsel %vm1145, %v3077, -inf
        %3128 = vmax.xlane.f32.xlu0 %v3127
        %v3129 = vpop.xlane.xlu0 %3128
        %v3130 = vsel %vm1145, %v3082, -inf
        %3131 = vmax.xlane.f32.xlu0 %v3130
        %v3132 = vpop.xlane.xlu0 %3131
        %v3133 = vsel %vm1145, %v3085, -inf
        %3134 = vmax.xlane.f32.xlu0 %v3133
        %v3135 = vpop.xlane.xlu0 %3134
        %v3136 = vsub.f32 %v2867, %v3090
        %v3137 = vsub.f32 %v2870, %v3093
        %v3138 = vsub.f32 %v2875, %v3096
        %v3139 = vsub.f32 %v2878, %v3099
        %v3140 = vsub.f32 %v2936, %v3102
        %v3141 = vsub.f32 %v2939, %v3105
        %v3142 = vsub.f32 %v2944, %v3108
        %v3143 = vsub.f32 %v2947, %v3111
        %v3144 = vsub.f32 %v3005, %v3114
        %v3145 = vsub.f32 %v3008, %v3117
        %v3146 = vsub.f32 %v3013, %v3120
        %v3147 = vsub.f32 %v3016, %v3123
        %v3148 = vsub.f32 %v3074, %v3126
        %v3149 = vsub.f32 %v3077, %v3129
        %v3150 = vsub.f32 %v3082, %v3132
        %v3151 = vsub.f32 %v3085, %v3135
        %v3152 = vmul.f32 %v3136, 1.442695
        %v3153 = vpow.pop %v3152
        %v3154 = vmul.f32 %v3137, 1.442695
        %v3155 = vpow.pop %v3154
        %v3156 = vmul.f32 %v3138, 1.442695
        %v3157 = vpow.pop %v3156
        %v3158 = vmul.f32 %v3139, 1.442695
        %v3159 = vpow.pop %v3158
        %v3160 = vmul.f32 %v3140, 1.442695
        %v3161 = vpow.pop %v3160
        %v3162 = vmul.f32 %v3141, 1.442695
        %v3163 = vpow.pop %v3162
        %v3164 = vmul.f32 %v3142, 1.442695
        %v3165 = vpow.pop %v3164
        %v3166 = vmul.f32 %v3143, 1.442695
        %v3167 = vpow.pop %v3166
        %v3168 = vmul.f32 %v3144, 1.442695
        %v3169 = vpow.pop %v3168
        %v3170 = vmul.f32 %v3145, 1.442695
        %v3171 = vpow.pop %v3170
        %v3172 = vmul.f32 %v3146, 1.442695
        %v3173 = vpow.pop %v3172
        %v3174 = vmul.f32 %v3147, 1.442695
        %v3175 = vpow.pop %v3174
        %v3176 = vmul.f32 %v3148, 1.442695
        %v3177 = vpow.pop %v3176
        %v3178 = vmul.f32 %v3149, 1.442695
        %v3179 = vpow.pop %v3178
        %v3180 = vmul.f32 %v3150, 1.442695
        %v3181 = vpow.pop %v3180
        %v3182 = vmul.f32 %v3151, 1.442695
        %v3183 = vpow.pop %v3182
        %v3184 = vsel %vm1145, %v3153, 0.0
        %3185 = vadd.xlane.f32.xlu0 %v3184
        %v3186 = vpop.xlane.xlu0 %3185
        %v3187 = vsel %vm1145, %v3155, 0.0
        %3188 = vadd.xlane.f32.xlu0 %v3187
        %v3189 = vpop.xlane.xlu0 %3188
        %v3190 = vsel %vm1145, %v3157, 0.0
        %3191 = vadd.xlane.f32.xlu0 %v3190
        %v3192 = vpop.xlane.xlu0 %3191
        %v3193 = vsel %vm1145, %v3159, 0.0
        %3194 = vadd.xlane.f32.xlu0 %v3193
        %v3195 = vpop.xlane.xlu0 %3194
        %v3196 = vsel %vm1145, %v3161, 0.0
        %3197 = vadd.xlane.f32.xlu0 %v3196
        %v3198 = vpop.xlane.xlu0 %3197
        %v3199 = vsel %vm1145, %v3163, 0.0
        %3200 = vadd.xlane.f32.xlu0 %v3199
        %v3201 = vpop.xlane.xlu0 %3200
        %v3202 = vsel %vm1145, %v3165, 0.0
        %3203 = vadd.xlane.f32.xlu0 %v3202
        %v3204 = vpop.xlane.xlu0 %3203
        %v3205 = vsel %vm1145, %v3167, 0.0
        %3206 = vadd.xlane.f32.xlu0 %v3205
        %v3207 = vpop.xlane.xlu0 %3206
        %v3208 = vsel %vm1145, %v3169, 0.0
        %3209 = vadd.xlane.f32.xlu0 %v3208
        %v3210 = vpop.xlane.xlu0 %3209
        %v3211 = vsel %vm1145, %v3171, 0.0
        %3212 = vadd.xlane.f32.xlu0 %v3211
        %v3213 = vpop.xlane.xlu0 %3212
        %v3214 = vsel %vm1145, %v3173, 0.0
        %3215 = vadd.xlane.f32.xlu0 %v3214
        %v3216 = vpop.xlane.xlu0 %3215
        %v3217 = vsel %vm1145, %v3175, 0.0
        %3218 = vadd.xlane.f32.xlu0 %v3217
        %v3219 = vpop.xlane.xlu0 %3218
        %v3220 = vsel %vm1145, %v3177, 0.0
        %3221 = vadd.xlane.f32.xlu0 %v3220
        %v3222 = vpop.xlane.xlu0 %3221
        %v3223 = vsel %vm1145, %v3179, 0.0
        %3224 = vadd.xlane.f32.xlu0 %v3223
        %v3225 = vpop.xlane.xlu0 %3224
        %v3226 = vsel %vm1145, %v3181, 0.0
        %3227 = vadd.xlane.f32.xlu0 %v3226
        %v3228 = vpop.xlane.xlu0 %3227
        %v3229 = vsel %vm1145, %v3183, 0.0
        %3230 = vadd.xlane.f32.xlu0 %v3229
        %v3231 = vpop.xlane.xlu0 %3230
        %v3232 = vrcp.pop %v3186
        %v3233 = vrcp.pop %v3189
        %v3234 = vrcp.pop %v3192
        %v3235 = vrcp.pop %v3195
        %v3236 = vrcp.pop %v3198
        %v3237 = vrcp.pop %v3201
        %v3238 = vrcp.pop %v3204
        %v3239 = vrcp.pop %v3207
        %v3240 = vrcp.pop %v3210
        %v3241 = vrcp.pop %v3213
        %v3242 = vrcp.pop %v3216
        %v3243 = vrcp.pop %v3219
        %v3244 = vrcp.pop %v3222
        %v3245 = vrcp.pop %v3225
        %v3246 = vrcp.pop %v3228
        %v3247 = vrcp.pop %v3231
        %v3248 = vmul.f32 %v3153, %v3232
        %v3249 = vmul.f32 %v3155, %v3233
        %v3250 = vmul.f32 %v3157, %v3234
        %v3251 = vmul.f32 %v3159, %v3235
        %v3252 = vmul.f32 %v3161, %v3236
        %v3253 = vmul.f32 %v3163, %v3237
        %v3254 = vmul.f32 %v3165, %v3238
        %v3255 = vmul.f32 %v3167, %v3239
        %v3256 = vmul.f32 %v3169, %v3240
        %v3257 = vmul.f32 %v3171, %v3241
        %v3258 = vmul.f32 %v3173, %v3242
        %v3259 = vmul.f32 %v3175, %v3243
        %v3260 = vmul.f32 %v3177, %v3244
        %v3261 = vmul.f32 %v3179, %v3245
        %v3262 = vmul.f32 %v3181, %v3246
        %v3263 = vmul.f32 %v3183, %v3247
        %v3264 = vpack.c.bf16 %v3249, %v3248
        %v3265 = vpack.c.bf16 %v3251, %v3250
        %v3266 = vpack.c.bf16 %v3253, %v3252
        %v3267 = vpack.c.bf16 %v3255, %v3254
        %v3268 = vpack.c.bf16 %v3257, %v3256
        %v3269 = vpack.c.bf16 %v3259, %v3258
        %v3270 = vpack.c.bf16 %v3261, %v3260
        %v3271 = vpack.c.bf16 %v3263, %v3262
        %3272 = vrot.lane.b32.xlu0 %v1137, 64
        %v3273 = vpop.permute.xlu0 %3272
        %3274 = vrot.lane.b32.xlu0 %v1138, 64
        %v3275 = vpop.permute.xlu0 %3274
        %v3279 = vsel %vm1145, %v3264, 0
        %v3282 = vsel %vm1145, %v3265, 0
        %3284 = vmatprep.subr.bf16.mxu0 0
        %3285 = vmatpush1.bf16.msra.mxu0 %v3273
        %3286 = vmatprep.subr.bf16.mxu0 0
        %3287 = vmatpush1.bf16.msra.mxu0 %v3275
        %3288 = vmatprep.subr.bf16.mxu0 0
        %3289 = vmatpush1.bf16.msra.mxu0 0
        %3290 = vmatprep.subr.bf16.mxu0 0
        %3291 = vmatpush1.bf16.msra.mxu0 0
        %3292 = vmatprep.subr.bf16.mxu0 0
        %3293 = vmatpush1.bf16.msra.mxu0 0
        %3294 = vmatprep.subr.bf16.mxu0 0
        %3295 = vmatpush1.bf16.msra.mxu0 0
        %3296 = vmatprep.subr.bf16.mxu0 0
        %3297 = vmatpush1.bf16.msra.mxu0 0
        %3298 = vmatprep.subr.bf16.mxu0 0
        %3299 = vmatpush1.bf16.msra.mxu0 0
        %3300 = vmatprep.subr.bf16.mxu0 0
        %3301 = vmatpush1.bf16.msra.mxu0 0
        %3302 = vmatprep.subr.bf16.mxu0 0
        %3303 = vmatpush1.bf16.msra.mxu0 0
        %3304 = vmatprep.subr.bf16.mxu0 0
        %3305 = vmatpush1.bf16.msra.mxu0 0
        %3306 = vmatprep.subr.bf16.mxu0 0
        %3307 = vmatpush1.bf16.msra.mxu0 0
        %3308 = vmatprep.subr.bf16.mxu0 0
        %3309 = vmatpush1.bf16.msra.mxu0 0
        %3310 = vmatprep.subr.bf16.mxu0 0
        %3311 = vmatpush1.bf16.msra.mxu0 0
        %3312 = vmatprep.subr.bf16.mxu0 0
        %3313 = vmatpush1.bf16.msra.mxu0 0
        %3314 = vmatprep.subr.bf16.mxu0 0
        %3315 = vmatpush1.bf16.msra.mxu0 0
        %3316 = vmatprep.mubr.bf16.mxu0 0
        %3317 = vmatmul.mubr.bf16.gmra.mrb[0].mxu0 %v3279
        %v3318 = vpop.f32.mrb[0].mxu0
        %v3319 = vadd.f32 0.0, %v3318
        %v3320 = vpop.f32.mrb[0].mxu0
        %v3321 = vpop.f32.mrb[0].mxu0
        %v3322 = vadd.f32 0.0, %v3321
        %v3323 = vpop.f32.mrb[0].mxu0
        %3324 = vmatprep.mubr.bf16.mxu0 0
        %3325 = vmatmul.mubr.bf16.gmra.mrb[0].mxu0 %v3282
        %v3326 = vpop.f32.mrb[0].mxu0
        %v3327 = vadd.f32 0.0, %v3326
        %v3328 = vpop.f32.mrb[0].mxu0
        %v3329 = vpop.f32.mrb[0].mxu0
        %v3330 = vadd.f32 0.0, %v3329
        %v3331 = vpop.f32.mrb[0].mxu0
        %3332 = vdwg.mxu0
        %3333 = vrot.lane.b32.xlu0 %v1139, 64
        %v3334 = vpop.permute.xlu0 %3333
        %3335 = vrot.lane.b32.xlu0 %v1140, 64
        %v3336 = vpop.permute.xlu0 %3335
        %v3340 = vsel %vm1145, %v3266, 0
        %v3343 = vsel %vm1145, %v3267, 0
        %3345 = vmatprep.subr.bf16.mxu0 0
        %3346 = vmatpush1.bf16.msra.mxu0 %v3334
        %3347 = vmatprep.subr.bf16.mxu0 0
        %3348 = vmatpush1.bf16.msra.mxu0 %v3336
        %3349 = vmatprep.subr.bf16.mxu0 0
        %3350 = vmatpush1.bf16.msra.mxu0 0
        %3351 = vmatprep.subr.bf16.mxu0 0
        %3352 = vmatpush1.bf16.msra.mxu0 0
        %3353 = vmatprep.subr.bf16.mxu0 0
        %3354 = vmatpush1.bf16.msra.mxu0 0
        %3355 = vmatprep.subr.bf16.mxu0 0
        %3356 = vmatpush1.bf16.msra.mxu0 0
        %3357 = vmatprep.subr.bf16.mxu0 0
        %3358 = vmatpush1.bf16.msra.mxu0 0
        %3359 = vmatprep.subr.bf16.mxu0 0
        %3360 = vmatpush1.bf16.msra.mxu0 0
        %3361 = vmatprep.subr.bf16.mxu0 0
        %3362 = vmatpush1.bf16.msra.mxu0 0
        %3363 = vmatprep.subr.bf16.mxu0 0
        %3364 = vmatpush1.bf16.msra.mxu0 0
        %3365 = vmatprep.subr.bf16.mxu0 0
        %3366 = vmatpush1.bf16.msra.mxu0 0
        %3367 = vmatprep.subr.bf16.mxu0 0
        %3368 = vmatpush1.bf16.msra.mxu0 0
        %3369 = vmatprep.subr.bf16.mxu0 0
        %3370 = vmatpush1.bf16.msra.mxu0 0
        %3371 = vmatprep.subr.bf16.mxu0 0
        %3372 = vmatpush1.bf16.msra.mxu0 0
        %3373 = vmatprep.subr.bf16.mxu0 0
        %3374 = vmatpush1.bf16.msra.mxu0 0
        %3375 = vmatprep.subr.bf16.mxu0 0
        %3376 = vmatpush1.bf16.msra.mxu0 0
        %3377 = vmatprep.mubr.bf16.mxu0 0
        %3378 = vmatmul.mubr.bf16.gmra.mrb[0].mxu0 %v3340
        %v3379 = vpop.f32.mrb[0].mxu0
        %v3380 = vadd.f32 0.0, %v3379
        %v3381 = vpop.f32.mrb[0].mxu0
        %v3382 = vpop.f32.mrb[0].mxu0
        %v3383 = vadd.f32 0.0, %v3382
        %v3384 = vpop.f32.mrb[0].mxu0
        %3385 = vmatprep.mubr.bf16.mxu0 0
        %3386 = vmatmul.mubr.bf16.gmra.mrb[0].mxu0 %v3343
        %v3387 = vpop.f32.mrb[0].mxu0
        %v3388 = vadd.f32 0.0, %v3387
        %v3389 = vpop.f32.mrb[0].mxu0
        %v3390 = vpop.f32.mrb[0].mxu0
        %v3391 = vadd.f32 0.0, %v3390
        %v3392 = vpop.f32.mrb[0].mxu0
        %3393 = vdwg.mxu0
        %3394 = vrot.lane.b32.xlu0 %v1141, 64
        %v3395 = vpop.permute.xlu0 %3394
        %3396 = vrot.lane.b32.xlu0 %v1142, 64
        %v3397 = vpop.permute.xlu0 %3396
        %v3401 = vsel %vm1145, %v3268, 0
        %v3404 = vsel %vm1145, %v3269, 0
        %3406 = vmatprep.subr.bf16.mxu0 0
        %3407 = vmatpush1.bf16.msra.mxu0 %v3395
        %3408 = vmatprep.subr.bf16.mxu0 0
        %3409 = vmatpush1.bf16.msra.mxu0 %v3397
        %3410 = vmatprep.subr.bf16.mxu0 0
        %3411 = vmatpush1.bf16.msra.mxu0 0
        %3412 = vmatprep.subr.bf16.mxu0 0
        %3413 = vmatpush1.bf16.msra.mxu0 0
        %3414 = vmatprep.subr.bf16.mxu0 0
        %3415 = vmatpush1.bf16.msra.mxu0 0
        %3416 = vmatprep.subr.bf16.mxu0 0
        %3417 = vmatpush1.bf16.msra.mxu0 0
        %3418 = vmatprep.subr.bf16.mxu0 0
        %3419 = vmatpush1.bf16.msra.mxu0 0
        %3420 = vmatprep.subr.bf16.mxu0 0
        %3421 = vmatpush1.bf16.msra.mxu0 0
        %3422 = vmatprep.subr.bf16.mxu0 0
        %3423 = vmatpush1.bf16.msra.mxu0 0
        %3424 = vmatprep.subr.bf16.mxu0 0
        %3425 = vmatpush1.bf16.msra.mxu0 0
        %3426 = vmatprep.subr.bf16.mxu0 0
        %3427 = vmatpush1.bf16.msra.mxu0 0
        %3428 = vmatprep.subr.bf16.mxu0 0
        %3429 = vmatpush1.bf16.msra.mxu0 0
        %3430 = vmatprep.subr.bf16.mxu0 0
        %3431 = vmatpush1.bf16.msra.mxu0 0
        %3432 = vmatprep.subr.bf16.mxu0 0
        %3433 = vmatpush1.bf16.msra.mxu0 0
        %3434 = vmatprep.subr.bf16.mxu0 0
        %3435 = vmatpush1.bf16.msra.mxu0 0
        %3436 = vmatprep.subr.bf16.mxu0 0
        %3437 = vmatpush1.bf16.msra.mxu0 0
        %3438 = vmatprep.mubr.bf16.mxu0 0
        %3439 = vmatmul.mubr.bf16.gmra.mrb[0].mxu0 %v3401
        %v3440 = vpop.f32.mrb[0].mxu0
        %v3441 = vadd.f32 0.0, %v3440
        %v3442 = vpop.f32.mrb[0].mxu0
        %v3443 = vpop.f32.mrb[0].mxu0
        %v3444 = vadd.f32 0.0, %v3443
        %v3445 = vpop.f32.mrb[0].mxu0
        %3446 = vmatprep.mubr.bf16.mxu0 0
        %3447 = vmatmul.mubr.bf16.gmra.mrb[0].mxu0 %v3404
        %v3448 = vpop.f32.mrb[0].mxu0
        %v3449 = vadd.f32 0.0, %v3448
        %v3450 = vpop.f32.mrb[0].mxu0
        %v3451 = vpop.f32.mrb[0].mxu0
        %v3452 = vadd.f32 0.0, %v3451
        %v3453 = vpop.f32.mrb[0].mxu0
        %3454 = vdwg.mxu0
        %3455 = vrot.lane.b32.xlu0 %v1143, 64
        %v3456 = vpop.permute.xlu0 %3455
        %3457 = vrot.lane.b32.xlu0 %v1144, 64
        %v3458 = vpop.permute.xlu0 %3457
        %v3462 = vsel %vm1145, %v3270, 0
        %v3465 = vsel %vm1145, %v3271, 0
        %3467 = vmatprep.subr.bf16.mxu0 0
        %3468 = vmatpush1.bf16.msra.mxu0 %v3456
        %3469 = vmatprep.subr.bf16.mxu0 0
        %3470 = vmatpush1.bf16.msra.mxu0 %v3458
        %3471 = vmatprep.subr.bf16.mxu0 0
        %3472 = vmatpush1.bf16.msra.mxu0 0
        %3473 = vmatprep.subr.bf16.mxu0 0
        %3474 = vmatpush1.bf16.msra.mxu0 0
        %3475 = vmatprep.subr.bf16.mxu0 0
        %3476 = vmatpush1.bf16.msra.mxu0 0
        %3477 = vmatprep.subr.bf16.mxu0 0
        %3478 = vmatpush1.bf16.msra.mxu0 0
        %3479 = vmatprep.subr.bf16.mxu0 0
        %3480 = vmatpush1.bf16.msra.mxu0 0
        %3481 = vmatprep.subr.bf16.mxu0 0
        %3482 = vmatpush1.bf16.msra.mxu0 0
        %3483 = vmatprep.subr.bf16.mxu0 0
        %3484 = vmatpush1.bf16.msra.mxu0 0
        %3485 = vmatprep.subr.bf16.mxu0 0
        %3486 = vmatpush1.bf16.msra.mxu0 0
        %3487 = vmatprep.subr.bf16.mxu0 0
        %3488 = vmatpush1.bf16.msra.mxu0 0
        %3489 = vmatprep.subr.bf16.mxu0 0
        %3490 = vmatpush1.bf16.msra.mxu0 0
        %3491 = vmatprep.subr.bf16.mxu0 0
        %3492 = vmatpush1.bf16.msra.mxu0 0
        %3493 = vmatprep.subr.bf16.mxu0 0
        %3494 = vmatpush1.bf16.msra.mxu0 0
        %3495 = vmatprep.subr.bf16.mxu0 0
        %3496 = vmatpush1.bf16.msra.mxu0 0
        %3497 = vmatprep.subr.bf16.mxu0 0
        %3498 = vmatpush1.bf16.msra.mxu0 0
        %3499 = vmatprep.mubr.bf16.mxu0 0
        %3500 = vmatmul.mubr.bf16.gmra.mrb[0].mxu0 %v3462
        %v3501 = vpop.f32.mrb[0].mxu0
        %v3502 = vadd.f32 0.0, %v3501
        %v3503 = vpop.f32.mrb[0].mxu0
        %v3504 = vpop.f32.mrb[0].mxu0
        %v3505 = vadd.f32 0.0, %v3504
        %v3506 = vpop.f32.mrb[0].mxu0
        %3507 = vmatprep.mubr.bf16.mxu0 0
        %3508 = vmatmul.mubr.bf16.gmra.mrb[0].mxu0 %v3465
        %v3509 = vpop.f32.mrb[0].mxu0
        %v3510 = vadd.f32 0.0, %v3509
        %v3511 = vpop.f32.mrb[0].mxu0
        %v3512 = vpop.f32.mrb[0].mxu0
        %v3513 = vadd.f32 0.0, %v3512
        %v3514 = vpop.f32.mrb[0].mxu0
        %3515 = vdwg.mxu0
        %v3516 = vpack.c.bf16 %v3322, %v3319
        %v3517 = vpack.c.bf16 %v3330, %v3327
        %v3518 = vpack.c.bf16 %v3383, %v3380
        %v3519 = vpack.c.bf16 %v3391, %v3388
        %v3520 = vpack.c.bf16 %v3444, %v3441
        %v3521 = vpack.c.bf16 %v3452, %v3449
        %v3522 = vpack.c.bf16 %v3505, %v3502
        %v3523 = vpack.c.bf16 %v3513, %v3510
        %v3524 = vld [vmem:[#allocation8 + $0x20] sm:$0xf]
        %v3525 = vld [vmem:[#allocation8 + $0x24] sm:$0xf]
        %v3526 = vld [vmem:[#allocation8 + $0x28] sm:$0xf]
        %v3527 = vld [vmem:[#allocation8 + $0x2c] sm:$0xf]
        %v3532 = vunpack.c.l.b16 %v3524
        %v3533 = vunpack.c.l.b16 %v3525
        %v3534 = vunpack.c.l.b16 %v3526
        %v3535 = vunpack.c.l.b16 %v3527
        %v3536 = vpack.c.b16 %v3533, %v3532
        %v3537 = vpack.c.b16 %v3535, %v3534
        %v3541 = vsel %vm1145, %v3516, 0
        %v3544 = vsel %vm1145, %v3517, 0
        %v3547 = vsel %vm1145, %v3518, 0
        %v3550 = vsel %vm1145, %v3519, 0
        %v3553 = vsel %vm1145, %v3520, 0
        %v3556 = vsel %vm1145, %v3521, 0
        %v3559 = vsel %vm1145, %v3522, 0
        %v3562 = vsel %vm1145, %v3523, 0
        %3564 = vmatprep.subr.bf16.mxu0 0
        %3565 = vmatpush1.bf16.msra.mxu0 %v3536
        %3566 = vmatprep.subr.bf16.mxu0 0
        %3567 = vmatpush1.bf16.msra.mxu0 %v3537
        %3568 = vmatprep.subr.bf16.mxu0 0
        %3569 = vmatpush1.bf16.msra.mxu0 0
        %3570 = vmatprep.subr.bf16.mxu0 0
        %3571 = vmatpush1.bf16.msra.mxu0 0
        %3572 = vmatprep.subr.bf16.mxu0 0
        %3573 = vmatpush1.bf16.msra.mxu0 0
        %3574 = vmatprep.subr.bf16.mxu0 0
        %3575 = vmatpush1.bf16.msra.mxu0 0
        %3576 = vmatprep.subr.bf16.mxu0 0
        %3577 = vmatpush1.bf16.msra.mxu0 0
        %3578 = vmatprep.subr.bf16.mxu0 0
        %3579 = vmatpush1.bf16.msra.mxu0 0
        %3580 = vmatprep.subr.bf16.mxu0 0
        %3581 = vmatpush1.bf16.msra.mxu0 0
        %3582 = vmatprep.subr.bf16.mxu0 0
        %3583 = vmatpush1.bf16.msra.mxu0 0
        %3584 = vmatprep.subr.bf16.mxu0 0
        %3585 = vmatpush1.bf16.msra.mxu0 0
        %3586 = vmatprep.subr.bf16.mxu0 0
        %3587 = vmatpush1.bf16.msra.mxu0 0
        %3588 = vmatprep.subr.bf16.mxu0 0
        %3589 = vmatpush1.bf16.msra.mxu0 0
        %3590 = vmatprep.subr.bf16.mxu0 0
        %3591 = vmatpush1.bf16.msra.mxu0 0
        %3592 = vmatprep.subr.bf16.mxu0 0
        %3593 = vmatpush1.bf16.msra.mxu0 0
        %3594 = vmatprep.subr.bf16.mxu0 0
        %3595 = vmatpush1.bf16.msra.mxu0 0
        %3596 = vmatprep.mubr.bf16.mxu0 0
        %3597 = vmatmul.mubr.bf16.gmra.mrb[0].mxu0 %v3541
        %v3598 = vpop.f32.mrb[0].mxu0
        %v3599 = vadd.f32 0.0, %v3598
        %v3600 = vpop.f32.mrb[0].mxu0
        %v3601 = vpop.f32.mrb[0].mxu0
        %v3602 = vadd.f32 0.0, %v3601
        %v3603 = vpop.f32.mrb[0].mxu0
        %3604 = vmatprep.mubr.bf16.mxu0 0
        %3605 = vmatmul.mubr.bf16.gmra.mrb[0].mxu0 %v3544
        %v3606 = vpop.f32.mrb[0].mxu0
        %v3607 = vadd.f32 0.0, %v3606
        %v3608 = vpop.f32.mrb[0].mxu0
        %v3609 = vpop.f32.mrb[0].mxu0
        %v3610 = vadd.f32 0.0, %v3609
        %v3611 = vpop.f32.mrb[0].mxu0
        %3612 = vmatprep.mubr.bf16.mxu0 0
        %3613 = vmatmul.mubr.bf16.gmra.mrb[0].mxu0 %v3547
        %v3614 = vpop.f32.mrb[0].mxu0
        %v3615 = vadd.f32 0.0, %v3614
        %v3616 = vpop.f32.mrb[0].mxu0
        %v3617 = vpop.f32.mrb[0].mxu0
        %v3618 = vadd.f32 0.0, %v3617
        %v3619 = vpop.f32.mrb[0].mxu0
        %3620 = vmatprep.mubr.bf16.mxu0 0
        %3621 = vmatmul.mubr.bf16.gmra.mrb[0].mxu0 %v3550
        %v3622 = vpop.f32.mrb[0].mxu0
        %v3623 = vadd.f32 0.0, %v3622
        %v3624 = vpop.f32.mrb[0].mxu0
        %v3625 = vpop.f32.mrb[0].mxu0
        %v3626 = vadd.f32 0.0, %v3625
        %v3627 = vpop.f32.mrb[0].mxu0
        %3628 = vmatprep.mubr.bf16.mxu0 0
        %3629 = vmatmul.mubr.bf16.gmra.mrb[0].mxu0 %v3553
        %v3630 = vpop.f32.mrb[0].mxu0
        %v3631 = vadd.f32 0.0, %v3630
        %v3632 = vpop.f32.mrb[0].mxu0
        %v3633 = vpop.f32.mrb[0].mxu0
        %v3634 = vadd.f32 0.0, %v3633
        %v3635 = vpop.f32.mrb[0].mxu0
        %3636 = vmatprep.mubr.bf16.mxu0 0
        %3637 = vmatmul.mubr.bf16.gmra.mrb[0].mxu0 %v3556
        %v3638 = vpop.f32.mrb[0].mxu0
        %v3639 = vadd.f32 0.0, %v3638
        %v3640 = vpop.f32.mrb[0].mxu0
        %v3641 = vpop.f32.mrb[0].mxu0
        %v3642 = vadd.f32 0.0, %v3641
        %v3643 = vpop.f32.mrb[0].mxu0
        %3644 = vmatprep.mubr.bf16.mxu0 0
        %3645 = vmatmul.mubr.bf16.gmra.mrb[0].mxu0 %v3559
        %v3646 = vpop.f32.mrb[0].mxu0
        %v3647 = vadd.f32 0.0, %v3646
        %v3648 = vpop.f32.mrb[0].mxu0
        %v3649 = vpop.f32.mrb[0].mxu0
        %v3650 = vadd.f32 0.0, %v3649
        %v3651 = vpop.f32.mrb[0].mxu0
        %3652 = vmatprep.mubr.bf16.mxu0 0
        %3653 = vmatmul.mubr.bf16.gmra.mrb[0].mxu0 %v3562
        %v3654 = vpop.f32.mrb[0].mxu0
        %v3655 = vadd.f32 0.0, %v3654
        %v3656 = vpop.f32.mrb[0].mxu0
        %v3657 = vpop.f32.mrb[0].mxu0
        %v3658 = vadd.f32 0.0, %v3657
        %v3659 = vpop.f32.mrb[0].mxu0
        %3660 = vdwg.mxu0
        %v3661 = vadd.f32 %v2750, %v3599
        %v3662 = vadd.f32 %v2753, %v3602
        %v3663 = vadd.f32 %v2758, %v3607
        %v3664 = vadd.f32 %v2761, %v3610
        %v3665 = vadd.f32 %v2766, %v3615
        %v3666 = vadd.f32 %v2769, %v3618
        %v3667 = vadd.f32 %v2774, %v3623
        %v3668 = vadd.f32 %v2777, %v3626
        %v3669 = vadd.f32 %v2782, %v3631
        %v3670 = vadd.f32 %v2785, %v3634
        %v3671 = vadd.f32 %v2790, %v3639
        %v3672 = vadd.f32 %v2793, %v3642
        %v3673 = vadd.f32 %v2798, %v3647
        %v3674 = vadd.f32 %v2801, %v3650
        %v3675 = vadd.f32 %v2806, %v3655
        %v3676 = vadd.f32 %v2809, %v3658
        %3677 = vrot.lane.b32.xlu0 %v1121, 32
        %v3678 = vpop.permute.xlu0 %3677
        %3679 = vrot.lane.b32.xlu0 %v1122, 32
        %v3680 = vpop.permute.xlu0 %3679
        %3681 = vrot.lane.b32.xlu0 %v1129, 32
        %v3682 = vpop.permute.xlu0 %3681
        %3683 = vrot.lane.b32.xlu0 %v1130, 32
        %v3684 = vpop.permute.xlu0 %3683
        %v3686 = vsel %vm1145, %v3678, 0
        %v3689 = vsel %vm1145, %v3680, 0
        %v3692 = vsel %vm1145, %v3682, 0
        %v3695 = vsel %vm1145, %v3684, 0
        %3697 = vmatprep.subr.bf16.mxu0 0
        %3698 = vmatpush1.bf16.xpose.msra.mxu0 %v3692
        %3699 = vmatprep.subr.bf16.mxu0 0
        %3700 = vmatpush1.bf16.xpose.msra.mxu0 %v3695
        %3701 = vmatprep.subr.bf16.mxu0 0
        %3702 = vmatpush1.bf16.xpose.msra.mxu0 0
        %3703 = vmatprep.subr.bf16.mxu0 0
        %3704 = vmatpush1.bf16.xpose.msra.mxu0 0
        %3705 = vmatprep.subr.bf16.mxu0 0
        %3706 = vmatpush1.bf16.xpose.msra.mxu0 0
        %3707 = vmatprep.subr.bf16.mxu0 0
        %3708 = vmatpush1.bf16.xpose.msra.mxu0 0
        %3709 = vmatprep.subr.bf16.mxu0 0
        %3710 = vmatpush1.bf16.xpose.msra.mxu0 0
        %3711 = vmatprep.subr.bf16.mxu0 0
        %3712 = vmatpush1.bf16.xpose.msra.mxu0 0
        %3713 = vmatprep.subr.bf16.mxu0 0
        %3714 = vmatpush1.bf16.xpose.msra.mxu0 0
        %3715 = vmatprep.subr.bf16.mxu0 0
        %3716 = vmatpush1.bf16.xpose.msra.mxu0 0
        %3717 = vmatprep.subr.bf16.mxu0 0
        %3718 = vmatpush1.bf16.xpose.msra.mxu0 0
        %3719 = vmatprep.subr.bf16.mxu0 0
        %3720 = vmatpush1.bf16.xpose.msra.mxu0 0
        %3721 = vmatprep.subr.bf16.mxu0 0
        %3722 = vmatpush1.bf16.xpose.msra.mxu0 0
        %3723 = vmatprep.subr.bf16.mxu0 0
        %3724 = vmatpush1.bf16.xpose.msra.mxu0 0
        %3725 = vmatprep.subr.bf16.mxu0 0
        %3726 = vmatpush1.bf16.xpose.msra.mxu0 0
        %3727 = vmatprep.subr.bf16.mxu0 0
        %3728 = vmatpush1.bf16.xpose.msra.mxu0 0
        %3729 = vmatprep.mubr.bf16.mxu0 0
        %3730 = vmatmul.mubr.bf16.gmra.mrb[0].mxu0 %v3686
        %v3731 = vpop.f32.mrb[0].mxu0
        %v3732 = vadd.f32 %v471, %v3731
        %v3733 = vpop.f32.mrb[0].mxu0
        %v3734 = vpop.f32.mrb[0].mxu0
        %v3735 = vadd.f32 %v472, %v3734
        %v3736 = vpop.f32.mrb[0].mxu0
        %3737 = vmatprep.mubr.bf16.mxu0 0
        %3738 = vmatmul.mubr.bf16.gmra.mrb[0].mxu0 %v3689
        %v3739 = vpop.f32.mrb[0].mxu0
        %v3740 = vadd.f32 %v473, %v3739
        %v3741 = vpop.f32.mrb[0].mxu0
        %v3742 = vpop.f32.mrb[0].mxu0
        %v3743 = vadd.f32 %v474, %v3742
        %v3744 = vpop.f32.mrb[0].mxu0
        %3745 = vdwg.mxu0
        %3746 = vrot.lane.b32.xlu0 %v1123, 32
        %v3747 = vpop.permute.xlu0 %3746
        %3748 = vrot.lane.b32.xlu0 %v1124, 32
        %v3749 = vpop.permute.xlu0 %3748
        %3750 = vrot.lane.b32.xlu0 %v1131, 32
        %v3751 = vpop.permute.xlu0 %3750
        %3752 = vrot.lane.b32.xlu0 %v1132, 32
        %v3753 = vpop.permute.xlu0 %3752
        %v3755 = vsel %vm1145, %v3747, 0
        %v3758 = vsel %vm1145, %v3749, 0
        %v3761 = vsel %vm1145, %v3751, 0
        %v3764 = vsel %vm1145, %v3753, 0
        %3766 = vmatprep.subr.bf16.mxu0 0
        %3767 = vmatpush1.bf16.xpose.msra.mxu0 %v3761
        %3768 = vmatprep.subr.bf16.mxu0 0
        %3769 = vmatpush1.bf16.xpose.msra.mxu0 %v3764
        %3770 = vmatprep.subr.bf16.mxu0 0
        %3771 = vmatpush1.bf16.xpose.msra.mxu0 0
        %3772 = vmatprep.subr.bf16.mxu0 0
        %3773 = vmatpush1.bf16.xpose.msra.mxu0 0
        %3774 = vmatprep.subr.bf16.mxu0 0
        %3775 = vmatpush1.bf16.xpose.msra.mxu0 0
        %3776 = vmatprep.subr.bf16.mxu0 0
        %3777 = vmatpush1.bf16.xpose.msra.mxu0 0
        %3778 = vmatprep.subr.bf16.mxu0 0
        %3779 = vmatpush1.bf16.xpose.msra.mxu0 0
        %3780 = vmatprep.subr.bf16.mxu0 0
        %3781 = vmatpush1.bf16.xpose.msra.mxu0 0
        %3782 = vmatprep.subr.bf16.mxu0 0
        %3783 = vmatpush1.bf16.xpose.msra.mxu0 0
        %3784 = vmatprep.subr.bf16.mxu0 0
        %3785 = vmatpush1.bf16.xpose.msra.mxu0 0
        %3786 = vmatprep.subr.bf16.mxu0 0
        %3787 = vmatpush1.bf16.xpose.msra.mxu0 0
        %3788 = vmatprep.subr.bf16.mxu0 0
        %3789 = vmatpush1.bf16.xpose.msra.mxu0 0
        %3790 = vmatprep.subr.bf16.mxu0 0
        %3791 = vmatpush1.bf16.xpose.msra.mxu0 0
        %3792 = vmatprep.subr.bf16.mxu0 0
        %3793 = vmatpush1.bf16.xpose.msra.mxu0 0
        %3794 = vmatprep.subr.bf16.mxu0 0
        %3795 = vmatpush1.bf16.xpose.msra.mxu0 0
        %3796 = vmatprep.subr.bf16.mxu0 0
        %3797 = vmatpush1.bf16.xpose.msra.mxu0 0
        %3798 = vmatprep.mubr.bf16.mxu0 0
        %3799 = vmatmul.mubr.bf16.gmra.mrb[0].mxu0 %v3755
        %v3800 = vpop.f32.mrb[0].mxu0
        %v3801 = vadd.f32 %v475, %v3800
        %v3802 = vpop.f32.mrb[0].mxu0
        %v3803 = vpop.f32.mrb[0].mxu0
        %v3804 = vadd.f32 %v476, %v3803
        %v3805 = vpop.f32.mrb[0].mxu0
        %3806 = vmatprep.mubr.bf16.mxu0 0
        %3807 = vmatmul.mubr.bf16.gmra.mrb[0].mxu0 %v3758
        %v3808 = vpop.f32.mrb[0].mxu0
        %v3809 = vadd.f32 %v477, %v3808
        %v3810 = vpop.f32.mrb[0].mxu0
        %v3811 = vpop.f32.mrb[0].mxu0
        %v3812 = vadd.f32 %v478, %v3811
        %v3813 = vpop.f32.mrb[0].mxu0
        %3814 = vdwg.mxu0
        %3815 = vrot.lane.b32.xlu0 %v1125, 32
        %v3816 = vpop.permute.xlu0 %3815
        %3817 = vrot.lane.b32.xlu0 %v1126, 32
        %v3818 = vpop.permute.xlu0 %3817
        %3819 = vrot.lane.b32.xlu0 %v1133, 32
        %v3820 = vpop.permute.xlu0 %3819
        %3821 = vrot.lane.b32.xlu0 %v1134, 32
        %v3822 = vpop.permute.xlu0 %3821
        %v3824 = vsel %vm1145, %v3816, 0
        %v3827 = vsel %vm1145, %v3818, 0
        %v3830 = vsel %vm1145, %v3820, 0
        %v3833 = vsel %vm1145, %v3822, 0
        %3835 = vmatprep.subr.bf16.mxu0 0
        %3836 = vmatpush1.bf16.xpose.msra.mxu0 %v3830
        %3837 = vmatprep.subr.bf16.mxu0 0
        %3838 = vmatpush1.bf16.xpose.msra.mxu0 %v3833
        %3839 = vmatprep.subr.bf16.mxu0 0
        %3840 = vmatpush1.bf16.xpose.msra.mxu0 0
        %3841 = vmatprep.subr.bf16.mxu0 0
        %3842 = vmatpush1.bf16.xpose.msra.mxu0 0
        %3843 = vmatprep.subr.bf16.mxu0 0
        %3844 = vmatpush1.bf16.xpose.msra.mxu0 0
        %3845 = vmatprep.subr.bf16.mxu0 0
        %3846 = vmatpush1.bf16.xpose.msra.mxu0 0
        %3847 = vmatprep.subr.bf16.mxu0 0
        %3848 = vmatpush1.bf16.xpose.msra.mxu0 0
        %3849 = vmatprep.subr.bf16.mxu0 0
        %3850 = vmatpush1.bf16.xpose.msra.mxu0 0
        %3851 = vmatprep.subr.bf16.mxu0 0
        %3852 = vmatpush1.bf16.xpose.msra.mxu0 0
        %3853 = vmatprep.subr.bf16.mxu0 0
        %3854 = vmatpush1.bf16.xpose.msra.mxu0 0
        %3855 = vmatprep.subr.bf16.mxu0 0
        %3856 = vmatpush1.bf16.xpose.msra.mxu0 0
        %3857 = vmatprep.subr.bf16.mxu0 0
        %3858 = vmatpush1.bf16.xpose.msra.mxu0 0
        %3859 = vmatprep.subr.bf16.mxu0 0
        %3860 = vmatpush1.bf16.xpose.msra.mxu0 0
        %3861 = vmatprep.subr.bf16.mxu0 0
        %3862 = vmatpush1.bf16.xpose.msra.mxu0 0
        %3863 = vmatprep.subr.bf16.mxu0 0
        %3864 = vmatpush1.bf16.xpose.msra.mxu0 0
        %3865 = vmatprep.subr.bf16.mxu0 0
        %3866 = vmatpush1.bf16.xpose.msra.mxu0 0
        %3867 = vmatprep.mubr.bf16.mxu0 0
        %3868 = vmatmul.mubr.bf16.gmra.mrb[0].mxu0 %v3824
        %v3869 = vpop.f32.mrb[0].mxu0
        %v3870 = vadd.f32 %v479, %v3869
        %v3871 = vpop.f32.mrb[0].mxu0
        %v3872 = vpop.f32.mrb[0].mxu0
        %v3873 = vadd.f32 %v480, %v3872
        %v3874 = vpop.f32.mrb[0].mxu0
        %3875 = vmatprep.mubr.bf16.mxu0 0
        %3876 = vmatmul.mubr.bf16.gmra.mrb[0].mxu0 %v3827
        %v3877 = vpop.f32.mrb[0].mxu0
        %v3878 = vadd.f32 %v481, %v3877
        %v3879 = vpop.f32.mrb[0].mxu0
        %v3880 = vpop.f32.mrb[0].mxu0
        %v3881 = vadd.f32 %v482, %v3880
        %v3882 = vpop.f32.mrb[0].mxu0
        %3883 = vdwg.mxu0
        %3884 = vrot.lane.b32.xlu0 %v1127, 32
        %v3885 = vpop.permute.xlu0 %3884
        %3886 = vrot.lane.b32.xlu0 %v1128, 32
        %v3887 = vpop.permute.xlu0 %3886
        %3888 = vrot.lane.b32.xlu0 %v1135, 32
        %v3889 = vpop.permute.xlu0 %3888
        %3890 = vrot.lane.b32.xlu0 %v1136, 32
        %v3891 = vpop.permute.xlu0 %3890
        %v3893 = vsel %vm1145, %v3885, 0
        %v3896 = vsel %vm1145, %v3887, 0
        %v3899 = vsel %vm1145, %v3889, 0
        %v3902 = vsel %vm1145, %v3891, 0
        %3904 = vmatprep.subr.bf16.mxu0 0
        %3905 = vmatpush1.bf16.xpose.msra.mxu0 %v3899
        %3906 = vmatprep.subr.bf16.mxu0 0
        %3907 = vmatpush1.bf16.xpose.msra.mxu0 %v3902
        %3908 = vmatprep.subr.bf16.mxu0 0
        %3909 = vmatpush1.bf16.xpose.msra.mxu0 0
        %3910 = vmatprep.subr.bf16.mxu0 0
        %3911 = vmatpush1.bf16.xpose.msra.mxu0 0
        %3912 = vmatprep.subr.bf16.mxu0 0
        %3913 = vmatpush1.bf16.xpose.msra.mxu0 0
        %3914 = vmatprep.subr.bf16.mxu0 0
        %3915 = vmatpush1.bf16.xpose.msra.mxu0 0
        %3916 = vmatprep.subr.bf16.mxu0 0
        %3917 = vmatpush1.bf16.xpose.msra.mxu0 0
        %3918 = vmatprep.subr.bf16.mxu0 0
        %3919 = vmatpush1.bf16.xpose.msra.mxu0 0
        %3920 = vmatprep.subr.bf16.mxu0 0
        %3921 = vmatpush1.bf16.xpose.msra.mxu0 0
        %3922 = vmatprep.subr.bf16.mxu0 0
        %3923 = vmatpush1.bf16.xpose.msra.mxu0 0
        %3924 = vmatprep.subr.bf16.mxu0 0
        %3925 = vmatpush1.bf16.xpose.msra.mxu0 0
        %3926 = vmatprep.subr.bf16.mxu0 0
        %3927 = vmatpush1.bf16.xpose.msra.mxu0 0
        %3928 = vmatprep.subr.bf16.mxu0 0
        %3929 = vmatpush1.bf16.xpose.msra.mxu0 0
        %3930 = vmatprep.subr.bf16.mxu0 0
        %3931 = vmatpush1.bf16.xpose.msra.mxu0 0
        %3932 = vmatprep.subr.bf16.mxu0 0
        %3933 = vmatpush1.bf16.xpose.msra.mxu0 0
        %3934 = vmatprep.subr.bf16.mxu0 0
        %3935 = vmatpush1.bf16.xpose.msra.mxu0 0
        %3936 = vmatprep.mubr.bf16.mxu0 0
        %3937 = vmatmul.mubr.bf16.gmra.mrb[0].mxu0 %v3893
        %v3938 = vpop.f32.mrb[0].mxu0
        %v3939 = vadd.f32 %v483, %v3938
        %v3940 = vpop.f32.mrb[0].mxu0
        %v3941 = vpop.f32.mrb[0].mxu0
        %v3942 = vadd.f32 %v484, %v3941
        %v3943 = vpop.f32.mrb[0].mxu0
        %3944 = vmatprep.mubr.bf16.mxu0 0
        %3945 = vmatmul.mubr.bf16.gmra.mrb[0].mxu0 %v3896
        %v3946 = vpop.f32.mrb[0].mxu0
        %v3947 = vadd.f32 %v485, %v3946
        %v3948 = vpop.f32.mrb[0].mxu0
        %v3949 = vpop.f32.mrb[0].mxu0
        %v3950 = vadd.f32 %v486, %v3949
        %v3951 = vpop.f32.mrb[0].mxu0
        %3952 = vdwg.mxu0
        %v3953 = vsel %vm1145, %v3732, -inf
        %3954 = vmax.xlane.f32.xlu0 %v3953
        %v3955 = vpop.xlane.xlu0 %3954
        %v3956 = vsel %vm1145, %v3735, -inf
        %3957 = vmax.xlane.f32.xlu0 %v3956
        %v3958 = vpop.xlane.xlu0 %3957
        %v3959 = vsel %vm1145, %v3740, -inf
        %3960 = vmax.xlane.f32.xlu0 %v3959
        %v3961 = vpop.xlane.xlu0 %3960
        %v3962 = vsel %vm1145, %v3743, -inf
        %3963 = vmax.xlane.f32.xlu0 %v3962
        %v3964 = vpop.xlane.xlu0 %3963
        %v3965 = vsel %vm1145, %v3801, -inf
        %3966 = vmax.xlane.f32.xlu0 %v3965
        %v3967 = vpop.xlane.xlu0 %3966
        %v3968 = vsel %vm1145, %v3804, -inf
        %3969 = vmax.xlane.f32.xlu0 %v3968
        %v3970 = vpop.xlane.xlu0 %3969
        %v3971 = vsel %vm1145, %v3809, -inf
        %3972 = vmax.xlane.f32.xlu0 %v3971
        %v3973 = vpop.xlane.xlu0 %3972
        %v3974 = vsel %vm1145, %v3812, -inf
        %3975 = vmax.xlane.f32.xlu0 %v3974
        %v3976 = vpop.xlane.xlu0 %3975
        %v3977 = vsel %vm1145, %v3870, -inf
        %3978 = vmax.xlane.f32.xlu0 %v3977
        %v3979 = vpop.xlane.xlu0 %3978
        %v3980 = vsel %vm1145, %v3873, -inf
        %3981 = vmax.xlane.f32.xlu0 %v3980
        %v3982 = vpop.xlane.xlu0 %3981
        %v3983 = vsel %vm1145, %v3878, -inf
        %3984 = vmax.xlane.f32.xlu0 %v3983
        %v3985 = vpop.xlane.xlu0 %3984
        %v3986 = vsel %vm1145, %v3881, -inf
        %3987 = vmax.xlane.f32.xlu0 %v3986
        %v3988 = vpop.xlane.xlu0 %3987
        %v3989 = vsel %vm1145, %v3939, -inf
        %3990 = vmax.xlane.f32.xlu0 %v3989
        %v3991 = vpop.xlane.xlu0 %3990
        %v3992 = vsel %vm1145, %v3942, -inf
        %3993 = vmax.xlane.f32.xlu0 %v3992
        %v3994 = vpop.xlane.xlu0 %3993
        %v3995 = vsel %vm1145, %v3947, -inf
        %3996 = vmax.xlane.f32.xlu0 %v3995
        %v3997 = vpop.xlane.xlu0 %3996
        %v3998 = vsel %vm1145, %v3950, -inf
        %3999 = vmax.xlane.f32.xlu0 %v3998
        %v4000 = vpop.xlane.xlu0 %3999
        %v4001 = vsub.f32 %v3732, %v3955
        %v4002 = vsub.f32 %v3735, %v3958
        %v4003 = vsub.f32 %v3740, %v3961
        %v4004 = vsub.f32 %v3743, %v3964
        %v4005 = vsub.f32 %v3801, %v3967
        %v4006 = vsub.f32 %v3804, %v3970
        %v4007 = vsub.f32 %v3809, %v3973
        %v4008 = vsub.f32 %v3812, %v3976
        %v4009 = vsub.f32 %v3870, %v3979
        %v4010 = vsub.f32 %v3873, %v3982
        %v4011 = vsub.f32 %v3878, %v3985
        %v4012 = vsub.f32 %v3881, %v3988
        %v4013 = vsub.f32 %v3939, %v3991
        %v4014 = vsub.f32 %v3942, %v3994
        %v4015 = vsub.f32 %v3947, %v3997
        %v4016 = vsub.f32 %v3950, %v4000
        %v4017 = vmul.f32 %v4001, 1.442695
        %v4018 = vpow.pop %v4017
        %v4019 = vmul.f32 %v4002, 1.442695
        %v4020 = vpow.pop %v4019
        %v4021 = vmul.f32 %v4003, 1.442695
        %v4022 = vpow.pop %v4021
        %v4023 = vmul.f32 %v4004, 1.442695
        %v4024 = vpow.pop %v4023
        %v4025 = vmul.f32 %v4005, 1.442695
        %v4026 = vpow.pop %v4025
        %v4027 = vmul.f32 %v4006, 1.442695
        %v4028 = vpow.pop %v4027
        %v4029 = vmul.f32 %v4007, 1.442695
        %v4030 = vpow.pop %v4029
        %v4031 = vmul.f32 %v4008, 1.442695
        %v4032 = vpow.pop %v4031
        %v4033 = vmul.f32 %v4009, 1.442695
        %v4034 = vpow.pop %v4033
        %v4035 = vmul.f32 %v4010, 1.442695
        %v4036 = vpow.pop %v4035
        %v4037 = vmul.f32 %v4011, 1.442695
        %v4038 = vpow.pop %v4037
        %v4039 = vmul.f32 %v4012, 1.442695
        %v4040 = vpow.pop %v4039
        %v4041 = vmul.f32 %v4013, 1.442695
        %v4042 = vpow.pop %v4041
        %v4043 = vmul.f32 %v4014, 1.442695
        %v4044 = vpow.pop %v4043
        %v4045 = vmul.f32 %v4015, 1.442695
        %v4046 = vpow.pop %v4045
        %v4047 = vmul.f32 %v4016, 1.442695
        %v4048 = vpow.pop %v4047
        %v4049 = vsel %vm1145, %v4018, 0.0
        %4050 = vadd.xlane.f32.xlu0 %v4049
        %v4051 = vpop.xlane.xlu0 %4050
        %v4052 = vsel %vm1145, %v4020, 0.0
        %4053 = vadd.xlane.f32.xlu0 %v4052
        %v4054 = vpop.xlane.xlu0 %4053
        %v4055 = vsel %vm1145, %v4022, 0.0
        %4056 = vadd.xlane.f32.xlu0 %v4055
        %v4057 = vpop.xlane.xlu0 %4056
        %v4058 = vsel %vm1145, %v4024, 0.0
        %4059 = vadd.xlane.f32.xlu0 %v4058
        %v4060 = vpop.xlane.xlu0 %4059
        %v4061 = vsel %vm1145, %v4026, 0.0
        %4062 = vadd.xlane.f32.xlu0 %v4061
        %v4063 = vpop.xlane.xlu0 %4062
        %v4064 = vsel %vm1145, %v4028, 0.0
        %4065 = vadd.xlane.f32.xlu0 %v4064
        %v4066 = vpop.xlane.xlu0 %4065
        %v4067 = vsel %vm1145, %v4030, 0.0
        %4068 = vadd.xlane.f32.xlu0 %v4067
        %v4069 = vpop.xlane.xlu0 %4068
        %v4070 = vsel %vm1145, %v4032, 0.0
        %4071 = vadd.xlane.f32.xlu0 %v4070
        %v4072 = vpop.xlane.xlu0 %4071
        %v4073 = vsel %vm1145, %v4034, 0.0
        %4074 = vadd.xlane.f32.xlu0 %v4073
        %v4075 = vpop.xlane.xlu0 %4074
        %v4076 = vsel %vm1145, %v4036, 0.0
        %4077 = vadd.xlane.f32.xlu0 %v4076
        %v4078 = vpop.xlane.xlu0 %4077
        %v4079 = vsel %vm1145, %v4038, 0.0
        %4080 = vadd.xlane.f32.xlu0 %v4079
        %v4081 = vpop.xlane.xlu0 %4080
        %v4082 = vsel %vm1145, %v4040, 0.0
        %4083 = vadd.xlane.f32.xlu0 %v4082
        %v4084 = vpop.xlane.xlu0 %4083
        %v4085 = vsel %vm1145, %v4042, 0.0
        %4086 = vadd.xlane.f32.xlu0 %v4085
        %v4087 = vpop.xlane.xlu0 %4086
        %v4088 = vsel %vm1145, %v4044, 0.0
        %4089 = vadd.xlane.f32.xlu0 %v4088
        %v4090 = vpop.xlane.xlu0 %4089
        %v4091 = vsel %vm1145, %v4046, 0.0
        %4092 = vadd.xlane.f32.xlu0 %v4091
        %v4093 = vpop.xlane.xlu0 %4092
        %v4094 = vsel %vm1145, %v4048, 0.0
        %4095 = vadd.xlane.f32.xlu0 %v4094
        %v4096 = vpop.xlane.xlu0 %4095
        %v4097 = vrcp.pop %v4051
        %v4098 = vrcp.pop %v4054
        %v4099 = vrcp.pop %v4057
        %v4100 = vrcp.pop %v4060
        %v4101 = vrcp.pop %v4063
        %v4102 = vrcp.pop %v4066
        %v4103 = vrcp.pop %v4069
        %v4104 = vrcp.pop %v4072
        %v4105 = vrcp.pop %v4075
        %v4106 = vrcp.pop %v4078
        %v4107 = vrcp.pop %v4081
        %v4108 = vrcp.pop %v4084
        %v4109 = vrcp.pop %v4087
        %v4110 = vrcp.pop %v4090
        %v4111 = vrcp.pop %v4093
        %v4112 = vrcp.pop %v4096
        %v4113 = vmul.f32 %v4018, %v4097
        %v4114 = vmul.f32 %v4020, %v4098
        %v4115 = vmul.f32 %v4022, %v4099
        %v4116 = vmul.f32 %v4024, %v4100
        %v4117 = vmul.f32 %v4026, %v4101
        %v4118 = vmul.f32 %v4028, %v4102
        %v4119 = vmul.f32 %v4030, %v4103
        %v4120 = vmul.f32 %v4032, %v4104
        %v4121 = vmul.f32 %v4034, %v4105
        %v4122 = vmul.f32 %v4036, %v4106
        %v4123 = vmul.f32 %v4038, %v4107
        %v4124 = vmul.f32 %v4040, %v4108
        %v4125 = vmul.f32 %v4042, %v4109
        %v4126 = vmul.f32 %v4044, %v4110
        %v4127 = vmul.f32 %v4046, %v4111
        %v4128 = vmul.f32 %v4048, %v4112
        %v4129 = vpack.c.bf16 %v4114, %v4113
        %v4130 = vpack.c.bf16 %v4116, %v4115
        %v4131 = vpack.c.bf16 %v4118, %v4117
        %v4132 = vpack.c.bf16 %v4120, %v4119
        %v4133 = vpack.c.bf16 %v4122, %v4121
        %v4134 = vpack.c.bf16 %v4124, %v4123
        %v4135 = vpack.c.bf16 %v4126, %v4125
        %v4136 = vpack.c.bf16 %v4128, %v4127
        %4137 = vrot.lane.b32.xlu0 %v1137, 32
        %v4138 = vpop.permute.xlu0 %4137
        %4139 = vrot.lane.b32.xlu0 %v1138, 32
        %v4140 = vpop.permute.xlu0 %4139
        %v4144 = vsel %vm1145, %v4129, 0
        %v4147 = vsel %vm1145, %v4130, 0
        %4149 = vmatprep.subr.bf16.mxu0 0
        %4150 = vmatpush1.bf16.msra.mxu0 %v4138
        %4151 = vmatprep.subr.bf16.mxu0 0
        %4152 = vmatpush1.bf16.msra.mxu0 %v4140
        %4153 = vmatprep.subr.bf16.mxu0 0
        %4154 = vmatpush1.bf16.msra.mxu0 0
        %4155 = vmatprep.subr.bf16.mxu0 0
        %4156 = vmatpush1.bf16.msra.mxu0 0
        %4157 = vmatprep.subr.bf16.mxu0 0
        %4158 = vmatpush1.bf16.msra.mxu0 0
        %4159 = vmatprep.subr.bf16.mxu0 0
        %4160 = vmatpush1.bf16.msra.mxu0 0
        %4161 = vmatprep.subr.bf16.mxu0 0
        %4162 = vmatpush1.bf16.msra.mxu0 0
        %4163 = vmatprep.subr.bf16.mxu0 0
        %4164 = vmatpush1.bf16.msra.mxu0 0
        %4165 = vmatprep.subr.bf16.mxu0 0
        %4166 = vmatpush1.bf16.msra.mxu0 0
        %4167 = vmatprep.subr.bf16.mxu0 0
        %4168 = vmatpush1.bf16.msra.mxu0 0
        %4169 = vmatprep.subr.bf16.mxu0 0
        %4170 = vmatpush1.bf16.msra.mxu0 0
        %4171 = vmatprep.subr.bf16.mxu0 0
        %4172 = vmatpush1.bf16.msra.mxu0 0
        %4173 = vmatprep.subr.bf16.mxu0 0
        %4174 = vmatpush1.bf16.msra.mxu0 0
        %4175 = vmatprep.subr.bf16.mxu0 0
        %4176 = vmatpush1.bf16.msra.mxu0 0
        %4177 = vmatprep.subr.bf16.mxu0 0
        %4178 = vmatpush1.bf16.msra.mxu0 0
        %4179 = vmatprep.subr.bf16.mxu0 0
        %4180 = vmatpush1.bf16.msra.mxu0 0
        %4181 = vmatprep.mubr.bf16.mxu0 0
        %4182 = vmatmul.mubr.bf16.gmra.mrb[0].mxu0 %v4144
        %v4183 = vpop.f32.mrb[0].mxu0
        %v4184 = vadd.f32 0.0, %v4183
        %v4185 = vpop.f32.mrb[0].mxu0
        %v4186 = vpop.f32.mrb[0].mxu0
        %v4187 = vadd.f32 0.0, %v4186
        %v4188 = vpop.f32.mrb[0].mxu0
        %4189 = vmatprep.mubr.bf16.mxu0 0
        %4190 = vmatmul.mubr.bf16.gmra.mrb[0].mxu0 %v4147
        %v4191 = vpop.f32.mrb[0].mxu0
        %v4192 = vadd.f32 0.0, %v4191
        %v4193 = vpop.f32.mrb[0].mxu0
        %v4194 = vpop.f32.mrb[0].mxu0
        %v4195 = vadd.f32 0.0, %v4194
        %v4196 = vpop.f32.mrb[0].mxu0
        %4197 = vdwg.mxu0
        %4198 = vrot.lane.b32.xlu0 %v1139, 32
        %v4199 = vpop.permute.xlu0 %4198
        %4200 = vrot.lane.b32.xlu0 %v1140, 32
        %v4201 = vpop.permute.xlu0 %4200
        %v4205 = vsel %vm1145, %v4131, 0
        %v4208 = vsel %vm1145, %v4132, 0
        %4210 = vmatprep.subr.bf16.mxu0 0
        %4211 = vmatpush1.bf16.msra.mxu0 %v4199
        %4212 = vmatprep.subr.bf16.mxu0 0
        %4213 = vmatpush1.bf16.msra.mxu0 %v4201
        %4214 = vmatprep.subr.bf16.mxu0 0
        %4215 = vmatpush1.bf16.msra.mxu0 0
        %4216 = vmatprep.subr.bf16.mxu0 0
        %4217 = vmatpush1.bf16.msra.mxu0 0
        %4218 = vmatprep.subr.bf16.mxu0 0
        %4219 = vmatpush1.bf16.msra.mxu0 0
        %4220 = vmatprep.subr.bf16.mxu0 0
        %4221 = vmatpush1.bf16.msra.mxu0 0
        %4222 = vmatprep.subr.bf16.mxu0 0
        %4223 = vmatpush1.bf16.msra.mxu0 0
        %4224 = vmatprep.subr.bf16.mxu0 0
        %4225 = vmatpush1.bf16.msra.mxu0 0
        %4226 = vmatprep.subr.bf16.mxu0 0
        %4227 = vmatpush1.bf16.msra.mxu0 0
        %4228 = vmatprep.subr.bf16.mxu0 0
        %4229 = vmatpush1.bf16.msra.mxu0 0
        %4230 = vmatprep.subr.bf16.mxu0 0
        %4231 = vmatpush1.bf16.msra.mxu0 0
        %4232 = vmatprep.subr.bf16.mxu0 0
        %4233 = vmatpush1.bf16.msra.mxu0 0
        %4234 = vmatprep.subr.bf16.mxu0 0
        %4235 = vmatpush1.bf16.msra.mxu0 0
        %4236 = vmatprep.subr.bf16.mxu0 0
        %4237 = vmatpush1.bf16.msra.mxu0 0
        %4238 = vmatprep.subr.bf16.mxu0 0
        %4239 = vmatpush1.bf16.msra.mxu0 0
        %4240 = vmatprep.subr.bf16.mxu0 0
        %4241 = vmatpush1.bf16.msra.mxu0 0
        %4242 = vmatprep.mubr.bf16.mxu0 0
        %4243 = vmatmul.mubr.bf16.gmra.mrb[0].mxu0 %v4205
        %v4244 = vpop.f32.mrb[0].mxu0
        %v4245 = vadd.f32 0.0, %v4244
        %v4246 = vpop.f32.mrb[0].mxu0
        %v4247 = vpop.f32.mrb[0].mxu0
        %v4248 = vadd.f32 0.0, %v4247
        %v4249 = vpop.f32.mrb[0].mxu0
        %4250 = vmatprep.mubr.bf16.mxu0 0
        %4251 = vmatmul.mubr.bf16.gmra.mrb[0].mxu0 %v4208
        %v4252 = vpop.f32.mrb[0].mxu0
        %v4253 = vadd.f32 0.0, %v4252
        %v4254 = vpop.f32.mrb[0].mxu0
        %v4255 = vpop.f32.mrb[0].mxu0
        %v4256 = vadd.f32 0.0, %v4255
        %v4257 = vpop.f32.mrb[0].mxu0
        %4258 = vdwg.mxu0
        %4259 = vrot.lane.b32.xlu0 %v1141, 32
        %v4260 = vpop.permute.xlu0 %4259
        %4261 = vrot.lane.b32.xlu0 %v1142, 32
        %v4262 = vpop.permute.xlu0 %4261
        %v4266 = vsel %vm1145, %v4133, 0
        %v4269 = vsel %vm1145, %v4134, 0
        %4271 = vmatprep.subr.bf16.mxu0 0
        %4272 = vmatpush1.bf16.msra.mxu0 %v4260
        %4273 = vmatprep.subr.bf16.mxu0 0
        %4274 = vmatpush1.bf16.msra.mxu0 %v4262
        %4275 = vmatprep.subr.bf16.mxu0 0
        %4276 = vmatpush1.bf16.msra.mxu0 0
        %4277 = vmatprep.subr.bf16.mxu0 0
        %4278 = vmatpush1.bf16.msra.mxu0 0
        %4279 = vmatprep.subr.bf16.mxu0 0
        %4280 = vmatpush1.bf16.msra.mxu0 0
        %4281 = vmatprep.subr.bf16.mxu0 0
        %4282 = vmatpush1.bf16.msra.mxu0 0
        %4283 = vmatprep.subr.bf16.mxu0 0
        %4284 = vmatpush1.bf16.msra.mxu0 0
        %4285 = vmatprep.subr.bf16.mxu0 0
        %4286 = vmatpush1.bf16.msra.mxu0 0
        %4287 = vmatprep.subr.bf16.mxu0 0
        %4288 = vmatpush1.bf16.msra.mxu0 0
        %4289 = vmatprep.subr.bf16.mxu0 0
        %4290 = vmatpush1.bf16.msra.mxu0 0
        %4291 = vmatprep.subr.bf16.mxu0 0
        %4292 = vmatpush1.bf16.msra.mxu0 0
        %4293 = vmatprep.subr.bf16.mxu0 0
        %4294 = vmatpush1.bf16.msra.mxu0 0
        %4295 = vmatprep.subr.bf16.mxu0 0
        %4296 = vmatpush1.bf16.msra.mxu0 0
        %4297 = vmatprep.subr.bf16.mxu0 0
        %4298 = vmatpush1.bf16.msra.mxu0 0
        %4299 = vmatprep.subr.bf16.mxu0 0
        %4300 = vmatpush1.bf16.msra.mxu0 0
        %4301 = vmatprep.subr.bf16.mxu0 0
        %4302 = vmatpush1.bf16.msra.mxu0 0
        %4303 = vmatprep.mubr.bf16.mxu0 0
        %4304 = vmatmul.mubr.bf16.gmra.mrb[0].mxu0 %v4266
        %v4305 = vpop.f32.mrb[0].mxu0
        %v4306 = vadd.f32 0.0, %v4305
        %v4307 = vpop.f32.mrb[0].mxu0
        %v4308 = vpop.f32.mrb[0].mxu0
        %v4309 = vadd.f32 0.0, %v4308
        %v4310 = vpop.f32.mrb[0].mxu0
        %4311 = vmatprep.mubr.bf16.mxu0 0
        %4312 = vmatmul.mubr.bf16.gmra.mrb[0].mxu0 %v4269
        %v4313 = vpop.f32.mrb[0].mxu0
        %v4314 = vadd.f32 0.0, %v4313
        %v4315 = vpop.f32.mrb[0].mxu0
        %v4316 = vpop.f32.mrb[0].mxu0
        %v4317 = vadd.f32 0.0, %v4316
        %v4318 = vpop.f32.mrb[0].mxu0
        %4319 = vdwg.mxu0
        %4320 = vrot.lane.b32.xlu0 %v1143, 32
        %v4321 = vpop.permute.xlu0 %4320
        %4322 = vrot.lane.b32.xlu0 %v1144, 32
        %v4323 = vpop.permute.xlu0 %4322
        %v4327 = vsel %vm1145, %v4135, 0
        %v4330 = vsel %vm1145, %v4136, 0
        %4332 = vmatprep.subr.bf16.mxu0 0
        %4333 = vmatpush1.bf16.msra.mxu0 %v4321
        %4334 = vmatprep.subr.bf16.mxu0 0
        %4335 = vmatpush1.bf16.msra.mxu0 %v4323
        %4336 = vmatprep.subr.bf16.mxu0 0
        %4337 = vmatpush1.bf16.msra.mxu0 0
        %4338 = vmatprep.subr.bf16.mxu0 0
        %4339 = vmatpush1.bf16.msra.mxu0 0
        %4340 = vmatprep.subr.bf16.mxu0 0
        %4341 = vmatpush1.bf16.msra.mxu0 0
        %4342 = vmatprep.subr.bf16.mxu0 0
        %4343 = vmatpush1.bf16.msra.mxu0 0
        %4344 = vmatprep.subr.bf16.mxu0 0
        %4345 = vmatpush1.bf16.msra.mxu0 0
        %4346 = vmatprep.subr.bf16.mxu0 0
        %4347 = vmatpush1.bf16.msra.mxu0 0
        %4348 = vmatprep.subr.bf16.mxu0 0
        %4349 = vmatpush1.bf16.msra.mxu0 0
        %4350 = vmatprep.subr.bf16.mxu0 0
        %4351 = vmatpush1.bf16.msra.mxu0 0
        %4352 = vmatprep.subr.bf16.mxu0 0
        %4353 = vmatpush1.bf16.msra.mxu0 0
        %4354 = vmatprep.subr.bf16.mxu0 0
        %4355 = vmatpush1.bf16.msra.mxu0 0
        %4356 = vmatprep.subr.bf16.mxu0 0
        %4357 = vmatpush1.bf16.msra.mxu0 0
        %4358 = vmatprep.subr.bf16.mxu0 0
        %4359 = vmatpush1.bf16.msra.mxu0 0
        %4360 = vmatprep.subr.bf16.mxu0 0
        %4361 = vmatpush1.bf16.msra.mxu0 0
        %4362 = vmatprep.subr.bf16.mxu0 0
        %4363 = vmatpush1.bf16.msra.mxu0 0
        %4364 = vmatprep.mubr.bf16.mxu0 0
        %4365 = vmatmul.mubr.bf16.gmra.mrb[0].mxu0 %v4327
        %v4366 = vpop.f32.mrb[0].mxu0
        %v4367 = vadd.f32 0.0, %v4366
        %v4368 = vpop.f32.mrb[0].mxu0
        %v4369 = vpop.f32.mrb[0].mxu0
        %v4370 = vadd.f32 0.0, %v4369
        %v4371 = vpop.f32.mrb[0].mxu0
        %4372 = vmatprep.mubr.bf16.mxu0 0
        %4373 = vmatmul.mubr.bf16.gmra.mrb[0].mxu0 %v4330
        %v4374 = vpop.f32.mrb[0].mxu0
        %v4375 = vadd.f32 0.0, %v4374
        %v4376 = vpop.f32.mrb[0].mxu0
        %v4377 = vpop.f32.mrb[0].mxu0
        %v4378 = vadd.f32 0.0, %v4377
        %v4379 = vpop.f32.mrb[0].mxu0
        %4380 = vdwg.mxu0
        %v4381 = vpack.c.bf16 %v4187, %v4184
        %v4382 = vpack.c.bf16 %v4195, %v4192
        %v4383 = vpack.c.bf16 %v4248, %v4245
        %v4384 = vpack.c.bf16 %v4256, %v4253
        %v4385 = vpack.c.bf16 %v4309, %v4306
        %v4386 = vpack.c.bf16 %v4317, %v4314
        %v4387 = vpack.c.bf16 %v4370, %v4367
        %v4388 = vpack.c.bf16 %v4378, %v4375
        %v4389 = vld [vmem:[#allocation8 + $0x30] sm:$0xf]
        %v4390 = vld [vmem:[#allocation8 + $0x34] sm:$0xf]
        %v4391 = vld [vmem:[#allocation8 + $0x38] sm:$0xf]
        %v4392 = vld [vmem:[#allocation8 + $0x3c] sm:$0xf]
        %v4397 = vunpack.c.l.b16 %v4389
        %v4398 = vunpack.c.l.b16 %v4390
        %v4399 = vunpack.c.l.b16 %v4391
        %v4400 = vunpack.c.l.b16 %v4392
        %v4401 = vpack.c.b16 %v4398, %v4397
        %v4402 = vpack.c.b16 %v4400, %v4399
        %v4406 = vsel %vm1145, %v4381, 0
        %v4409 = vsel %vm1145, %v4382, 0
        %v4412 = vsel %vm1145, %v4383, 0
        %v4415 = vsel %vm1145, %v4384, 0
        %v4418 = vsel %vm1145, %v4385, 0
        %v4421 = vsel %vm1145, %v4386, 0
        %v4424 = vsel %vm1145, %v4387, 0
        %v4427 = vsel %vm1145, %v4388, 0
        %4429 = vmatprep.subr.bf16.mxu0 0
        %4430 = vmatpush1.bf16.msra.mxu0 %v4401
        %4431 = vmatprep.subr.bf16.mxu0 0
        %4432 = vmatpush1.bf16.msra.mxu0 %v4402
        %4433 = vmatprep.subr.bf16.mxu0 0
        %4434 = vmatpush1.bf16.msra.mxu0 0
        %4435 = vmatprep.subr.bf16.mxu0 0
        %4436 = vmatpush1.bf16.msra.mxu0 0
        %4437 = vmatprep.subr.bf16.mxu0 0
        %4438 = vmatpush1.bf16.msra.mxu0 0
        %4439 = vmatprep.subr.bf16.mxu0 0
        %4440 = vmatpush1.bf16.msra.mxu0 0
        %4441 = vmatprep.subr.bf16.mxu0 0
        %4442 = vmatpush1.bf16.msra.mxu0 0
        %4443 = vmatprep.subr.bf16.mxu0 0
        %4444 = vmatpush1.bf16.msra.mxu0 0
        %4445 = vmatprep.subr.bf16.mxu0 0
        %4446 = vmatpush1.bf16.msra.mxu0 0
        %4447 = vmatprep.subr.bf16.mxu0 0
        %4448 = vmatpush1.bf16.msra.mxu0 0
        %4449 = vmatprep.subr.bf16.mxu0 0
        %4450 = vmatpush1.bf16.msra.mxu0 0
        %4451 = vmatprep.subr.bf16.mxu0 0
        %4452 = vmatpush1.bf16.msra.mxu0 0
        %4453 = vmatprep.subr.bf16.mxu0 0
        %4454 = vmatpush1.bf16.msra.mxu0 0
        %4455 = vmatprep.subr.bf16.mxu0 0
        %4456 = vmatpush1.bf16.msra.mxu0 0
        %4457 = vmatprep.subr.bf16.mxu0 0
        %4458 = vmatpush1.bf16.msra.mxu0 0
        %4459 = vmatprep.subr.bf16.mxu0 0
        %4460 = vmatpush1.bf16.msra.mxu0 0
        %4461 = vmatprep.mubr.bf16.mxu0 0
        %4462 = vmatmul.mubr.bf16.gmra.mrb[0].mxu0 %v4406
        %v4463 = vpop.f32.mrb[0].mxu0
        %v4464 = vadd.f32 0.0, %v4463
        %v4465 = vpop.f32.mrb[0].mxu0
        %v4466 = vpop.f32.mrb[0].mxu0
        %v4467 = vadd.f32 0.0, %v4466
        %v4468 = vpop.f32.mrb[0].mxu0
        %4469 = vmatprep.mubr.bf16.mxu0 0
        %4470 = vmatmul.mubr.bf16.gmra.mrb[0].mxu0 %v4409
        %v4471 = vpop.f32.mrb[0].mxu0
        %v4472 = vadd.f32 0.0, %v4471
        %v4473 = vpop.f32.mrb[0].mxu0
        %v4474 = vpop.f32.mrb[0].mxu0
        %v4475 = vadd.f32 0.0, %v4474
        %v4476 = vpop.f32.mrb[0].mxu0
        %4477 = vmatprep.mubr.bf16.mxu0 0
        %4478 = vmatmul.mubr.bf16.gmra.mrb[0].mxu0 %v4412
        %v4479 = vpop.f32.mrb[0].mxu0
        %v4480 = vadd.f32 0.0, %v4479
        %v4481 = vpop.f32.mrb[0].mxu0
        %v4482 = vpop.f32.mrb[0].mxu0
        %v4483 = vadd.f32 0.0, %v4482
        %v4484 = vpop.f32.mrb[0].mxu0
        %4485 = vmatprep.mubr.bf16.mxu0 0
        %4486 = vmatmul.mubr.bf16.gmra.mrb[0].mxu0 %v4415
        %v4487 = vpop.f32.mrb[0].mxu0
        %v4488 = vadd.f32 0.0, %v4487
        %v4489 = vpop.f32.mrb[0].mxu0
        %v4490 = vpop.f32.mrb[0].mxu0
        %v4491 = vadd.f32 0.0, %v4490
        %v4492 = vpop.f32.mrb[0].mxu0
        %4493 = vmatprep.mubr.bf16.mxu0 0
        %4494 = vmatmul.mubr.bf16.gmra.mrb[0].mxu0 %v4418
        %v4495 = vpop.f32.mrb[0].mxu0
        %v4496 = vadd.f32 0.0, %v4495
        %v4497 = vpop.f32.mrb[0].mxu0
        %v4498 = vpop.f32.mrb[0].mxu0
        %v4499 = vadd.f32 0.0, %v4498
        %v4500 = vpop.f32.mrb[0].mxu0
        %4501 = vmatprep.mubr.bf16.mxu0 0
        %4502 = vmatmul.mubr.bf16.gmra.mrb[0].mxu0 %v4421
        %v4503 = vpop.f32.mrb[0].mxu0
        %v4504 = vadd.f32 0.0, %v4503
        %v4505 = vpop.f32.mrb[0].mxu0
        %v4506 = vpop.f32.mrb[0].mxu0
        %v4507 = vadd.f32 0.0, %v4506
        %v4508 = vpop.f32.mrb[0].mxu0
        %4509 = vmatprep.mubr.bf16.mxu0 0
        %4510 = vmatmul.mubr.bf16.gmra.mrb[0].mxu0 %v4424
        %v4511 = vpop.f32.mrb[0].mxu0
        %v4512 = vadd.f32 0.0, %v4511
        %v4513 = vpop.f32.mrb[0].mxu0
        %v4514 = vpop.f32.mrb[0].mxu0
        %v4515 = vadd.f32 0.0, %v4514
        %v4516 = vpop.f32.mrb[0].mxu0
        %4517 = vmatprep.mubr.bf16.mxu0 0
        %4518 = vmatmul.mubr.bf16.gmra.mrb[0].mxu0 %v4427
        %v4519 = vpop.f32.mrb[0].mxu0
        %v4520 = vadd.f32 0.0, %v4519
        %v4521 = vpop.f32.mrb[0].mxu0
        %v4522 = vpop.f32.mrb[0].mxu0
        %v4523 = vadd.f32 0.0, %v4522
        %v4524 = vpop.f32.mrb[0].mxu0
        %4525 = vdwg.mxu0
        %v4526 = vadd.f32 %v3661, %v4464
        %v4527 = vadd.f32 %v3662, %v4467
        %v4528 = vadd.f32 %v3663, %v4472
        %v4529 = vadd.f32 %v3664, %v4475
        %v4530 = vadd.f32 %v3665, %v4480
        %v4531 = vadd.f32 %v3666, %v4483
        %v4532 = vadd.f32 %v3667, %v4488
        %v4533 = vadd.f32 %v3668, %v4491
        %v4534 = vadd.f32 %v3669, %v4496
        %v4535 = vadd.f32 %v3670, %v4499
        %v4536 = vadd.f32 %v3671, %v4504
        %v4537 = vadd.f32 %v3672, %v4507
        %v4538 = vadd.f32 %v3673, %v4512
        %v4539 = vadd.f32 %v3674, %v4515
        %v4540 = vadd.f32 %v3675, %v4520
        %v4541 = vadd.f32 %v3676, %v4523
        %v4542 = vadd.f32 %v455, %v4526
        %v4543 = vadd.f32 %v456, %v4527
        %v4544 = vadd.f32 %v457, %v4528
        %v4545 = vadd.f32 %v458, %v4529
        %v4546 = vadd.f32 %v459, %v4530
        %v4547 = vadd.f32 %v460, %v4531
        %v4548 = vadd.f32 %v461, %v4532
        %v4549 = vadd.f32 %v462, %v4533
        %v4550 = vadd.f32 %v463, %v4534
        %v4551 = vadd.f32 %v464, %v4535
        %v4552 = vadd.f32 %v465, %v4536
        %v4553 = vadd.f32 %v466, %v4537
        %v4554 = vadd.f32 %v467, %v4538
        %v4555 = vadd.f32 %v468, %v4539
        %v4556 = vadd.f32 %v469, %v4540
        %v4557 = vadd.f32 %v470, %v4541
        %v4558 = vlaneseq
        %v4559 = vshrl.u32 %v4558, 7
        %v4560 = vsub.s32 0, %v4559
        %v4561 = vrot.slane %v487, %v4560
        %v4562 = vadd.f32 %v4542, %v4561
        %v4563 = vadd.f32 %v4543, %v4561
        %v4564 = vadd.f32 %v4544, %v4561
        %v4565 = vadd.f32 %v4545, %v4561
        %v4566 = vadd.f32 %v4546, %v4561
        %v4567 = vadd.f32 %v4547, %v4561
        %v4568 = vadd.f32 %v4548, %v4561
        %v4569 = vadd.f32 %v4549, %v4561
        %v4570 = vadd.f32 %v4550, %v4561
        %v4571 = vadd.f32 %v4551, %v4561
        %v4572 = vadd.f32 %v4552, %v4561
        %v4573 = vadd.f32 %v4553, %v4561
        %v4574 = vadd.f32 %v4554, %v4561
        %v4575 = vadd.f32 %v4555, %v4561
        %v4576 = vadd.f32 %v4556, %v4561
        %v4577 = vadd.f32 %v4557, %v4561
        %4578 = vadd.xlane.f32.xlu0 %v4562
        %v4579 = vpop.xlane.xlu0 %4578
        %4580 = vadd.xlane.f32.xlu0 %v4563
        %v4581 = vpop.xlane.xlu0 %4580
        %4582 = vadd.xlane.f32.xlu0 %v4564
        %v4583 = vpop.xlane.xlu0 %4582
        %4584 = vadd.xlane.f32.xlu0 %v4565
        %v4585 = vpop.xlane.xlu0 %4584
        %4586 = vadd.xlane.f32.xlu0 %v4566
        %v4587 = vpop.xlane.xlu0 %4586
        %4588 = vadd.xlane.f32.xlu0 %v4567
        %v4589 = vpop.xlane.xlu0 %4588
        %4590 = vadd.xlane.f32.xlu0 %v4568
        %v4591 = vpop.xlane.xlu0 %4590
        %4592 = vadd.xlane.f32.xlu0 %v4569
        %v4593 = vpop.xlane.xlu0 %4592
        %4594 = vadd.xlane.f32.xlu0 %v4570
        %v4595 = vpop.xlane.xlu0 %4594
        %4596 = vadd.xlane.f32.xlu0 %v4571
        %v4597 = vpop.xlane.xlu0 %4596
        %4598 = vadd.xlane.f32.xlu0 %v4572
        %v4599 = vpop.xlane.xlu0 %4598
        %4600 = vadd.xlane.f32.xlu0 %v4573
        %v4601 = vpop.xlane.xlu0 %4600
        %4602 = vadd.xlane.f32.xlu0 %v4574
        %v4603 = vpop.xlane.xlu0 %4602
        %4604 = vadd.xlane.f32.xlu0 %v4575
        %v4605 = vpop.xlane.xlu0 %4604
        %4606 = vadd.xlane.f32.xlu0 %v4576
        %v4607 = vpop.xlane.xlu0 %4606
        %4608 = vadd.xlane.f32.xlu0 %v4577
        %v4609 = vpop.xlane.xlu0 %4608
        %v4610 = vmul.f32 %v4579, %v525
        %v4611 = vmul.f32 %v4581, %v525
        %v4612 = vmul.f32 %v4583, %v525
        %v4613 = vmul.f32 %v4585, %v525
        %v4614 = vmul.f32 %v4587, %v525
        %v4615 = vmul.f32 %v4589, %v525
        %v4616 = vmul.f32 %v4591, %v525
        %v4617 = vmul.f32 %v4593, %v525
        %v4618 = vmul.f32 %v4595, %v525
        %v4619 = vmul.f32 %v4597, %v525
        %v4620 = vmul.f32 %v4599, %v525
        %v4621 = vmul.f32 %v4601, %v525
        %v4622 = vmul.f32 %v4603, %v525
        %v4623 = vmul.f32 %v4605, %v525
        %v4624 = vmul.f32 %v4607, %v525
        %v4625 = vmul.f32 %v4609, %v525
        %v4626 = vsub.f32 %v4562, %v4610
        %v4627 = vsub.f32 %v4563, %v4611
        %v4628 = vsub.f32 %v4564, %v4612
        %v4629 = vsub.f32 %v4565, %v4613
        %v4630 = vsub.f32 %v4566, %v4614
        %v4631 = vsub.f32 %v4567, %v4615
        %v4632 = vsub.f32 %v4568, %v4616
        %v4633 = vsub.f32 %v4569, %v4617
        %v4634 = vsub.f32 %v4570, %v4618
        %v4635 = vsub.f32 %v4571, %v4619
        %v4636 = vsub.f32 %v4572, %v4620
        %v4637 = vsub.f32 %v4573, %v4621
        %v4638 = vsub.f32 %v4574, %v4622
        %v4639 = vsub.f32 %v4575, %v4623
        %v4640 = vsub.f32 %v4576, %v4624
        %v4641 = vsub.f32 %v4577, %v4625
        %v4642 = vmul.f32 %v4626, %v4626
        %v4643 = vmul.f32 %v4627, %v4627
        %v4644 = vmul.f32 %v4628, %v4628
        %v4645 = vmul.f32 %v4629, %v4629
        %v4646 = vmul.f32 %v4630, %v4630
        %v4647 = vmul.f32 %v4631, %v4631
        %v4648 = vmul.f32 %v4632, %v4632
        %v4649 = vmul.f32 %v4633, %v4633
        %v4650 = vmul.f32 %v4634, %v4634
        %v4651 = vmul.f32 %v4635, %v4635
        %v4652 = vmul.f32 %v4636, %v4636
        %v4653 = vmul.f32 %v4637, %v4637
        %v4654 = vmul.f32 %v4638, %v4638
        %v4655 = vmul.f32 %v4639, %v4639
        %v4656 = vmul.f32 %v4640, %v4640
        %v4657 = vmul.f32 %v4641, %v4641
        %4658 = vadd.xlane.f32.xlu0 %v4642
        %v4659 = vpop.xlane.xlu0 %4658
        %4660 = vadd.xlane.f32.xlu0 %v4643
        %v4661 = vpop.xlane.xlu0 %4660
        %4662 = vadd.xlane.f32.xlu0 %v4644
        %v4663 = vpop.xlane.xlu0 %4662
        %4664 = vadd.xlane.f32.xlu0 %v4645
        %v4665 = vpop.xlane.xlu0 %4664
        %4666 = vadd.xlane.f32.xlu0 %v4646
        %v4667 = vpop.xlane.xlu0 %4666
        %4668 = vadd.xlane.f32.xlu0 %v4647
        %v4669 = vpop.xlane.xlu0 %4668
        %4670 = vadd.xlane.f32.xlu0 %v4648
        %v4671 = vpop.xlane.xlu0 %4670
        %4672 = vadd.xlane.f32.xlu0 %v4649
        %v4673 = vpop.xlane.xlu0 %4672
        %4674 = vadd.xlane.f32.xlu0 %v4650
        %v4675 = vpop.xlane.xlu0 %4674
        %4676 = vadd.xlane.f32.xlu0 %v4651
        %v4677 = vpop.xlane.xlu0 %4676
        %4678 = vadd.xlane.f32.xlu0 %v4652
        %v4679 = vpop.xlane.xlu0 %4678
        %4680 = vadd.xlane.f32.xlu0 %v4653
        %v4681 = vpop.xlane.xlu0 %4680
        %4682 = vadd.xlane.f32.xlu0 %v4654
        %v4683 = vpop.xlane.xlu0 %4682
        %4684 = vadd.xlane.f32.xlu0 %v4655
        %v4685 = vpop.xlane.xlu0 %4684
        %4686 = vadd.xlane.f32.xlu0 %v4656
        %v4687 = vpop.xlane.xlu0 %4686
        %4688 = vadd.xlane.f32.xlu0 %v4657
        %v4689 = vpop.xlane.xlu0 %4688
        %v4690 = vmul.f32 %v4659, %v525
        %v4691 = vmul.f32 %v4661, %v525
        %v4692 = vmul.f32 %v4663, %v525
        %v4693 = vmul.f32 %v4665, %v525
        %v4694 = vmul.f32 %v4667, %v525
        %v4695 = vmul.f32 %v4669, %v525
        %v4696 = vmul.f32 %v4671, %v525
        %v4697 = vmul.f32 %v4673, %v525
        %v4698 = vmul.f32 %v4675, %v525
        %v4699 = vmul.f32 %v4677, %v525
        %v4700 = vmul.f32 %v4679, %v525
        %v4701 = vmul.f32 %v4681, %v525
        %v4702 = vmul.f32 %v4683, %v525
        %v4703 = vmul.f32 %v4685, %v525
        %v4704 = vmul.f32 %v4687, %v525
        %v4705 = vmul.f32 %v4689, %v525
        %v4706 = vadd.f32 %v4690, 1e-05
        %v4707 = vadd.f32 %v4691, 1e-05
        %v4708 = vadd.f32 %v4692, 1e-05
        %v4709 = vadd.f32 %v4693, 1e-05
        %v4710 = vadd.f32 %v4694, 1e-05
        %v4711 = vadd.f32 %v4695, 1e-05
        %v4712 = vadd.f32 %v4696, 1e-05
        %v4713 = vadd.f32 %v4697, 1e-05
        %v4714 = vadd.f32 %v4698, 1e-05
        %v4715 = vadd.f32 %v4699, 1e-05
        %v4716 = vadd.f32 %v4700, 1e-05
        %v4717 = vadd.f32 %v4701, 1e-05
        %v4718 = vadd.f32 %v4702, 1e-05
        %v4719 = vadd.f32 %v4703, 1e-05
        %v4720 = vadd.f32 %v4704, 1e-05
        %v4721 = vadd.f32 %v4705, 1e-05
        %v4722 = vrsqrt.pop %v4706
        %v4723 = vrsqrt.pop %v4707
        %v4724 = vrsqrt.pop %v4708
        %v4725 = vrsqrt.pop %v4709
        %v4726 = vrsqrt.pop %v4710
        %v4727 = vrsqrt.pop %v4711
        %v4728 = vrsqrt.pop %v4712
        %v4729 = vrsqrt.pop %v4713
        %v4730 = vrsqrt.pop %v4714
        %v4731 = vrsqrt.pop %v4715
        %v4732 = vrsqrt.pop %v4716
        %v4733 = vrsqrt.pop %v4717
        %v4734 = vrsqrt.pop %v4718
        %v4735 = vrsqrt.pop %v4719
        %v4736 = vrsqrt.pop %v4720
        %v4737 = vrsqrt.pop %v4721
        %v4738 = vmul.f32 %v4626, %v4722
        %v4739 = vmul.f32 %v4627, %v4723
        %v4740 = vmul.f32 %v4628, %v4724
        %v4741 = vmul.f32 %v4629, %v4725
        %v4742 = vmul.f32 %v4630, %v4726
        %v4743 = vmul.f32 %v4631, %v4727
        %v4744 = vmul.f32 %v4632, %v4728
        %v4745 = vmul.f32 %v4633, %v4729
        %v4746 = vmul.f32 %v4634, %v4730
        %v4747 = vmul.f32 %v4635, %v4731
        %v4748 = vmul.f32 %v4636, %v4732
        %v4749 = vmul.f32 %v4637, %v4733
        %v4750 = vmul.f32 %v4638, %v4734
        %v4751 = vmul.f32 %v4639, %v4735
        %v4752 = vmul.f32 %v4640, %v4736
        %v4753 = vmul.f32 %v4641, %v4737
        %v4754 = vlaneseq
        %v4755 = vshrl.u32 %v4754, 7
        %v4756 = vsub.s32 0, %v4755
        %v4757 = vrot.slane %v490, %v4756
        %v4758 = vmul.f32 %v4738, %v4757
        %v4759 = vmul.f32 %v4739, %v4757
        %v4760 = vmul.f32 %v4740, %v4757
        %v4761 = vmul.f32 %v4741, %v4757
        %v4762 = vmul.f32 %v4742, %v4757
        %v4763 = vmul.f32 %v4743, %v4757
        %v4764 = vmul.f32 %v4744, %v4757
        %v4765 = vmul.f32 %v4745, %v4757
        %v4766 = vmul.f32 %v4746, %v4757
        %v4767 = vmul.f32 %v4747, %v4757
        %v4768 = vmul.f32 %v4748, %v4757
        %v4769 = vmul.f32 %v4749, %v4757
        %v4770 = vmul.f32 %v4750, %v4757
        %v4771 = vmul.f32 %v4751, %v4757
        %v4772 = vmul.f32 %v4752, %v4757
        %v4773 = vmul.f32 %v4753, %v4757
        %v4774 = vlaneseq
        %v4775 = vshrl.u32 %v4774, 7
        %v4776 = vsub.s32 0, %v4775
        %v4777 = vrot.slane %v491, %v4776
        %v4778 = vadd.f32 %v4758, %v4777
        %v4779 = vadd.f32 %v4759, %v4777
        %v4780 = vadd.f32 %v4760, %v4777
        %v4781 = vadd.f32 %v4761, %v4777
        %v4782 = vadd.f32 %v4762, %v4777
        %v4783 = vadd.f32 %v4763, %v4777
        %v4784 = vadd.f32 %v4764, %v4777
        %v4785 = vadd.f32 %v4765, %v4777
        %v4786 = vadd.f32 %v4766, %v4777
        %v4787 = vadd.f32 %v4767, %v4777
        %v4788 = vadd.f32 %v4768, %v4777
        %v4789 = vadd.f32 %v4769, %v4777
        %v4790 = vadd.f32 %v4770, %v4777
        %v4791 = vadd.f32 %v4771, %v4777
        %v4792 = vadd.f32 %v4772, %v4777
        %v4793 = vadd.f32 %v4773, %v4777
        %v4794 = vpack.c.bf16 %v4779, %v4778
        %v4795 = vpack.c.bf16 %v4781, %v4780
        %v4796 = vpack.c.bf16 %v4783, %v4782
        %v4797 = vpack.c.bf16 %v4785, %v4784
        %v4798 = vpack.c.bf16 %v4787, %v4786
        %v4799 = vpack.c.bf16 %v4789, %v4788
        %v4800 = vpack.c.bf16 %v4791, %v4790
        %v4801 = vpack.c.bf16 %v4793, %v4792
        %v4802 = vld [vmem:[#allocation10] sm:$0xff]
        %v4803 = vld [vmem:[#allocation10 + $0x8] sm:$0xff]
        %v4804 = vld [vmem:[#allocation10 + $0x10] sm:$0xff]
        %v4805 = vld [vmem:[#allocation10 + $0x18] sm:$0xff]
        %v4806 = vld [vmem:[#allocation10 + $0x20] sm:$0xff]
        %v4807 = vld [vmem:[#allocation10 + $0x28] sm:$0xff]
        %v4808 = vld [vmem:[#allocation10 + $0x30] sm:$0xff]
        %v4809 = vld [vmem:[#allocation10 + $0x38] sm:$0xff]
        %v4810 = vld [vmem:[#allocation10 + $0x40] sm:$0xff]
        %v4811 = vld [vmem:[#allocation10 + $0x48] sm:$0xff]
        %v4812 = vld [vmem:[#allocation10 + $0x50] sm:$0xff]
        %v4813 = vld [vmem:[#allocation10 + $0x58] sm:$0xff]
        %v4814 = vld [vmem:[#allocation10 + $0x60] sm:$0xff]
        %v4815 = vld [vmem:[#allocation10 + $0x68] sm:$0xff]
        %v4816 = vld [vmem:[#allocation10 + $0x70] sm:$0xff]
        %v4817 = vld [vmem:[#allocation10 + $0x78] sm:$0xff]
        %v4818 = vld [vmem:[#allocation10 + $0x80] sm:$0xff]
        %v4819 = vld [vmem:[#allocation10 + $0x88] sm:$0xff]
        %v4820 = vld [vmem:[#allocation10 + $0x90] sm:$0xff]
        %v4821 = vld [vmem:[#allocation10 + $0x98] sm:$0xff]
        %v4822 = vld [vmem:[#allocation10 + $0xa0] sm:$0xff]
        %v4823 = vld [vmem:[#allocation10 + $0xa8] sm:$0xff]
        %v4824 = vld [vmem:[#allocation10 + $0xb0] sm:$0xff]
        %v4825 = vld [vmem:[#allocation10 + $0xb8] sm:$0xff]
        %v4826 = vld [vmem:[#allocation10 + $0xc0] sm:$0xff]
        %v4827 = vld [vmem:[#allocation10 + $0xc8] sm:$0xff]
        %v4828 = vld [vmem:[#allocation10 + $0xd0] sm:$0xff]
        %v4829 = vld [vmem:[#allocation10 + $0xd8] sm:$0xff]
        %v4830 = vld [vmem:[#allocation10 + $0xe0] sm:$0xff]
        %v4831 = vld [vmem:[#allocation10 + $0xe8] sm:$0xff]
        %v4832 = vld [vmem:[#allocation10 + $0xf0] sm:$0xff]
        %v4833 = vld [vmem:[#allocation10 + $0xf8] sm:$0xff]
        %v4834 = vld [vmem:[%s6] sm:$0xf]
        %v4836 = vlaneseq
        %v4837 = vshrl.u32 %v4836, 7
        %v4838 = vsub.s32 0, %v4837
        %v4839 = vrot.slane %v4834, %v4838
        %v4840 = vlaneseq
        %v4841 = vshrl.u32 %v4840, 7
        %v4842 = vsub.s32 1, %v4841
        %v4843 = vrot.slane %v4834, %v4842
        %v4844 = vlaneseq
        %v4845 = vshrl.u32 %v4844, 7
        %v4846 = vsub.s32 2, %v4845
        %v4847 = vrot.slane %v4834, %v4846
        %v4848 = vlaneseq
        %v4849 = vshrl.u32 %v4848, 7
        %v4850 = vsub.s32 3, %v4849
        %v4851 = vrot.slane %v4834, %v4850
        %v4888 = vunpack.c.l.b16 %v4802
        %v4889 = vunpack.c.h.b16 %v4802
        %v4890 = vunpack.c.l.b16 %v4803
        %v4891 = vunpack.c.h.b16 %v4803
        %v4892 = vunpack.c.l.b16 %v4804
        %v4893 = vunpack.c.h.b16 %v4804
        %v4894 = vunpack.c.l.b16 %v4805
        %v4895 = vunpack.c.h.b16 %v4805
        %v4896 = vunpack.c.l.b16 %v4806
        %v4897 = vunpack.c.h.b16 %v4806
        %v4898 = vunpack.c.l.b16 %v4807
        %v4899 = vunpack.c.h.b16 %v4807
        %v4900 = vunpack.c.l.b16 %v4808
        %v4901 = vunpack.c.h.b16 %v4808
        %v4902 = vunpack.c.l.b16 %v4809
        %v4903 = vunpack.c.h.b16 %v4809
        %v4904 = vunpack.c.l.b16 %v4810
        %v4905 = vunpack.c.h.b16 %v4810
        %v4906 = vunpack.c.l.b16 %v4811
        %v4907 = vunpack.c.h.b16 %v4811
        %v4908 = vunpack.c.l.b16 %v4812
        %v4909 = vunpack.c.h.b16 %v4812
        %v4910 = vunpack.c.l.b16 %v4813
        %v4911 = vunpack.c.h.b16 %v4813
        %v4912 = vunpack.c.l.b16 %v4814
        %v4913 = vunpack.c.h.b16 %v4814
        %v4914 = vunpack.c.l.b16 %v4815
        %v4915 = vunpack.c.h.b16 %v4815
        %v4916 = vunpack.c.l.b16 %v4816
        %v4917 = vunpack.c.h.b16 %v4816
        %v4918 = vunpack.c.l.b16 %v4817
        %v4919 = vunpack.c.h.b16 %v4817
        %v4920 = vunpack.c.l.b16 %v4818
        %v4921 = vunpack.c.h.b16 %v4818
        %v4922 = vunpack.c.l.b16 %v4819
        %v4923 = vunpack.c.h.b16 %v4819
        %v4924 = vunpack.c.l.b16 %v4820
        %v4925 = vunpack.c.h.b16 %v4820
        %v4926 = vunpack.c.l.b16 %v4821
        %v4927 = vunpack.c.h.b16 %v4821
        %v4928 = vunpack.c.l.b16 %v4822
        %v4929 = vunpack.c.h.b16 %v4822
        %v4930 = vunpack.c.l.b16 %v4823
        %v4931 = vunpack.c.h.b16 %v4823
        %v4932 = vunpack.c.l.b16 %v4824
        %v4933 = vunpack.c.h.b16 %v4824
        %v4934 = vunpack.c.l.b16 %v4825
        %v4935 = vunpack.c.h.b16 %v4825
        %v4936 = vunpack.c.l.b16 %v4826
        %v4937 = vunpack.c.h.b16 %v4826
        %v4938 = vunpack.c.l.b16 %v4827
        %v4939 = vunpack.c.h.b16 %v4827
        %v4940 = vunpack.c.l.b16 %v4828
        %v4941 = vunpack.c.h.b16 %v4828
        %v4942 = vunpack.c.l.b16 %v4829
        %v4943 = vunpack.c.h.b16 %v4829
        %v4944 = vunpack.c.l.b16 %v4830
        %v4945 = vunpack.c.h.b16 %v4830
        %v4946 = vunpack.c.l.b16 %v4831
        %v4947 = vunpack.c.h.b16 %v4831
        %v4948 = vunpack.c.l.b16 %v4832
        %v4949 = vunpack.c.h.b16 %v4832
        %v4950 = vunpack.c.l.b16 %v4833
        %v4951 = vunpack.c.h.b16 %v4833
        %v4952 = vpack.c.b16 %v4892, %v4888
        %v4953 = vpack.c.b16 %v4893, %v4889
        %v4954 = vpack.c.b16 %v4894, %v4890
        %v4955 = vpack.c.b16 %v4895, %v4891
        %v4956 = vpack.c.b16 %v4900, %v4896
        %v4957 = vpack.c.b16 %v4901, %v4897
        %v4958 = vpack.c.b16 %v4902, %v4898
        %v4959 = vpack.c.b16 %v4903, %v4899
        %v4960 = vpack.c.b16 %v4908, %v4904
        %v4961 = vpack.c.b16 %v4909, %v4905
        %v4962 = vpack.c.b16 %v4910, %v4906
        %v4963 = vpack.c.b16 %v4911, %v4907
        %v4964 = vpack.c.b16 %v4916, %v4912
        %v4965 = vpack.c.b16 %v4917, %v4913
        %v4966 = vpack.c.b16 %v4918, %v4914
        %v4967 = vpack.c.b16 %v4919, %v4915
        %v4968 = vpack.c.b16 %v4924, %v4920
        %v4969 = vpack.c.b16 %v4925, %v4921
        %v4970 = vpack.c.b16 %v4926, %v4922
        %v4971 = vpack.c.b16 %v4927, %v4923
        %v4972 = vpack.c.b16 %v4932, %v4928
        %v4973 = vpack.c.b16 %v4933, %v4929
        %v4974 = vpack.c.b16 %v4934, %v4930
        %v4975 = vpack.c.b16 %v4935, %v4931
        %v4976 = vpack.c.b16 %v4940, %v4936
        %v4977 = vpack.c.b16 %v4941, %v4937
        %v4978 = vpack.c.b16 %v4942, %v4938
        %v4979 = vpack.c.b16 %v4943, %v4939
        %v4980 = vpack.c.b16 %v4948, %v4944
        %v4981 = vpack.c.b16 %v4949, %v4945
        %v4982 = vpack.c.b16 %v4950, %v4946
        %v4983 = vpack.c.b16 %v4951, %v4947
        %5016 = vmatprep.subr.bf16.mxu0 %v4953
        %5017 = vmatpush1.bf16.msra.mxu0 %v4952
        %5018 = vmatprep.subr.bf16.mxu0 %v4957
        %5019 = vmatpush1.bf16.msra.mxu0 %v4956
        %5020 = vmatprep.subr.bf16.mxu0 %v4961
        %5021 = vmatpush1.bf16.msra.mxu0 %v4960
        %5022 = vmatprep.subr.bf16.mxu0 %v4965
        %5023 = vmatpush1.bf16.msra.mxu0 %v4964
        %5024 = vmatprep.subr.bf16.mxu0 %v4969
        %5025 = vmatpush1.bf16.msra.mxu0 %v4968
        %5026 = vmatprep.subr.bf16.mxu0 %v4973
        %5027 = vmatpush1.bf16.msra.mxu0 %v4972
        %5028 = vmatprep.subr.bf16.mxu0 %v4977
        %5029 = vmatpush1.bf16.msra.mxu0 %v4976
        %5030 = vmatprep.subr.bf16.mxu0 %v4981
        %5031 = vmatpush1.bf16.msra.mxu0 %v4980
        %5032 = vmatprep.subr.bf16.mxu0 0
        %5033 = vmatpush1.bf16.msra.mxu0 0
        %5034 = vmatprep.subr.bf16.mxu0 0
        %5035 = vmatpush1.bf16.msra.mxu0 0
        %5036 = vmatprep.subr.bf16.mxu0 0
        %5037 = vmatpush1.bf16.msra.mxu0 0
        %5038 = vmatprep.subr.bf16.mxu0 0
        %5039 = vmatpush1.bf16.msra.mxu0 0
        %5040 = vmatprep.subr.bf16.mxu0 0
        %5041 = vmatpush1.bf16.msra.mxu0 0
        %5042 = vmatprep.subr.bf16.mxu0 0
        %5043 = vmatpush1.bf16.msra.mxu0 0
        %5044 = vmatprep.subr.bf16.mxu0 0
        %5045 = vmatpush1.bf16.msra.mxu0 0
        %5046 = vmatprep.subr.bf16.mxu0 0
        %5047 = vmatpush1.bf16.msra.mxu0 0
        %5048 = vmatprep.mubr.bf16.mxu0 0
        %5049 = vmatmul.mubr.bf16.gmra.mrb[0].mxu0 %v4794
        %v5050 = vpop.f32.mrb[0].mxu0
        %v5051 = vadd.f32 %v4839, %v5050
        %v5052 = vpop.f32.mrb[0].mxu0
        %v5053 = vadd.f32 %v4843, %v5052
        %v5054 = vpop.f32.mrb[0].mxu0
        %v5055 = vadd.f32 %v4839, %v5054
        %v5056 = vpop.f32.mrb[0].mxu0
        %v5057 = vadd.f32 %v4843, %v5056
        %5058 = vmatprep.mubr.bf16.mxu0 0
        %5059 = vmatmul.mubr.bf16.gmra.mrb[0].mxu0 %v4795
        %v5060 = vpop.f32.mrb[0].mxu0
        %v5061 = vadd.f32 %v4839, %v5060
        %v5062 = vpop.f32.mrb[0].mxu0
        %v5063 = vadd.f32 %v4843, %v5062
        %v5064 = vpop.f32.mrb[0].mxu0
        %v5065 = vadd.f32 %v4839, %v5064
        %v5066 = vpop.f32.mrb[0].mxu0
        %v5067 = vadd.f32 %v4843, %v5066
        %5068 = vmatprep.mubr.bf16.mxu0 0
        %5069 = vmatmul.mubr.bf16.gmra.mrb[0].mxu0 %v4796
        %v5070 = vpop.f32.mrb[0].mxu0
        %v5071 = vadd.f32 %v4839, %v5070
        %v5072 = vpop.f32.mrb[0].mxu0
        %v5073 = vadd.f32 %v4843, %v5072
        %v5074 = vpop.f32.mrb[0].mxu0
        %v5075 = vadd.f32 %v4839, %v5074
        %v5076 = vpop.f32.mrb[0].mxu0
        %v5077 = vadd.f32 %v4843, %v5076
        %5078 = vmatprep.mubr.bf16.mxu0 0
        %5079 = vmatmul.mubr.bf16.gmra.mrb[0].mxu0 %v4797
        %v5080 = vpop.f32.mrb[0].mxu0
        %v5081 = vadd.f32 %v4839, %v5080
        %v5082 = vpop.f32.mrb[0].mxu0
        %v5083 = vadd.f32 %v4843, %v5082
        %v5084 = vpop.f32.mrb[0].mxu0
        %v5085 = vadd.f32 %v4839, %v5084
        %v5086 = vpop.f32.mrb[0].mxu0
        %v5087 = vadd.f32 %v4843, %v5086
        %5088 = vmatprep.mubr.bf16.mxu0 0
        %5089 = vmatmul.mubr.bf16.gmra.mrb[0].mxu0 %v4798
        %v5090 = vpop.f32.mrb[0].mxu0
        %v5091 = vadd.f32 %v4839, %v5090
        %v5092 = vpop.f32.mrb[0].mxu0
        %v5093 = vadd.f32 %v4843, %v5092
        %v5094 = vpop.f32.mrb[0].mxu0
        %v5095 = vadd.f32 %v4839, %v5094
        %v5096 = vpop.f32.mrb[0].mxu0
        %v5097 = vadd.f32 %v4843, %v5096
        %5098 = vmatprep.mubr.bf16.mxu0 0
        %5099 = vmatmul.mubr.bf16.gmra.mrb[0].mxu0 %v4799
        %v5100 = vpop.f32.mrb[0].mxu0
        %v5101 = vadd.f32 %v4839, %v5100
        %v5102 = vpop.f32.mrb[0].mxu0
        %v5103 = vadd.f32 %v4843, %v5102
        %v5104 = vpop.f32.mrb[0].mxu0
        %v5105 = vadd.f32 %v4839, %v5104
        %v5106 = vpop.f32.mrb[0].mxu0
        %v5107 = vadd.f32 %v4843, %v5106
        %5108 = vmatprep.mubr.bf16.mxu0 0
        %5109 = vmatmul.mubr.bf16.gmra.mrb[0].mxu0 %v4800
        %v5110 = vpop.f32.mrb[0].mxu0
        %v5111 = vadd.f32 %v4839, %v5110
        %v5112 = vpop.f32.mrb[0].mxu0
        %v5113 = vadd.f32 %v4843, %v5112
        %v5114 = vpop.f32.mrb[0].mxu0
        %v5115 = vadd.f32 %v4839, %v5114
        %v5116 = vpop.f32.mrb[0].mxu0
        %v5117 = vadd.f32 %v4843, %v5116
        %5118 = vmatprep.mubr.bf16.mxu0 0
        %5119 = vmatmul.mubr.bf16.gmra.mrb[0].mxu0 %v4801
        %v5120 = vpop.f32.mrb[0].mxu0
        %v5121 = vadd.f32 %v4839, %v5120
        %v5122 = vpop.f32.mrb[0].mxu0
        %v5123 = vadd.f32 %v4843, %v5122
        %v5124 = vpop.f32.mrb[0].mxu0
        %v5125 = vadd.f32 %v4839, %v5124
        %v5126 = vpop.f32.mrb[0].mxu0
        %v5127 = vadd.f32 %v4843, %v5126
        %5128 = vdwg.mxu0
        %5129 = vmatprep.subr.bf16.mxu0 %v4955
        %5130 = vmatpush1.bf16.msra.mxu0 %v4954
        %5131 = vmatprep.subr.bf16.mxu0 %v4959
        %5132 = vmatpush1.bf16.msra.mxu0 %v4958
        %5133 = vmatprep.subr.bf16.mxu0 %v4963
        %5134 = vmatpush1.bf16.msra.mxu0 %v4962
        %5135 = vmatprep.subr.bf16.mxu0 %v4967
        %5136 = vmatpush1.bf16.msra.mxu0 %v4966
        %5137 = vmatprep.subr.bf16.mxu0 %v4971
        %5138 = vmatpush1.bf16.msra.mxu0 %v4970
        %5139 = vmatprep.subr.bf16.mxu0 %v4975
        %5140 = vmatpush1.bf16.msra.mxu0 %v4974
        %5141 = vmatprep.subr.bf16.mxu0 %v4979
        %5142 = vmatpush1.bf16.msra.mxu0 %v4978
        %5143 = vmatprep.subr.bf16.mxu0 %v4983
        %5144 = vmatpush1.bf16.msra.mxu0 %v4982
        %5145 = vmatprep.subr.bf16.mxu0 0
        %5146 = vmatpush1.bf16.msra.mxu0 0
        %5147 = vmatprep.subr.bf16.mxu0 0
        %5148 = vmatpush1.bf16.msra.mxu0 0
        %5149 = vmatprep.subr.bf16.mxu0 0
        %5150 = vmatpush1.bf16.msra.mxu0 0
        %5151 = vmatprep.subr.bf16.mxu0 0
        %5152 = vmatpush1.bf16.msra.mxu0 0
        %5153 = vmatprep.subr.bf16.mxu0 0
        %5154 = vmatpush1.bf16.msra.mxu0 0
        %5155 = vmatprep.subr.bf16.mxu0 0
        %5156 = vmatpush1.bf16.msra.mxu0 0
        %5157 = vmatprep.subr.bf16.mxu0 0
        %5158 = vmatpush1.bf16.msra.mxu0 0
        %5159 = vmatprep.subr.bf16.mxu0 0
        %5160 = vmatpush1.bf16.msra.mxu0 0
        %5161 = vmatprep.mubr.bf16.mxu0 0
        %5162 = vmatmul.mubr.bf16.gmra.mrb[0].mxu0 %v4794
        %v5163 = vpop.f32.mrb[0].mxu0
        %v5164 = vadd.f32 %v4847, %v5163
        %v5165 = vpop.f32.mrb[0].mxu0
        %v5166 = vadd.f32 %v4851, %v5165
        %v5167 = vpop.f32.mrb[0].mxu0
        %v5168 = vadd.f32 %v4847, %v5167
        %v5169 = vpop.f32.mrb[0].mxu0
        %v5170 = vadd.f32 %v4851, %v5169
        %5171 = vmatprep.mubr.bf16.mxu0 0
        %5172 = vmatmul.mubr.bf16.gmra.mrb[0].mxu0 %v4795
        %v5173 = vpop.f32.mrb[0].mxu0
        %v5174 = vadd.f32 %v4847, %v5173
        %v5175 = vpop.f32.mrb[0].mxu0
        %v5176 = vadd.f32 %v4851, %v5175
        %v5177 = vpop.f32.mrb[0].mxu0
        %v5178 = vadd.f32 %v4847, %v5177
        %v5179 = vpop.f32.mrb[0].mxu0
        %v5180 = vadd.f32 %v4851, %v5179
        %5181 = vmatprep.mubr.bf16.mxu0 0
        %5182 = vmatmul.mubr.bf16.gmra.mrb[0].mxu0 %v4796
        %v5183 = vpop.f32.mrb[0].mxu0
        %v5184 = vadd.f32 %v4847, %v5183
        %v5185 = vpop.f32.mrb[0].mxu0
        %v5186 = vadd.f32 %v4851, %v5185
        %v5187 = vpop.f32.mrb[0].mxu0
        %v5188 = vadd.f32 %v4847, %v5187
        %v5189 = vpop.f32.mrb[0].mxu0
        %v5190 = vadd.f32 %v4851, %v5189
        %5191 = vmatprep.mubr.bf16.mxu0 0
        %5192 = vmatmul.mubr.bf16.gmra.mrb[0].mxu0 %v4797
        %v5193 = vpop.f32.mrb[0].mxu0
        %v5194 = vadd.f32 %v4847, %v5193
        %v5195 = vpop.f32.mrb[0].mxu0
        %v5196 = vadd.f32 %v4851, %v5195
        %v5197 = vpop.f32.mrb[0].mxu0
        %v5198 = vadd.f32 %v4847, %v5197
        %v5199 = vpop.f32.mrb[0].mxu0
        %v5200 = vadd.f32 %v4851, %v5199
        %5201 = vmatprep.mubr.bf16.mxu0 0
        %5202 = vmatmul.mubr.bf16.gmra.mrb[0].mxu0 %v4798
        %v5203 = vpop.f32.mrb[0].mxu0
        %v5204 = vadd.f32 %v4847, %v5203
        %v5205 = vpop.f32.mrb[0].mxu0
        %v5206 = vadd.f32 %v4851, %v5205
        %v5207 = vpop.f32.mrb[0].mxu0
        %v5208 = vadd.f32 %v4847, %v5207
        %v5209 = vpop.f32.mrb[0].mxu0
        %v5210 = vadd.f32 %v4851, %v5209
        %5211 = vmatprep.mubr.bf16.mxu0 0
        %5212 = vmatmul.mubr.bf16.gmra.mrb[0].mxu0 %v4799
        %v5213 = vpop.f32.mrb[0].mxu0
        %v5214 = vadd.f32 %v4847, %v5213
        %v5215 = vpop.f32.mrb[0].mxu0
        %v5216 = vadd.f32 %v4851, %v5215
        %v5217 = vpop.f32.mrb[0].mxu0
        %v5218 = vadd.f32 %v4847, %v5217
        %v5219 = vpop.f32.mrb[0].mxu0
        %v5220 = vadd.f32 %v4851, %v5219
        %5221 = vmatprep.mubr.bf16.mxu0 0
        %5222 = vmatmul.mubr.bf16.gmra.mrb[0].mxu0 %v4800
        %v5223 = vpop.f32.mrb[0].mxu0
        %v5224 = vadd.f32 %v4847, %v5223
        %v5225 = vpop.f32.mrb[0].mxu0
        %v5226 = vadd.f32 %v4851, %v5225
        %v5227 = vpop.f32.mrb[0].mxu0
        %v5228 = vadd.f32 %v4847, %v5227
        %v5229 = vpop.f32.mrb[0].mxu0
        %v5230 = vadd.f32 %v4851, %v5229
        %5231 = vmatprep.mubr.bf16.mxu0 0
        %5232 = vmatmul.mubr.bf16.gmra.mrb[0].mxu0 %v4801
        %v5233 = vpop.f32.mrb[0].mxu0
        %v5234 = vadd.f32 %v4847, %v5233
        %v5235 = vpop.f32.mrb[0].mxu0
        %v5236 = vadd.f32 %v4851, %v5235
        %v5237 = vpop.f32.mrb[0].mxu0
        %v5238 = vadd.f32 %v4847, %v5237
        %v5239 = vpop.f32.mrb[0].mxu0
        %v5240 = vadd.f32 %v4851, %v5239
        %5241 = vdwg.mxu0
        %v5242 = vmul.f32 %v5051, 0.5
        %v5243 = vmul.f32 %v5053, 0.5
        %v5244 = vmul.f32 %v5164, 0.5
        %v5245 = vmul.f32 %v5166, 0.5
        %v5246 = vmul.f32 %v5055, 0.5
        %v5247 = vmul.f32 %v5057, 0.5
        %v5248 = vmul.f32 %v5168, 0.5
        %v5249 = vmul.f32 %v5170, 0.5
        %v5250 = vmul.f32 %v5061, 0.5
        %v5251 = vmul.f32 %v5063, 0.5
        %v5252 = vmul.f32 %v5174, 0.5
        %v5253 = vmul.f32 %v5176, 0.5
        %v5254 = vmul.f32 %v5065, 0.5
        %v5255 = vmul.f32 %v5067, 0.5
        %v5256 = vmul.f32 %v5178, 0.5
        %v5257 = vmul.f32 %v5180, 0.5
        %v5258 = vmul.f32 %v5071, 0.5
        %v5259 = vmul.f32 %v5073, 0.5
        %v5260 = vmul.f32 %v5184, 0.5
        %v5261 = vmul.f32 %v5186, 0.5
        %v5262 = vmul.f32 %v5075, 0.5
        %v5263 = vmul.f32 %v5077, 0.5
        %v5264 = vmul.f32 %v5188, 0.5
        %v5265 = vmul.f32 %v5190, 0.5
        %v5266 = vmul.f32 %v5081, 0.5
        %v5267 = vmul.f32 %v5083, 0.5
        %v5268 = vmul.f32 %v5194, 0.5
        %v5269 = vmul.f32 %v5196, 0.5
        %v5270 = vmul.f32 %v5085, 0.5
        %v5271 = vmul.f32 %v5087, 0.5
        %v5272 = vmul.f32 %v5198, 0.5
        %v5273 = vmul.f32 %v5200, 0.5
        %v5274 = vmul.f32 %v5091, 0.5
        %v5275 = vmul.f32 %v5093, 0.5
        %v5276 = vmul.f32 %v5204, 0.5
        %v5277 = vmul.f32 %v5206, 0.5
        %v5278 = vmul.f32 %v5095, 0.5
        %v5279 = vmul.f32 %v5097, 0.5
        %v5280 = vmul.f32 %v5208, 0.5
        %v5281 = vmul.f32 %v5210, 0.5
        %v5282 = vmul.f32 %v5101, 0.5
        %v5283 = vmul.f32 %v5103, 0.5
        %v5284 = vmul.f32 %v5214, 0.5
        %v5285 = vmul.f32 %v5216, 0.5
        %v5286 = vmul.f32 %v5105, 0.5
        %v5287 = vmul.f32 %v5107, 0.5
        %v5288 = vmul.f32 %v5218, 0.5
        %v5289 = vmul.f32 %v5220, 0.5
        %v5290 = vmul.f32 %v5111, 0.5
        %v5291 = vmul.f32 %v5113, 0.5
        %v5292 = vmul.f32 %v5224, 0.5
        %v5293 = vmul.f32 %v5226, 0.5
        %v5294 = vmul.f32 %v5115, 0.5
        %v5295 = vmul.f32 %v5117, 0.5
        %v5296 = vmul.f32 %v5228, 0.5
        %v5297 = vmul.f32 %v5230, 0.5
        %v5298 = vmul.f32 %v5121, 0.5
        %v5299 = vmul.f32 %v5123, 0.5
        %v5300 = vmul.f32 %v5234, 0.5
        %v5301 = vmul.f32 %v5236, 0.5
        %v5302 = vmul.f32 %v5125, 0.5
        %v5303 = vmul.f32 %v5127, 0.5
        %v5304 = vmul.f32 %v5238, 0.5
        %v5305 = vmul.f32 %v5240, 0.5
        %v5306 = vmul.f32 %v5051, 0.044715
        %v5307 = vmul.f32 %v5053, 0.044715
        %v5308 = vmul.f32 %v5164, 0.044715
        %v5309 = vmul.f32 %v5166, 0.044715
        %v5310 = vmul.f32 %v5055, 0.044715
        %v5311 = vmul.f32 %v5057, 0.044715
        %v5312 = vmul.f32 %v5168, 0.044715
        %v5313 = vmul.f32 %v5170, 0.044715
        %v5314 = vmul.f32 %v5061, 0.044715
        %v5315 = vmul.f32 %v5063, 0.044715
        %v5316 = vmul.f32 %v5174, 0.044715
        %v5317 = vmul.f32 %v5176, 0.044715
        %v5318 = vmul.f32 %v5065, 0.044715
        %v5319 = vmul.f32 %v5067, 0.044715
        %v5320 = vmul.f32 %v5178, 0.044715
        %v5321 = vmul.f32 %v5180, 0.044715
        %v5322 = vmul.f32 %v5071, 0.044715
        %v5323 = vmul.f32 %v5073, 0.044715
        %v5324 = vmul.f32 %v5184, 0.044715
        %v5325 = vmul.f32 %v5186, 0.044715
        %v5326 = vmul.f32 %v5075, 0.044715
        %v5327 = vmul.f32 %v5077, 0.044715
        %v5328 = vmul.f32 %v5188, 0.044715
        %v5329 = vmul.f32 %v5190, 0.044715
        %v5330 = vmul.f32 %v5081, 0.044715
        %v5331 = vmul.f32 %v5083, 0.044715
        %v5332 = vmul.f32 %v5194, 0.044715
        %v5333 = vmul.f32 %v5196, 0.044715
        %v5334 = vmul.f32 %v5085, 0.044715
        %v5335 = vmul.f32 %v5087, 0.044715
        %v5336 = vmul.f32 %v5198, 0.044715
        %v5337 = vmul.f32 %v5200, 0.044715
        %v5338 = vmul.f32 %v5091, 0.044715
        %v5339 = vmul.f32 %v5093, 0.044715
        %v5340 = vmul.f32 %v5204, 0.044715
        %v5341 = vmul.f32 %v5206, 0.044715
        %v5342 = vmul.f32 %v5095, 0.044715
        %v5343 = vmul.f32 %v5097, 0.044715
        %v5344 = vmul.f32 %v5208, 0.044715
        %v5345 = vmul.f32 %v5210, 0.044715
        %v5346 = vmul.f32 %v5101, 0.044715
        %v5347 = vmul.f32 %v5103, 0.044715
        %v5348 = vmul.f32 %v5214, 0.044715
        %v5349 = vmul.f32 %v5216, 0.044715
        %v5350 = vmul.f32 %v5105, 0.044715
        %v5351 = vmul.f32 %v5107, 0.044715
        %v5352 = vmul.f32 %v5218, 0.044715
        %v5353 = vmul.f32 %v5220, 0.044715
        %v5354 = vmul.f32 %v5111, 0.044715
        %v5355 = vmul.f32 %v5113, 0.044715
        %v5356 = vmul.f32 %v5224, 0.044715
        %v5357 = vmul.f32 %v5226, 0.044715
        %v5358 = vmul.f32 %v5115, 0.044715
        %v5359 = vmul.f32 %v5117, 0.044715
        %v5360 = vmul.f32 %v5228, 0.044715
        %v5361 = vmul.f32 %v5230, 0.044715
        %v5362 = vmul.f32 %v5121, 0.044715
        %v5363 = vmul.f32 %v5123, 0.044715
        %v5364 = vmul.f32 %v5234, 0.044715
        %v5365 = vmul.f32 %v5236, 0.044715
        %v5366 = vmul.f32 %v5125, 0.044715
        %v5367 = vmul.f32 %v5127, 0.044715
        %v5368 = vmul.f32 %v5238, 0.044715
        %v5369 = vmul.f32 %v5240, 0.044715
        %v5370 = vmul.f32 %v5306, %v5051
        %v5371 = vmul.f32 %v5307, %v5053
        %v5372 = vmul.f32 %v5308, %v5164
        %v5373 = vmul.f32 %v5309, %v5166
        %v5374 = vmul.f32 %v5310, %v5055
        %v5375 = vmul.f32 %v5311, %v5057
        %v5376 = vmul.f32 %v5312, %v5168
        %v5377 = vmul.f32 %v5313, %v5170
        %v5378 = vmul.f32 %v5314, %v5061
        %v5379 = vmul.f32 %v5315, %v5063
        %v5380 = vmul.f32 %v5316, %v5174
        %v5381 = vmul.f32 %v5317, %v5176
        %v5382 = vmul.f32 %v5318, %v5065
        %v5383 = vmul.f32 %v5319, %v5067
        %v5384 = vmul.f32 %v5320, %v5178
        %v5385 = vmul.f32 %v5321, %v5180
        %v5386 = vmul.f32 %v5322, %v5071
        %v5387 = vmul.f32 %v5323, %v5073
        %v5388 = vmul.f32 %v5324, %v5184
        %v5389 = vmul.f32 %v5325, %v5186
        %v5390 = vmul.f32 %v5326, %v5075
        %v5391 = vmul.f32 %v5327, %v5077
        %v5392 = vmul.f32 %v5328, %v5188
        %v5393 = vmul.f32 %v5329, %v5190
        %v5394 = vmul.f32 %v5330, %v5081
        %v5395 = vmul.f32 %v5331, %v5083
        %v5396 = vmul.f32 %v5332, %v5194
        %v5397 = vmul.f32 %v5333, %v5196
        %v5398 = vmul.f32 %v5334, %v5085
        %v5399 = vmul.f32 %v5335, %v5087
        %v5400 = vmul.f32 %v5336, %v5198
        %v5401 = vmul.f32 %v5337, %v5200
        %v5402 = vmul.f32 %v5338, %v5091
        %v5403 = vmul.f32 %v5339, %v5093
        %v5404 = vmul.f32 %v5340, %v5204
        %v5405 = vmul.f32 %v5341, %v5206
        %v5406 = vmul.f32 %v5342, %v5095
        %v5407 = vmul.f32 %v5343, %v5097
        %v5408 = vmul.f32 %v5344, %v5208
        %v5409 = vmul.f32 %v5345, %v5210
        %v5410 = vmul.f32 %v5346, %v5101
        %v5411 = vmul.f32 %v5347, %v5103
        %v5412 = vmul.f32 %v5348, %v5214
        %v5413 = vmul.f32 %v5349, %v5216
        %v5414 = vmul.f32 %v5350, %v5105
        %v5415 = vmul.f32 %v5351, %v5107
        %v5416 = vmul.f32 %v5352, %v5218
        %v5417 = vmul.f32 %v5353, %v5220
        %v5418 = vmul.f32 %v5354, %v5111
        %v5419 = vmul.f32 %v5355, %v5113
        %v5420 = vmul.f32 %v5356, %v5224
        %v5421 = vmul.f32 %v5357, %v5226
        %v5422 = vmul.f32 %v5358, %v5115
        %v5423 = vmul.f32 %v5359, %v5117
        %v5424 = vmul.f32 %v5360, %v5228
        %v5425 = vmul.f32 %v5361, %v5230
        %v5426 = vmul.f32 %v5362, %v5121
        %v5427 = vmul.f32 %v5363, %v5123
        %v5428 = vmul.f32 %v5364, %v5234
        %v5429 = vmul.f32 %v5365, %v5236
        %v5430 = vmul.f32 %v5366, %v5125
        %v5431 = vmul.f32 %v5367, %v5127
        %v5432 = vmul.f32 %v5368, %v5238
        %v5433 = vmul.f32 %v5369, %v5240
        %v5434 = vmul.f32 %v5370, %v5051
        %v5435 = vmul.f32 %v5371, %v5053
        %v5436 = vmul.f32 %v5372, %v5164
        %v5437 = vmul.f32 %v5373, %v5166
        %v5438 = vmul.f32 %v5374, %v5055
        %v5439 = vmul.f32 %v5375, %v5057
        %v5440 = vmul.f32 %v5376, %v5168
        %v5441 = vmul.f32 %v5377, %v5170
        %v5442 = vmul.f32 %v5378, %v5061
        %v5443 = vmul.f32 %v5379, %v5063
        %v5444 = vmul.f32 %v5380, %v5174
        %v5445 = vmul.f32 %v5381, %v5176
        %v5446 = vmul.f32 %v5382, %v5065
        %v5447 = vmul.f32 %v5383, %v5067
        %v5448 = vmul.f32 %v5384, %v5178
        %v5449 = vmul.f32 %v5385, %v5180
        %v5450 = vmul.f32 %v5386, %v5071
        %v5451 = vmul.f32 %v5387, %v5073
        %v5452 = vmul.f32 %v5388, %v5184
        %v5453 = vmul.f32 %v5389, %v5186
        %v5454 = vmul.f32 %v5390, %v5075
        %v5455 = vmul.f32 %v5391, %v5077
        %v5456 = vmul.f32 %v5392, %v5188
        %v5457 = vmul.f32 %v5393, %v5190
        %v5458 = vmul.f32 %v5394, %v5081
        %v5459 = vmul.f32 %v5395, %v5083
        %v5460 = vmul.f32 %v5396, %v5194
        %v5461 = vmul.f32 %v5397, %v5196
        %v5462 = vmul.f32 %v5398, %v5085
        %v5463 = vmul.f32 %v5399, %v5087
        %v5464 = vmul.f32 %v5400, %v5198
        %v5465 = vmul.f32 %v5401, %v5200
        %v5466 = vmul.f32 %v5402, %v5091
        %v5467 = vmul.f32 %v5403, %v5093
        %v5468 = vmul.f32 %v5404, %v5204
        %v5469 = vmul.f32 %v5405, %v5206
        %v5470 = vmul.f32 %v5406, %v5095
        %v5471 = vmul.f32 %v5407, %v5097
        %v5472 = vmul.f32 %v5408, %v5208
        %v5473 = vmul.f32 %v5409, %v5210
        %v5474 = vmul.f32 %v5410, %v5101
        %v5475 = vmul.f32 %v5411, %v5103
        %v5476 = vmul.f32 %v5412, %v5214
        %v5477 = vmul.f32 %v5413, %v5216
        %v5478 = vmul.f32 %v5414, %v5105
        %v5479 = vmul.f32 %v5415, %v5107
        %v5480 = vmul.f32 %v5416, %v5218
        %v5481 = vmul.f32 %v5417, %v5220
        %v5482 = vmul.f32 %v5418, %v5111
        %v5483 = vmul.f32 %v5419, %v5113
        %v5484 = vmul.f32 %v5420, %v5224
        %v5485 = vmul.f32 %v5421, %v5226
        %v5486 = vmul.f32 %v5422, %v5115
        %v5487 = vmul.f32 %v5423, %v5117
        %v5488 = vmul.f32 %v5424, %v5228
        %v5489 = vmul.f32 %v5425, %v5230
        %v5490 = vmul.f32 %v5426, %v5121
        %v5491 = vmul.f32 %v5427, %v5123
        %v5492 = vmul.f32 %v5428, %v5234
        %v5493 = vmul.f32 %v5429, %v5236
        %v5494 = vmul.f32 %v5430, %v5125
        %v5495 = vmul.f32 %v5431, %v5127
        %v5496 = vmul.f32 %v5432, %v5238
        %v5497 = vmul.f32 %v5433, %v5240
        %v5498 = vadd.f32 %v5051, %v5434
        %v5499 = vadd.f32 %v5053, %v5435
        %v5500 = vadd.f32 %v5164, %v5436
        %v5501 = vadd.f32 %v5166, %v5437
        %v5502 = vadd.f32 %v5055, %v5438
        %v5503 = vadd.f32 %v5057, %v5439
        %v5504 = vadd.f32 %v5168, %v5440
        %v5505 = vadd.f32 %v5170, %v5441
        %v5506 = vadd.f32 %v5061, %v5442
        %v5507 = vadd.f32 %v5063, %v5443
        %v5508 = vadd.f32 %v5174, %v5444
        %v5509 = vadd.f32 %v5176, %v5445
        %v5510 = vadd.f32 %v5065, %v5446
        %v5511 = vadd.f32 %v5067, %v5447
        %v5512 = vadd.f32 %v5178, %v5448
        %v5513 = vadd.f32 %v5180, %v5449
        %v5514 = vadd.f32 %v5071, %v5450
        %v5515 = vadd.f32 %v5073, %v5451
        %v5516 = vadd.f32 %v5184, %v5452
        %v5517 = vadd.f32 %v5186, %v5453
        %v5518 = vadd.f32 %v5075, %v5454
        %v5519 = vadd.f32 %v5077, %v5455
        %v5520 = vadd.f32 %v5188, %v5456
        %v5521 = vadd.f32 %v5190, %v5457
        %v5522 = vadd.f32 %v5081, %v5458
        %v5523 = vadd.f32 %v5083, %v5459
        %v5524 = vadd.f32 %v5194, %v5460
        %v5525 = vadd.f32 %v5196, %v5461
        %v5526 = vadd.f32 %v5085, %v5462
        %v5527 = vadd.f32 %v5087, %v5463
        %v5528 = vadd.f32 %v5198, %v5464
        %v5529 = vadd.f32 %v5200, %v5465
        %v5530 = vadd.f32 %v5091, %v5466
        %v5531 = vadd.f32 %v5093, %v5467
        %v5532 = vadd.f32 %v5204, %v5468
        %v5533 = vadd.f32 %v5206, %v5469
        %v5534 = vadd.f32 %v5095, %v5470
        %v5535 = vadd.f32 %v5097, %v5471
        %v5536 = vadd.f32 %v5208, %v5472
        %v5537 = vadd.f32 %v5210, %v5473
        %v5538 = vadd.f32 %v5101, %v5474
        %v5539 = vadd.f32 %v5103, %v5475
        %v5540 = vadd.f32 %v5214, %v5476
        %v5541 = vadd.f32 %v5216, %v5477
        %v5542 = vadd.f32 %v5105, %v5478
        %v5543 = vadd.f32 %v5107, %v5479
        %v5544 = vadd.f32 %v5218, %v5480
        %v5545 = vadd.f32 %v5220, %v5481
        %v5546 = vadd.f32 %v5111, %v5482
        %v5547 = vadd.f32 %v5113, %v5483
        %v5548 = vadd.f32 %v5224, %v5484
        %v5549 = vadd.f32 %v5226, %v5485
        %v5550 = vadd.f32 %v5115, %v5486
        %v5551 = vadd.f32 %v5117, %v5487
        %v5552 = vadd.f32 %v5228, %v5488
        %v5553 = vadd.f32 %v5230, %v5489
        %v5554 = vadd.f32 %v5121, %v5490
        %v5555 = vadd.f32 %v5123, %v5491
        %v5556 = vadd.f32 %v5234, %v5492
        %v5557 = vadd.f32 %v5236, %v5493
        %v5558 = vadd.f32 %v5125, %v5494
        %v5559 = vadd.f32 %v5127, %v5495
        %v5560 = vadd.f32 %v5238, %v5496
        %v5561 = vadd.f32 %v5240, %v5497
        %v5562 = vmul.f32 %v5498, 0.7978846
        %v5563 = vmul.f32 %v5499, 0.7978846
        %v5564 = vmul.f32 %v5500, 0.7978846
        %v5565 = vmul.f32 %v5501, 0.7978846
        %v5566 = vmul.f32 %v5502, 0.7978846
        %v5567 = vmul.f32 %v5503, 0.7978846
        %v5568 = vmul.f32 %v5504, 0.7978846
        %v5569 = vmul.f32 %v5505, 0.7978846
        %v5570 = vmul.f32 %v5506, 0.7978846
        %v5571 = vmul.f32 %v5507, 0.7978846
        %v5572 = vmul.f32 %v5508, 0.7978846
        %v5573 = vmul.f32 %v5509, 0.7978846
        %v5574 = vmul.f32 %v5510, 0.7978846
        %v5575 = vmul.f32 %v5511, 0.7978846
        %v5576 = vmul.f32 %v5512, 0.7978846
        %v5577 = vmul.f32 %v5513, 0.7978846
        %v5578 = vmul.f32 %v5514, 0.7978846
        %v5579 = vmul.f32 %v5515, 0.7978846
        %v5580 = vmul.f32 %v5516, 0.7978846
        %v5581 = vmul.f32 %v5517, 0.7978846
        %v5582 = vmul.f32 %v5518, 0.7978846
        %v5583 = vmul.f32 %v5519, 0.7978846
        %v5584 = vmul.f32 %v5520, 0.7978846
        %v5585 = vmul.f32 %v5521, 0.7978846
        %v5586 = vmul.f32 %v5522, 0.7978846
        %v5587 = vmul.f32 %v5523, 0.7978846
        %v5588 = vmul.f32 %v5524, 0.7978846
        %v5589 = vmul.f32 %v5525, 0.7978846
        %v5590 = vmul.f32 %v5526, 0.7978846
        %v5591 = vmul.f32 %v5527, 0.7978846
        %v5592 = vmul.f32 %v5528, 0.7978846
        %v5593 = vmul.f32 %v5529, 0.7978846
        %v5594 = vmul.f32 %v5530, 0.7978846
        %v5595 = vmul.f32 %v5531, 0.7978846
        %v5596 = vmul.f32 %v5532, 0.7978846
        %v5597 = vmul.f32 %v5533, 0.7978846
        %v5598 = vmul.f32 %v5534, 0.7978846
        %v5599 = vmul.f32 %v5535, 0.7978846
        %v5600 = vmul.f32 %v5536, 0.7978846
        %v5601 = vmul.f32 %v5537, 0.7978846
        %v5602 = vmul.f32 %v5538, 0.7978846
        %v5603 = vmul.f32 %v5539, 0.7978846
        %v5604 = vmul.f32 %v5540, 0.7978846
        %v5605 = vmul.f32 %v5541, 0.7978846
        %v5606 = vmul.f32 %v5542, 0.7978846
        %v5607 = vmul.f32 %v5543, 0.7978846
        %v5608 = vmul.f32 %v5544, 0.7978846
        %v5609 = vmul.f32 %v5545, 0.7978846
        %v5610 = vmul.f32 %v5546, 0.7978846
        %v5611 = vmul.f32 %v5547, 0.7978846
        %v5612 = vmul.f32 %v5548, 0.7978846
        %v5613 = vmul.f32 %v5549, 0.7978846
        %v5614 = vmul.f32 %v5550, 0.7978846
        %v5615 = vmul.f32 %v5551, 0.7978846
        %v5616 = vmul.f32 %v5552, 0.7978846
        %v5617 = vmul.f32 %v5553, 0.7978846
        %v5618 = vmul.f32 %v5554, 0.7978846
        %v5619 = vmul.f32 %v5555, 0.7978846
        %v5620 = vmul.f32 %v5556, 0.7978846
        %v5621 = vmul.f32 %v5557, 0.7978846
        %v5622 = vmul.f32 %v5558, 0.7978846
        %v5623 = vmul.f32 %v5559, 0.7978846
        %v5624 = vmul.f32 %v5560, 0.7978846
        %v5625 = vmul.f32 %v5561, 0.7978846
        %v5626 = vtanh.pop %v5562
        %v5627 = vtanh.pop %v5563
        %v5628 = vtanh.pop %v5564
        %v5629 = vtanh.pop %v5565
        %v5630 = vtanh.pop %v5566
        %v5631 = vtanh.pop %v5567
        %v5632 = vtanh.pop %v5568
        %v5633 = vtanh.pop %v5569
        %v5634 = vtanh.pop %v5570
        %v5635 = vtanh.pop %v5571
        %v5636 = vtanh.pop %v5572
        %v5637 = vtanh.pop %v5573
        %v5638 = vtanh.pop %v5574
        %v5639 = vtanh.pop %v5575
        %v5640 = vtanh.pop %v5576
        %v5641 = vtanh.pop %v5577
        %v5642 = vtanh.pop %v5578
        %v5643 = vtanh.pop %v5579
        %v5644 = vtanh.pop %v5580
        %v5645 = vtanh.pop %v5581
        %v5646 = vtanh.pop %v5582
        %v5647 = vtanh.pop %v5583
        %v5648 = vtanh.pop %v5584
        %v5649 = vtanh.pop %v5585
        %v5650 = vtanh.pop %v5586
        %v5651 = vtanh.pop %v5587
        %v5652 = vtanh.pop %v5588
        %v5653 = vtanh.pop %v5589
        %v5654 = vtanh.pop %v5590
        %v5655 = vtanh.pop %v5591
        %v5656 = vtanh.pop %v5592
        %v5657 = vtanh.pop %v5593
        %v5658 = vtanh.pop %v5594
        %v5659 = vtanh.pop %v5595
        %v5660 = vtanh.pop %v5596
        %v5661 = vtanh.pop %v5597
        %v5662 = vtanh.pop %v5598
        %v5663 = vtanh.pop %v5599
        %v5664 = vtanh.pop %v5600
        %v5665 = vtanh.pop %v5601
        %v5666 = vtanh.pop %v5602
        %v5667 = vtanh.pop %v5603
        %v5668 = vtanh.pop %v5604
        %v5669 = vtanh.pop %v5605
        %v5670 = vtanh.pop %v5606
        %v5671 = vtanh.pop %v5607
        %v5672 = vtanh.pop %v5608
        %v5673 = vtanh.pop %v5609
        %v5674 = vtanh.pop %v5610
        %v5675 = vtanh.pop %v5611
        %v5676 = vtanh.pop %v5612
        %v5677 = vtanh.pop %v5613
        %v5678 = vtanh.pop %v5614
        %v5679 = vtanh.pop %v5615
        %v5680 = vtanh.pop %v5616
        %v5681 = vtanh.pop %v5617
        %v5682 = vtanh.pop %v5618
        %v5683 = vtanh.pop %v5619
        %v5684 = vtanh.pop %v5620
        %v5685 = vtanh.pop %v5621
        %v5686 = vtanh.pop %v5622
        %v5687 = vtanh.pop %v5623
        %v5688 = vtanh.pop %v5624
        %v5689 = vtanh.pop %v5625
        %v5690 = vadd.f32 %v5626, 1.0
        %v5691 = vadd.f32 %v5627, 1.0
        %v5692 = vadd.f32 %v5628, 1.0
        %v5693 = vadd.f32 %v5629, 1.0
        %v5694 = vadd.f32 %v5630, 1.0
        %v5695 = vadd.f32 %v5631, 1.0
        %v5696 = vadd.f32 %v5632, 1.0
        %v5697 = vadd.f32 %v5633, 1.0
        %v5698 = vadd.f32 %v5634, 1.0
        %v5699 = vadd.f32 %v5635, 1.0
        %v5700 = vadd.f32 %v5636, 1.0
        %v5701 = vadd.f32 %v5637, 1.0
        %v5702 = vadd.f32 %v5638, 1.0
        %v5703 = vadd.f32 %v5639, 1.0
        %v5704 = vadd.f32 %v5640, 1.0
        %v5705 = vadd.f32 %v5641, 1.0
        %v5706 = vadd.f32 %v5642, 1.0
        %v5707 = vadd.f32 %v5643, 1.0
        %v5708 = vadd.f32 %v5644, 1.0
        %v5709 = vadd.f32 %v5645, 1.0
        %v5710 = vadd.f32 %v5646, 1.0
        %v5711 = vadd.f32 %v5647, 1.0
        %v5712 = vadd.f32 %v5648, 1.0
        %v5713 = vadd.f32 %v5649, 1.0
        %v5714 = vadd.f32 %v5650, 1.0
        %v5715 = vadd.f32 %v5651, 1.0
        %v5716 = vadd.f32 %v5652, 1.0
        %v5717 = vadd.f32 %v5653, 1.0
        %v5718 = vadd.f32 %v5654, 1.0
        %v5719 = vadd.f32 %v5655, 1.0
        %v5720 = vadd.f32 %v5656, 1.0
        %v5721 = vadd.f32 %v5657, 1.0
        %v5722 = vadd.f32 %v5658, 1.0
        %v5723 = vadd.f32 %v5659, 1.0
        %v5724 = vadd.f32 %v5660, 1.0
        %v5725 = vadd.f32 %v5661, 1.0
        %v5726 = vadd.f32 %v5662, 1.0
        %v5727 = vadd.f32 %v5663, 1.0
        %v5728 = vadd.f32 %v5664, 1.0
        %v5729 = vadd.f32 %v5665, 1.0
        %v5730 = vadd.f32 %v5666, 1.0
        %v5731 = vadd.f32 %v5667, 1.0
        %v5732 = vadd.f32 %v5668, 1.0
        %v5733 = vadd.f32 %v5669, 1.0
        %v5734 = vadd.f32 %v5670, 1.0
        %v5735 = vadd.f32 %v5671, 1.0
        %v5736 = vadd.f32 %v5672, 1.0
        %v5737 = vadd.f32 %v5673, 1.0
        %v5738 = vadd.f32 %v5674, 1.0
        %v5739 = vadd.f32 %v5675, 1.0
        %v5740 = vadd.f32 %v5676, 1.0
        %v5741 = vadd.f32 %v5677, 1.0
        %v5742 = vadd.f32 %v5678, 1.0
        %v5743 = vadd.f32 %v5679, 1.0
        %v5744 = vadd.f32 %v5680, 1.0
        %v5745 = vadd.f32 %v5681, 1.0
        %v5746 = vadd.f32 %v5682, 1.0
        %v5747 = vadd.f32 %v5683, 1.0
        %v5748 = vadd.f32 %v5684, 1.0
        %v5749 = vadd.f32 %v5685, 1.0
        %v5750 = vadd.f32 %v5686, 1.0
        %v5751 = vadd.f32 %v5687, 1.0
        %v5752 = vadd.f32 %v5688, 1.0
        %v5753 = vadd.f32 %v5689, 1.0
        %v5754 = vmul.f32 %v5242, %v5690
        %v5755 = vmul.f32 %v5243, %v5691
        %v5756 = vmul.f32 %v5244, %v5692
        %v5757 = vmul.f32 %v5245, %v5693
        %v5758 = vmul.f32 %v5246, %v5694
        %v5759 = vmul.f32 %v5247, %v5695
        %v5760 = vmul.f32 %v5248, %v5696
        %v5761 = vmul.f32 %v5249, %v5697
        %v5762 = vmul.f32 %v5250, %v5698
        %v5763 = vmul.f32 %v5251, %v5699
        %v5764 = vmul.f32 %v5252, %v5700
        %v5765 = vmul.f32 %v5253, %v5701
        %v5766 = vmul.f32 %v5254, %v5702
        %v5767 = vmul.f32 %v5255, %v5703
        %v5768 = vmul.f32 %v5256, %v5704
        %v5769 = vmul.f32 %v5257, %v5705
        %v5770 = vmul.f32 %v5258, %v5706
        %v5771 = vmul.f32 %v5259, %v5707
        %v5772 = vmul.f32 %v5260, %v5708
        %v5773 = vmul.f32 %v5261, %v5709
        %v5774 = vmul.f32 %v5262, %v5710
        %v5775 = vmul.f32 %v5263, %v5711
        %v5776 = vmul.f32 %v5264, %v5712
        %v5777 = vmul.f32 %v5265, %v5713
        %v5778 = vmul.f32 %v5266, %v5714
        %v5779 = vmul.f32 %v5267, %v5715
        %v5780 = vmul.f32 %v5268, %v5716
        %v5781 = vmul.f32 %v5269, %v5717
        %v5782 = vmul.f32 %v5270, %v5718
        %v5783 = vmul.f32 %v5271, %v5719
        %v5784 = vmul.f32 %v5272, %v5720
        %v5785 = vmul.f32 %v5273, %v5721
        %v5786 = vmul.f32 %v5274, %v5722
        %v5787 = vmul.f32 %v5275, %v5723
        %v5788 = vmul.f32 %v5276, %v5724
        %v5789 = vmul.f32 %v5277, %v5725
        %v5790 = vmul.f32 %v5278, %v5726
        %v5791 = vmul.f32 %v5279, %v5727
        %v5792 = vmul.f32 %v5280, %v5728
        %v5793 = vmul.f32 %v5281, %v5729
        %v5794 = vmul.f32 %v5282, %v5730
        %v5795 = vmul.f32 %v5283, %v5731
        %v5796 = vmul.f32 %v5284, %v5732
        %v5797 = vmul.f32 %v5285, %v5733
        %v5798 = vmul.f32 %v5286, %v5734
        %v5799 = vmul.f32 %v5287, %v5735
        %v5800 = vmul.f32 %v5288, %v5736
        %v5801 = vmul.f32 %v5289, %v5737
        %v5802 = vmul.f32 %v5290, %v5738
        %v5803 = vmul.f32 %v5291, %v5739
        %v5804 = vmul.f32 %v5292, %v5740
        %v5805 = vmul.f32 %v5293, %v5741
        %v5806 = vmul.f32 %v5294, %v5742
        %v5807 = vmul.f32 %v5295, %v5743
        %v5808 = vmul.f32 %v5296, %v5744
        %v5809 = vmul.f32 %v5297, %v5745
        %v5810 = vmul.f32 %v5298, %v5746
        %v5811 = vmul.f32 %v5299, %v5747
        %v5812 = vmul.f32 %v5300, %v5748
        %v5813 = vmul.f32 %v5301, %v5749
        %v5814 = vmul.f32 %v5302, %v5750
        %v5815 = vmul.f32 %v5303, %v5751
        %v5816 = vmul.f32 %v5304, %v5752
        %v5817 = vmul.f32 %v5305, %v5753
        %v5818 = vpack.c.bf16 %v5758, %v5754
        %v5819 = vpack.c.bf16 %v5759, %v5755
        %v5820 = vpack.c.bf16 %v5760, %v5756
        %v5821 = vpack.c.bf16 %v5761, %v5757
        %v5822 = vpack.c.bf16 %v5766, %v5762
        %v5823 = vpack.c.bf16 %v5767, %v5763
        %v5824 = vpack.c.bf16 %v5768, %v5764
        %v5825 = vpack.c.bf16 %v5769, %v5765
        %v5826 = vpack.c.bf16 %v5774, %v5770
        %v5827 = vpack.c.bf16 %v5775, %v5771
        %v5828 = vpack.c.bf16 %v5776, %v5772
        %v5829 = vpack.c.bf16 %v5777, %v5773
        %v5830 = vpack.c.bf16 %v5782, %v5778
        %v5831 = vpack.c.bf16 %v5783, %v5779
        %v5832 = vpack.c.bf16 %v5784, %v5780
        %v5833 = vpack.c.bf16 %v5785, %v5781
        %v5834 = vpack.c.bf16 %v5790, %v5786
        %v5835 = vpack.c.bf16 %v5791, %v5787
        %v5836 = vpack.c.bf16 %v5792, %v5788
        %v5837 = vpack.c.bf16 %v5793, %v5789
        %v5838 = vpack.c.bf16 %v5798, %v5794
        %v5839 = vpack.c.bf16 %v5799, %v5795
        %v5840 = vpack.c.bf16 %v5800, %v5796
        %v5841 = vpack.c.bf16 %v5801, %v5797
        %v5842 = vpack.c.bf16 %v5806, %v5802
        %v5843 = vpack.c.bf16 %v5807, %v5803
        %v5844 = vpack.c.bf16 %v5808, %v5804
        %v5845 = vpack.c.bf16 %v5809, %v5805
        %v5846 = vpack.c.bf16 %v5814, %v5810
        %v5847 = vpack.c.bf16 %v5815, %v5811
        %v5848 = vpack.c.bf16 %v5816, %v5812
        %v5849 = vpack.c.bf16 %v5817, %v5813
        %v5850 = vld [vmem:[#allocation11] sm:$0xf]
        %v5851 = vld [vmem:[#allocation11 + $0x4] sm:$0xf]
        %v5852 = vld [vmem:[#allocation11 + $0x8] sm:$0xf]
        %v5853 = vld [vmem:[#allocation11 + $0xc] sm:$0xf]
        %v5854 = vld [vmem:[#allocation11 + $0x10] sm:$0xf]
        %v5855 = vld [vmem:[#allocation11 + $0x14] sm:$0xf]
        %v5856 = vld [vmem:[#allocation11 + $0x18] sm:$0xf]
        %v5857 = vld [vmem:[#allocation11 + $0x1c] sm:$0xf]
        %v5858 = vld [vmem:[#allocation11 + $0x20] sm:$0xf]
        %v5859 = vld [vmem:[#allocation11 + $0x24] sm:$0xf]
        %v5860 = vld [vmem:[#allocation11 + $0x28] sm:$0xf]
        %v5861 = vld [vmem:[#allocation11 + $0x2c] sm:$0xf]
        %v5862 = vld [vmem:[#allocation11 + $0x30] sm:$0xf]
        %v5863 = vld [vmem:[#allocation11 + $0x34] sm:$0xf]
        %v5864 = vld [vmem:[#allocation11 + $0x38] sm:$0xf]
        %v5865 = vld [vmem:[#allocation11 + $0x3c] sm:$0xf]
        %v5866 = vld [vmem:[#allocation11 + $0x40] sm:$0xf]
        %v5867 = vld [vmem:[#allocation11 + $0x44] sm:$0xf]
        %v5868 = vld [vmem:[#allocation11 + $0x48] sm:$0xf]
        %v5869 = vld [vmem:[#allocation11 + $0x4c] sm:$0xf]
        %v5870 = vld [vmem:[#allocation11 + $0x50] sm:$0xf]
        %v5871 = vld [vmem:[#allocation11 + $0x54] sm:$0xf]
        %v5872 = vld [vmem:[#allocation11 + $0x58] sm:$0xf]
        %v5873 = vld [vmem:[#allocation11 + $0x5c] sm:$0xf]
        %v5874 = vld [vmem:[#allocation11 + $0x60] sm:$0xf]
        %v5875 = vld [vmem:[#allocation11 + $0x64] sm:$0xf]
        %v5876 = vld [vmem:[#allocation11 + $0x68] sm:$0xf]
        %v5877 = vld [vmem:[#allocation11 + $0x6c] sm:$0xf]
        %v5878 = vld [vmem:[#allocation11 + $0x70] sm:$0xf]
        %v5879 = vld [vmem:[#allocation11 + $0x74] sm:$0xf]
        %v5880 = vld [vmem:[#allocation11 + $0x78] sm:$0xf]
        %v5881 = vld [vmem:[#allocation11 + $0x7c] sm:$0xf]
        %v5882 = vld [vmem:[#allocation11 + $0x80] sm:$0xf]
        %v5883 = vld [vmem:[#allocation11 + $0x84] sm:$0xf]
        %v5884 = vld [vmem:[#allocation11 + $0x88] sm:$0xf]
        %v5885 = vld [vmem:[#allocation11 + $0x8c] sm:$0xf]
        %v5886 = vld [vmem:[#allocation11 + $0x90] sm:$0xf]
        %v5887 = vld [vmem:[#allocation11 + $0x94] sm:$0xf]
        %v5888 = vld [vmem:[#allocation11 + $0x98] sm:$0xf]
        %v5889 = vld [vmem:[#allocation11 + $0x9c] sm:$0xf]
        %v5890 = vld [vmem:[#allocation11 + $0xa0] sm:$0xf]
        %v5891 = vld [vmem:[#allocation11 + $0xa4] sm:$0xf]
        %v5892 = vld [vmem:[#allocation11 + $0xa8] sm:$0xf]
        %v5893 = vld [vmem:[#allocation11 + $0xac] sm:$0xf]
        %v5894 = vld [vmem:[#allocation11 + $0xb0] sm:$0xf]
        %v5895 = vld [vmem:[#allocation11 + $0xb4] sm:$0xf]
        %v5896 = vld [vmem:[#allocation11 + $0xb8] sm:$0xf]
        %v5897 = vld [vmem:[#allocation11 + $0xbc] sm:$0xf]
        %v5898 = vld [vmem:[#allocation11 + $0xc0] sm:$0xf]
        %v5899 = vld [vmem:[#allocation11 + $0xc4] sm:$0xf]
        %v5900 = vld [vmem:[#allocation11 + $0xc8] sm:$0xf]
        %v5901 = vld [vmem:[#allocation11 + $0xcc] sm:$0xf]
        %v5902 = vld [vmem:[#allocation11 + $0xd0] sm:$0xf]
        %v5903 = vld [vmem:[#allocation11 + $0xd4] sm:$0xf]
        %v5904 = vld [vmem:[#allocation11 + $0xd8] sm:$0xf]
        %v5905 = vld [vmem:[#allocation11 + $0xdc] sm:$0xf]
        %v5906 = vld [vmem:[#allocation11 + $0xe0] sm:$0xf]
        %v5907 = vld [vmem:[#allocation11 + $0xe4] sm:$0xf]
        %v5908 = vld [vmem:[#allocation11 + $0xe8] sm:$0xf]
        %v5909 = vld [vmem:[#allocation11 + $0xec] sm:$0xf]
        %v5910 = vld [vmem:[#allocation11 + $0xf0] sm:$0xf]
        %v5911 = vld [vmem:[#allocation11 + $0xf4] sm:$0xf]
        %v5912 = vld [vmem:[#allocation11 + $0xf8] sm:$0xf]
        %v5913 = vld [vmem:[#allocation11 + $0xfc] sm:$0xf]
        %v5914 = vlaneseq
        %v5915 = vshrl.u32 %v5914, 7
        %v5916 = vsub.s32 0, %v5915
        %v5917 = vrot.slane %v492, %v5916
        %v5982 = vunpack.c.l.b16 %v5850
        %v5983 = vunpack.c.l.b16 %v5851
        %v5984 = vunpack.c.l.b16 %v5852
        %v5985 = vunpack.c.l.b16 %v5853
        %v5986 = vunpack.c.l.b16 %v5854
        %v5987 = vunpack.c.l.b16 %v5855
        %v5988 = vunpack.c.l.b16 %v5856
        %v5989 = vunpack.c.l.b16 %v5857
        %v5990 = vunpack.c.l.b16 %v5858
        %v5991 = vunpack.c.l.b16 %v5859
        %v5992 = vunpack.c.l.b16 %v5860
        %v5993 = vunpack.c.l.b16 %v5861
        %v5994 = vunpack.c.l.b16 %v5862
        %v5995 = vunpack.c.l.b16 %v5863
        %v5996 = vunpack.c.l.b16 %v5864
        %v5997 = vunpack.c.l.b16 %v5865
        %v5998 = vunpack.c.l.b16 %v5866
        %v5999 = vunpack.c.l.b16 %v5867
        %v6000 = vunpack.c.l.b16 %v5868
        %v6001 = vunpack.c.l.b16 %v5869
        %v6002 = vunpack.c.l.b16 %v5870
        %v6003 = vunpack.c.l.b16 %v5871
        %v6004 = vunpack.c.l.b16 %v5872
        %v6005 = vunpack.c.l.b16 %v5873
        %v6006 = vunpack.c.l.b16 %v5874
        %v6007 = vunpack.c.l.b16 %v5875
        %v6008 = vunpack.c.l.b16 %v5876
        %v6009 = vunpack.c.l.b16 %v5877
        %v6010 = vunpack.c.l.b16 %v5878
        %v6011 = vunpack.c.l.b16 %v5879
        %v6012 = vunpack.c.l.b16 %v5880
        %v6013 = vunpack.c.l.b16 %v5881
        %v6014 = vunpack.c.l.b16 %v5882
        %v6015 = vunpack.c.l.b16 %v5883
        %v6016 = vunpack.c.l.b16 %v5884
        %v6017 = vunpack.c.l.b16 %v5885
        %v6018 = vunpack.c.l.b16 %v5886
        %v6019 = vunpack.c.l.b16 %v5887
        %v6020 = vunpack.c.l.b16 %v5888
        %v6021 = vunpack.c.l.b16 %v5889
        %v6022 = vunpack.c.l.b16 %v5890
        %v6023 = vunpack.c.l.b16 %v5891
        %v6024 = vunpack.c.l.b16 %v5892
        %v6025 = vunpack.c.l.b16 %v5893
        %v6026 = vunpack.c.l.b16 %v5894
        %v6027 = vunpack.c.l.b16 %v5895
        %v6028 = vunpack.c.l.b16 %v5896
        %v6029 = vunpack.c.l.b16 %v5897
        %v6030 = vunpack.c.l.b16 %v5898
        %v6031 = vunpack.c.l.b16 %v5899
        %v6032 = vunpack.c.l.b16 %v5900
        %v6033 = vunpack.c.l.b16 %v5901
        %v6034 = vunpack.c.l.b16 %v5902
        %v6035 = vunpack.c.l.b16 %v5903
        %v6036 = vunpack.c.l.b16 %v5904
        %v6037 = vunpack.c.l.b16 %v5905
        %v6038 = vunpack.c.l.b16 %v5906
        %v6039 = vunpack.c.l.b16 %v5907
        %v6040 = vunpack.c.l.b16 %v5908
        %v6041 = vunpack.c.l.b16 %v5909
        %v6042 = vunpack.c.l.b16 %v5910
        %v6043 = vunpack.c.l.b16 %v5911
        %v6044 = vunpack.c.l.b16 %v5912
        %v6045 = vunpack.c.l.b16 %v5913
        %v6046 = vpack.c.b16 %v5983, %v5982
        %v6047 = vpack.c.b16 %v5985, %v5984
        %v6048 = vpack.c.b16 %v5987, %v5986
        %v6049 = vpack.c.b16 %v5989, %v5988
        %v6050 = vpack.c.b16 %v5991, %v5990
        %v6051 = vpack.c.b16 %v5993, %v5992
        %v6052 = vpack.c.b16 %v5995, %v5994
        %v6053 = vpack.c.b16 %v5997, %v5996
        %v6054 = vpack.c.b16 %v5999, %v5998
        %v6055 = vpack.c.b16 %v6001, %v6000
        %v6056 = vpack.c.b16 %v6003, %v6002
        %v6057 = vpack.c.b16 %v6005, %v6004
        %v6058 = vpack.c.b16 %v6007, %v6006
        %v6059 = vpack.c.b16 %v6009, %v6008
        %v6060 = vpack.c.b16 %v6011, %v6010
        %v6061 = vpack.c.b16 %v6013, %v6012
        %v6062 = vpack.c.b16 %v6015, %v6014
        %v6063 = vpack.c.b16 %v6017, %v6016
        %v6064 = vpack.c.b16 %v6019, %v6018
        %v6065 = vpack.c.b16 %v6021, %v6020
        %v6066 = vpack.c.b16 %v6023, %v6022
        %v6067 = vpack.c.b16 %v6025, %v6024
        %v6068 = vpack.c.b16 %v6027, %v6026
        %v6069 = vpack.c.b16 %v6029, %v6028
        %v6070 = vpack.c.b16 %v6031, %v6030
        %v6071 = vpack.c.b16 %v6033, %v6032
        %v6072 = vpack.c.b16 %v6035, %v6034
        %v6073 = vpack.c.b16 %v6037, %v6036
        %v6074 = vpack.c.b16 %v6039, %v6038
        %v6075 = vpack.c.b16 %v6041, %v6040
        %v6076 = vpack.c.b16 %v6043, %v6042
        %v6077 = vpack.c.b16 %v6045, %v6044
        %6110 = vmatprep.subr.bf16.mxu0 0
        %6111 = vmatpush1.bf16.msra.mxu0 %v6046
        %6112 = vmatprep.subr.bf16.mxu0 0
        %6113 = vmatpush1.bf16.msra.mxu0 %v6047
        %6114 = vmatprep.subr.bf16.mxu0 0
        %6115 = vmatpush1.bf16.msra.mxu0 %v6048
        %6116 = vmatprep.subr.bf16.mxu0 0
        %6117 = vmatpush1.bf16.msra.mxu0 %v6049
        %6118 = vmatprep.subr.bf16.mxu0 0
        %6119 = vmatpush1.bf16.msra.mxu0 %v6050
        %6120 = vmatprep.subr.bf16.mxu0 0
        %6121 = vmatpush1.bf16.msra.mxu0 %v6051
        %6122 = vmatprep.subr.bf16.mxu0 0
        %6123 = vmatpush1.bf16.msra.mxu0 %v6052
        %6124 = vmatprep.subr.bf16.mxu0 0
        %6125 = vmatpush1.bf16.msra.mxu0 %v6053
        %6126 = vmatprep.subr.bf16.mxu0 0
        %6127 = vmatpush1.bf16.msra.mxu0 %v6054
        %6128 = vmatprep.subr.bf16.mxu0 0
        %6129 = vmatpush1.bf16.msra.mxu0 %v6055
        %6130 = vmatprep.subr.bf16.mxu0 0
        %6131 = vmatpush1.bf16.msra.mxu0 %v6056
        %6132 = vmatprep.subr.bf16.mxu0 0
        %6133 = vmatpush1.bf16.msra.mxu0 %v6057
        %6134 = vmatprep.subr.bf16.mxu0 0
        %6135 = vmatpush1.bf16.msra.mxu0 %v6058
        %6136 = vmatprep.subr.bf16.mxu0 0
        %6137 = vmatpush1.bf16.msra.mxu0 %v6059
        %6138 = vmatprep.subr.bf16.mxu0 0
        %6139 = vmatpush1.bf16.msra.mxu0 %v6060
        %6140 = vmatprep.subr.bf16.mxu0 0
        %6141 = vmatpush1.bf16.msra.mxu0 %v6061
        %6142 = vmatprep.mubr.bf16.mxu0 %v5819
        %6143 = vmatmul.mubr.bf16.gmra.mrb[0].mxu0 %v5818
        %v6144 = vpop.f32.mrb[0].mxu0
        %v6145 = vadd.f32 %v5917, %v6144
        %v6146 = vpop.f32.mrb[0].mxu0
        %v6147 = vpop.f32.mrb[0].mxu0
        %v6148 = vadd.f32 %v5917, %v6147
        %v6149 = vpop.f32.mrb[0].mxu0
        %6150 = vmatprep.mubr.bf16.mxu0 %v5823
        %6151 = vmatmul.mubr.bf16.gmra.mrb[0].mxu0 %v5822
        %v6152 = vpop.f32.mrb[0].mxu0
        %v6153 = vadd.f32 %v5917, %v6152
        %v6154 = vpop.f32.mrb[0].mxu0
        %v6155 = vpop.f32.mrb[0].mxu0
        %v6156 = vadd.f32 %v5917, %v6155
        %v6157 = vpop.f32.mrb[0].mxu0
        %6158 = vmatprep.mubr.bf16.mxu0 %v5827
        %6159 = vmatmul.mubr.bf16.gmra.mrb[0].mxu0 %v5826
        %v6160 = vpop.f32.mrb[0].mxu0
        %v6161 = vadd.f32 %v5917, %v6160
        %v6162 = vpop.f32.mrb[0].mxu0
        %v6163 = vpop.f32.mrb[0].mxu0
        %v6164 = vadd.f32 %v5917, %v6163
        %v6165 = vpop.f32.mrb[0].mxu0
        %6166 = vmatprep.mubr.bf16.mxu0 %v5831
        %6167 = vmatmul.mubr.bf16.gmra.mrb[0].mxu0 %v5830
        %v6168 = vpop.f32.mrb[0].mxu0
        %v6169 = vadd.f32 %v5917, %v6168
        %v6170 = vpop.f32.mrb[0].mxu0
        %v6171 = vpop.f32.mrb[0].mxu0
        %v6172 = vadd.f32 %v5917, %v6171
        %v6173 = vpop.f32.mrb[0].mxu0
        %6174 = vmatprep.mubr.bf16.mxu0 %v5835
        %6175 = vmatmul.mubr.bf16.gmra.mrb[0].mxu0 %v5834
        %v6176 = vpop.f32.mrb[0].mxu0
        %v6177 = vadd.f32 %v5917, %v6176
        %v6178 = vpop.f32.mrb[0].mxu0
        %v6179 = vpop.f32.mrb[0].mxu0
        %v6180 = vadd.f32 %v5917, %v6179
        %v6181 = vpop.f32.mrb[0].mxu0
        %6182 = vmatprep.mubr.bf16.mxu0 %v5839
        %6183 = vmatmul.mubr.bf16.gmra.mrb[0].mxu0 %v5838
        %v6184 = vpop.f32.mrb[0].mxu0
        %v6185 = vadd.f32 %v5917, %v6184
        %v6186 = vpop.f32.mrb[0].mxu0
        %v6187 = vpop.f32.mrb[0].mxu0
        %v6188 = vadd.f32 %v5917, %v6187
        %v6189 = vpop.f32.mrb[0].mxu0
        %6190 = vmatprep.mubr.bf16.mxu0 %v5843
        %6191 = vmatmul.mubr.bf16.gmra.mrb[0].mxu0 %v5842
        %v6192 = vpop.f32.mrb[0].mxu0
        %v6193 = vadd.f32 %v5917, %v6192
        %v6194 = vpop.f32.mrb[0].mxu0
        %v6195 = vpop.f32.mrb[0].mxu0
        %v6196 = vadd.f32 %v5917, %v6195
        %v6197 = vpop.f32.mrb[0].mxu0
        %6198 = vmatprep.mubr.bf16.mxu0 %v5847
        %6199 = vmatmul.mubr.bf16.gmra.mrb[0].mxu0 %v5846
        %v6200 = vpop.f32.mrb[0].mxu0
        %v6201 = vadd.f32 %v5917, %v6200
        %v6202 = vpop.f32.mrb[0].mxu0
        %v6203 = vpop.f32.mrb[0].mxu0
        %v6204 = vadd.f32 %v5917, %v6203
        %v6205 = vpop.f32.mrb[0].mxu0
        %6206 = vdwg.mxu0
        %6207 = vmatprep.subr.bf16.mxu0 0
        %6208 = vmatpush1.bf16.msra.mxu0 %v6062
        %6209 = vmatprep.subr.bf16.mxu0 0
        %6210 = vmatpush1.bf16.msra.mxu0 %v6063
        %6211 = vmatprep.subr.bf16.mxu0 0
        %6212 = vmatpush1.bf16.msra.mxu0 %v6064
        %6213 = vmatprep.subr.bf16.mxu0 0
        %6214 = vmatpush1.bf16.msra.mxu0 %v6065
        %6215 = vmatprep.subr.bf16.mxu0 0
        %6216 = vmatpush1.bf16.msra.mxu0 %v6066
        %6217 = vmatprep.subr.bf16.mxu0 0
        %6218 = vmatpush1.bf16.msra.mxu0 %v6067
        %6219 = vmatprep.subr.bf16.mxu0 0
        %6220 = vmatpush1.bf16.msra.mxu0 %v6068
        %6221 = vmatprep.subr.bf16.mxu0 0
        %6222 = vmatpush1.bf16.msra.mxu0 %v6069
        %6223 = vmatprep.subr.bf16.mxu0 0
        %6224 = vmatpush1.bf16.msra.mxu0 %v6070
        %6225 = vmatprep.subr.bf16.mxu0 0
        %6226 = vmatpush1.bf16.msra.mxu0 %v6071
        %6227 = vmatprep.subr.bf16.mxu0 0
        %6228 = vmatpush1.bf16.msra.mxu0 %v6072
        %6229 = vmatprep.subr.bf16.mxu0 0
        %6230 = vmatpush1.bf16.msra.mxu0 %v6073
        %6231 = vmatprep.subr.bf16.mxu0 0
        %6232 = vmatpush1.bf16.msra.mxu0 %v6074
        %6233 = vmatprep.subr.bf16.mxu0 0
        %6234 = vmatpush1.bf16.msra.mxu0 %v6075
        %6235 = vmatprep.subr.bf16.mxu0 0
        %6236 = vmatpush1.bf16.msra.mxu0 %v6076
        %6237 = vmatprep.subr.bf16.mxu0 0
        %6238 = vmatpush1.bf16.msra.mxu0 %v6077
        %6239 = vmatprep.mubr.bf16.mxu0 %v5821
        %6240 = vmatmul.mubr.bf16.gmra.mrb[0].mxu0 %v5820
        %v6241 = vpop.f32.mrb[0].mxu0
        %v6242 = vadd.f32 %v6145, %v6241
        %v6243 = vpop.f32.mrb[0].mxu0
        %v6244 = vpop.f32.mrb[0].mxu0
        %v6245 = vadd.f32 %v6148, %v6244
        %v6246 = vpop.f32.mrb[0].mxu0
        %6247 = vmatprep.mubr.bf16.mxu0 %v5825
        %6248 = vmatmul.mubr.bf16.gmra.mrb[0].mxu0 %v5824
        %v6249 = vpop.f32.mrb[0].mxu0
        %v6250 = vadd.f32 %v6153, %v6249
        %v6251 = vpop.f32.mrb[0].mxu0
        %v6252 = vpop.f32.mrb[0].mxu0
        %v6253 = vadd.f32 %v6156, %v6252
        %v6254 = vpop.f32.mrb[0].mxu0
        %6255 = vmatprep.mubr.bf16.mxu0 %v5829
        %6256 = vmatmul.mubr.bf16.gmra.mrb[0].mxu0 %v5828
        %v6257 = vpop.f32.mrb[0].mxu0
        %v6258 = vadd.f32 %v6161, %v6257
        %v6259 = vpop.f32.mrb[0].mxu0
        %v6260 = vpop.f32.mrb[0].mxu0
        %v6261 = vadd.f32 %v6164, %v6260
        %v6262 = vpop.f32.mrb[0].mxu0
        %6263 = vmatprep.mubr.bf16.mxu0 %v5833
        %6264 = vmatmul.mubr.bf16.gmra.mrb[0].mxu0 %v5832
        %v6265 = vpop.f32.mrb[0].mxu0
        %v6266 = vadd.f32 %v6169, %v6265
        %v6267 = vpop.f32.mrb[0].mxu0
        %v6268 = vpop.f32.mrb[0].mxu0
        %v6269 = vadd.f32 %v6172, %v6268
        %v6270 = vpop.f32.mrb[0].mxu0
        %6271 = vmatprep.mubr.bf16.mxu0 %v5837
        %6272 = vmatmul.mubr.bf16.gmra.mrb[0].mxu0 %v5836
        %v6273 = vpop.f32.mrb[0].mxu0
        %v6274 = vadd.f32 %v6177, %v6273
        %v6275 = vpop.f32.mrb[0].mxu0
        %v6276 = vpop.f32.mrb[0].mxu0
        %v6277 = vadd.f32 %v6180, %v6276
        %v6278 = vpop.f32.mrb[0].mxu0
        %6279 = vmatprep.mubr.bf16.mxu0 %v5841
        %6280 = vmatmul.mubr.bf16.gmra.mrb[0].mxu0 %v5840
        %v6281 = vpop.f32.mrb[0].mxu0
        %v6282 = vadd.f32 %v6185, %v6281
        %v6283 = vpop.f32.mrb[0].mxu0
        %v6284 = vpop.f32.mrb[0].mxu0
        %v6285 = vadd.f32 %v6188, %v6284
        %v6286 = vpop.f32.mrb[0].mxu0
        %6287 = vmatprep.mubr.bf16.mxu0 %v5845
        %6288 = vmatmul.mubr.bf16.gmra.mrb[0].mxu0 %v5844
        %v6289 = vpop.f32.mrb[0].mxu0
        %v6290 = vadd.f32 %v6193, %v6289
        %v6291 = vpop.f32.mrb[0].mxu0
        %v6292 = vpop.f32.mrb[0].mxu0
        %v6293 = vadd.f32 %v6196, %v6292
        %v6294 = vpop.f32.mrb[0].mxu0
        %6295 = vmatprep.mubr.bf16.mxu0 %v5849
        %6296 = vmatmul.mubr.bf16.gmra.mrb[0].mxu0 %v5848
        %v6297 = vpop.f32.mrb[0].mxu0
        %v6298 = vadd.f32 %v6201, %v6297
        %v6299 = vpop.f32.mrb[0].mxu0
        %v6300 = vpop.f32.mrb[0].mxu0
        %v6301 = vadd.f32 %v6204, %v6300
        %v6302 = vpop.f32.mrb[0].mxu0
        %6303 = vdwg.mxu0
        %v6304 = vadd.f32 %v4562, %v6242
        %v6305 = vadd.f32 %v4563, %v6245
        %v6306 = vadd.f32 %v4564, %v6250
        %v6307 = vadd.f32 %v4565, %v6253
        %v6308 = vadd.f32 %v4566, %v6258
        %v6309 = vadd.f32 %v4567, %v6261
        %v6310 = vadd.f32 %v4568, %v6266
        %v6311 = vadd.f32 %v4569, %v6269
        %v6312 = vadd.f32 %v4570, %v6274
        %v6313 = vadd.f32 %v4571, %v6277
        %v6314 = vadd.f32 %v4572, %v6282
        %v6315 = vadd.f32 %v4573, %v6285
        %v6316 = vadd.f32 %v4574, %v6290
        %v6317 = vadd.f32 %v4575, %v6293
        %v6318 = vadd.f32 %v4576, %v6298
        %v6319 = vadd.f32 %v4577, %v6301
        %6320 = vst [vmem:[%s450] sm:$0xff] %v6304
        %6321 = vst [vmem:[%s450 + $0x8] sm:$0xff] %v6305
        %6322 = vst [vmem:[%s450 + $0x10] sm:$0xff] %v6306
        %6323 = vst [vmem:[%s450 + $0x18] sm:$0xff] %v6307
        %6324 = vst [vmem:[%s450 + $0x20] sm:$0xff] %v6308
        %6325 = vst [vmem:[%s450 + $0x28] sm:$0xff] %v6309
        %6326 = vst [vmem:[%s450 + $0x30] sm:$0xff] %v6310
        %6327 = vst [vmem:[%s450 + $0x38] sm:$0xff] %v6311
        %6328 = vst [vmem:[%s450 + $0x40] sm:$0xff] %v6312
        %6329 = vst [vmem:[%s450 + $0x48] sm:$0xff] %v6313
        %6330 = vst [vmem:[%s450 + $0x50] sm:$0xff] %v6314
        %6331 = vst [vmem:[%s450 + $0x58] sm:$0xff] %v6315
        %6332 = vst [vmem:[%s450 + $0x60] sm:$0xff] %v6316
        %6333 = vst [vmem:[%s450 + $0x68] sm:$0xff] %v6317
        %6334 = vst [vmem:[%s450 + $0x70] sm:$0xff] %v6318
        %6335 = vst [vmem:[%s450 + $0x78] sm:$0xff] %v6319
        %s6336 = sand.u32 %s238, 1
        %s6337 = scalar_lea.sflag [#allocation4], %s6336
        %s6338 = sand.u32 %s238, 1
        %s6339 = smul.addr %s6338, 128
        %s6340 = scalar_lea.vmem [#allocation13], %s6339
        // Predicated region
        $region81: #{tpu_custom_call.1} parent=55 // pred_check
          %p6341 = pneg %p248
        $region82: #{tpu_custom_call.1} parent=55 // pred_check_branch
          %6343 = sbr.rel (%p6341) target = $region84
        $region83: #{tpu_custom_call.1} parent=55 // pred_region
          %s6344 = smul.u32 4, %s31
          %s6346 = ssub.s32 2048, 2048
          %6347 = vsyncadd %s6337, %s6346
          %s6348 = smul.addr %s6344, 4
          %s6349 = smul.addr %s6348, 128
          %s6350 = scalar_lea.hbm %s9, %s6349
          %s6351 = sshll.u32 %s6340, 4
          %s6352 = int_to_ptr.vmem [resolvable:$true] %s6351
          %6357 = dma.vmem_to_hbm [thread:$0]  %s6352, 2048, %s6350, %s6337, 128, 128, 8
        $region84: #{tpu_custom_call.1} parent=55 // pred_fallthru
          _
      $region56: #{tpu_custom_call.1} parent=5 // pred_fallthru
        _
      %p6358 = scmp.le.s32.totalorder 2, %s26
      // Predicated region
      $region85: #{tpu_custom_call.1} parent=5 // pred_check
        %p6359 = pneg %p6358
      $region86: #{tpu_custom_call.1} parent=5 // pred_check_branch
        %6361 = sbr.rel (%p6359) target = $region88
      $region87: #{tpu_custom_call.1} parent=5 // pred_region
        %s6362 = ssub.s32 %s26, 2
        // Predicated region
        $region89: #{tpu_custom_call.1} parent=87 // pred_check
          %p6363 = pneg %p254
        $region90: #{tpu_custom_call.1} parent=87 // pred_check_branch
          %6365 = sbr.rel (%p6363) target = $region92
        $region91: #{tpu_custom_call.1} parent=87 // pred_region
          %s6366 = sand.u32 %s239, 1
          %s6367 = scalar_lea.sflag [#allocation4], %s6366
          %s6368 = sand.u32 %s239, 1
          %s6369 = smul.addr %s6368, 128
          %s6370 = scalar_lea.vmem [#allocation13], %s6369
          %6371 = dma.done %s6367, 2048
        $region92: #{tpu_custom_call.1} parent=87 // pred_fallthru
          _
      $region88: #{tpu_custom_call.1} parent=5 // pred_fallthru
        _
    $region6: #{tpu_custom_call.1} parent=1 // loop_footer
      %s30 = sadd.s32 1, %s26
    $region7: #{tpu_custom_call.1} parent=1 // loop_footer_branch
      %25 = sbr.rel target = $region3
    $region8: #{tpu_custom_call.1} parent=1 // loop_exit
      _
    %6372 = vsyncpa [#allocation3], 1
    %s6373 = scalar_lea.sflag [#allocation3], 1
    %6374 = vsyncpa %s6373, 1
    %6375 = vsyncpa [#allocation6], 1
    %s6376 = scalar_lea.sflag [#allocation6], 1
    %6377 = vsyncpa %s6376, 1
    %6378 = vsyncpa [#allocation9], 1
    %6379 = vsyncpa [#allocation12], 1
    %6380 = vsyncpa [#allocation4], 1
    %s6381 = scalar_lea.sflag [#allocation4], 1
    %6382 = vsyncpa %s6381, 1

</llo_original>
